<compile_context>
chip_gen: v7x
topology: tpu7x:2x2x1
jax: 0.10.0
libtpu: 0.0.40
codegen_flags: <defaults>
</compile_context>

<pallas_src>
import functools

import jax
import jax.numpy as jnp
from jax import lax
from jax.experimental import pallas as pl
from jax.experimental.pallas import tpu as pltpu


_MATMUL_DTYPE = jnp.bfloat16  # MXU operand dtype (f32 accumulation everywhere)


# ---------------------------------------------------------------------------
# Pallas kernels
# ---------------------------------------------------------------------------
def _backbone_kernel(
    p_ref, wp_ref, bp_ref, pos_ref,
    wqkv_ref, bqkv_ref, wo_ref, bo_ref, g1_ref, be1_ref,
    w1_ref, b1_ref, w2_ref, b2_ref, g2_ref, be2_ref,
    o_ref, *, num_layers, bc, n, h, dh, eps,
):
    """Patch embedding + positional encoding + full encoder stack, fused."""
    f32 = jnp.float32
    cdt = _MATMUL_DTYPE
    d = h * dh
    t = bc * n
    scale = 1.0 / (dh ** 0.5)

    # ---- patch embedding + positional encoding ----
    z = jnp.dot(p_ref[...].astype(cdt), wp_ref[...],
                preferred_element_type=f32) + bp_ref[...]
    # Tile the (N, D) positional table over the batch*channel axis in VMEM.
    z = z + jnp.concatenate([pos_ref[...]] * bc, axis=0)

    # ---- transformer encoder stack (activations stay resident in VMEM) ----
    # TODO(synk): for production sizes, tile the (B*C*N) token axis with a grid
    # and a cross-core BatchNorm reduction (v7x megacore); the demo config fits
    # whole in VMEM so a single invocation is used.
    for l in range(num_layers):
        # Fused QKV projection: one (T, D) @ (D, 3D) matmul.
        qkv = jnp.dot(z.astype(cdt), wqkv_ref[l],
                      preferred_element_type=f32) + bqkv_ref[l]
        qkv3 = qkv.reshape(bc, n, 3 * d)

        # Multi-head attention: BC-batched einsums, static loop over heads only.
        heads = []
        for hh in range(h):
            qh = qkv3[:, :, hh * dh:(hh + 1) * dh].astype(cdt)
            kh = qkv3[:, :, d + hh * dh:d + (hh + 1) * dh].astype(cdt)
            vh = qkv3[:, :, 2 * d + hh * dh:2 * d + (hh + 1) * dh].astype(cdt)
            s = jnp.einsum("bnd,bmd->bnm", qh, kh,
                           preferred_element_type=f32) * scale
            s = s - jnp.max(s, axis=-1, keepdims=True)
            p = jnp.exp(s)
            p = p * pl.reciprocal(jnp.sum(p, axis=-1, keepdims=True), approx=True)
            heads.append(jnp.einsum("bnm,bmd->bnd", p.astype(cdt), vh,
                                    preferred_element_type=f32))
        ctx = jnp.concatenate(heads, axis=-1).reshape(t, d)
        attn = jnp.dot(ctx.astype(cdt), wo_ref[l],
                       preferred_element_type=f32) + bo_ref[l]

        # Residual + BatchNorm1d (batch statistics over all tokens, per feature).
        src = z + attn
        mu = jnp.mean(src, axis=0, keepdims=True)
        var = jnp.mean((src - mu) ** 2, axis=0, keepdims=True)
        src = (src - mu) * lax.rsqrt(var + eps) * g1_ref[l] + be1_ref[l]

        # FFN.
        hid = jnp.dot(src.astype(cdt), w1_ref[l],
                      preferred_element_type=f32) + b1_ref[l]
        # TODO(synk): PyTorch nn.GELU defaults to exact erf; tanh approximation
        # is used here for the TPU EUP lowering.
        hid = jax.nn.gelu(hid, approximate=True)
        ffn = jnp.dot(hid.astype(cdt), w2_ref[l],
                      preferred_element_type=f32) + b2_ref[l]

        # Residual + BatchNorm1d.
        src2 = src + ffn
        mu2 = jnp.mean(src2, axis=0, keepdims=True)
        var2 = jnp.mean((src2 - mu2) ** 2, axis=0, keepdims=True)
        z = (src2 - mu2) * lax.rsqrt(var2 + eps) * g2_ref[l] + be2_ref[l]

    o_ref[...] = z


def _head_kernel(z_ref, wh_ref, bh_ref, mean_ref, std_ref, aw_ref, ab_ref,
                 o_ref, *, eps):
    """Flatten head (weights pre-permuted at init) + RevIN denormalization."""
    y = jnp.dot(z_ref[...].astype(_MATMUL_DTYPE), wh_ref[...],
                preferred_element_type=jnp.float32) + bh_ref[...]
    y = (y - ab_ref[...]) / (aw_ref[...] + eps * eps)
    o_ref[...] = y * std_ref[...] + mean_ref[...]


# ---------------------------------------------------------------------------
# Parameters (deterministic synthetic init)
# ---------------------------------------------------------------------------
def init_params(key, *, num_channels, seq_len, pred_len, patch_dim, stride,
                num_enc_layers, d_model, num_heads, d_ff):
    del num_heads
    num_patches = (seq_len - patch_dim) // stride + 2  # +1 for end replication pad
    keys = jax.random.split(key, 4 + num_enc_layers)

    def dense(k, fan_in, fan_out):
        kw, kb = jax.random.split(k)
        w = jax.random.normal(kw, (fan_in, fan_out), jnp.float32) * 0.02
        b = jax.random.normal(kb, (1, fan_out), jnp.float32) * 0.02
        return w, b

    W_p, b_p = dense(keys[0], patch_dim, d_model)
    pos = jax.random.uniform(keys[1], (num_patches, d_model), jnp.float32, -0.02, 0.02)

    Wqkv, bqkv, Wo, bo, W1, b1, W2, b2 = [], [], [], [], [], [], [], []
    g1, be1, g2, be2 = [], [], [], []
    for l in range(num_enc_layers):
        lk = jax.random.split(keys[2 + l], 6)
        wq, bq_ = dense(lk[0], d_model, d_model)
        wk, bk_ = dense(lk[1], d_model, d_model)
        wv, bv_ = dense(lk[2], d_model, d_model)
        wo_, bo_ = dense(lk[3], d_model, d_model)
        w1_, b1_ = dense(lk[4], d_model, d_ff)
        w2_, b2_ = dense(lk[5], d_ff, d_model)
        # Fused QKV projection (matches nn.MultiheadAttention in_proj).
        Wqkv.append(jnp.concatenate([wq, wk, wv], axis=1))
        bqkv.append(jnp.concatenate([bq_, bk_, bv_], axis=1))
        Wo.append(wo_); bo.append(bo_)
        W1.append(w1_); b1.append(b1_)
        W2.append(w2_); b2.append(b2_)
        g1.append(jnp.ones((1, d_model), jnp.float32))
        be1.append(jnp.zeros((1, d_model), jnp.float32))
        g2.append(jnp.ones((1, d_model), jnp.float32))
        be2.append(jnp.zeros((1, d_model), jnp.float32))

    W_head, b_head = dense(keys[2 + num_enc_layers], d_model * num_patches, pred_len)
    # Fold the PyTorch (d_model, num_patches) flatten permutation into W_head
    # so the runtime flatten is a free row-major reshape of the (patch, d_model)
    # token layout (no transpose / relayout at runtime).
    W_head = (W_head.reshape(d_model, num_patches, pred_len)
              .transpose(1, 0, 2).reshape(num_patches * d_model, pred_len))

    stack = lambda xs: jnp.stack(xs, axis=0)
    mm = lambda w: w.astype(_MATMUL_DTYPE)  # MXU operands stored in bf16
    return dict(
        W_p=mm(W_p), b_p=b_p, pos=pos,
        Wqkv=mm(stack(Wqkv)), bqkv=stack(bqkv),
        Wo=mm(stack(Wo)), bo=stack(bo),
        g1=stack(g1), be1=stack(be1),
        W1=mm(stack(W1)), b1=stack(b1),
        W2=mm(stack(W2)), b2=stack(b2),
        g2=stack(g2), be2=stack(be2),
        W_head=mm(W_head), b_head=b_head,
        revin_w=jnp.ones((num_channels,), jnp.float32),
        revin_b=jnp.zeros((num_channels,), jnp.float32),
    )


# ---------------------------------------------------------------------------
# Forward pass
# ---------------------------------------------------------------------------
def patchtst_forward(params, x, *, patch_dim, stride, num_heads):
    B, C, L = x.shape
    eps_revin = 1e-5
    eps_bn = 1e-5

    # ---- RevIN normalize (per (batch, channel) series; cheap one-time glue) ----
    mean = jnp.mean(x, axis=-1, keepdims=True)                    # (B, C, 1)
    var = jnp.mean((x - mean) ** 2, axis=-1, keepdims=True)
    std = jnp.sqrt(var + eps_revin)
    xn = (x - mean) / std
    xn = xn * params["revin_w"].reshape(1, C, 1) + params["revin_b"].reshape(1, C, 1)

    # ---- Patching: replication-pad end by `stride`, then unfold ----
    x_pad = jnp.concatenate(
        [xn, jnp.repeat(xn[..., -1:], stride, axis=-1)], axis=-1)
    num_patches = (L - patch_dim) // stride + 2
    patches = jnp.stack(
        [x_pad[..., i * stride:i * stride + patch_dim] for i in range(num_patches)],
        axis=2)                                                   # (B, C, N, P)

    BC, N = B * C, num_patches
    D = params["W_p"].shape[1]
    dh = D // num_heads
    T = BC * N
    p2 = patches.reshape(T, patch_dim)

    num_layers = params["Wqkv"].shape[0]
    cparams = pltpu.CompilerParams(vmem_limit_bytes=64 * 1024 * 1024)

    # ---- Fused backbone: embed + pos + all encoder layers (one Pallas call) ----
    kern = functools.partial(
        _backbone_kernel, num_layers=num_layers, bc=BC, n=N,
        h=num_heads, dh=dh, eps=eps_bn)
    z = pl.pallas_call(
        kern,
        out_shape=jax.ShapeDtypeStruct((T, D), jnp.float32),
        compiler_params=cparams,
    )(p2, params["W_p"], params["b_p"], params["pos"],
      params["Wqkv"], params["bqkv"], params["Wo"], params["bo"],
      params["g1"], params["be1"], params["W1"], params["b1"],
      params["W2"], params["b2"], params["g2"], params["be2"])

    # ---- Flatten head + RevIN denormalize (tiny second Pallas call) ----
    # W_head was pre-permuted at init, so this reshape is a free row-major view
    # (no transpose materialization between the two kernels).
    zf = z.reshape(BC, N * D)
    mean_bc = mean.reshape(BC, 1)
    std_bc = std.reshape(BC, 1)
    aw_bc = jnp.tile(params["revin_w"].reshape(1, C), (B, 1)).reshape(BC, 1)
    ab_bc = jnp.tile(params["revin_b"].reshape(1, C), (B, 1)).reshape(BC, 1)

    pred_len = params["W_head"].shape[1]
    out = pl.pallas_call(
        functools.partial(_head_kernel, eps=eps_revin),
        out_shape=jax.ShapeDtypeStruct((BC, pred_len), jnp.float32),
        compiler_params=cparams,
    )(zf, params["W_head"], params["b_head"], mean_bc, std_bc, aw_bc, ab_bc)
    return out.reshape(B, C, pred_len)


# ---------------------------------------------------------------------------
if __name__ == "__main__":
    cfg = dict(num_channels=4, seq_len=64, pred_len=16, patch_dim=16, stride=8,
               num_enc_layers=2, d_model=32, num_heads=4, d_ff=64)
    batch = 2

    key = jax.random.PRNGKey(0)
    pkey, xkey = jax.random.split(key)
    params = init_params(pkey, **cfg)
    x = jax.random.normal(xkey, (batch, cfg["num_channels"], cfg["seq_len"]),
                          jnp.float32)

    fwd = jax.jit(functools.partial(
        patchtst_forward,
        patch_dim=cfg["patch_dim"], stride=cfg["stride"],
        num_heads=cfg["num_heads"]))

    out = fwd(params, x)
    out = jax.block_until_ready(out)

    assert out.shape == (batch, cfg["num_channels"], cfg["pred_len"]), out.shape
    assert bool(jnp.all(jnp.isfinite(out)))
    print("KERNEL_OK")
</pallas_src>

<mosaic_0001>
module attributes {stable_mosaic.version = 11 : i64} {
  func.func @_head_kernel(%arg0: memref<8x256xf32, #tpu.memory_space<vmem>>, %arg1: memref<256x16xbf16, #tpu.memory_space<vmem>>, %arg2: memref<1x16xf32, #tpu.memory_space<vmem>>, %arg3: memref<8x1xf32, #tpu.memory_space<vmem>>, %arg4: memref<8x1xf32, #tpu.memory_space<vmem>>, %arg5: memref<8x1xf32, #tpu.memory_space<vmem>>, %arg6: memref<8x1xf32, #tpu.memory_space<vmem>>, %arg7: memref<8x16xf32, #tpu.memory_space<vmem>>) attributes {dimension_semantics = [], scalar_prefetch = 0 : i64, scratch_operands = 0 : i64, tpu.core_type = #tpu.core_type<tc>} {
    %c0 = arith.constant 0 : index
    %c0_0 = arith.constant 0 : index
    %0 = vector.load %arg0[%c0, %c0_0] : memref<8x256xf32, #tpu.memory_space<vmem>>, vector<8x256xf32>
    %1 = arith.truncf %0 : vector<8x256xf32> to vector<8x256xbf16>
    %c0_1 = arith.constant 0 : index
    %c0_2 = arith.constant 0 : index
    %2 = vector.load %arg1[%c0_1, %c0_2] : memref<256x16xbf16, #tpu.memory_space<vmem>>, vector<256x16xbf16>
    %cst = arith.constant dense<0.000000e+00> : vector<8x16xf32>
    %3 = tpu.matmul %1, %2, %cst {dimension_numbers = #tpu.dot_dimension_numbers<[1], [0], [0], [1], [0, 0, 1, 1], [], []>} : vector<8x256xbf16>, vector<256x16xbf16>, vector<8x16xf32> -> vector<8x16xf32>
    %c0_3 = arith.constant 0 : index
    %c0_4 = arith.constant 0 : index
    %4 = vector.load %arg2[%c0_3, %c0_4] : memref<1x16xf32, #tpu.memory_space<vmem>>, vector<1x16xf32>
    %5 = vector.broadcast %4 : vector<1x16xf32> to vector<8x16xf32>
    %6 = arith.addf %3, %5 : vector<8x16xf32>
    %c0_5 = arith.constant 0 : index
    %c0_6 = arith.constant 0 : index
    %7 = vector.load %arg6[%c0_5, %c0_6] : memref<8x1xf32, #tpu.memory_space<vmem>>, vector<8x1xf32>
    %8 = vector.broadcast %7 : vector<8x1xf32> to vector<8x16xf32>
    %9 = arith.subf %6, %8 : vector<8x16xf32>
    %c0_7 = arith.constant 0 : index
    %c0_8 = arith.constant 0 : index
    %10 = vector.load %arg5[%c0_7, %c0_8] : memref<8x1xf32, #tpu.memory_space<vmem>>, vector<8x1xf32>
    %cst_9 = arith.constant 1.000000e-10 : f32
    %11 = vector.broadcast %cst_9 : f32 to vector<8x1xf32>
    %12 = arith.addf %10, %11 : vector<8x1xf32>
    %13 = vector.broadcast %12 : vector<8x1xf32> to vector<8x16xf32>
    %14 = arith.divf %9, %13 : vector<8x16xf32>
    %c0_10 = arith.constant 0 : index
    %c0_11 = arith.constant 0 : index
    %15 = vector.load %arg4[%c0_10, %c0_11] : memref<8x1xf32, #tpu.memory_space<vmem>>, vector<8x1xf32>
    %16 = vector.broadcast %15 : vector<8x1xf32> to vector<8x16xf32>
    %17 = arith.mulf %14, %16 : vector<8x16xf32>
    %c0_12 = arith.constant 0 : index
    %c0_13 = arith.constant 0 : index
    %18 = vector.load %arg3[%c0_12, %c0_13] : memref<8x1xf32, #tpu.memory_space<vmem>>, vector<8x1xf32>
    %19 = vector.broadcast %18 : vector<8x1xf32> to vector<8x16xf32>
    %20 = arith.addf %17, %19 : vector<8x16xf32>
    %c0_14 = arith.constant 0 : index
    %c0_15 = arith.constant 0 : index
    %21 = vector.load %arg7[%c0_14, %c0_15] : memref<8x16xf32, #tpu.memory_space<vmem>>, vector<8x16xf32>
    tpu.vector_store %arg7[%c0_14, %c0_15], %20 {strides = array<i32>} : memref<8x16xf32, #tpu.memory_space<vmem>>, vector<8x16xf32>,
    return
  }
}

module attributes {stable_mosaic.version = 11 : i64} {
  func.func @_backbone_kernel(%arg0: memref<64x16xf32, #tpu.memory_space<vmem>>, %arg1: memref<16x32xbf16, #tpu.memory_space<vmem>>, %arg2: memref<1x32xf32, #tpu.memory_space<vmem>>, %arg3: memref<8x32xf32, #tpu.memory_space<vmem>>, %arg4: memref<2x32x96xbf16, #tpu.memory_space<vmem>>, %arg5: memref<2x1x96xf32, #tpu.memory_space<vmem>>, %arg6: memref<2x32x32xbf16, #tpu.memory_space<vmem>>, %arg7: memref<2x1x32xf32, #tpu.memory_space<vmem>>, %arg8: memref<2x1x32xf32, #tpu.memory_space<vmem>>, %arg9: memref<2x1x32xf32, #tpu.memory_space<vmem>>, %arg10: memref<2x32x64xbf16, #tpu.memory_space<vmem>>, %arg11: memref<2x1x64xf32, #tpu.memory_space<vmem>>, %arg12: memref<2x64x32xbf16, #tpu.memory_space<vmem>>, %arg13: memref<2x1x32xf32, #tpu.memory_space<vmem>>, %arg14: memref<2x1x32xf32, #tpu.memory_space<vmem>>, %arg15: memref<2x1x32xf32, #tpu.memory_space<vmem>>, %arg16: memref<64x32xf32, #tpu.memory_space<vmem>>) attributes {dimension_semantics = [], scalar_prefetch = 0 : i64, scratch_operands = 0 : i64, tpu.core_type = #tpu.core_type<tc>} {
    %c0 = arith.constant 0 : index
    %c0_0 = arith.constant 0 : index
    %0 = vector.load %arg0[%c0, %c0_0] : memref<64x16xf32, #tpu.memory_space<vmem>>, vector<64x16xf32>
    %1 = arith.truncf %0 : vector<64x16xf32> to vector<64x16xbf16>
    %c0_1 = arith.constant 0 : index
    %c0_2 = arith.constant 0 : index
    %2 = vector.load %arg1[%c0_1, %c0_2] : memref<16x32xbf16, #tpu.memory_space<vmem>>, vector<16x32xbf16>
    %cst = arith.constant dense<0.000000e+00> : vector<64x32xf32>
    %3 = tpu.matmul %1, %2, %cst {dimension_numbers = #tpu.dot_dimension_numbers<[1], [0], [0], [1], [0, 0, 1, 1], [], []>} : vector<64x16xbf16>, vector<16x32xbf16>, vector<64x32xf32> -> vector<64x32xf32>
    %c0_3 = arith.constant 0 : index
    %c0_4 = arith.constant 0 : index
    %4 = vector.load %arg2[%c0_3, %c0_4] : memref<1x32xf32, #tpu.memory_space<vmem>>, vector<1x32xf32>
    %5 = vector.broadcast %4 : vector<1x32xf32> to vector<64x32xf32>
    %6 = arith.addf %3, %5 : vector<64x32xf32>
    %c0_5 = arith.constant 0 : index
    %c0_6 = arith.constant 0 : index
    %7 = vector.load %arg3[%c0_5, %c0_6] : memref<8x32xf32, #tpu.memory_space<vmem>>, vector<8x32xf32>
    %8 = tpu.concatenate %7, %7, %7, %7, %7, %7, %7, %7 in 0 : vector<8x32xf32>, vector<8x32xf32>, vector<8x32xf32>, vector<8x32xf32>, vector<8x32xf32>, vector<8x32xf32>, vector<8x32xf32>, vector<8x32xf32> -> vector<64x32xf32>
    %9 = arith.addf %6, %8 : vector<64x32xf32>
    %10 = arith.truncf %9 : vector<64x32xf32> to vector<64x32xbf16>
    %c0_7 = arith.constant 0 : index
    %c0_8 = arith.constant 0 : index
    %c0_9 = arith.constant 0 : index
    %11 = vector.load %arg4[%c0_7, %c0_8, %c0_9] : memref<2x32x96xbf16, #tpu.memory_space<vmem>>, vector<1x32x96xbf16>
    %12 = vector.shape_cast %11 : vector<1x32x96xbf16> to vector<32x96xbf16>
    %cst_10 = arith.constant dense<0.000000e+00> : vector<64x96xf32>
    %13 = tpu.matmul %10, %12, %cst_10 {dimension_numbers = #tpu.dot_dimension_numbers<[1], [0], [0], [1], [0, 0, 1, 1], [], []>} : vector<64x32xbf16>, vector<32x96xbf16>, vector<64x96xf32> -> vector<64x96xf32>
    %c0_11 = arith.constant 0 : index
    %c0_12 = arith.constant 0 : index
    %c0_13 = arith.constant 0 : index
    %14 = vector.load %arg5[%c0_11, %c0_12, %c0_13] : memref<2x1x96xf32, #tpu.memory_space<vmem>>, vector<1x1x96xf32>
    %15 = vector.shape_cast %14 : vector<1x1x96xf32> to vector<1x96xf32>
    %16 = vector.broadcast %15 : vector<1x96xf32> to vector<64x96xf32>
    %17 = arith.addf %13, %16 : vector<64x96xf32>
    %18 = vector.shape_cast %17 : vector<64x96xf32> to vector<8x8x96xf32>
    %19 = vector.extract_strided_slice %18 {offsets = [0, 0, 0], sizes = [8, 8, 8], strides = [1, 1, 1]} : vector<8x8x96xf32> to vector<8x8x8xf32>
    %20 = arith.truncf %19 : vector<8x8x8xf32> to vector<8x8x8xbf16>
    %21 = vector.extract_strided_slice %18 {offsets = [0, 0, 32], sizes = [8, 8, 8], strides = [1, 1, 1]} : vector<8x8x96xf32> to vector<8x8x8xf32>
    %22 = arith.truncf %21 : vector<8x8x8xf32> to vector<8x8x8xbf16>
    %23 = vector.extract_strided_slice %18 {offsets = [0, 0, 64], sizes = [8, 8, 8], strides = [1, 1, 1]} : vector<8x8x96xf32> to vector<8x8x8xf32>
    %24 = arith.truncf %23 : vector<8x8x8xf32> to vector<8x8x8xbf16>
    "tpu.trace_start"() <{level = 10 : i32, message = "bnd,bmd->bnm"}> : () -> ()
    %cst_14 = arith.constant dense<0.000000e+00> : vector<8x8x8xf32>
    %25 = tpu.matmul %20, %22, %cst_14 {dimension_numbers = #tpu.dot_dimension_numbers<[2], [2], [1], [1], [0, 0, 0, 1, 1, 1], [0], [0]>} : vector<8x8x8xbf16>, vector<8x8x8xbf16>, vector<8x8x8xf32> -> vector<8x8x8xf32>
    "tpu.trace_stop"() : () -> ()
    %cst_15 = arith.constant 0.353553385 : f32
    %26 = vector.broadcast %cst_15 : f32 to vector<8x8x8xf32>
    %27 = arith.mulf %25, %26 : vector<8x8x8xf32>
    %cst_16 = arith.constant dense<0xFF800000> : vector<8x8xf32>
    %28 = vector.multi_reduction <maximumf>, %27, %cst_16 [2] : vector<8x8x8xf32> to vector<8x8xf32>
    %29 = vector.shape_cast %28 : vector<8x8xf32> to vector<8x8x1xf32>
    %30 = vector.broadcast %29 : vector<8x8x1xf32> to vector<8x8x8xf32>
    %31 = arith.subf %27, %30 : vector<8x8x8xf32>
    %32 = math.exp %31 : vector<8x8x8xf32>
    %cst_17 = arith.constant dense<0.000000e+00> : vector<8x8xf32>
    %33 = vector.multi_reduction <add>, %32, %cst_17 [2] : vector<8x8x8xf32> to vector<8x8xf32>
    %34 = vector.shape_cast %33 : vector<8x8xf32> to vector<8x8x1xf32>
    %35 = tpu.reciprocal %34 {approx = true} : vector<8x8x1xf32> -> vector<8x8x1xf32>
    %36 = vector.broadcast %35 : vector<8x8x1xf32> to vector<8x8x8xf32>
    %37 = arith.mulf %32, %36 : vector<8x8x8xf32>
    %38 = arith.truncf %37 : vector<8x8x8xf32> to vector<8x8x8xbf16>
    "tpu.trace_start"() <{level = 10 : i32, message = "bnm,bmd->bnd"}> : () -> ()
    %cst_18 = arith.constant dense<0.000000e+00> : vector<8x8x8xf32>
    %39 = tpu.matmul %38, %24, %cst_18 {dimension_numbers = #tpu.dot_dimension_numbers<[2], [1], [1], [2], [0, 0, 0, 1, 1, 2], [0], [0]>} : vector<8x8x8xbf16>, vector<8x8x8xbf16>, vector<8x8x8xf32> -> vector<8x8x8xf32>
    "tpu.trace_stop"() : () -> ()
    %40 = vector.extract_strided_slice %18 {offsets = [0, 0, 8], sizes = [8, 8, 8], strides = [1, 1, 1]} : vector<8x8x96xf32> to vector<8x8x8xf32>
    %41 = arith.truncf %40 : vector<8x8x8xf32> to vector<8x8x8xbf16>
    %42 = vector.extract_strided_slice %18 {offsets = [0, 0, 40], sizes = [8, 8, 8], strides = [1, 1, 1]} : vector<8x8x96xf32> to vector<8x8x8xf32>
    %43 = arith.truncf %42 : vector<8x8x8xf32> to vector<8x8x8xbf16>
    %44 = vector.extract_strided_slice %18 {offsets = [0, 0, 72], sizes = [8, 8, 8], strides = [1, 1, 1]} : vector<8x8x96xf32> to vector<8x8x8xf32>
    %45 = arith.truncf %44 : vector<8x8x8xf32> to vector<8x8x8xbf16>
    "tpu.trace_start"() <{level = 10 : i32, message = "bnd,bmd->bnm"}> : () -> ()
    %cst_19 = arith.constant dense<0.000000e+00> : vector<8x8x8xf32>
    %46 = tpu.matmul %41, %43, %cst_19 {dimension_numbers = #tpu.dot_dimension_numbers<[2], [2], [1], [1], [0, 0, 0, 1, 1, 1], [0], [0]>} : vector<8x8x8xbf16>, vector<8x8x8xbf16>, vector<8x8x8xf32> -> vector<8x8x8xf32>
    "tpu.trace_stop"() : () -> ()
    %cst_20 = arith.constant 0.353553385 : f32
    %47 = vector.broadcast %cst_20 : f32 to vector<8x8x8xf32>
    %48 = arith.mulf %46, %47 : vector<8x8x8xf32>
    %cst_21 = arith.constant dense<0xFF800000> : vector<8x8xf32>
    %49 = vector.multi_reduction <maximumf>, %48, %cst_21 [2] : vector<8x8x8xf32> to vector<8x8xf32>
    %50 = vector.shape_cast %49 : vector<8x8xf32> to vector<8x8x1xf32>
    %51 = vector.broadcast %50 : vector<8x8x1xf32> to vector<8x8x8xf32>
    %52 = arith.subf %48, %51 : vector<8x8x8xf32>
    %53 = math.exp %52 : vector<8x8x8xf32>
    %cst_22 = arith.constant dense<0.000000e+00> : vector<8x8xf32>
    %54 = vector.multi_reduction <add>, %53, %cst_22 [2] : vector<8x8x8xf32> to vector<8x8xf32>
    %55 = vector.shape_cast %54 : vector<8x8xf32> to vector<8x8x1xf32>
    %56 = tpu.reciprocal %55 {approx = true} : vector<8x8x1xf32> -> vector<8x8x1xf32>
    %57 = vector.broadcast %56 : vector<8x8x1xf32> to vector<8x8x8xf32>
    %58 = arith.mulf %53, %57 : vector<8x8x8xf32>
    %59 = arith.truncf %58 : vector<8x8x8xf32> to vector<8x8x8xbf16>
    "tpu.trace_start"() <{level = 10 : i32, message = "bnm,bmd->bnd"}> : () -> ()
    %cst_23 = arith.constant dense<0.000000e+00> : vector<8x8x8xf32>
    %60 = tpu.matmul %59, %45, %cst_23 {dimension_numbers = #tpu.dot_dimension_numbers<[2], [1], [1], [2], [0, 0, 0, 1, 1, 2], [0], [0]>} : vector<8x8x8xbf16>, vector<8x8x8xbf16>, vector<8x8x8xf32> -> vector<8x8x8xf32>
    "tpu.trace_stop"() : () -> ()
    %61 = vector.extract_strided_slice %18 {offsets = [0, 0, 16], sizes = [8, 8, 8], strides = [1, 1, 1]} : vector<8x8x96xf32> to vector<8x8x8xf32>
    %62 = arith.truncf %61 : vector<8x8x8xf32> to vector<8x8x8xbf16>
    %63 = vector.extract_strided_slice %18 {offsets = [0, 0, 48], sizes = [8, 8, 8], strides = [1, 1, 1]} : vector<8x8x96xf32> to vector<8x8x8xf32>
    %64 = arith.truncf %63 : vector<8x8x8xf32> to vector<8x8x8xbf16>
    %65 = vector.extract_strided_slice %18 {offsets = [0, 0, 80], sizes = [8, 8, 8], strides = [1, 1, 1]} : vector<8x8x96xf32> to vector<8x8x8xf32>
    %66 = arith.truncf %65 : vector<8x8x8xf32> to vector<8x8x8xbf16>
    "tpu.trace_start"() <{level = 10 : i32, message = "bnd,bmd->bnm"}> : () -> ()
    %cst_24 = arith.constant dense<0.000000e+00> : vector<8x8x8xf32>
    %67 = tpu.matmul %62, %64, %cst_24 {dimension_numbers = #tpu.dot_dimension_numbers<[2], [2], [1], [1], [0, 0, 0, 1, 1, 1], [0], [0]>} : vector<8x8x8xbf16>, vector<8x8x8xbf16>, vector<8x8x8xf32> -> vector<8x8x8xf32>
    "tpu.trace_stop"() : () -> ()
    %cst_25 = arith.constant 0.353553385 : f32
    %68 = vector.broadcast %cst_25 : f32 to vector<8x8x8xf32>
    %69 = arith.mulf %67, %68 : vector<8x8x8xf32>
    %cst_26 = arith.constant dense<0xFF800000> : vector<8x8xf32>
    %70 = vector.multi_reduction <maximumf>, %69, %cst_26 [2] : vector<8x8x8xf32> to vector<8x8xf32>
    %71 = vector.shape_cast %70 : vector<8x8xf32> to vector<8x8x1xf32>
    %72 = vector.broadcast %71 : vector<8x8x1xf32> to vector<8x8x8xf32>
    %73 = arith.subf %69, %72 : vector<8x8x8xf32>
    %74 = math.exp %73 : vector<8x8x8xf32>
    %cst_27 = arith.constant dense<0.000000e+00> : vector<8x8xf32>
    %75 = vector.multi_reduction <add>, %74, %cst_27 [2] : vector<8x8x8xf32> to vector<8x8xf32>
    %76 = vector.shape_cast %75 : vector<8x8xf32> to vector<8x8x1xf32>
    %77 = tpu.reciprocal %76 {approx = true} : vector<8x8x1xf32> -> vector<8x8x1xf32>
    %78 = vector.broadcast %77 : vector<8x8x1xf32> to vector<8x8x8xf32>
    %79 = arith.mulf %74, %78 : vector<8x8x8xf32>
    %80 = arith.truncf %79 : vector<8x8x8xf32> to vector<8x8x8xbf16>
    "tpu.trace_start"() <{level = 10 : i32, message = "bnm,bmd->bnd"}> : () -> ()
    %cst_28 = arith.constant dense<0.000000e+00> : vector<8x8x8xf32>
    %81 = tpu.matmul %80, %66, %cst_28 {dimension_numbers = #tpu.dot_dimension_numbers<[2], [1], [1], [2], [0, 0, 0, 1, 1, 2], [0], [0]>} : vector<8x8x8xbf16>, vector<8x8x8xbf16>, vector<8x8x8xf32> -> vector<8x8x8xf32>
    "tpu.trace_stop"() : () -> ()
    %82 = vector.extract_strided_slice %18 {offsets = [0, 0, 24], sizes = [8, 8, 8], strides = [1, 1, 1]} : vector<8x8x96xf32> to vector<8x8x8xf32>
    %83 = arith.truncf %82 : vector<8x8x8xf32> to vector<8x8x8xbf16>
    %84 = vector.extract_strided_slice %18 {offsets = [0, 0, 56], sizes = [8, 8, 8], strides = [1, 1, 1]} : vector<8x8x96xf32> to vector<8x8x8xf32>
    %85 = arith.truncf %84 : vector<8x8x8xf32> to vector<8x8x8xbf16>
    %86 = vector.extract_strided_slice %18 {offsets = [0, 0, 88], sizes = [8, 8, 8], strides = [1, 1, 1]} : vector<8x8x96xf32> to vector<8x8x8xf32>
    %87 = arith.truncf %86 : vector<8x8x8xf32> to vector<8x8x8xbf16>
    "tpu.trace_start"() <{level = 10 : i32, message = "bnd,bmd->bnm"}> : () -> ()
    %cst_29 = arith.constant dense<0.000000e+00> : vector<8x8x8xf32>
    %88 = tpu.matmul %83, %85, %cst_29 {dimension_numbers = #tpu.dot_dimension_numbers<[2], [2], [1], [1], [0, 0, 0, 1, 1, 1], [0], [0]>} : vector<8x8x8xbf16>, vector<8x8x8xbf16>, vector<8x8x8xf32> -> vector<8x8x8xf32>
    "tpu.trace_stop"() : () -> ()
    %cst_30 = arith.constant 0.353553385 : f32
    %89 = vector.broadcast %cst_30 : f32 to vector<8x8x8xf32>
    %90 = arith.mulf %88, %89 : vector<8x8x8xf32>
    %cst_31 = arith.constant dense<0xFF800000> : vector<8x8xf32>
    %91 = vector.multi_reduction <maximumf>, %90, %cst_31 [2] : vector<8x8x8xf32> to vector<8x8xf32>
    %92 = vector.shape_cast %91 : vector<8x8xf32> to vector<8x8x1xf32>
    %93 = vector.broadcast %92 : vector<8x8x1xf32> to vector<8x8x8xf32>
    %94 = arith.subf %90, %93 : vector<8x8x8xf32>
    %95 = math.exp %94 : vector<8x8x8xf32>
    %cst_32 = arith.constant dense<0.000000e+00> : vector<8x8xf32>
    %96 = vector.multi_reduction <add>, %95, %cst_32 [2] : vector<8x8x8xf32> to vector<8x8xf32>
    %97 = vector.shape_cast %96 : vector<8x8xf32> to vector<8x8x1xf32>
    %98 = tpu.reciprocal %97 {approx = true} : vector<8x8x1xf32> -> vector<8x8x1xf32>
    %99 = vector.broadcast %98 : vector<8x8x1xf32> to vector<8x8x8xf32>
    %100 = arith.mulf %95, %99 : vector<8x8x8xf32>
    %101 = arith.truncf %100 : vector<8x8x8xf32> to vector<8x8x8xbf16>
    "tpu.trace_start"() <{level = 10 : i32, message = "bnm,bmd->bnd"}> : () -> ()
    %cst_33 = arith.constant dense<0.000000e+00> : vector<8x8x8xf32>
    %102 = tpu.matmul %101, %87, %cst_33 {dimension_numbers = #tpu.dot_dimension_numbers<[2], [1], [1], [2], [0, 0, 0, 1, 1, 2], [0], [0]>} : vector<8x8x8xbf16>, vector<8x8x8xbf16>, vector<8x8x8xf32> -> vector<8x8x8xf32>
    "tpu.trace_stop"() : () -> ()
    %103 = tpu.concatenate %39, %60, %81, %102 in 2 : vector<8x8x8xf32>, vector<8x8x8xf32>, vector<8x8x8xf32>, vector<8x8x8xf32> -> vector<8x8x32xf32>
    %104 = vector.shape_cast %103 : vector<8x8x32xf32> to vector<64x32xf32>
    %105 = arith.truncf %104 : vector<64x32xf32> to vector<64x32xbf16>
    %c0_34 = arith.constant 0 : index
    %c0_35 = arith.constant 0 : index
    %c0_36 = arith.constant 0 : index
    %106 = vector.load %arg6[%c0_34, %c0_35, %c0_36] : memref<2x32x32xbf16, #tpu.memory_space<vmem>>, vector<1x32x32xbf16>
    %107 = vector.shape_cast %106 : vector<1x32x32xbf16> to vector<32x32xbf16>
    %cst_37 = arith.constant dense<0.000000e+00> : vector<64x32xf32>
    %108 = tpu.matmul %105, %107, %cst_37 {dimension_numbers = #tpu.dot_dimension_numbers<[1], [0], [0], [1], [0, 0, 1, 1], [], []>} : vector<64x32xbf16>, vector<32x32xbf16>, vector<64x32xf32> -> vector<64x32xf32>
    %c0_38 = arith.constant 0 : index
    %c0_39 = arith.constant 0 : index
    %c0_40 = arith.constant 0 : index
    %109 = vector.load %arg7[%c0_38, %c0_39, %c0_40] : memref<2x1x32xf32, #tpu.memory_space<vmem>>, vector<1x1x32xf32>
    %110 = vector.shape_cast %109 : vector<1x1x32xf32> to vector<1x32xf32>
    %111 = vector.broadcast %110 : vector<1x32xf32> to vector<64x32xf32>
    %112 = arith.addf %108, %111 : vector<64x32xf32>
    %113 = arith.addf %9, %112 : vector<64x32xf32>
    %cst_41 = arith.constant dense<0.000000e+00> : vector<32xf32>
    %114 = vector.multi_reduction <add>, %113, %cst_41 [0] : vector<64x32xf32> to vector<32xf32>
    %115 = vector.shape_cast %114 : vector<32xf32> to vector<1x32xf32>
    %cst_42 = arith.constant 6.400000e+01 : f32
    %116 = vector.broadcast %cst_42 : f32 to vector<1x32xf32>
    %117 = arith.divf %115, %116 : vector<1x32xf32>
    %118 = vector.broadcast %117 : vector<1x32xf32> to vector<64x32xf32>
    %119 = arith.subf %113, %118 : vector<64x32xf32>
    %120 = arith.mulf %119, %119 : vector<64x32xf32>
    %cst_43 = arith.constant dense<0.000000e+00> : vector<32xf32>
    %121 = vector.multi_reduction <add>, %120, %cst_43 [0] : vector<64x32xf32> to vector<32xf32>
    %122 = vector.shape_cast %121 : vector<32xf32> to vector<1x32xf32>
    %cst_44 = arith.constant 6.400000e+01 : f32
    %123 = vector.broadcast %cst_44 : f32 to vector<1x32xf32>
    %124 = arith.divf %122, %123 : vector<1x32xf32>
    %125 = vector.broadcast %117 : vector<1x32xf32> to vector<64x32xf32>
    %126 = arith.subf %113, %125 : vector<64x32xf32>
    %cst_45 = arith.constant 9.99999974E-6 : f32
    %127 = vector.broadcast %cst_45 : f32 to vector<1x32xf32>
    %128 = arith.addf %124, %127 : vector<1x32xf32>
    %129 = math.rsqrt %128 : vector<1x32xf32>
    %130 = vector.broadcast %129 : vector<1x32xf32> to vector<64x32xf32>
    %131 = arith.mulf %126, %130 : vector<64x32xf32>
    %c0_46 = arith.constant 0 : index
    %c0_47 = arith.constant 0 : index
    %c0_48 = arith.constant 0 : index
    %132 = vector.load %arg8[%c0_46, %c0_47, %c0_48] : memref<2x1x32xf32, #tpu.memory_space<vmem>>, vector<1x1x32xf32>
    %133 = vector.shape_cast %132 : vector<1x1x32xf32> to vector<1x32xf32>
    %134 = vector.broadcast %133 : vector<1x32xf32> to vector<64x32xf32>
    %135 = arith.mulf %131, %134 : vector<64x32xf32>
    %c0_49 = arith.constant 0 : index
    %c0_50 = arith.constant 0 : index
    %c0_51 = arith.constant 0 : index
    %136 = vector.load %arg9[%c0_49, %c0_50, %c0_51] : memref<2x1x32xf32, #tpu.memory_space<vmem>>, vector<1x1x32xf32>
    %137 = vector.shape_cast %136 : vector<1x1x32xf32> to vector<1x32xf32>
    %138 = vector.broadcast %137 : vector<1x32xf32> to vector<64x32xf32>
    %139 = arith.addf %135, %138 : vector<64x32xf32>
    %140 = arith.truncf %139 : vector<64x32xf32> to vector<64x32xbf16>
    %c0_52 = arith.constant 0 : index
    %c0_53 = arith.constant 0 : index
    %c0_54 = arith.constant 0 : index
    %141 = vector.load %arg10[%c0_52, %c0_53, %c0_54] : memref<2x32x64xbf16, #tpu.memory_space<vmem>>, vector<1x32x64xbf16>
    %142 = vector.shape_cast %141 : vector<1x32x64xbf16> to vector<32x64xbf16>
    %cst_55 = arith.constant dense<0.000000e+00> : vector<64x64xf32>
    %143 = tpu.matmul %140, %142, %cst_55 {dimension_numbers = #tpu.dot_dimension_numbers<[1], [0], [0], [1], [0, 0, 1, 1], [], []>} : vector<64x32xbf16>, vector<32x64xbf16>, vector<64x64xf32> -> vector<64x64xf32>
    %c0_56 = arith.constant 0 : index
    %c0_57 = arith.constant 0 : index
    %c0_58 = arith.constant 0 : index
    %144 = vector.load %arg11[%c0_56, %c0_57, %c0_58] : memref<2x1x64xf32, #tpu.memory_space<vmem>>, vector<1x1x64xf32>
    %145 = vector.shape_cast %144 : vector<1x1x64xf32> to vector<1x64xf32>
    %146 = vector.broadcast %145 : vector<1x64xf32> to vector<64x64xf32>
    %147 = arith.addf %143, %146 : vector<64x64xf32>
    %148 = arith.mulf %147, %147 : vector<64x64xf32>
    %149 = arith.mulf %147, %148 : vector<64x64xf32>
    %cst_59 = arith.constant 4.471500e-02 : f32
    %150 = vector.broadcast %cst_59 : f32 to vector<64x64xf32>
    %151 = arith.mulf %150, %149 : vector<64x64xf32>
    %152 = arith.addf %147, %151 : vector<64x64xf32>
    %cst_60 = arith.constant 0.797884583 : f32
    %153 = vector.broadcast %cst_60 : f32 to vector<64x64xf32>
    %154 = arith.mulf %153, %152 : vector<64x64xf32>
    %155 = math.tanh %154 : vector<64x64xf32>
    %cst_61 = arith.constant 1.000000e+00 : f32
    %156 = vector.broadcast %cst_61 : f32 to vector<64x64xf32>
    %157 = arith.addf %156, %155 : vector<64x64xf32>
    %cst_62 = arith.constant 5.000000e-01 : f32
    %158 = vector.broadcast %cst_62 : f32 to vector<64x64xf32>
    %159 = arith.mulf %158, %157 : vector<64x64xf32>
    %160 = arith.mulf %147, %159 : vector<64x64xf32>
    %161 = arith.truncf %160 : vector<64x64xf32> to vector<64x64xbf16>
    %c0_63 = arith.constant 0 : index
    %c0_64 = arith.constant 0 : index
    %c0_65 = arith.constant 0 : index
    %162 = vector.load %arg12[%c0_63, %c0_64, %c0_65] : memref<2x64x32xbf16, #tpu.memory_space<vmem>>, vector<1x64x32xbf16>
    %163 = vector.shape_cast %162 : vector<1x64x32xbf16> to vector<64x32xbf16>
    %cst_66 = arith.constant dense<0.000000e+00> : vector<64x32xf32>
    %164 = tpu.matmul %161, %163, %cst_66 {dimension_numbers = #tpu.dot_dimension_numbers<[1], [0], [0], [1], [0, 0, 1, 1], [], []>} : vector<64x64xbf16>, vector<64x32xbf16>, vector<64x32xf32> -> vector<64x32xf32>
    %c0_67 = arith.constant 0 : index
    %c0_68 = arith.constant 0 : index
    %c0_69 = arith.constant 0 : index
    %165 = vector.load %arg13[%c0_67, %c0_68, %c0_69] : memref<2x1x32xf32, #tpu.memory_space<vmem>>, vector<1x1x32xf32>
    %166 = vector.shape_cast %165 : vector<1x1x32xf32> to vector<1x32xf32>
    %167 = vector.broadcast %166 : vector<1x32xf32> to vector<64x32xf32>
    %168 = arith.addf %164, %167 : vector<64x32xf32>
    %169 = arith.addf %139, %168 : vector<64x32xf32>
    %cst_70 = arith.constant dense<0.000000e+00> : vector<32xf32>
    %170 = vector.multi_reduction <add>, %169, %cst_70 [0] : vector<64x32xf32> to vector<32xf32>
    %171 = vector.shape_cast %170 : vector<32xf32> to vector<1x32xf32>
    %cst_71 = arith.constant 6.400000e+01 : f32
    %172 = vector.broadcast %cst_71 : f32 to vector<1x32xf32>
    %173 = arith.divf %171, %172 : vector<1x32xf32>
    %174 = vector.broadcast %173 : vector<1x32xf32> to vector<64x32xf32>
    %175 = arith.subf %169, %174 : vector<64x32xf32>
    %176 = arith.mulf %175, %175 : vector<64x32xf32>
    %cst_72 = arith.constant dense<0.000000e+00> : vector<32xf32>
    %177 = vector.multi_reduction <add>, %176, %cst_72 [0] : vector<64x32xf32> to vector<32xf32>
    %178 = vector.shape_cast %177 : vector<32xf32> to vector<1x32xf32>
    %cst_73 = arith.constant 6.400000e+01 : f32
    %179 = vector.broadcast %cst_73 : f32 to vector<1x32xf32>
    %180 = arith.divf %178, %179 : vector<1x32xf32>
    %181 = vector.broadcast %173 : vector<1x32xf32> to vector<64x32xf32>
    %182 = arith.subf %169, %181 : vector<64x32xf32>
    %cst_74 = arith.constant 9.99999974E-6 : f32
    %183 = vector.broadcast %cst_74 : f32 to vector<1x32xf32>
    %184 = arith.addf %180, %183 : vector<1x32xf32>
    %185 = math.rsqrt %184 : vector<1x32xf32>
    %186 = vector.broadcast %185 : vector<1x32xf32> to vector<64x32xf32>
    %187 = arith.mulf %182, %186 : vector<64x32xf32>
    %c0_75 = arith.constant 0 : index
    %c0_76 = arith.constant 0 : index
    %c0_77 = arith.constant 0 : index
    %188 = vector.load %arg14[%c0_75, %c0_76, %c0_77] : memref<2x1x32xf32, #tpu.memory_space<vmem>>, vector<1x1x32xf32>
    %189 = vector.shape_cast %188 : vector<1x1x32xf32> to vector<1x32xf32>
    %190 = vector.broadcast %189 : vector<1x32xf32> to vector<64x32xf32>
    %191 = arith.mulf %187, %190 : vector<64x32xf32>
    %c0_78 = arith.constant 0 : index
    %c0_79 = arith.constant 0 : index
    %c0_80 = arith.constant 0 : index
    %192 = vector.load %arg15[%c0_78, %c0_79, %c0_80] : memref<2x1x32xf32, #tpu.memory_space<vmem>>, vector<1x1x32xf32>
    %193 = vector.shape_cast %192 : vector<1x1x32xf32> to vector<1x32xf32>
    %194 = vector.broadcast %193 : vector<1x32xf32> to vector<64x32xf32>
    %195 = arith.addf %191, %194 : vector<64x32xf32>
    %196 = arith.truncf %195 : vector<64x32xf32> to vector<64x32xbf16>
    %c1 = arith.constant 1 : index
    %c0_81 = arith.constant 0 : index
    %c0_82 = arith.constant 0 : index
    %197 = vector.load %arg4[%c1, %c0_81, %c0_82] : memref<2x32x96xbf16, #tpu.memory_space<vmem>>, vector<1x32x96xbf16>
    %198 = vector.shape_cast %197 : vector<1x32x96xbf16> to vector<32x96xbf16>
    %cst_83 = arith.constant dense<0.000000e+00> : vector<64x96xf32>
    %199 = tpu.matmul %196, %198, %cst_83 {dimension_numbers = #tpu.dot_dimension_numbers<[1], [0], [0], [1], [0, 0, 1, 1], [], []>} : vector<64x32xbf16>, vector<32x96xbf16>, vector<64x96xf32> -> vector<64x96xf32>
    %c1_84 = arith.constant 1 : index
    %c0_85 = arith.constant 0 : index
    %c0_86 = arith.constant 0 : index
    %200 = vector.load %arg5[%c1_84, %c0_85, %c0_86] : memref<2x1x96xf32, #tpu.memory_space<vmem>>, vector<1x1x96xf32>
    %201 = vector.shape_cast %200 : vector<1x1x96xf32> to vector<1x96xf32>
    %202 = vector.broadcast %201 : vector<1x96xf32> to vector<64x96xf32>
    %203 = arith.addf %199, %202 : vector<64x96xf32>
    %204 = vector.shape_cast %203 : vector<64x96xf32> to vector<8x8x96xf32>
    %205 = vector.extract_strided_slice %204 {offsets = [0, 0, 0], sizes = [8, 8, 8], strides = [1, 1, 1]} : vector<8x8x96xf32> to vector<8x8x8xf32>
    %206 = arith.truncf %205 : vector<8x8x8xf32> to vector<8x8x8xbf16>
    %207 = vector.extract_strided_slice %204 {offsets = [0, 0, 32], sizes = [8, 8, 8], strides = [1, 1, 1]} : vector<8x8x96xf32> to vector<8x8x8xf32>
    %208 = arith.truncf %207 : vector<8x8x8xf32> to vector<8x8x8xbf16>
    %209 = vector.extract_strided_slice %204 {offsets = [0, 0, 64], sizes = [8, 8, 8], strides = [1, 1, 1]} : vector<8x8x96xf32> to vector<8x8x8xf32>
    %210 = arith.truncf %209 : vector<8x8x8xf32> to vector<8x8x8xbf16>
    "tpu.trace_start"() <{level = 10 : i32, message = "bnd,bmd->bnm"}> : () -> ()
    %cst_87 = arith.constant dense<0.000000e+00> : vector<8x8x8xf32>
    %211 = tpu.matmul %206, %208, %cst_87 {dimension_numbers = #tpu.dot_dimension_numbers<[2], [2], [1], [1], [0, 0, 0, 1, 1, 1], [0], [0]>} : vector<8x8x8xbf16>, vector<8x8x8xbf16>, vector<8x8x8xf32> -> vector<8x8x8xf32>
    "tpu.trace_stop"() : () -> ()
    %cst_88 = arith.constant 0.353553385 : f32
    %212 = vector.broadcast %cst_88 : f32 to vector<8x8x8xf32>
    %213 = arith.mulf %211, %212 : vector<8x8x8xf32>
    %cst_89 = arith.constant dense<0xFF800000> : vector<8x8xf32>
    %214 = vector.multi_reduction <maximumf>, %213, %cst_89 [2] : vector<8x8x8xf32> to vector<8x8xf32>
    %215 = vector.shape_cast %214 : vector<8x8xf32> to vector<8x8x1xf32>
    %216 = vector.broadcast %215 : vector<8x8x1xf32> to vector<8x8x8xf32>
    %217 = arith.subf %213, %216 : vector<8x8x8xf32>
    %218 = math.exp %217 : vector<8x8x8xf32>
    %cst_90 = arith.constant dense<0.000000e+00> : vector<8x8xf32>
    %219 = vector.multi_reduction <add>, %218, %cst_90 [2] : vector<8x8x8xf32> to vector<8x8xf32>
    %220 = vector.shape_cast %219 : vector<8x8xf32> to vector<8x8x1xf32>
    %221 = tpu.reciprocal %220 {approx = true} : vector<8x8x1xf32> -> vector<8x8x1xf32>
    %222 = vector.broadcast %221 : vector<8x8x1xf32> to vector<8x8x8xf32>
    %223 = arith.mulf %218, %222 : vector<8x8x8xf32>
    %224 = arith.truncf %223 : vector<8x8x8xf32> to vector<8x8x8xbf16>
    "tpu.trace_start"() <{level = 10 : i32, message = "bnm,bmd->bnd"}> : () -> ()
    %cst_91 = arith.constant dense<0.000000e+00> : vector<8x8x8xf32>
    %225 = tpu.matmul %224, %210, %cst_91 {dimension_numbers = #tpu.dot_dimension_numbers<[2], [1], [1], [2], [0, 0, 0, 1, 1, 2], [0], [0]>} : vector<8x8x8xbf16>, vector<8x8x8xbf16>, vector<8x8x8xf32> -> vector<8x8x8xf32>
    "tpu.trace_stop"() : () -> ()
    %226 = vector.extract_strided_slice %204 {offsets = [0, 0, 8], sizes = [8, 8, 8], strides = [1, 1, 1]} : vector<8x8x96xf32> to vector<8x8x8xf32>
    %227 = arith.truncf %226 : vector<8x8x8xf32> to vector<8x8x8xbf16>
    %228 = vector.extract_strided_slice %204 {offsets = [0, 0, 40], sizes = [8, 8, 8], strides = [1, 1, 1]} : vector<8x8x96xf32> to vector<8x8x8xf32>
    %229 = arith.truncf %228 : vector<8x8x8xf32> to vector<8x8x8xbf16>
    %230 = vector.extract_strided_slice %204 {offsets = [0, 0, 72], sizes = [8, 8, 8], strides = [1, 1, 1]} : vector<8x8x96xf32> to vector<8x8x8xf32>
    %231 = arith.truncf %230 : vector<8x8x8xf32> to vector<8x8x8xbf16>
    "tpu.trace_start"() <{level = 10 : i32, message = "bnd,bmd->bnm"}> : () -> ()
    %cst_92 = arith.constant dense<0.000000e+00> : vector<8x8x8xf32>
    %232 = tpu.matmul %227, %229, %cst_92 {dimension_numbers = #tpu.dot_dimension_numbers<[2], [2], [1], [1], [0, 0, 0, 1, 1, 1], [0], [0]>} : vector<8x8x8xbf16>, vector<8x8x8xbf16>, vector<8x8x8xf32> -> vector<8x8x8xf32>
    "tpu.trace_stop"() : () -> ()
    %cst_93 = arith.constant 0.353553385 : f32
    %233 = vector.broadcast %cst_93 : f32 to vector<8x8x8xf32>
    %234 = arith.mulf %232, %233 : vector<8x8x8xf32>
    %cst_94 = arith.constant dense<0xFF800000> : vector<8x8xf32>
    %235 = vector.multi_reduction <maximumf>, %234, %cst_94 [2] : vector<8x8x8xf32> to vector<8x8xf32>
    %236 = vector.shape_cast %235 : vector<8x8xf32> to vector<8x8x1xf32>
    %237 = vector.broadcast %236 : vector<8x8x1xf32> to vector<8x8x8xf32>
    %238 = arith.subf %234, %237 : vector<8x8x8xf32>
    %239 = math.exp %238 : vector<8x8x8xf32>
    %cst_95 = arith.constant dense<0.000000e+00> : vector<8x8xf32>
    %240 = vector.multi_reduction <add>, %239, %cst_95 [2] : vector<8x8x8xf32> to vector<8x8xf32>
    %241 = vector.shape_cast %240 : vector<8x8xf32> to vector<8x8x1xf32>
    %242 = tpu.reciprocal %241 {approx = true} : vector<8x8x1xf32> -> vector<8x8x1xf32>
    %243 = vector.broadcast %242 : vector<8x8x1xf32> to vector<8x8x8xf32>
    %244 = arith.mulf %239, %243 : vector<8x8x8xf32>
    %245 = arith.truncf %244 : vector<8x8x8xf32> to vector<8x8x8xbf16>
    "tpu.trace_start"() <{level = 10 : i32, message = "bnm,bmd->bnd"}> : () -> ()
    %cst_96 = arith.constant dense<0.000000e+00> : vector<8x8x8xf32>
    %246 = tpu.matmul %245, %231, %cst_96 {dimension_numbers = #tpu.dot_dimension_numbers<[2], [1], [1], [2], [0, 0, 0, 1, 1, 2], [0], [0]>} : vector<8x8x8xbf16>, vector<8x8x8xbf16>, vector<8x8x8xf32> -> vector<8x8x8xf32>
    "tpu.trace_stop"() : () -> ()
    %247 = vector.extract_strided_slice %204 {offsets = [0, 0, 16], sizes = [8, 8, 8], strides = [1, 1, 1]} : vector<8x8x96xf32> to vector<8x8x8xf32>
    %248 = arith.truncf %247 : vector<8x8x8xf32> to vector<8x8x8xbf16>
    %249 = vector.extract_strided_slice %204 {offsets = [0, 0, 48], sizes = [8, 8, 8], strides = [1, 1, 1]} : vector<8x8x96xf32> to vector<8x8x8xf32>
    %250 = arith.truncf %249 : vector<8x8x8xf32> to vector<8x8x8xbf16>
    %251 = vector.extract_strided_slice %204 {offsets = [0, 0, 80], sizes = [8, 8, 8], strides = [1, 1, 1]} : vector<8x8x96xf32> to vector<8x8x8xf32>
    %252 = arith.truncf %251 : vector<8x8x8xf32> to vector<8x8x8xbf16>
    "tpu.trace_start"() <{level = 10 : i32, message = "bnd,bmd->bnm"}> : () -> ()
    %cst_97 = arith.constant dense<0.000000e+00> : vector<8x8x8xf32>
    %253 = tpu.matmul %248, %250, %cst_97 {dimension_numbers = #tpu.dot_dimension_numbers<[2], [2], [1], [1], [0, 0, 0, 1, 1, 1], [0], [0]>} : vector<8x8x8xbf16>, vector<8x8x8xbf16>, vector<8x8x8xf32> -> vector<8x8x8xf32>
    "tpu.trace_stop"() : () -> ()
    %cst_98 = arith.constant 0.353553385 : f32
    %254 = vector.broadcast %cst_98 : f32 to vector<8x8x8xf32>
    %255 = arith.mulf %253, %254 : vector<8x8x8xf32>
    %cst_99 = arith.constant dense<0xFF800000> : vector<8x8xf32>
    %256 = vector.multi_reduction <maximumf>, %255, %cst_99 [2] : vector<8x8x8xf32> to vector<8x8xf32>
    %257 = vector.shape_cast %256 : vector<8x8xf32> to vector<8x8x1xf32>
    %258 = vector.broadcast %257 : vector<8x8x1xf32> to vector<8x8x8xf32>
    %259 = arith.subf %255, %258 : vector<8x8x8xf32>
    %260 = math.exp %259 : vector<8x8x8xf32>
    %cst_100 = arith.constant dense<0.000000e+00> : vector<8x8xf32>
    %261 = vector.multi_reduction <add>, %260, %cst_100 [2] : vector<8x8x8xf32> to vector<8x8xf32>
    %262 = vector.shape_cast %261 : vector<8x8xf32> to vector<8x8x1xf32>
    %263 = tpu.reciprocal %262 {approx = true} : vector<8x8x1xf32> -> vector<8x8x1xf32>
    %264 = vector.broadcast %263 : vector<8x8x1xf32> to vector<8x8x8xf32>
    %265 = arith.mulf %260, %264 : vector<8x8x8xf32>
    %266 = arith.truncf %265 : vector<8x8x8xf32> to vector<8x8x8xbf16>
    "tpu.trace_start"() <{level = 10 : i32, message = "bnm,bmd->bnd"}> : () -> ()
    %cst_101 = arith.constant dense<0.000000e+00> : vector<8x8x8xf32>
    %267 = tpu.matmul %266, %252, %cst_101 {dimension_numbers = #tpu.dot_dimension_numbers<[2], [1], [1], [2], [0, 0, 0, 1, 1, 2], [0], [0]>} : vector<8x8x8xbf16>, vector<8x8x8xbf16>, vector<8x8x8xf32> -> vector<8x8x8xf32>
    "tpu.trace_stop"() : () -> ()
    %268 = vector.extract_strided_slice %204 {offsets = [0, 0, 24], sizes = [8, 8, 8], strides = [1, 1, 1]} : vector<8x8x96xf32> to vector<8x8x8xf32>
    %269 = arith.truncf %268 : vector<8x8x8xf32> to vector<8x8x8xbf16>
    %270 = vector.extract_strided_slice %204 {offsets = [0, 0, 56], sizes = [8, 8, 8], strides = [1, 1, 1]} : vector<8x8x96xf32> to vector<8x8x8xf32>
    %271 = arith.truncf %270 : vector<8x8x8xf32> to vector<8x8x8xbf16>
    %272 = vector.extract_strided_slice %204 {offsets = [0, 0, 88], sizes = [8, 8, 8], strides = [1, 1, 1]} : vector<8x8x96xf32> to vector<8x8x8xf32>
    %273 = arith.truncf %272 : vector<8x8x8xf32> to vector<8x8x8xbf16>
    "tpu.trace_start"() <{level = 10 : i32, message = "bnd,bmd->bnm"}> : () -> ()
    %cst_102 = arith.constant dense<0.000000e+00> : vector<8x8x8xf32>
    %274 = tpu.matmul %269, %271, %cst_102 {dimension_numbers = #tpu.dot_dimension_numbers<[2], [2], [1], [1], [0, 0, 0, 1, 1, 1], [0], [0]>} : vector<8x8x8xbf16>, vector<8x8x8xbf16>, vector<8x8x8xf32> -> vector<8x8x8xf32>
    "tpu.trace_stop"() : () -> ()
    %cst_103 = arith.constant 0.353553385 : f32
    %275 = vector.broadcast %cst_103 : f32 to vector<8x8x8xf32>
    %276 = arith.mulf %274, %275 : vector<8x8x8xf32>
    %cst_104 = arith.constant dense<0xFF800000> : vector<8x8xf32>
    %277 = vector.multi_reduction <maximumf>, %276, %cst_104 [2] : vector<8x8x8xf32> to vector<8x8xf32>
    %278 = vector.shape_cast %277 : vector<8x8xf32> to vector<8x8x1xf32>
    %279 = vector.broadcast %278 : vector<8x8x1xf32> to vector<8x8x8xf32>
    %280 = arith.subf %276, %279 : vector<8x8x8xf32>
    %281 = math.exp %280 : vector<8x8x8xf32>
    %cst_105 = arith.constant dense<0.000000e+00> : vector<8x8xf32>
    %282 = vector.multi_reduction <add>, %281, %cst_105 [2] : vector<8x8x8xf32> to vector<8x8xf32>
    %283 = vector.shape_cast %282 : vector<8x8xf32> to vector<8x8x1xf32>
    %284 = tpu.reciprocal %283 {approx = true} : vector<8x8x1xf32> -> vector<8x8x1xf32>
    %285 = vector.broadcast %284 : vector<8x8x1xf32> to vector<8x8x8xf32>
    %286 = arith.mulf %281, %285 : vector<8x8x8xf32>
    %287 = arith.truncf %286 : vector<8x8x8xf32> to vector<8x8x8xbf16>
    "tpu.trace_start"() <{level = 10 : i32, message = "bnm,bmd->bnd"}> : () -> ()
    %cst_106 = arith.constant dense<0.000000e+00> : vector<8x8x8xf32>
    %288 = tpu.matmul %287, %273, %cst_106 {dimension_numbers = #tpu.dot_dimension_numbers<[2], [1], [1], [2], [0, 0, 0, 1, 1, 2], [0], [0]>} : vector<8x8x8xbf16>, vector<8x8x8xbf16>, vector<8x8x8xf32> -> vector<8x8x8xf32>
    "tpu.trace_stop"() : () -> ()
    %289 = tpu.concatenate %225, %246, %267, %288 in 2 : vector<8x8x8xf32>, vector<8x8x8xf32>, vector<8x8x8xf32>, vector<8x8x8xf32> -> vector<8x8x32xf32>
    %290 = vector.shape_cast %289 : vector<8x8x32xf32> to vector<64x32xf32>
    %291 = arith.truncf %290 : vector<64x32xf32> to vector<64x32xbf16>
    %c1_107 = arith.constant 1 : index
    %c0_108 = arith.constant 0 : index
    %c0_109 = arith.constant 0 : index
    %292 = vector.load %arg6[%c1_107, %c0_108, %c0_109] : memref<2x32x32xbf16, #tpu.memory_space<vmem>>, vector<1x32x32xbf16>
    %293 = vector.shape_cast %292 : vector<1x32x32xbf16> to vector<32x32xbf16>
    %cst_110 = arith.constant dense<0.000000e+00> : vector<64x32xf32>
    %294 = tpu.matmul %291, %293, %cst_110 {dimension_numbers = #tpu.dot_dimension_numbers<[1], [0], [0], [1], [0, 0, 1, 1], [], []>} : vector<64x32xbf16>, vector<32x32xbf16>, vector<64x32xf32> -> vector<64x32xf32>
    %c1_111 = arith.constant 1 : index
    %c0_112 = arith.constant 0 : index
    %c0_113 = arith.constant 0 : index
    %295 = vector.load %arg7[%c1_111, %c0_112, %c0_113] : memref<2x1x32xf32, #tpu.memory_space<vmem>>, vector<1x1x32xf32>
    %296 = vector.shape_cast %295 : vector<1x1x32xf32> to vector<1x32xf32>
    %297 = vector.broadcast %296 : vector<1x32xf32> to vector<64x32xf32>
    %298 = arith.addf %294, %297 : vector<64x32xf32>
    %299 = arith.addf %195, %298 : vector<64x32xf32>
    %cst_114 = arith.constant dense<0.000000e+00> : vector<32xf32>
    %300 = vector.multi_reduction <add>, %299, %cst_114 [0] : vector<64x32xf32> to vector<32xf32>
    %301 = vector.shape_cast %300 : vector<32xf32> to vector<1x32xf32>
    %cst_115 = arith.constant 6.400000e+01 : f32
    %302 = vector.broadcast %cst_115 : f32 to vector<1x32xf32>
    %303 = arith.divf %301, %302 : vector<1x32xf32>
    %304 = vector.broadcast %303 : vector<1x32xf32> to vector<64x32xf32>
    %305 = arith.subf %299, %304 : vector<64x32xf32>
    %306 = arith.mulf %305, %305 : vector<64x32xf32>
    %cst_116 = arith.constant dense<0.000000e+00> : vector<32xf32>
    %307 = vector.multi_reduction <add>, %306, %cst_116 [0] : vector<64x32xf32> to vector<32xf32>
    %308 = vector.shape_cast %307 : vector<32xf32> to vector<1x32xf32>
    %cst_117 = arith.constant 6.400000e+01 : f32
    %309 = vector.broadcast %cst_117 : f32 to vector<1x32xf32>
    %310 = arith.divf %308, %309 : vector<1x32xf32>
    %311 = vector.broadcast %303 : vector<1x32xf32> to vector<64x32xf32>
    %312 = arith.subf %299, %311 : vector<64x32xf32>
    %cst_118 = arith.constant 9.99999974E-6 : f32
    %313 = vector.broadcast %cst_118 : f32 to vector<1x32xf32>
    %314 = arith.addf %310, %313 : vector<1x32xf32>
    %315 = math.rsqrt %314 : vector<1x32xf32>
    %316 = vector.broadcast %315 : vector<1x32xf32> to vector<64x32xf32>
    %317 = arith.mulf %312, %316 : vector<64x32xf32>
    %c1_119 = arith.constant 1 : index
    %c0_120 = arith.constant 0 : index
    %c0_121 = arith.constant 0 : index
    %318 = vector.load %arg8[%c1_119, %c0_120, %c0_121] : memref<2x1x32xf32, #tpu.memory_space<vmem>>, vector<1x1x32xf32>
    %319 = vector.shape_cast %318 : vector<1x1x32xf32> to vector<1x32xf32>
    %320 = vector.broadcast %319 : vector<1x32xf32> to vector<64x32xf32>
    %321 = arith.mulf %317, %320 : vector<64x32xf32>
    %c1_122 = arith.constant 1 : index
    %c0_123 = arith.constant 0 : index
    %c0_124 = arith.constant 0 : index
    %322 = vector.load %arg9[%c1_122, %c0_123, %c0_124] : memref<2x1x32xf32, #tpu.memory_space<vmem>>, vector<1x1x32xf32>
    %323 = vector.shape_cast %322 : vector<1x1x32xf32> to vector<1x32xf32>
    %324 = vector.broadcast %323 : vector<1x32xf32> to vector<64x32xf32>
    %325 = arith.addf %321, %324 : vector<64x32xf32>
    %326 = arith.truncf %325 : vector<64x32xf32> to vector<64x32xbf16>
    %c1_125 = arith.constant 1 : index
    %c0_126 = arith.constant 0 : index
    %c0_127 = arith.constant 0 : index
    %327 = vector.load %arg10[%c1_125, %c0_126, %c0_127] : memref<2x32x64xbf16, #tpu.memory_space<vmem>>, vector<1x32x64xbf16>
    %328 = vector.shape_cast %327 : vector<1x32x64xbf16> to vector<32x64xbf16>
    %cst_128 = arith.constant dense<0.000000e+00> : vector<64x64xf32>
    %329 = tpu.matmul %326, %328, %cst_128 {dimension_numbers = #tpu.dot_dimension_numbers<[1], [0], [0], [1], [0, 0, 1, 1], [], []>} : vector<64x32xbf16>, vector<32x64xbf16>, vector<64x64xf32> -> vector<64x64xf32>
    %c1_129 = arith.constant 1 : index
    %c0_130 = arith.constant 0 : index
    %c0_131 = arith.constant 0 : index
    %330 = vector.load %arg11[%c1_129, %c0_130, %c0_131] : memref<2x1x64xf32, #tpu.memory_space<vmem>>, vector<1x1x64xf32>
    %331 = vector.shape_cast %330 : vector<1x1x64xf32> to vector<1x64xf32>
    %332 = vector.broadcast %331 : vector<1x64xf32> to vector<64x64xf32>
    %333 = arith.addf %329, %332 : vector<64x64xf32>
    %334 = arith.mulf %333, %333 : vector<64x64xf32>
    %335 = arith.mulf %333, %334 : vector<64x64xf32>
    %cst_132 = arith.constant 4.471500e-02 : f32
    %336 = vector.broadcast %cst_132 : f32 to vector<64x64xf32>
    %337 = arith.mulf %336, %335 : vector<64x64xf32>
    %338 = arith.addf %333, %337 : vector<64x64xf32>
    %cst_133 = arith.constant 0.797884583 : f32
    %339 = vector.broadcast %cst_133 : f32 to vector<64x64xf32>
    %340 = arith.mulf %339, %338 : vector<64x64xf32>
    %341 = math.tanh %340 : vector<64x64xf32>
    %cst_134 = arith.constant 1.000000e+00 : f32
    %342 = vector.broadcast %cst_134 : f32 to vector<64x64xf32>
    %343 = arith.addf %342, %341 : vector<64x64xf32>
    %cst_135 = arith.constant 5.000000e-01 : f32
    %344 = vector.broadcast %cst_135 : f32 to vector<64x64xf32>
    %345 = arith.mulf %344, %343 : vector<64x64xf32>
    %346 = arith.mulf %333, %345 : vector<64x64xf32>
    %347 = arith.truncf %346 : vector<64x64xf32> to vector<64x64xbf16>
    %c1_136 = arith.constant 1 : index
    %c0_137 = arith.constant 0 : index
    %c0_138 = arith.constant 0 : index
    %348 = vector.load %arg12[%c1_136, %c0_137, %c0_138] : memref<2x64x32xbf16, #tpu.memory_space<vmem>>, vector<1x64x32xbf16>
    %349 = vector.shape_cast %348 : vector<1x64x32xbf16> to vector<64x32xbf16>
    %cst_139 = arith.constant dense<0.000000e+00> : vector<64x32xf32>
    %350 = tpu.matmul %347, %349, %cst_139 {dimension_numbers = #tpu.dot_dimension_numbers<[1], [0], [0], [1], [0, 0, 1, 1], [], []>} : vector<64x64xbf16>, vector<64x32xbf16>, vector<64x32xf32> -> vector<64x32xf32>
    %c1_140 = arith.constant 1 : index
    %c0_141 = arith.constant 0 : index
    %c0_142 = arith.constant 0 : index
    %351 = vector.load %arg13[%c1_140, %c0_141, %c0_142] : memref<2x1x32xf32, #tpu.memory_space<vmem>>, vector<1x1x32xf32>
    %352 = vector.shape_cast %351 : vector<1x1x32xf32> to vector<1x32xf32>
    %353 = vector.broadcast %352 : vector<1x32xf32> to vector<64x32xf32>
    %354 = arith.addf %350, %353 : vector<64x32xf32>
    %355 = arith.addf %325, %354 : vector<64x32xf32>
    %cst_143 = arith.constant dense<0.000000e+00> : vector<32xf32>
    %356 = vector.multi_reduction <add>, %355, %cst_143 [0] : vector<64x32xf32> to vector<32xf32>
    %357 = vector.shape_cast %356 : vector<32xf32> to vector<1x32xf32>
    %cst_144 = arith.constant 6.400000e+01 : f32
    %358 = vector.broadcast %cst_144 : f32 to vector<1x32xf32>
    %359 = arith.divf %357, %358 : vector<1x32xf32>
    %360 = vector.broadcast %359 : vector<1x32xf32> to vector<64x32xf32>
    %361 = arith.subf %355, %360 : vector<64x32xf32>
    %362 = arith.mulf %361, %361 : vector<64x32xf32>
    %cst_145 = arith.constant dense<0.000000e+00> : vector<32xf32>
    %363 = vector.multi_reduction <add>, %362, %cst_145 [0] : vector<64x32xf32> to vector<32xf32>
    %364 = vector.shape_cast %363 : vector<32xf32> to vector<1x32xf32>
    %cst_146 = arith.constant 6.400000e+01 : f32
    %365 = vector.broadcast %cst_146 : f32 to vector<1x32xf32>
    %366 = arith.divf %364, %365 : vector<1x32xf32>
    %367 = vector.broadcast %359 : vector<1x32xf32> to vector<64x32xf32>
    %368 = arith.subf %355, %367 : vector<64x32xf32>
    %cst_147 = arith.constant 9.99999974E-6 : f32
    %369 = vector.broadcast %cst_147 : f32 to vector<1x32xf32>
    %370 = arith.addf %366, %369 : vector<1x32xf32>
    %371 = math.rsqrt %370 : vector<1x32xf32>
    %372 = vector.broadcast %371 : vector<1x32xf32> to vector<64x32xf32>
    %373 = arith.mulf %368, %372 : vector<64x32xf32>
    %c1_148 = arith.constant 1 : index
    %c0_149 = arith.constant 0 : index
    %c0_150 = arith.constant 0 : index
    %374 = vector.load %arg14[%c1_148, %c0_149, %c0_150] : memref<2x1x32xf32, #tpu.memory_space<vmem>>, vector<1x1x32xf32>
    %375 = vector.shape_cast %374 : vector<1x1x32xf32> to vector<1x32xf32>
    %376 = vector.broadcast %375 : vector<1x32xf32> to vector<64x32xf32>
    %377 = arith.mulf %373, %376 : vector<64x32xf32>
    %c1_151 = arith.constant 1 : index
    %c0_152 = arith.constant 0 : index
    %c0_153 = arith.constant 0 : index
    %378 = vector.load %arg15[%c1_151, %c0_152, %c0_153] : memref<2x1x32xf32, #tpu.memory_space<vmem>>, vector<1x1x32xf32>
    %379 = vector.shape_cast %378 : vector<1x1x32xf32> to vector<1x32xf32>
    %380 = vector.broadcast %379 : vector<1x32xf32> to vector<64x32xf32>
    %381 = arith.addf %377, %380 : vector<64x32xf32>
    %c0_154 = arith.constant 0 : index
    %c0_155 = arith.constant 0 : index
    %382 = vector.load %arg16[%c0_154, %c0_155] : memref<64x32xf32, #tpu.memory_space<vmem>>, vector<64x32xf32>
    tpu.vector_store %arg16[%c0_154, %c0_155], %381 {strides = array<i32>} : memref<64x32xf32, #tpu.memory_space<vmem>>, vector<64x32xf32>,
    return
  }
}

</mosaic_0001>

<llo_original>
// kernel: tile.10
$region0: #{tile.10}
  #allocation0 [shape = 's32[1]{0}', space=sflag, size = 0x4, scoped, tag = 'scoped memory for tile.10']
  %s0 = inlined_call_operand.vmem [shape: f32[4], index: 0, kind: input, shape index: {}]
  %s1 = inlined_call_operand.vmem [shape: f32[2,1,1,4], index: 1, kind: output, shape index: {}]
  // Predicated region
  $region2: #{tile.10} parent=0 // pred_check
    _
  $region3: #{tile.10} parent=0 // pred_check_branch
    %3 = sbr.rel (0) target = $region5
  $region4: #{tile.10} parent=0 // pred_region
    _
  $region5: #{tile.10} parent=0 // pred_fallthru
    _
  %v4 = vld [vmem:[%s0] ss:$0 sm:$0xff]
  %5 = vst [vmem:[%s1] sm:$0x3] %v4

// kernel: tile.0
$region0: #{tile.0}
  %s0 = inlined_call_operand.vmem [shape: f32[2,1,1,4], index: 0, kind: input, shape index: {}]
  %s1 = inlined_call_operand.hbm [shape: f32[8,1], index: 1, kind: output, shape index: {}]
  $region1: #{tile.0} parent=0
    #allocation0 [shape = 'u8[4096]{0}', space=vmem, size = 0x1000, scoped, tag = 'operand span for operand 1']
    #allocation1 [shape = 's32[1]{0}', space=sflag, size = 0x4, scoped, tag = 'scoped memory for tile.0']
    #allocation2 [shape = 'u8[4096]{0}', space=vmem, size = 0x1000, scoped, tag = 'scoped mem for input reshape']
    %2 = vsyncpa [#allocation1], 0
    %s4 = sshllo.u32 0, 2
    %v5 = vld [vmem:[%s0] sm:%s4]
    %6 = vst [vmem:[#allocation2] sm:%s4] %v5
    %v7 = vld [vmem:[#allocation2] sm:$0x3]
    %vm8 = vcmask 7168
    %9 = vst.msk [vmem:[#allocation0] ss:$4 sm:$0x3] %vm8, %v7
    %v10 = vld [vmem:[#allocation2] sm:$0x3]
    %11 = vrot.lane.b32.xlu0 %v10, 127
    %v12 = vpop.permute.xlu0 %11
    %vm13 = vcmask 7168
    %s14 = scalar_lea.vmem [#allocation0], 1
    %15 = vst.msk [vmem:[%s14] ss:$4 sm:$0x3] %vm13, %v12
    %v16 = vld [vmem:[#allocation2] sm:$0x3]
    %17 = vrot.lane.b32.xlu0 %v16, 126
    %v18 = vpop.permute.xlu0 %17
    %vm19 = vcmask 7168
    %s20 = scalar_lea.vmem [#allocation0], 2
    %21 = vst.msk [vmem:[%s20] ss:$4 sm:$0x3] %vm19, %v18
    %v22 = vld [vmem:[#allocation2] sm:$0x3]
    %23 = vrot.lane.b32.xlu0 %v22, 125
    %v24 = vpop.permute.xlu0 %23
    %vm25 = vcmask 7168
    %s26 = scalar_lea.vmem [#allocation0], 3
    %27 = vst.msk [vmem:[%s26] ss:$4 sm:$0x3] %vm25, %v24
    %s29 = ssub.s32 128, 128
    %30 = vsyncadd [#allocation1], %s29
    %s32 = sshll.u32 [#allocation0], 4
    %s33 = int_to_ptr.vmem [resolvable:$true] %s32
    %35 = dma.vmem_to_hbm [thread:$0]  %s33, 128, %s1, [#allocation1]
    %36 = dma.done [#allocation1], 128
    %37 = vsyncpa [#allocation1], 1

// kernel: patchtst_forward.3
$region0: #{patchtst_forward.3}
  #allocation0 [shape = 'u32[]', space=smem, size = 0x4, offset = 0x4, fixed_abs, tag = 'smem constant byte address 0x4 - core index']
  #allocation1 [shape = 'u32[144,128]{1,0:T(1,128)}', space=vmem, size = 0x12000, scoped, tag = 'internal scratch']
  %s0 = inlined_call_operand.hbm [shape: f32[8,256], index: 0, kind: input, shape index: {}]
  %s1 = inlined_call_operand.hbm [shape: bf16[256,16], index: 1, kind: input, shape index: {}]
  %s2 = inlined_call_operand.hbm [shape: f32[1,16], index: 2, kind: input, shape index: {}]
  %s3 = inlined_call_operand.hbm [shape: f32[8,1], index: 3, kind: input, shape index: {}]
  %s4 = inlined_call_operand.hbm [shape: f32[8,1], index: 4, kind: input, shape index: {}]
  %s5 = inlined_call_operand.hbm [shape: f32[8,1], index: 5, kind: input, shape index: {}]
  %s6 = inlined_call_operand.hbm [shape: f32[8,1], index: 6, kind: input, shape index: {}]
  %s7 = inlined_call_operand.hbm [shape: f32[8,16], index: 7, kind: output, shape index: {}]
  %s8 = sld [smem:[#allocation0]]
  $region66: #{patchtst_forward.3} parent=0
    _
  %s10 = ssub.s32 1, %s8
  %s11 = scalar_select 0, %s10, %s8
  $region1: #{patchtst_forward.3} parent=0
    #allocation2 [shape = 'u8[8192]{0}', space=vmem, size = 0x2000, scoped, tag = 'input window, operand 0, single buffered']
    #allocation3 [shape = 's32[1]{0}', space=sflag, size = 0x4, scoped, tag = 'scoped memory for patchtst_forward.3']
    #allocation4 [shape = 's32[1]{0}', space=sflag, size = 0x4, scoped, tag = 'scoped memory for patchtst_forward.3']
    #allocation5 [shape = 'u8[65536]{0}', space=vmem, size = 0x10000, scoped, tag = 'input window, operand 1, single buffered']
    #allocation6 [shape = 's32[1]{0}', space=sflag, size = 0x4, scoped, tag = 'scoped memory for patchtst_forward.3']
    #allocation7 [shape = 'u8[512]{0}', space=vmem, size = 0x400, scoped, tag = 'input window, operand 2, single buffered']
    #allocation8 [shape = 'u8[4096]{0}', space=vmem, size = 0x1000, scoped, tag = 'input window, operand 3, single buffered']
    #allocation9 [shape = 's32[1]{0}', space=sflag, size = 0x4, scoped, tag = 'scoped memory for patchtst_forward.3']
    #allocation10 [shape = 'u8[4096]{0}', space=vmem, size = 0x1000, scoped, tag = 'input window, operand 4, single buffered']
    #allocation11 [shape = 'u8[4096]{0}', space=vmem, size = 0x1000, scoped, tag = 'input window, operand 5, single buffered']
    #allocation12 [shape = 's32[1]{0}', space=sflag, size = 0x4, scoped, tag = 'scoped memory for patchtst_forward.3']
    #allocation13 [shape = 'u8[4096]{0}', space=vmem, size = 0x1000, scoped, tag = 'input window, operand 6, single buffered']
    #allocation14 [shape = 'u8[4096]{0}', space=vmem, size = 0x1000, scoped, tag = 'output window, operand 0, single buffered']
    %12 = vsyncpa [#allocation3], 0
    %13 = vsyncpa [#allocation6], 0
    %14 = vsyncpa [#allocation9], 0
    %15 = vsyncpa [#allocation12], 0
    %16 = vsyncpa [#allocation4], 0
    // Predicated region
    $region2: #{patchtst_forward.3} parent=1 // pred_check
      _
    $region3: #{patchtst_forward.3} parent=1 // pred_check_branch
      %18 = sbr.rel (0) target = $region5
    $region4: #{patchtst_forward.3} parent=1 // pred_region
      %s20 = ssub.s32 256, 256
      %21 = vsyncadd [#allocation3], %s20
      %s23 = sshll.u32 [#allocation2], 4
      %s24 = int_to_ptr.vmem [resolvable:$true] %s23
      %26 = dma.hbm_to_vmem [thread:$0]  %s0, 256, %s24, [#allocation3]
    $region5: #{patchtst_forward.3} parent=1 // pred_fallthru
      _
    // Predicated region
    $region6: #{patchtst_forward.3} parent=1 // pred_check
      _
    $region7: #{patchtst_forward.3} parent=1 // pred_check_branch
      %28 = sbr.rel (0) target = $region9
    $region8: #{patchtst_forward.3} parent=1 // pred_region
      %s30 = ssub.s32 2048, 2048
      %31 = vsyncadd [#allocation6], %s30
      %s32 = sshll.u32 [#allocation5], 4
      %s33 = int_to_ptr.vmem [resolvable:$true] %s32
      %38 = dma.hbm_to_vmem [thread:$0]  %s1, 2048, %s33, [#allocation6], 64, 64, 4
    $region9: #{patchtst_forward.3} parent=1 // pred_fallthru
      _
    // Predicated region
    $region10: #{patchtst_forward.3} parent=1 // pred_check
      _
    $region11: #{patchtst_forward.3} parent=1 // pred_check_branch
      %40 = sbr.rel (0) target = $region13
    $region12: #{patchtst_forward.3} parent=1 // pred_region
      %s42 = ssub.s32 16, 16
      %43 = vsyncadd [#allocation6], %s42
      %s45 = sshll.u32 [#allocation7], 4
      %s46 = int_to_ptr.vmem [resolvable:$true] %s45
      %48 = dma.hbm_to_vmem [thread:$0]  %s2, 16, %s46, [#allocation6]
    $region13: #{patchtst_forward.3} parent=1 // pred_fallthru
      _
    // Predicated region
    $region14: #{patchtst_forward.3} parent=1 // pred_check
      _
    $region15: #{patchtst_forward.3} parent=1 // pred_check_branch
      %50 = sbr.rel (0) target = $region17
    $region16: #{patchtst_forward.3} parent=1 // pred_region
      %s52 = ssub.s32 128, 128
      %53 = vsyncadd [#allocation9], %s52
      %s55 = sshll.u32 [#allocation8], 4
      %s56 = int_to_ptr.vmem [resolvable:$true] %s55
      %58 = dma.hbm_to_vmem [thread:$0]  %s3, 128, %s56, [#allocation9]
    $region17: #{patchtst_forward.3} parent=1 // pred_fallthru
      _
    // Predicated region
    $region18: #{patchtst_forward.3} parent=1 // pred_check
      _
    $region19: #{patchtst_forward.3} parent=1 // pred_check_branch
      %60 = sbr.rel (0) target = $region21
    $region20: #{patchtst_forward.3} parent=1 // pred_region
      %s62 = ssub.s32 128, 128
      %63 = vsyncadd [#allocation9], %s62
      %s65 = sshll.u32 [#allocation10], 4
      %s66 = int_to_ptr.vmem [resolvable:$true] %s65
      %68 = dma.hbm_to_vmem [thread:$0]  %s4, 128, %s66, [#allocation9]
    $region21: #{patchtst_forward.3} parent=1 // pred_fallthru
      _
    // Predicated region
    $region22: #{patchtst_forward.3} parent=1 // pred_check
      _
    $region23: #{patchtst_forward.3} parent=1 // pred_check_branch
      %70 = sbr.rel (0) target = $region25
    $region24: #{patchtst_forward.3} parent=1 // pred_region
      %s72 = ssub.s32 128, 128
      %73 = vsyncadd [#allocation12], %s72
      %s75 = sshll.u32 [#allocation11], 4
      %s76 = int_to_ptr.vmem [resolvable:$true] %s75
      %78 = dma.hbm_to_vmem [thread:$0]  %s5, 128, %s76, [#allocation12]
    $region25: #{patchtst_forward.3} parent=1 // pred_fallthru
      _
    // Predicated region
    $region26: #{patchtst_forward.3} parent=1 // pred_check
      _
    $region27: #{patchtst_forward.3} parent=1 // pred_check_branch
      %80 = sbr.rel (0) target = $region29
    $region28: #{patchtst_forward.3} parent=1 // pred_region
      %s82 = ssub.s32 128, 128
      %83 = vsyncadd [#allocation12], %s82
      %s85 = sshll.u32 [#allocation13], 4
      %s86 = int_to_ptr.vmem [resolvable:$true] %s85
      %88 = dma.hbm_to_vmem [thread:$0]  %s6, 128, %s86, [#allocation12]
    $region29: #{patchtst_forward.3} parent=1 // pred_fallthru
      _
    // Predicated region
    $region30: #{patchtst_forward.3} parent=1 // pred_check
      _
    $region31: #{patchtst_forward.3} parent=1 // pred_check_branch
      %90 = sbr.rel (0) target = $region33
    $region32: #{patchtst_forward.3} parent=1 // pred_region
      %91 = dma.done [#allocation3], 256
    $region33: #{patchtst_forward.3} parent=1 // pred_fallthru
      _
    // Predicated region
    $region34: #{patchtst_forward.3} parent=1 // pred_check
      _
    $region35: #{patchtst_forward.3} parent=1 // pred_check_branch
      %93 = sbr.rel (0) target = $region37
    $region36: #{patchtst_forward.3} parent=1 // pred_region
      %94 = dma.done [#allocation6], 2048
    $region37: #{patchtst_forward.3} parent=1 // pred_fallthru
      _
    // Predicated region
    $region38: #{patchtst_forward.3} parent=1 // pred_check
      _
    $region39: #{patchtst_forward.3} parent=1 // pred_check_branch
      %96 = sbr.rel (0) target = $region41
    $region40: #{patchtst_forward.3} parent=1 // pred_region
      %97 = dma.done [#allocation6], 16
    $region41: #{patchtst_forward.3} parent=1 // pred_fallthru
      _
    // Predicated region
    $region42: #{patchtst_forward.3} parent=1 // pred_check
      _
    $region43: #{patchtst_forward.3} parent=1 // pred_check_branch
      %99 = sbr.rel (0) target = $region45
    $region44: #{patchtst_forward.3} parent=1 // pred_region
      %100 = dma.done [#allocation9], 128
    $region45: #{patchtst_forward.3} parent=1 // pred_fallthru
      _
    // Predicated region
    $region46: #{patchtst_forward.3} parent=1 // pred_check
      _
    $region47: #{patchtst_forward.3} parent=1 // pred_check_branch
      %102 = sbr.rel (0) target = $region49
    $region48: #{patchtst_forward.3} parent=1 // pred_region
      %103 = dma.done [#allocation9], 128
    $region49: #{patchtst_forward.3} parent=1 // pred_fallthru
      _
    // Predicated region
    $region50: #{patchtst_forward.3} parent=1 // pred_check
      _
    $region51: #{patchtst_forward.3} parent=1 // pred_check_branch
      %105 = sbr.rel (0) target = $region53
    $region52: #{patchtst_forward.3} parent=1 // pred_region
      %106 = dma.done [#allocation12], 128
    $region53: #{patchtst_forward.3} parent=1 // pred_fallthru
      _
    // Predicated region
    $region54: #{patchtst_forward.3} parent=1 // pred_check
      _
    $region55: #{patchtst_forward.3} parent=1 // pred_check_branch
      %108 = sbr.rel (0) target = $region57
    $region56: #{patchtst_forward.3} parent=1 // pred_region
      %109 = dma.done [#allocation12], 128
    $region57: #{patchtst_forward.3} parent=1 // pred_fallthru
      _
    %v111 = vld [vmem:[#allocation2] sm:$0xff]
    %v112 = vld [vmem:[#allocation2 + $0x8] sm:$0xff]
    %v113 = vpack.c.bf16 %v111, %v111
    %v114 = vpack.c.bf16 %v112, %v112
    %v115 = vld [vmem:[#allocation5] sm:$0xf]
    %v116 = vld [vmem:[#allocation5 + $0x4] sm:$0xf]
    %v117 = vld [vmem:[#allocation5 + $0x8] sm:$0xf]
    %v118 = vld [vmem:[#allocation5 + $0xc] sm:$0xf]
    %v119 = vld [vmem:[#allocation5 + $0x10] sm:$0xf]
    %v120 = vld [vmem:[#allocation5 + $0x14] sm:$0xf]
    %v121 = vld [vmem:[#allocation5 + $0x18] sm:$0xf]
    %v122 = vld [vmem:[#allocation5 + $0x1c] sm:$0xf]
    %v123 = vld [vmem:[#allocation5 + $0x20] sm:$0xf]
    %v124 = vld [vmem:[#allocation5 + $0x24] sm:$0xf]
    %v125 = vld [vmem:[#allocation5 + $0x28] sm:$0xf]
    %v126 = vld [vmem:[#allocation5 + $0x2c] sm:$0xf]
    %v127 = vld [vmem:[#allocation5 + $0x30] sm:$0xf]
    %v128 = vld [vmem:[#allocation5 + $0x34] sm:$0xf]
    %v129 = vld [vmem:[#allocation5 + $0x38] sm:$0xf]
    %v130 = vld [vmem:[#allocation5 + $0x3c] sm:$0xf]
    %v131 = vld [vmem:[#allocation5 + $0x40] sm:$0xf]
    %v132 = vld [vmem:[#allocation5 + $0x44] sm:$0xf]
    %v133 = vld [vmem:[#allocation5 + $0x48] sm:$0xf]
    %v134 = vld [vmem:[#allocation5 + $0x4c] sm:$0xf]
    %v135 = vld [vmem:[#allocation5 + $0x50] sm:$0xf]
    %v136 = vld [vmem:[#allocation5 + $0x54] sm:$0xf]
    %v137 = vld [vmem:[#allocation5 + $0x58] sm:$0xf]
    %v138 = vld [vmem:[#allocation5 + $0x5c] sm:$0xf]
    %v139 = vld [vmem:[#allocation5 + $0x60] sm:$0xf]
    %v140 = vld [vmem:[#allocation5 + $0x64] sm:$0xf]
    %v141 = vld [vmem:[#allocation5 + $0x68] sm:$0xf]
    %v142 = vld [vmem:[#allocation5 + $0x6c] sm:$0xf]
    %v143 = vld [vmem:[#allocation5 + $0x70] sm:$0xf]
    %v144 = vld [vmem:[#allocation5 + $0x74] sm:$0xf]
    %v145 = vld [vmem:[#allocation5 + $0x78] sm:$0xf]
    %v146 = vld [vmem:[#allocation5 + $0x7c] sm:$0xf]
    %v147 = vld [vmem:[#allocation7] sm:$0x1]
    %v149 = vlaneseq
    %v150 = vshrl.u32 %v149, 7
    %v151 = vsub.s32 0, %v150
    %v152 = vrot.slane %v147, %v151
    %v186 = vunpack.c.l.b16 %v115
    %v187 = vunpack.c.l.b16 %v116
    %v188 = vunpack.c.l.b16 %v117
    %v189 = vunpack.c.l.b16 %v118
    %v190 = vunpack.c.l.b16 %v119
    %v191 = vunpack.c.l.b16 %v120
    %v192 = vunpack.c.l.b16 %v121
    %v193 = vunpack.c.l.b16 %v122
    %v194 = vunpack.c.l.b16 %v123
    %v195 = vunpack.c.l.b16 %v124
    %v196 = vunpack.c.l.b16 %v125
    %v197 = vunpack.c.l.b16 %v126
    %v198 = vunpack.c.l.b16 %v127
    %v199 = vunpack.c.l.b16 %v128
    %v200 = vunpack.c.l.b16 %v129
    %v201 = vunpack.c.l.b16 %v130
    %v202 = vunpack.c.l.b16 %v131
    %v203 = vunpack.c.l.b16 %v132
    %v204 = vunpack.c.l.b16 %v133
    %v205 = vunpack.c.l.b16 %v134
    %v206 = vunpack.c.l.b16 %v135
    %v207 = vunpack.c.l.b16 %v136
    %v208 = vunpack.c.l.b16 %v137
    %v209 = vunpack.c.l.b16 %v138
    %v210 = vunpack.c.l.b16 %v139
    %v211 = vunpack.c.l.b16 %v140
    %v212 = vunpack.c.l.b16 %v141
    %v213 = vunpack.c.l.b16 %v142
    %v214 = vunpack.c.l.b16 %v143
    %v215 = vunpack.c.l.b16 %v144
    %v216 = vunpack.c.l.b16 %v145
    %v217 = vunpack.c.l.b16 %v146
    %v218 = vpack.c.b16 %v187, %v186
    %v219 = vpack.c.b16 %v189, %v188
    %v220 = vpack.c.b16 %v191, %v190
    %v221 = vpack.c.b16 %v193, %v192
    %v222 = vpack.c.b16 %v195, %v194
    %v223 = vpack.c.b16 %v197, %v196
    %v224 = vpack.c.b16 %v199, %v198
    %v225 = vpack.c.b16 %v201, %v200
    %v226 = vpack.c.b16 %v203, %v202
    %v227 = vpack.c.b16 %v205, %v204
    %v228 = vpack.c.b16 %v207, %v206
    %v229 = vpack.c.b16 %v209, %v208
    %v230 = vpack.c.b16 %v211, %v210
    %v231 = vpack.c.b16 %v213, %v212
    %v232 = vpack.c.b16 %v215, %v214
    %v233 = vpack.c.b16 %v217, %v216
    %250 = vmatprep.subr.bf16.mxu0 0
    %251 = vmatpush1.bf16.msra.mxu0 %v218
    %252 = vmatprep.subr.bf16.mxu0 0
    %253 = vmatpush1.bf16.msra.mxu0 %v219
    %254 = vmatprep.subr.bf16.mxu0 0
    %255 = vmatpush1.bf16.msra.mxu0 %v220
    %256 = vmatprep.subr.bf16.mxu0 0
    %257 = vmatpush1.bf16.msra.mxu0 %v221
    %258 = vmatprep.subr.bf16.mxu0 0
    %259 = vmatpush1.bf16.msra.mxu0 %v222
    %260 = vmatprep.subr.bf16.mxu0 0
    %261 = vmatpush1.bf16.msra.mxu0 %v223
    %262 = vmatprep.subr.bf16.mxu0 0
    %263 = vmatpush1.bf16.msra.mxu0 %v224
    %264 = vmatprep.subr.bf16.mxu0 0
    %265 = vmatpush1.bf16.msra.mxu0 %v225
    %266 = vmatprep.subr.bf16.mxu0 0
    %267 = vmatpush1.bf16.msra.mxu0 %v226
    %268 = vmatprep.subr.bf16.mxu0 0
    %269 = vmatpush1.bf16.msra.mxu0 %v227
    %270 = vmatprep.subr.bf16.mxu0 0
    %271 = vmatpush1.bf16.msra.mxu0 %v228
    %272 = vmatprep.subr.bf16.mxu0 0
    %273 = vmatpush1.bf16.msra.mxu0 %v229
    %274 = vmatprep.subr.bf16.mxu0 0
    %275 = vmatpush1.bf16.msra.mxu0 %v230
    %276 = vmatprep.subr.bf16.mxu0 0
    %277 = vmatpush1.bf16.msra.mxu0 %v231
    %278 = vmatprep.subr.bf16.mxu0 0
    %279 = vmatpush1.bf16.msra.mxu0 %v232
    %280 = vmatprep.subr.bf16.mxu0 0
    %281 = vmatpush1.bf16.msra.mxu0 %v233
    %282 = vmatprep.mubr.bf16.mxu0 %v114
    %283 = vmatmul.mubr.bf16.gmra.mrb[0].mxu0 %v113
    %v284 = vpop.f32.mrb[0].mxu0
    %v285 = vadd.f32 %v152, %v284
    %v286 = vpop.f32.mrb[0].mxu0
    %v287 = vpop.f32.mrb[0].mxu0
    %v288 = vpop.f32.mrb[0].mxu0
    %289 = vdwg.mxu0
    %v290 = vld [vmem:[#allocation13] sm:$0xff]
    %292 = vset.pattern.permute.xlu0 0
    %293 = vperm.xlu0 %292, %v290
    %v294 = vpop.permute.xlu0 %293
    %v296 = vsub.f32 %v285, %v294
    %v297 = vld [vmem:[#allocation11] sm:$0xff]
    %v298 = vadd.f32 %v297, 1e-10
    %300 = vset.pattern.permute.xlu0 0
    %301 = vperm.xlu0 %300, %v298
    %v302 = vpop.permute.xlu0 %301
    %v304 = vrcp.pop %v302
    %v305 = vmul.f32 %v296, %v304
    %v306 = vld [vmem:[#allocation10] sm:$0xff]
    %308 = vset.pattern.permute.xlu0 0
    %309 = vperm.xlu0 %308, %v306
    %v310 = vpop.permute.xlu0 %309
    %v312 = vmul.f32 %v305, %v310
    %v313 = vld [vmem:[#allocation8] sm:$0xff]
    %315 = vset.pattern.permute.xlu0 0
    %316 = vperm.xlu0 %315, %v313
    %v317 = vpop.permute.xlu0 %316
    %v319 = vadd.f32 %v312, %v317
    %vm320 = vcmask 130048
    %321 = vst.msk [vmem:[#allocation14] sm:$0xff] %vm320, %v319
    // Predicated region
    $region58: #{patchtst_forward.3} parent=1 // pred_check
      _
    $region59: #{patchtst_forward.3} parent=1 // pred_check_branch
      %323 = sbr.rel (0) target = $region61
    $region60: #{patchtst_forward.3} parent=1 // pred_region
      %s325 = ssub.s32 128, 128
      %326 = vsyncadd [#allocation4], %s325
      %s328 = sshll.u32 [#allocation14], 4
      %s329 = int_to_ptr.vmem [resolvable:$true] %s328
      %331 = dma.vmem_to_hbm [thread:$0]  %s329, 128, %s7, [#allocation4]
    $region61: #{patchtst_forward.3} parent=1 // pred_fallthru
      _
    // Predicated region
    $region62: #{patchtst_forward.3} parent=1 // pred_check
      _
    $region63: #{patchtst_forward.3} parent=1 // pred_check_branch
      %333 = sbr.rel (0) target = $region65
    $region64: #{patchtst_forward.3} parent=1 // pred_region
      %334 = dma.done [#allocation4], 128
    $region65: #{patchtst_forward.3} parent=1 // pred_fallthru
      _
    %335 = vsyncpa [#allocation3], 1
    %336 = vsyncpa [#allocation6], 1
    %337 = vsyncpa [#allocation9], 1
    %338 = vsyncpa [#allocation12], 1
    %339 = vsyncpa [#allocation4], 1

// kernel: patchtst_forward.2
$region0: #{patchtst_forward.2}
  #allocation0 [shape = 'u32[]', space=smem, size = 0x4, offset = 0x4, fixed_abs, tag = 'smem constant byte address 0x4 - core index']
  #allocation1 [shape = 'u32[144,128]{1,0:T(1,128)}', space=vmem, size = 0x12000, scoped, tag = 'internal scratch']
  %s0 = inlined_call_operand.hbm [shape: f32[64,16], index: 0, kind: input, shape index: {}]
  %s1 = inlined_call_operand.hbm [shape: bf16[16,32], index: 1, kind: input, shape index: {}]
  %s2 = inlined_call_operand.hbm [shape: f32[1,32], index: 2, kind: input, shape index: {}]
  %s3 = inlined_call_operand.hbm [shape: f32[8,32], index: 3, kind: input, shape index: {}]
  %s4 = inlined_call_operand.hbm [shape: bf16[2,32,96], index: 4, kind: input, shape index: {}]
  %s5 = inlined_call_operand.hbm [shape: f32[2,1,96], index: 5, kind: input, shape index: {}]
  %s6 = inlined_call_operand.hbm [shape: bf16[2,32,32], index: 6, kind: input, shape index: {}]
  %s7 = inlined_call_operand.hbm [shape: f32[2,1,32], index: 7, kind: input, shape index: {}]
  %s8 = inlined_call_operand.hbm [shape: f32[2,1,32], index: 8, kind: input, shape index: {}]
  %s9 = inlined_call_operand.hbm [shape: f32[2,1,32], index: 9, kind: input, shape index: {}]
  %s10 = inlined_call_operand.hbm [shape: bf16[2,32,64], index: 10, kind: input, shape index: {}]
  %s11 = inlined_call_operand.hbm [shape: f32[2,1,64], index: 11, kind: input, shape index: {}]
  %s12 = inlined_call_operand.hbm [shape: bf16[2,64,32], index: 12, kind: input, shape index: {}]
  %s13 = inlined_call_operand.hbm [shape: f32[2,1,32], index: 13, kind: input, shape index: {}]
  %s14 = inlined_call_operand.hbm [shape: f32[2,1,32], index: 14, kind: input, shape index: {}]
  %s15 = inlined_call_operand.hbm [shape: f32[2,1,32], index: 15, kind: input, shape index: {}]
  %s16 = inlined_call_operand.hbm [shape: f32[64,32], index: 16, kind: output, shape index: {}]
  %s17 = sld [smem:[#allocation0]]
  $region138: #{patchtst_forward.2} parent=0
    _
  %s19 = ssub.s32 1, %s17
  %s20 = scalar_select 0, %s19, %s17
  $region1: #{patchtst_forward.2} parent=0
    #allocation2 [shape = 'u8[32768]{0}', space=vmem, size = 0x8000, scoped, tag = 'input window, operand 0, single buffered']
    #allocation3 [shape = 's32[1]{0}', space=sflag, size = 0x4, scoped, tag = 'scoped memory for patchtst_forward.2']
    #allocation4 [shape = 's32[1]{0}', space=sflag, size = 0x4, scoped, tag = 'scoped memory for patchtst_forward.2']
    #allocation5 [shape = 'u8[4096]{0}', space=vmem, size = 0x1000, scoped, tag = 'input window, operand 1, single buffered']
    #allocation6 [shape = 's32[1]{0}', space=sflag, size = 0x4, scoped, tag = 'scoped memory for patchtst_forward.2']
    #allocation7 [shape = 'u8[512]{0}', space=vmem, size = 0x400, scoped, tag = 'input window, operand 2, single buffered']
    #allocation8 [shape = 'u8[4096]{0}', space=vmem, size = 0x1000, scoped, tag = 'input window, operand 3, single buffered']
    #allocation9 [shape = 's32[1]{0}', space=sflag, size = 0x4, scoped, tag = 'scoped memory for patchtst_forward.2']
    #allocation10 [shape = 'u8[16384]{0}', space=vmem, size = 0x4000, scoped, tag = 'input window, operand 4, single buffered']
    #allocation11 [shape = 'u8[1024]{0}', space=vmem, size = 0x400, scoped, tag = 'input window, operand 5, single buffered']
    #allocation12 [shape = 's32[1]{0}', space=sflag, size = 0x4, scoped, tag = 'scoped memory for patchtst_forward.2']
    #allocation13 [shape = 'u8[16384]{0}', space=vmem, size = 0x4000, scoped, tag = 'input window, operand 6, single buffered']
    #allocation14 [shape = 'u8[1024]{0}', space=vmem, size = 0x400, scoped, tag = 'input window, operand 7, single buffered']
    #allocation15 [shape = 's32[1]{0}', space=sflag, size = 0x4, scoped, tag = 'scoped memory for patchtst_forward.2']
    #allocation16 [shape = 'u8[1024]{0}', space=vmem, size = 0x400, scoped, tag = 'input window, operand 8, single buffered']
    #allocation17 [shape = 'u8[1024]{0}', space=vmem, size = 0x400, scoped, tag = 'input window, operand 9, single buffered']
    #allocation18 [shape = 's32[1]{0}', space=sflag, size = 0x4, scoped, tag = 'scoped memory for patchtst_forward.2']
    #allocation19 [shape = 'u8[16384]{0}', space=vmem, size = 0x4000, scoped, tag = 'input window, operand 10, single buffered']
    #allocation20 [shape = 'u8[1024]{0}', space=vmem, size = 0x400, scoped, tag = 'input window, operand 11, single buffered']
    #allocation21 [shape = 's32[1]{0}', space=sflag, size = 0x4, scoped, tag = 'scoped memory for patchtst_forward.2']
    #allocation22 [shape = 'u8[32768]{0}', space=vmem, size = 0x8000, scoped, tag = 'input window, operand 12, single buffered']
    #allocation23 [shape = 'u8[1024]{0}', space=vmem, size = 0x400, scoped, tag = 'input window, operand 13, single buffered']
    #allocation24 [shape = 's32[1]{0}', space=sflag, size = 0x4, scoped, tag = 'scoped memory for patchtst_forward.2']
    #allocation25 [shape = 'u8[1024]{0}', space=vmem, size = 0x400, scoped, tag = 'input window, operand 14, single buffered']
    #allocation26 [shape = 'u8[1024]{0}', space=vmem, size = 0x400, scoped, tag = 'input window, operand 15, single buffered']
    #allocation27 [shape = 's32[1]{0}', space=sflag, size = 0x4, scoped, tag = 'scoped memory for patchtst_forward.2']
    #allocation28 [shape = 'u8[32768]{0}', space=vmem, size = 0x8000, scoped, tag = 'output window, operand 0, single buffered']
    %21 = vsyncpa [#allocation3], 0
    %22 = vsyncpa [#allocation6], 0
    %23 = vsyncpa [#allocation9], 0
    %24 = vsyncpa [#allocation12], 0
    %25 = vsyncpa [#allocation15], 0
    %26 = vsyncpa [#allocation18], 0
    %27 = vsyncpa [#allocation21], 0
    %28 = vsyncpa [#allocation24], 0
    %29 = vsyncpa [#allocation27], 0
    %30 = vsyncpa [#allocation4], 0
    // Predicated region
    $region2: #{patchtst_forward.2} parent=1 // pred_check
      _
    $region3: #{patchtst_forward.2} parent=1 // pred_check_branch
      %32 = sbr.rel (0) target = $region5
    $region4: #{patchtst_forward.2} parent=1 // pred_region
      %s34 = ssub.s32 1024, 1024
      %35 = vsyncadd [#allocation3], %s34
      %s36 = sshll.u32 [#allocation2], 4
      %s37 = int_to_ptr.vmem [resolvable:$true] %s36
      %42 = dma.hbm_to_vmem [thread:$0]  %s0, 1024, %s37, [#allocation3], 128, 128, 8
    $region5: #{patchtst_forward.2} parent=1 // pred_fallthru
      _
    // Predicated region
    $region6: #{patchtst_forward.2} parent=1 // pred_check
      _
    $region7: #{patchtst_forward.2} parent=1 // pred_check_branch
      %44 = sbr.rel (0) target = $region9
    $region8: #{patchtst_forward.2} parent=1 // pred_region
      %s46 = ssub.s32 128, 128
      %47 = vsyncadd [#allocation6], %s46
      %s48 = sshll.u32 [#allocation5], 4
      %s49 = int_to_ptr.vmem [resolvable:$true] %s48
      %54 = dma.hbm_to_vmem [thread:$0]  %s1, 128, %s49, [#allocation6], 64, 64, 4
    $region9: #{patchtst_forward.2} parent=1 // pred_fallthru
      _
    // Predicated region
    $region10: #{patchtst_forward.2} parent=1 // pred_check
      _
    $region11: #{patchtst_forward.2} parent=1 // pred_check_branch
      %56 = sbr.rel (0) target = $region13
    $region12: #{patchtst_forward.2} parent=1 // pred_region
      %s58 = ssub.s32 16, 16
      %59 = vsyncadd [#allocation6], %s58
      %s61 = sshll.u32 [#allocation7], 4
      %s62 = int_to_ptr.vmem [resolvable:$true] %s61
      %64 = dma.hbm_to_vmem [thread:$0]  %s2, 16, %s62, [#allocation6]
    $region13: #{patchtst_forward.2} parent=1 // pred_fallthru
      _
    // Predicated region
    $region14: #{patchtst_forward.2} parent=1 // pred_check
      _
    $region15: #{patchtst_forward.2} parent=1 // pred_check_branch
      %66 = sbr.rel (0) target = $region17
    $region16: #{patchtst_forward.2} parent=1 // pred_region
      %s68 = ssub.s32 128, 128
      %69 = vsyncadd [#allocation9], %s68
      %s71 = sshll.u32 [#allocation8], 4
      %s72 = int_to_ptr.vmem [resolvable:$true] %s71
      %74 = dma.hbm_to_vmem [thread:$0]  %s3, 128, %s72, [#allocation9]
    $region17: #{patchtst_forward.2} parent=1 // pred_fallthru
      _
    // Predicated region
    $region18: #{patchtst_forward.2} parent=1 // pred_check
      _
    $region19: #{patchtst_forward.2} parent=1 // pred_check_branch
      %76 = sbr.rel (0) target = $region21
    $region20: #{patchtst_forward.2} parent=1 // pred_region
      %s78 = ssub.s32 512, 512
      %79 = vsyncadd [#allocation9], %s78
      %s80 = sshll.u32 [#allocation10], 4
      %s81 = int_to_ptr.vmem [resolvable:$true] %s80
      %86 = dma.hbm_to_vmem [thread:$0]  %s4, 512, %s81, [#allocation9], 64, 64, 4
    $region21: #{patchtst_forward.2} parent=1 // pred_fallthru
      _
    // Predicated region
    $region22: #{patchtst_forward.2} parent=1 // pred_check
      _
    $region23: #{patchtst_forward.2} parent=1 // pred_check_branch
      %88 = sbr.rel (0) target = $region25
    $region24: #{patchtst_forward.2} parent=1 // pred_region
      %s90 = ssub.s32 32, 32
      %91 = vsyncadd [#allocation12], %s90
      %s92 = sshll.u32 [#allocation11], 4
      %s93 = int_to_ptr.vmem [resolvable:$true] %s92
      %98 = dma.hbm_to_vmem [thread:$0]  %s5, 32, %s93, [#allocation12], 16, 16, 1
    $region25: #{patchtst_forward.2} parent=1 // pred_fallthru
      _
    // Predicated region
    $region26: #{patchtst_forward.2} parent=1 // pred_check
      _
    $region27: #{patchtst_forward.2} parent=1 // pred_check_branch
      %100 = sbr.rel (0) target = $region29
    $region28: #{patchtst_forward.2} parent=1 // pred_region
      %s102 = ssub.s32 512, 512
      %103 = vsyncadd [#allocation12], %s102
      %s104 = sshll.u32 [#allocation13], 4
      %s105 = int_to_ptr.vmem [resolvable:$true] %s104
      %110 = dma.hbm_to_vmem [thread:$0]  %s6, 512, %s105, [#allocation12], 64, 64, 4
    $region29: #{patchtst_forward.2} parent=1 // pred_fallthru
      _
    // Predicated region
    $region30: #{patchtst_forward.2} parent=1 // pred_check
      _
    $region31: #{patchtst_forward.2} parent=1 // pred_check_branch
      %112 = sbr.rel (0) target = $region33
    $region32: #{patchtst_forward.2} parent=1 // pred_region
      %s114 = ssub.s32 32, 32
      %115 = vsyncadd [#allocation15], %s114
      %s116 = sshll.u32 [#allocation14], 4
      %s117 = int_to_ptr.vmem [resolvable:$true] %s116
      %122 = dma.hbm_to_vmem [thread:$0]  %s7, 32, %s117, [#allocation15], 16, 16, 1
    $region33: #{patchtst_forward.2} parent=1 // pred_fallthru
      _
    // Predicated region
    $region34: #{patchtst_forward.2} parent=1 // pred_check
      _
    $region35: #{patchtst_forward.2} parent=1 // pred_check_branch
      %124 = sbr.rel (0) target = $region37
    $region36: #{patchtst_forward.2} parent=1 // pred_region
      %s126 = ssub.s32 32, 32
      %127 = vsyncadd [#allocation15], %s126
      %s128 = sshll.u32 [#allocation16], 4
      %s129 = int_to_ptr.vmem [resolvable:$true] %s128
      %134 = dma.hbm_to_vmem [thread:$0]  %s8, 32, %s129, [#allocation15], 16, 16, 1
    $region37: #{patchtst_forward.2} parent=1 // pred_fallthru
      _
    // Predicated region
    $region38: #{patchtst_forward.2} parent=1 // pred_check
      _
    $region39: #{patchtst_forward.2} parent=1 // pred_check_branch
      %136 = sbr.rel (0) target = $region41
    $region40: #{patchtst_forward.2} parent=1 // pred_region
      %s138 = ssub.s32 32, 32
      %139 = vsyncadd [#allocation18], %s138
      %s140 = sshll.u32 [#allocation17], 4
      %s141 = int_to_ptr.vmem [resolvable:$true] %s140
      %146 = dma.hbm_to_vmem [thread:$0]  %s9, 32, %s141, [#allocation18], 16, 16, 1
    $region41: #{patchtst_forward.2} parent=1 // pred_fallthru
      _
    // Predicated region
    $region42: #{patchtst_forward.2} parent=1 // pred_check
      _
    $region43: #{patchtst_forward.2} parent=1 // pred_check_branch
      %148 = sbr.rel (0) target = $region45
    $region44: #{patchtst_forward.2} parent=1 // pred_region
      %s150 = ssub.s32 512, 512
      %151 = vsyncadd [#allocation18], %s150
      %s152 = sshll.u32 [#allocation19], 4
      %s153 = int_to_ptr.vmem [resolvable:$true] %s152
      %158 = dma.hbm_to_vmem [thread:$0]  %s10, 512, %s153, [#allocation18], 64, 64, 4
    $region45: #{patchtst_forward.2} parent=1 // pred_fallthru
      _
    // Predicated region
    $region46: #{patchtst_forward.2} parent=1 // pred_check
      _
    $region47: #{patchtst_forward.2} parent=1 // pred_check_branch
      %160 = sbr.rel (0) target = $region49
    $region48: #{patchtst_forward.2} parent=1 // pred_region
      %s162 = ssub.s32 32, 32
      %163 = vsyncadd [#allocation21], %s162
      %s164 = sshll.u32 [#allocation20], 4
      %s165 = int_to_ptr.vmem [resolvable:$true] %s164
      %170 = dma.hbm_to_vmem [thread:$0]  %s11, 32, %s165, [#allocation21], 16, 16, 1
    $region49: #{patchtst_forward.2} parent=1 // pred_fallthru
      _
    // Predicated region
    $region50: #{patchtst_forward.2} parent=1 // pred_check
      _
    $region51: #{patchtst_forward.2} parent=1 // pred_check_branch
      %172 = sbr.rel (0) target = $region53
    $region52: #{patchtst_forward.2} parent=1 // pred_region
      %s174 = ssub.s32 1024, 1024
      %175 = vsyncadd [#allocation21], %s174
      %s176 = sshll.u32 [#allocation22], 4
      %s177 = int_to_ptr.vmem [resolvable:$true] %s176
      %182 = dma.hbm_to_vmem [thread:$0]  %s12, 1024, %s177, [#allocation21], 64, 64, 4
    $region53: #{patchtst_forward.2} parent=1 // pred_fallthru
      _
    // Predicated region
    $region54: #{patchtst_forward.2} parent=1 // pred_check
      _
    $region55: #{patchtst_forward.2} parent=1 // pred_check_branch
      %184 = sbr.rel (0) target = $region57
    $region56: #{patchtst_forward.2} parent=1 // pred_region
      %s186 = ssub.s32 32, 32
      %187 = vsyncadd [#allocation24], %s186
      %s188 = sshll.u32 [#allocation23], 4
      %s189 = int_to_ptr.vmem [resolvable:$true] %s188
      %194 = dma.hbm_to_vmem [thread:$0]  %s13, 32, %s189, [#allocation24], 16, 16, 1
    $region57: #{patchtst_forward.2} parent=1 // pred_fallthru
      _
    // Predicated region
    $region58: #{patchtst_forward.2} parent=1 // pred_check
      _
    $region59: #{patchtst_forward.2} parent=1 // pred_check_branch
      %196 = sbr.rel (0) target = $region61
    $region60: #{patchtst_forward.2} parent=1 // pred_region
      %s198 = ssub.s32 32, 32
      %199 = vsyncadd [#allocation24], %s198
      %s200 = sshll.u32 [#allocation25], 4
      %s201 = int_to_ptr.vmem [resolvable:$true] %s200
      %206 = dma.hbm_to_vmem [thread:$0]  %s14, 32, %s201, [#allocation24], 16, 16, 1
    $region61: #{patchtst_forward.2} parent=1 // pred_fallthru
      _
    // Predicated region
    $region62: #{patchtst_forward.2} parent=1 // pred_check
      _
    $region63: #{patchtst_forward.2} parent=1 // pred_check_branch
      %208 = sbr.rel (0) target = $region65
    $region64: #{patchtst_forward.2} parent=1 // pred_region
      %s210 = ssub.s32 32, 32
      %211 = vsyncadd [#allocation27], %s210
      %s212 = sshll.u32 [#allocation26], 4
      %s213 = int_to_ptr.vmem [resolvable:$true] %s212
      %218 = dma.hbm_to_vmem [thread:$0]  %s15, 32, %s213, [#allocation27], 16, 16, 1
    $region65: #{patchtst_forward.2} parent=1 // pred_fallthru
      _
    // Predicated region
    $region66: #{patchtst_forward.2} parent=1 // pred_check
      _
    $region67: #{patchtst_forward.2} parent=1 // pred_check_branch
      %220 = sbr.rel (0) target = $region69
    $region68: #{patchtst_forward.2} parent=1 // pred_region
      %221 = dma.done [#allocation3], 1024
    $region69: #{patchtst_forward.2} parent=1 // pred_fallthru
      _
    // Predicated region
    $region70: #{patchtst_forward.2} parent=1 // pred_check
      _
    $region71: #{patchtst_forward.2} parent=1 // pred_check_branch
      %223 = sbr.rel (0) target = $region73
    $region72: #{patchtst_forward.2} parent=1 // pred_region
      %224 = dma.done [#allocation6], 128
    $region73: #{patchtst_forward.2} parent=1 // pred_fallthru
      _
    // Predicated region
    $region74: #{patchtst_forward.2} parent=1 // pred_check
      _
    $region75: #{patchtst_forward.2} parent=1 // pred_check_branch
      %226 = sbr.rel (0) target = $region77
    $region76: #{patchtst_forward.2} parent=1 // pred_region
      %227 = dma.done [#allocation6], 16
    $region77: #{patchtst_forward.2} parent=1 // pred_fallthru
      _
    // Predicated region
    $region78: #{patchtst_forward.2} parent=1 // pred_check
      _
    $region79: #{patchtst_forward.2} parent=1 // pred_check_branch
      %229 = sbr.rel (0) target = $region81
    $region80: #{patchtst_forward.2} parent=1 // pred_region
      %230 = dma.done [#allocation9], 128
    $region81: #{patchtst_forward.2} parent=1 // pred_fallthru
      _
    // Predicated region
    $region82: #{patchtst_forward.2} parent=1 // pred_check
      _
    $region83: #{patchtst_forward.2} parent=1 // pred_check_branch
      %232 = sbr.rel (0) target = $region85
    $region84: #{patchtst_forward.2} parent=1 // pred_region
      %233 = dma.done [#allocation9], 512
    $region85: #{patchtst_forward.2} parent=1 // pred_fallthru
      _
    // Predicated region
    $region86: #{patchtst_forward.2} parent=1 // pred_check
      _
    $region87: #{patchtst_forward.2} parent=1 // pred_check_branch
      %235 = sbr.rel (0) target = $region89
    $region88: #{patchtst_forward.2} parent=1 // pred_region
      %236 = dma.done [#allocation12], 32
    $region89: #{patchtst_forward.2} parent=1 // pred_fallthru
      _
    // Predicated region
    $region90: #{patchtst_forward.2} parent=1 // pred_check
      _
    $region91: #{patchtst_forward.2} parent=1 // pred_check_branch
      %238 = sbr.rel (0) target = $region93
    $region92: #{patchtst_forward.2} parent=1 // pred_region
      %239 = dma.done [#allocation12], 512
    $region93: #{patchtst_forward.2} parent=1 // pred_fallthru
      _
    // Predicated region
    $region94: #{patchtst_forward.2} parent=1 // pred_check
      _
    $region95: #{patchtst_forward.2} parent=1 // pred_check_branch
      %241 = sbr.rel (0) target = $region97
    $region96: #{patchtst_forward.2} parent=1 // pred_region
      %242 = dma.done [#allocation15], 32
    $region97: #{patchtst_forward.2} parent=1 // pred_fallthru
      _
    // Predicated region
    $region98: #{patchtst_forward.2} parent=1 // pred_check
      _
    $region99: #{patchtst_forward.2} parent=1 // pred_check_branch
      %244 = sbr.rel (0) target = $region101
    $region100: #{patchtst_forward.2} parent=1 // pred_region
      %245 = dma.done [#allocation15], 32
    $region101: #{patchtst_forward.2} parent=1 // pred_fallthru
      _
    // Predicated region
    $region102: #{patchtst_forward.2} parent=1 // pred_check
      _
    $region103: #{patchtst_forward.2} parent=1 // pred_check_branch
      %247 = sbr.rel (0) target = $region105
    $region104: #{patchtst_forward.2} parent=1 // pred_region
      %248 = dma.done [#allocation18], 32
    $region105: #{patchtst_forward.2} parent=1 // pred_fallthru
      _
    // Predicated region
    $region106: #{patchtst_forward.2} parent=1 // pred_check
      _
    $region107: #{patchtst_forward.2} parent=1 // pred_check_branch
      %250 = sbr.rel (0) target = $region109
    $region108: #{patchtst_forward.2} parent=1 // pred_region
      %251 = dma.done [#allocation18], 512
    $region109: #{patchtst_forward.2} parent=1 // pred_fallthru
      _
    // Predicated region
    $region110: #{patchtst_forward.2} parent=1 // pred_check
      _
    $region111: #{patchtst_forward.2} parent=1 // pred_check_branch
      %253 = sbr.rel (0) target = $region113
    $region112: #{patchtst_forward.2} parent=1 // pred_region
      %254 = dma.done [#allocation21], 32
    $region113: #{patchtst_forward.2} parent=1 // pred_fallthru
      _
    // Predicated region
    $region114: #{patchtst_forward.2} parent=1 // pred_check
      _
    $region115: #{patchtst_forward.2} parent=1 // pred_check_branch
      %256 = sbr.rel (0) target = $region117
    $region116: #{patchtst_forward.2} parent=1 // pred_region
      %257 = dma.done [#allocation21], 1024
    $region117: #{patchtst_forward.2} parent=1 // pred_fallthru
      _
    // Predicated region
    $region118: #{patchtst_forward.2} parent=1 // pred_check
      _
    $region119: #{patchtst_forward.2} parent=1 // pred_check_branch
      %259 = sbr.rel (0) target = $region121
    $region120: #{patchtst_forward.2} parent=1 // pred_region
      %260 = dma.done [#allocation24], 32
    $region121: #{patchtst_forward.2} parent=1 // pred_fallthru
      _
    // Predicated region
    $region122: #{patchtst_forward.2} parent=1 // pred_check
      _
    $region123: #{patchtst_forward.2} parent=1 // pred_check_branch
      %262 = sbr.rel (0) target = $region125
    $region124: #{patchtst_forward.2} parent=1 // pred_region
      %263 = dma.done [#allocation24], 32
    $region125: #{patchtst_forward.2} parent=1 // pred_fallthru
      _
    // Predicated region
    $region126: #{patchtst_forward.2} parent=1 // pred_check
      _
    $region127: #{patchtst_forward.2} parent=1 // pred_check_branch
      %265 = sbr.rel (0) target = $region129
    $region128: #{patchtst_forward.2} parent=1 // pred_region
      %266 = dma.done [#allocation27], 32
    $region129: #{patchtst_forward.2} parent=1 // pred_fallthru
      _
    %v268 = vld [vmem:[#allocation2] sm:$0xff]
    %v269 = vld [vmem:[#allocation2 + $0x8] sm:$0xff]
    %v270 = vld [vmem:[#allocation2 + $0x10] sm:$0xff]
    %v271 = vld [vmem:[#allocation2 + $0x18] sm:$0xff]
    %v272 = vld [vmem:[#allocation2 + $0x20] sm:$0xff]
    %v273 = vld [vmem:[#allocation2 + $0x28] sm:$0xff]
    %v274 = vld [vmem:[#allocation2 + $0x30] sm:$0xff]
    %v275 = vld [vmem:[#allocation2 + $0x38] sm:$0xff]
    %v276 = vpack.c.bf16 %v269, %v268
    %v277 = vpack.c.bf16 %v271, %v270
    %v278 = vpack.c.bf16 %v273, %v272
    %v279 = vpack.c.bf16 %v275, %v274
    %v280 = vld [vmem:[#allocation5] sm:$0xf]
    %v281 = vld [vmem:[#allocation5 + $0x4] sm:$0xf]
    %v282 = vld [vmem:[#allocation7] sm:$0x1]
    %v284 = vlaneseq
    %v285 = vshrl.u32 %v284, 7
    %v286 = vsub.s32 0, %v285
    %v287 = vrot.slane %v282, %v286
    %v291 = vunpack.c.l.b16 %v280
    %v292 = vunpack.c.l.b16 %v281
    %v293 = vpack.c.b16 %v292, %v291
    %vm295 = vcmask 130048
    %v297 = vsel %vm295, %v276, 0
    %v300 = vsel %vm295, %v277, 0
    %v303 = vsel %vm295, %v278, 0
    %v306 = vsel %vm295, %v279, 0
    %308 = vmatprep.subr.bf16.mxu0 0
    %309 = vmatpush1.bf16.msra.mxu0 %v293
    %310 = vmatprep.subr.bf16.mxu0 0
    %311 = vmatpush1.bf16.msra.mxu0 0
    %312 = vmatprep.subr.bf16.mxu0 0
    %313 = vmatpush1.bf16.msra.mxu0 0
    %314 = vmatprep.subr.bf16.mxu0 0
    %315 = vmatpush1.bf16.msra.mxu0 0
    %316 = vmatprep.subr.bf16.mxu0 0
    %317 = vmatpush1.bf16.msra.mxu0 0
    %318 = vmatprep.subr.bf16.mxu0 0
    %319 = vmatpush1.bf16.msra.mxu0 0
    %320 = vmatprep.subr.bf16.mxu0 0
    %321 = vmatpush1.bf16.msra.mxu0 0
    %322 = vmatprep.subr.bf16.mxu0 0
    %323 = vmatpush1.bf16.msra.mxu0 0
    %324 = vmatprep.subr.bf16.mxu0 0
    %325 = vmatpush1.bf16.msra.mxu0 0
    %326 = vmatprep.subr.bf16.mxu0 0
    %327 = vmatpush1.bf16.msra.mxu0 0
    %328 = vmatprep.subr.bf16.mxu0 0
    %329 = vmatpush1.bf16.msra.mxu0 0
    %330 = vmatprep.subr.bf16.mxu0 0
    %331 = vmatpush1.bf16.msra.mxu0 0
    %332 = vmatprep.subr.bf16.mxu0 0
    %333 = vmatpush1.bf16.msra.mxu0 0
    %334 = vmatprep.subr.bf16.mxu0 0
    %335 = vmatpush1.bf16.msra.mxu0 0
    %336 = vmatprep.subr.bf16.mxu0 0
    %337 = vmatpush1.bf16.msra.mxu0 0
    %338 = vmatprep.subr.bf16.mxu0 0
    %339 = vmatpush1.bf16.msra.mxu0 0
    %340 = vmatprep.mubr.bf16.mxu0 0
    %341 = vmatmul.mubr.bf16.gmra.mrb[0].mxu0 %v297
    %v342 = vpop.f32.mrb[0].mxu0
    %v343 = vadd.f32 %v287, %v342
    %v344 = vpop.f32.mrb[0].mxu0
    %v345 = vpop.f32.mrb[0].mxu0
    %v346 = vadd.f32 %v287, %v345
    %v347 = vpop.f32.mrb[0].mxu0
    %348 = vmatprep.mubr.bf16.mxu0 0
    %349 = vmatmul.mubr.bf16.gmra.mrb[0].mxu0 %v300
    %v350 = vpop.f32.mrb[0].mxu0
    %v351 = vadd.f32 %v287, %v350
    %v352 = vpop.f32.mrb[0].mxu0
    %v353 = vpop.f32.mrb[0].mxu0
    %v354 = vadd.f32 %v287, %v353
    %v355 = vpop.f32.mrb[0].mxu0
    %356 = vmatprep.mubr.bf16.mxu0 0
    %357 = vmatmul.mubr.bf16.gmra.mrb[0].mxu0 %v303
    %v358 = vpop.f32.mrb[0].mxu0
    %v359 = vadd.f32 %v287, %v358
    %v360 = vpop.f32.mrb[0].mxu0
    %v361 = vpop.f32.mrb[0].mxu0
    %v362 = vadd.f32 %v287, %v361
    %v363 = vpop.f32.mrb[0].mxu0
    %364 = vmatprep.mubr.bf16.mxu0 0
    %365 = vmatmul.mubr.bf16.gmra.mrb[0].mxu0 %v306
    %v366 = vpop.f32.mrb[0].mxu0
    %v367 = vadd.f32 %v287, %v366
    %v368 = vpop.f32.mrb[0].mxu0
    %v369 = vpop.f32.mrb[0].mxu0
    %v370 = vadd.f32 %v287, %v369
    %v371 = vpop.f32.mrb[0].mxu0
    %372 = vdwg.mxu0
    %v373 = vld [vmem:[#allocation8] sm:$0xff]
    %v374 = vadd.f32 %v343, %v373
    %v375 = vadd.f32 %v346, %v373
    %v376 = vadd.f32 %v351, %v373
    %v377 = vadd.f32 %v354, %v373
    %v378 = vadd.f32 %v359, %v373
    %v379 = vadd.f32 %v362, %v373
    %v380 = vadd.f32 %v367, %v373
    %v381 = vadd.f32 %v370, %v373
    %v382 = vpack.c.bf16 %v375, %v374
    %v383 = vpack.c.bf16 %v377, %v376
    %v384 = vpack.c.bf16 %v379, %v378
    %v385 = vpack.c.bf16 %v381, %v380
    %v386 = vld [vmem:[#allocation10] sm:$0xf]
    %v387 = vld [vmem:[#allocation10 + $0x4] sm:$0xf]
    %v388 = vld [vmem:[#allocation10 + $0x8] sm:$0xf]
    %v389 = vld [vmem:[#allocation10 + $0xc] sm:$0xf]
    %v390 = vld [vmem:[#allocation11] sm:$0x1]
    %v392 = vlaneseq
    %v393 = vshrl.u32 %v392, 7
    %v394 = vsub.s32 0, %v393
    %v395 = vrot.slane %v390, %v394
    %v401 = vunpack.c.l.b16 %v386
    %v402 = vunpack.c.l.b16 %v387
    %v403 = vunpack.c.l.b16 %v388
    %v404 = vunpack.c.l.b16 %v389
    %v405 = vpack.c.b16 %v402, %v401
    %v406 = vpack.c.b16 %v404, %v403
    %vm409 = vcmask 261120
    %v411 = vsel %vm409, %v382, 0
    %v414 = vsel %vm409, %v383, 0
    %v417 = vsel %vm409, %v384, 0
    %v420 = vsel %vm409, %v385, 0
    %422 = vmatprep.subr.bf16.mxu0 0
    %423 = vmatpush1.bf16.msra.mxu0 %v405
    %424 = vmatprep.subr.bf16.mxu0 0
    %425 = vmatpush1.bf16.msra.mxu0 %v406
    %426 = vmatprep.subr.bf16.mxu0 0
    %427 = vmatpush1.bf16.msra.mxu0 0
    %428 = vmatprep.subr.bf16.mxu0 0
    %429 = vmatpush1.bf16.msra.mxu0 0
    %430 = vmatprep.subr.bf16.mxu0 0
    %431 = vmatpush1.bf16.msra.mxu0 0
    %432 = vmatprep.subr.bf16.mxu0 0
    %433 = vmatpush1.bf16.msra.mxu0 0
    %434 = vmatprep.subr.bf16.mxu0 0
    %435 = vmatpush1.bf16.msra.mxu0 0
    %436 = vmatprep.subr.bf16.mxu0 0
    %437 = vmatpush1.bf16.msra.mxu0 0
    %438 = vmatprep.subr.bf16.mxu0 0
    %439 = vmatpush1.bf16.msra.mxu0 0
    %440 = vmatprep.subr.bf16.mxu0 0
    %441 = vmatpush1.bf16.msra.mxu0 0
    %442 = vmatprep.subr.bf16.mxu0 0
    %443 = vmatpush1.bf16.msra.mxu0 0
    %444 = vmatprep.subr.bf16.mxu0 0
    %445 = vmatpush1.bf16.msra.mxu0 0
    %446 = vmatprep.subr.bf16.mxu0 0
    %447 = vmatpush1.bf16.msra.mxu0 0
    %448 = vmatprep.subr.bf16.mxu0 0
    %449 = vmatpush1.bf16.msra.mxu0 0
    %450 = vmatprep.subr.bf16.mxu0 0
    %451 = vmatpush1.bf16.msra.mxu0 0
    %452 = vmatprep.subr.bf16.mxu0 0
    %453 = vmatpush1.bf16.msra.mxu0 0
    %454 = vmatprep.mubr.bf16.mxu0 0
    %455 = vmatmul.mubr.bf16.gmra.mrb[0].mxu0 %v411
    %v456 = vpop.f32.mrb[0].mxu0
    %v457 = vadd.f32 %v395, %v456
    %v458 = vpop.f32.mrb[0].mxu0
    %v459 = vpop.f32.mrb[0].mxu0
    %v460 = vadd.f32 %v395, %v459
    %v461 = vpop.f32.mrb[0].mxu0
    %462 = vmatprep.mubr.bf16.mxu0 0
    %463 = vmatmul.mubr.bf16.gmra.mrb[0].mxu0 %v414
    %v464 = vpop.f32.mrb[0].mxu0
    %v465 = vadd.f32 %v395, %v464
    %v466 = vpop.f32.mrb[0].mxu0
    %v467 = vpop.f32.mrb[0].mxu0
    %v468 = vadd.f32 %v395, %v467
    %v469 = vpop.f32.mrb[0].mxu0
    %470 = vmatprep.mubr.bf16.mxu0 0
    %471 = vmatmul.mubr.bf16.gmra.mrb[0].mxu0 %v417
    %v472 = vpop.f32.mrb[0].mxu0
    %v473 = vadd.f32 %v395, %v472
    %v474 = vpop.f32.mrb[0].mxu0
    %v475 = vpop.f32.mrb[0].mxu0
    %v476 = vadd.f32 %v395, %v475
    %v477 = vpop.f32.mrb[0].mxu0
    %478 = vmatprep.mubr.bf16.mxu0 0
    %479 = vmatmul.mubr.bf16.gmra.mrb[0].mxu0 %v420
    %v480 = vpop.f32.mrb[0].mxu0
    %v481 = vadd.f32 %v395, %v480
    %v482 = vpop.f32.mrb[0].mxu0
    %v483 = vpop.f32.mrb[0].mxu0
    %v484 = vadd.f32 %v395, %v483
    %v485 = vpop.f32.mrb[0].mxu0
    %486 = vdwg.mxu0
    %v487 = vpack.c.bf16 %v457, %v457
    %v488 = vpack.c.bf16 %v460, %v460
    %v489 = vpack.c.bf16 %v465, %v465
    %v490 = vpack.c.bf16 %v468, %v468
    %v491 = vpack.c.bf16 %v473, %v473
    %v492 = vpack.c.bf16 %v476, %v476
    %v493 = vpack.c.bf16 %v481, %v481
    %v494 = vpack.c.bf16 %v484, %v484
    %496 = vrot.lane.b32.xlu0 %v487, 96
    %v497 = vpop.permute.xlu0 %496
    %vm498 = vcmask 64512
    %v500 = vsel %vm498, %v487, 0
    %v503 = vsel %vm498, %v497, 0
    %505 = vmatprep.subr.bf16.mxu0 0
    %506 = vmatpush1.bf16.xpose.msra.mxu0 %v503
    %507 = vmatprep.subr.bf16.mxu0 0
    %508 = vmatpush1.bf16.xpose.msra.mxu0 0
    %509 = vmatprep.subr.bf16.mxu0 0
    %510 = vmatpush1.bf16.xpose.msra.mxu0 0
    %511 = vmatprep.subr.bf16.mxu0 0
    %512 = vmatpush1.bf16.xpose.msra.mxu0 0
    %513 = vmatprep.subr.bf16.mxu0 0
    %514 = vmatpush1.bf16.xpose.msra.mxu0 0
    %515 = vmatprep.subr.bf16.mxu0 0
    %516 = vmatpush1.bf16.xpose.msra.mxu0 0
    %517 = vmatprep.subr.bf16.mxu0 0
    %518 = vmatpush1.bf16.xpose.msra.mxu0 0
    %519 = vmatprep.subr.bf16.mxu0 0
    %520 = vmatpush1.bf16.xpose.msra.mxu0 0
    %521 = vmatprep.subr.bf16.mxu0 0
    %522 = vmatpush1.bf16.xpose.msra.mxu0 0
    %523 = vmatprep.subr.bf16.mxu0 0
    %524 = vmatpush1.bf16.xpose.msra.mxu0 0
    %525 = vmatprep.subr.bf16.mxu0 0
    %526 = vmatpush1.bf16.xpose.msra.mxu0 0
    %527 = vmatprep.subr.bf16.mxu0 0
    %528 = vmatpush1.bf16.xpose.msra.mxu0 0
    %529 = vmatprep.subr.bf16.mxu0 0
    %530 = vmatpush1.bf16.xpose.msra.mxu0 0
    %531 = vmatprep.subr.bf16.mxu0 0
    %532 = vmatpush1.bf16.xpose.msra.mxu0 0
    %533 = vmatprep.subr.bf16.mxu0 0
    %534 = vmatpush1.bf16.xpose.msra.mxu0 0
    %535 = vmatprep.subr.bf16.mxu0 0
    %536 = vmatpush1.bf16.xpose.msra.mxu0 0
    %537 = vmatprep.mubr.bf16.mxu0 0
    %538 = vmatmul.mubr.bf16.gmra.mrb[0].mxu0 %v500
    %v539 = vpop.f32.mrb[0].mxu0
    %v540 = vadd.f32 0.0, %v539
    %v541 = vpop.f32.mrb[0].mxu0
    %v542 = vpop.f32.mrb[0].mxu0
    %v543 = vpop.f32.mrb[0].mxu0
    %544 = vdwg.mxu0
    %546 = vrot.lane.b32.xlu0 %v488, 96
    %v547 = vpop.permute.xlu0 %546
    %v549 = vsel %vm498, %v488, 0
    %v552 = vsel %vm498, %v547, 0
    %554 = vmatprep.subr.bf16.mxu0 0
    %555 = vmatpush1.bf16.xpose.msra.mxu0 %v552
    %556 = vmatprep.subr.bf16.mxu0 0
    %557 = vmatpush1.bf16.xpose.msra.mxu0 0
    %558 = vmatprep.subr.bf16.mxu0 0
    %559 = vmatpush1.bf16.xpose.msra.mxu0 0
    %560 = vmatprep.subr.bf16.mxu0 0
    %561 = vmatpush1.bf16.xpose.msra.mxu0 0
    %562 = vmatprep.subr.bf16.mxu0 0
    %563 = vmatpush1.bf16.xpose.msra.mxu0 0
    %564 = vmatprep.subr.bf16.mxu0 0
    %565 = vmatpush1.bf16.xpose.msra.mxu0 0
    %566 = vmatprep.subr.bf16.mxu0 0
    %567 = vmatpush1.bf16.xpose.msra.mxu0 0
    %568 = vmatprep.subr.bf16.mxu0 0
    %569 = vmatpush1.bf16.xpose.msra.mxu0 0
    %570 = vmatprep.subr.bf16.mxu0 0
    %571 = vmatpush1.bf16.xpose.msra.mxu0 0
    %572 = vmatprep.subr.bf16.mxu0 0
    %573 = vmatpush1.bf16.xpose.msra.mxu0 0
    %574 = vmatprep.subr.bf16.mxu0 0
    %575 = vmatpush1.bf16.xpose.msra.mxu0 0
    %576 = vmatprep.subr.bf16.mxu0 0
    %577 = vmatpush1.bf16.xpose.msra.mxu0 0
    %578 = vmatprep.subr.bf16.mxu0 0
    %579 = vmatpush1.bf16.xpose.msra.mxu0 0
    %580 = vmatprep.subr.bf16.mxu0 0
    %581 = vmatpush1.bf16.xpose.msra.mxu0 0
    %582 = vmatprep.subr.bf16.mxu0 0
    %583 = vmatpush1.bf16.xpose.msra.mxu0 0
    %584 = vmatprep.subr.bf16.mxu0 0
    %585 = vmatpush1.bf16.xpose.msra.mxu0 0
    %586 = vmatprep.mubr.bf16.mxu0 0
    %587 = vmatmul.mubr.bf16.gmra.mrb[0].mxu0 %v549
    %v588 = vpop.f32.mrb[0].mxu0
    %v589 = vadd.f32 0.0, %v588
    %v590 = vpop.f32.mrb[0].mxu0
    %v591 = vpop.f32.mrb[0].mxu0
    %v592 = vpop.f32.mrb[0].mxu0
    %593 = vdwg.mxu0
    %595 = vrot.lane.b32.xlu0 %v489, 96
    %v596 = vpop.permute.xlu0 %595
    %v598 = vsel %vm498, %v489, 0
    %v601 = vsel %vm498, %v596, 0
    %603 = vmatprep.subr.bf16.mxu0 0
    %604 = vmatpush1.bf16.xpose.msra.mxu0 %v601
    %605 = vmatprep.subr.bf16.mxu0 0
    %606 = vmatpush1.bf16.xpose.msra.mxu0 0
    %607 = vmatprep.subr.bf16.mxu0 0
    %608 = vmatpush1.bf16.xpose.msra.mxu0 0
    %609 = vmatprep.subr.bf16.mxu0 0
    %610 = vmatpush1.bf16.xpose.msra.mxu0 0
    %611 = vmatprep.subr.bf16.mxu0 0
    %612 = vmatpush1.bf16.xpose.msra.mxu0 0
    %613 = vmatprep.subr.bf16.mxu0 0
    %614 = vmatpush1.bf16.xpose.msra.mxu0 0
    %615 = vmatprep.subr.bf16.mxu0 0
    %616 = vmatpush1.bf16.xpose.msra.mxu0 0
    %617 = vmatprep.subr.bf16.mxu0 0
    %618 = vmatpush1.bf16.xpose.msra.mxu0 0
    %619 = vmatprep.subr.bf16.mxu0 0
    %620 = vmatpush1.bf16.xpose.msra.mxu0 0
    %621 = vmatprep.subr.bf16.mxu0 0
    %622 = vmatpush1.bf16.xpose.msra.mxu0 0
    %623 = vmatprep.subr.bf16.mxu0 0
    %624 = vmatpush1.bf16.xpose.msra.mxu0 0
    %625 = vmatprep.subr.bf16.mxu0 0
    %626 = vmatpush1.bf16.xpose.msra.mxu0 0
    %627 = vmatprep.subr.bf16.mxu0 0
    %628 = vmatpush1.bf16.xpose.msra.mxu0 0
    %629 = vmatprep.subr.bf16.mxu0 0
    %630 = vmatpush1.bf16.xpose.msra.mxu0 0
    %631 = vmatprep.subr.bf16.mxu0 0
    %632 = vmatpush1.bf16.xpose.msra.mxu0 0
    %633 = vmatprep.subr.bf16.mxu0 0
    %634 = vmatpush1.bf16.xpose.msra.mxu0 0
    %635 = vmatprep.mubr.bf16.mxu0 0
    %636 = vmatmul.mubr.bf16.gmra.mrb[0].mxu0 %v598
    %v637 = vpop.f32.mrb[0].mxu0
    %v638 = vadd.f32 0.0, %v637
    %v639 = vpop.f32.mrb[0].mxu0
    %v640 = vpop.f32.mrb[0].mxu0
    %v641 = vpop.f32.mrb[0].mxu0
    %642 = vdwg.mxu0
    %644 = vrot.lane.b32.xlu0 %v490, 96
    %v645 = vpop.permute.xlu0 %644
    %v647 = vsel %vm498, %v490, 0
    %v650 = vsel %vm498, %v645, 0
    %652 = vmatprep.subr.bf16.mxu0 0
    %653 = vmatpush1.bf16.xpose.msra.mxu0 %v650
    %654 = vmatprep.subr.bf16.mxu0 0
    %655 = vmatpush1.bf16.xpose.msra.mxu0 0
    %656 = vmatprep.subr.bf16.mxu0 0
    %657 = vmatpush1.bf16.xpose.msra.mxu0 0
    %658 = vmatprep.subr.bf16.mxu0 0
    %659 = vmatpush1.bf16.xpose.msra.mxu0 0
    %660 = vmatprep.subr.bf16.mxu0 0
    %661 = vmatpush1.bf16.xpose.msra.mxu0 0
    %662 = vmatprep.subr.bf16.mxu0 0
    %663 = vmatpush1.bf16.xpose.msra.mxu0 0
    %664 = vmatprep.subr.bf16.mxu0 0
    %665 = vmatpush1.bf16.xpose.msra.mxu0 0
    %666 = vmatprep.subr.bf16.mxu0 0
    %667 = vmatpush1.bf16.xpose.msra.mxu0 0
    %668 = vmatprep.subr.bf16.mxu0 0
    %669 = vmatpush1.bf16.xpose.msra.mxu0 0
    %670 = vmatprep.subr.bf16.mxu0 0
    %671 = vmatpush1.bf16.xpose.msra.mxu0 0
    %672 = vmatprep.subr.bf16.mxu0 0
    %673 = vmatpush1.bf16.xpose.msra.mxu0 0
    %674 = vmatprep.subr.bf16.mxu0 0
    %675 = vmatpush1.bf16.xpose.msra.mxu0 0
    %676 = vmatprep.subr.bf16.mxu0 0
    %677 = vmatpush1.bf16.xpose.msra.mxu0 0
    %678 = vmatprep.subr.bf16.mxu0 0
    %679 = vmatpush1.bf16.xpose.msra.mxu0 0
    %680 = vmatprep.subr.bf16.mxu0 0
    %681 = vmatpush1.bf16.xpose.msra.mxu0 0
    %682 = vmatprep.subr.bf16.mxu0 0
    %683 = vmatpush1.bf16.xpose.msra.mxu0 0
    %684 = vmatprep.mubr.bf16.mxu0 0
    %685 = vmatmul.mubr.bf16.gmra.mrb[0].mxu0 %v647
    %v686 = vpop.f32.mrb[0].mxu0
    %v687 = vadd.f32 0.0, %v686
    %v688 = vpop.f32.mrb[0].mxu0
    %v689 = vpop.f32.mrb[0].mxu0
    %v690 = vpop.f32.mrb[0].mxu0
    %691 = vdwg.mxu0
    %693 = vrot.lane.b32.xlu0 %v491, 96
    %v694 = vpop.permute.xlu0 %693
    %v696 = vsel %vm498, %v491, 0
    %v699 = vsel %vm498, %v694, 0
    %701 = vmatprep.subr.bf16.mxu0 0
    %702 = vmatpush1.bf16.xpose.msra.mxu0 %v699
    %703 = vmatprep.subr.bf16.mxu0 0
    %704 = vmatpush1.bf16.xpose.msra.mxu0 0
    %705 = vmatprep.subr.bf16.mxu0 0
    %706 = vmatpush1.bf16.xpose.msra.mxu0 0
    %707 = vmatprep.subr.bf16.mxu0 0
    %708 = vmatpush1.bf16.xpose.msra.mxu0 0
    %709 = vmatprep.subr.bf16.mxu0 0
    %710 = vmatpush1.bf16.xpose.msra.mxu0 0
    %711 = vmatprep.subr.bf16.mxu0 0
    %712 = vmatpush1.bf16.xpose.msra.mxu0 0
    %713 = vmatprep.subr.bf16.mxu0 0
    %714 = vmatpush1.bf16.xpose.msra.mxu0 0
    %715 = vmatprep.subr.bf16.mxu0 0
    %716 = vmatpush1.bf16.xpose.msra.mxu0 0
    %717 = vmatprep.subr.bf16.mxu0 0
    %718 = vmatpush1.bf16.xpose.msra.mxu0 0
    %719 = vmatprep.subr.bf16.mxu0 0
    %720 = vmatpush1.bf16.xpose.msra.mxu0 0
    %721 = vmatprep.subr.bf16.mxu0 0
    %722 = vmatpush1.bf16.xpose.msra.mxu0 0
    %723 = vmatprep.subr.bf16.mxu0 0
    %724 = vmatpush1.bf16.xpose.msra.mxu0 0
    %725 = vmatprep.subr.bf16.mxu0 0
    %726 = vmatpush1.bf16.xpose.msra.mxu0 0
    %727 = vmatprep.subr.bf16.mxu0 0
    %728 = vmatpush1.bf16.xpose.msra.mxu0 0
    %729 = vmatprep.subr.bf16.mxu0 0
    %730 = vmatpush1.bf16.xpose.msra.mxu0 0
    %731 = vmatprep.subr.bf16.mxu0 0
    %732 = vmatpush1.bf16.xpose.msra.mxu0 0
    %733 = vmatprep.mubr.bf16.mxu0 0
    %734 = vmatmul.mubr.bf16.gmra.mrb[0].mxu0 %v696
    %v735 = vpop.f32.mrb[0].mxu0
    %v736 = vadd.f32 0.0, %v735
    %v737 = vpop.f32.mrb[0].mxu0
    %v738 = vpop.f32.mrb[0].mxu0
    %v739 = vpop.f32.mrb[0].mxu0
    %740 = vdwg.mxu0
    %742 = vrot.lane.b32.xlu0 %v492, 96
    %v743 = vpop.permute.xlu0 %742
    %v745 = vsel %vm498, %v492, 0
    %v748 = vsel %vm498, %v743, 0
    %750 = vmatprep.subr.bf16.mxu0 0
    %751 = vmatpush1.bf16.xpose.msra.mxu0 %v748
    %752 = vmatprep.subr.bf16.mxu0 0
    %753 = vmatpush1.bf16.xpose.msra.mxu0 0
    %754 = vmatprep.subr.bf16.mxu0 0
    %755 = vmatpush1.bf16.xpose.msra.mxu0 0
    %756 = vmatprep.subr.bf16.mxu0 0
    %757 = vmatpush1.bf16.xpose.msra.mxu0 0
    %758 = vmatprep.subr.bf16.mxu0 0
    %759 = vmatpush1.bf16.xpose.msra.mxu0 0
    %760 = vmatprep.subr.bf16.mxu0 0
    %761 = vmatpush1.bf16.xpose.msra.mxu0 0
    %762 = vmatprep.subr.bf16.mxu0 0
    %763 = vmatpush1.bf16.xpose.msra.mxu0 0
    %764 = vmatprep.subr.bf16.mxu0 0
    %765 = vmatpush1.bf16.xpose.msra.mxu0 0
    %766 = vmatprep.subr.bf16.mxu0 0
    %767 = vmatpush1.bf16.xpose.msra.mxu0 0
    %768 = vmatprep.subr.bf16.mxu0 0
    %769 = vmatpush1.bf16.xpose.msra.mxu0 0
    %770 = vmatprep.subr.bf16.mxu0 0
    %771 = vmatpush1.bf16.xpose.msra.mxu0 0
    %772 = vmatprep.subr.bf16.mxu0 0
    %773 = vmatpush1.bf16.xpose.msra.mxu0 0
    %774 = vmatprep.subr.bf16.mxu0 0
    %775 = vmatpush1.bf16.xpose.msra.mxu0 0
    %776 = vmatprep.subr.bf16.mxu0 0
    %777 = vmatpush1.bf16.xpose.msra.mxu0 0
    %778 = vmatprep.subr.bf16.mxu0 0
    %779 = vmatpush1.bf16.xpose.msra.mxu0 0
    %780 = vmatprep.subr.bf16.mxu0 0
    %781 = vmatpush1.bf16.xpose.msra.mxu0 0
    %782 = vmatprep.mubr.bf16.mxu0 0
    %783 = vmatmul.mubr.bf16.gmra.mrb[0].mxu0 %v745
    %v784 = vpop.f32.mrb[0].mxu0
    %v785 = vadd.f32 0.0, %v784
    %v786 = vpop.f32.mrb[0].mxu0
    %v787 = vpop.f32.mrb[0].mxu0
    %v788 = vpop.f32.mrb[0].mxu0
    %789 = vdwg.mxu0
    %791 = vrot.lane.b32.xlu0 %v493, 96
    %v792 = vpop.permute.xlu0 %791
    %v794 = vsel %vm498, %v493, 0
    %v797 = vsel %vm498, %v792, 0
    %799 = vmatprep.subr.bf16.mxu0 0
    %800 = vmatpush1.bf16.xpose.msra.mxu0 %v797
    %801 = vmatprep.subr.bf16.mxu0 0
    %802 = vmatpush1.bf16.xpose.msra.mxu0 0
    %803 = vmatprep.subr.bf16.mxu0 0
    %804 = vmatpush1.bf16.xpose.msra.mxu0 0
    %805 = vmatprep.subr.bf16.mxu0 0
    %806 = vmatpush1.bf16.xpose.msra.mxu0 0
    %807 = vmatprep.subr.bf16.mxu0 0
    %808 = vmatpush1.bf16.xpose.msra.mxu0 0
    %809 = vmatprep.subr.bf16.mxu0 0
    %810 = vmatpush1.bf16.xpose.msra.mxu0 0
    %811 = vmatprep.subr.bf16.mxu0 0
    %812 = vmatpush1.bf16.xpose.msra.mxu0 0
    %813 = vmatprep.subr.bf16.mxu0 0
    %814 = vmatpush1.bf16.xpose.msra.mxu0 0
    %815 = vmatprep.subr.bf16.mxu0 0
    %816 = vmatpush1.bf16.xpose.msra.mxu0 0
    %817 = vmatprep.subr.bf16.mxu0 0
    %818 = vmatpush1.bf16.xpose.msra.mxu0 0
    %819 = vmatprep.subr.bf16.mxu0 0
    %820 = vmatpush1.bf16.xpose.msra.mxu0 0
    %821 = vmatprep.subr.bf16.mxu0 0
    %822 = vmatpush1.bf16.xpose.msra.mxu0 0
    %823 = vmatprep.subr.bf16.mxu0 0
    %824 = vmatpush1.bf16.xpose.msra.mxu0 0
    %825 = vmatprep.subr.bf16.mxu0 0
    %826 = vmatpush1.bf16.xpose.msra.mxu0 0
    %827 = vmatprep.subr.bf16.mxu0 0
    %828 = vmatpush1.bf16.xpose.msra.mxu0 0
    %829 = vmatprep.subr.bf16.mxu0 0
    %830 = vmatpush1.bf16.xpose.msra.mxu0 0
    %831 = vmatprep.mubr.bf16.mxu0 0
    %832 = vmatmul.mubr.bf16.gmra.mrb[0].mxu0 %v794
    %v833 = vpop.f32.mrb[0].mxu0
    %v834 = vadd.f32 0.0, %v833
    %v835 = vpop.f32.mrb[0].mxu0
    %v836 = vpop.f32.mrb[0].mxu0
    %v837 = vpop.f32.mrb[0].mxu0
    %838 = vdwg.mxu0
    %840 = vrot.lane.b32.xlu0 %v494, 96
    %v841 = vpop.permute.xlu0 %840
    %v843 = vsel %vm498, %v494, 0
    %v846 = vsel %vm498, %v841, 0
    %848 = vmatprep.subr.bf16.mxu0 0
    %849 = vmatpush1.bf16.xpose.msra.mxu0 %v846
    %850 = vmatprep.subr.bf16.mxu0 0
    %851 = vmatpush1.bf16.xpose.msra.mxu0 0
    %852 = vmatprep.subr.bf16.mxu0 0
    %853 = vmatpush1.bf16.xpose.msra.mxu0 0
    %854 = vmatprep.subr.bf16.mxu0 0
    %855 = vmatpush1.bf16.xpose.msra.mxu0 0
    %856 = vmatprep.subr.bf16.mxu0 0
    %857 = vmatpush1.bf16.xpose.msra.mxu0 0
    %858 = vmatprep.subr.bf16.mxu0 0
    %859 = vmatpush1.bf16.xpose.msra.mxu0 0
    %860 = vmatprep.subr.bf16.mxu0 0
    %861 = vmatpush1.bf16.xpose.msra.mxu0 0
    %862 = vmatprep.subr.bf16.mxu0 0
    %863 = vmatpush1.bf16.xpose.msra.mxu0 0
    %864 = vmatprep.subr.bf16.mxu0 0
    %865 = vmatpush1.bf16.xpose.msra.mxu0 0
    %866 = vmatprep.subr.bf16.mxu0 0
    %867 = vmatpush1.bf16.xpose.msra.mxu0 0
    %868 = vmatprep.subr.bf16.mxu0 0
    %869 = vmatpush1.bf16.xpose.msra.mxu0 0
    %870 = vmatprep.subr.bf16.mxu0 0
    %871 = vmatpush1.bf16.xpose.msra.mxu0 0
    %872 = vmatprep.subr.bf16.mxu0 0
    %873 = vmatpush1.bf16.xpose.msra.mxu0 0
    %874 = vmatprep.subr.bf16.mxu0 0
    %875 = vmatpush1.bf16.xpose.msra.mxu0 0
    %876 = vmatprep.subr.bf16.mxu0 0
    %877 = vmatpush1.bf16.xpose.msra.mxu0 0
    %878 = vmatprep.subr.bf16.mxu0 0
    %879 = vmatpush1.bf16.xpose.msra.mxu0 0
    %880 = vmatprep.mubr.bf16.mxu0 0
    %881 = vmatmul.mubr.bf16.gmra.mrb[0].mxu0 %v843
    %v882 = vpop.f32.mrb[0].mxu0
    %v883 = vadd.f32 0.0, %v882
    %v884 = vpop.f32.mrb[0].mxu0
    %v885 = vpop.f32.mrb[0].mxu0
    %v886 = vpop.f32.mrb[0].mxu0
    %887 = vdwg.mxu0
    %v888 = vmul.f32 %v540, 0.35355338
    %v889 = vmul.f32 %v589, 0.35355338
    %v890 = vmul.f32 %v638, 0.35355338
    %v891 = vmul.f32 %v687, 0.35355338
    %v892 = vmul.f32 %v736, 0.35355338
    %v893 = vmul.f32 %v785, 0.35355338
    %v894 = vmul.f32 %v834, 0.35355338
    %v895 = vmul.f32 %v883, 0.35355338
    %v896 = vsel %vm498, %v888, -inf
    %897 = vmax.xlane.f32.xlu0 %v896
    %v898 = vpop.xlane.xlu0 %897
    %v899 = vsel %vm498, %v889, -inf
    %900 = vmax.xlane.f32.xlu0 %v899
    %v901 = vpop.xlane.xlu0 %900
    %v902 = vsel %vm498, %v890, -inf
    %903 = vmax.xlane.f32.xlu0 %v902
    %v904 = vpop.xlane.xlu0 %903
    %v905 = vsel %vm498, %v891, -inf
    %906 = vmax.xlane.f32.xlu0 %v905
    %v907 = vpop.xlane.xlu0 %906
    %v908 = vsel %vm498, %v892, -inf
    %909 = vmax.xlane.f32.xlu0 %v908
    %v910 = vpop.xlane.xlu0 %909
    %v911 = vsel %vm498, %v893, -inf
    %912 = vmax.xlane.f32.xlu0 %v911
    %v913 = vpop.xlane.xlu0 %912
    %v914 = vsel %vm498, %v894, -inf
    %915 = vmax.xlane.f32.xlu0 %v914
    %v916 = vpop.xlane.xlu0 %915
    %v917 = vsel %vm498, %v895, -inf
    %918 = vmax.xlane.f32.xlu0 %v917
    %v919 = vpop.xlane.xlu0 %918
    %v920 = vsub.f32 %v888, %v898
    %v921 = vsub.f32 %v889, %v901
    %v922 = vsub.f32 %v890, %v904
    %v923 = vsub.f32 %v891, %v907
    %v924 = vsub.f32 %v892, %v910
    %v925 = vsub.f32 %v893, %v913
    %v926 = vsub.f32 %v894, %v916
    %v927 = vsub.f32 %v895, %v919
    %v928 = vmul.f32 %v920, 1.442695
    %v929 = vpow.pop %v928
    %v930 = vmul.f32 %v921, 1.442695
    %v931 = vpow.pop %v930
    %v932 = vmul.f32 %v922, 1.442695
    %v933 = vpow.pop %v932
    %v934 = vmul.f32 %v923, 1.442695
    %v935 = vpow.pop %v934
    %v936 = vmul.f32 %v924, 1.442695
    %v937 = vpow.pop %v936
    %v938 = vmul.f32 %v925, 1.442695
    %v939 = vpow.pop %v938
    %v940 = vmul.f32 %v926, 1.442695
    %v941 = vpow.pop %v940
    %v942 = vmul.f32 %v927, 1.442695
    %v943 = vpow.pop %v942
    %v944 = vsel %vm498, %v929, 0.0
    %945 = vadd.xlane.f32.xlu0 %v944
    %v946 = vpop.xlane.xlu0 %945
    %v947 = vsel %vm498, %v931, 0.0
    %948 = vadd.xlane.f32.xlu0 %v947
    %v949 = vpop.xlane.xlu0 %948
    %v950 = vsel %vm498, %v933, 0.0
    %951 = vadd.xlane.f32.xlu0 %v950
    %v952 = vpop.xlane.xlu0 %951
    %v953 = vsel %vm498, %v935, 0.0
    %954 = vadd.xlane.f32.xlu0 %v953
    %v955 = vpop.xlane.xlu0 %954
    %v956 = vsel %vm498, %v937, 0.0
    %957 = vadd.xlane.f32.xlu0 %v956
    %v958 = vpop.xlane.xlu0 %957
    %v959 = vsel %vm498, %v939, 0.0
    %960 = vadd.xlane.f32.xlu0 %v959
    %v961 = vpop.xlane.xlu0 %960
    %v962 = vsel %vm498, %v941, 0.0
    %963 = vadd.xlane.f32.xlu0 %v962
    %v964 = vpop.xlane.xlu0 %963
    %v965 = vsel %vm498, %v943, 0.0
    %966 = vadd.xlane.f32.xlu0 %v965
    %v967 = vpop.xlane.xlu0 %966
    %v968 = vrcp.pop %v946
    %v969 = vrcp.pop %v949
    %v970 = vrcp.pop %v952
    %v971 = vrcp.pop %v955
    %v972 = vrcp.pop %v958
    %v973 = vrcp.pop %v961
    %v974 = vrcp.pop %v964
    %v975 = vrcp.pop %v967
    %v976 = vmul.f32 %v929, %v968
    %v977 = vmul.f32 %v931, %v969
    %v978 = vmul.f32 %v933, %v970
    %v979 = vmul.f32 %v935, %v971
    %v980 = vmul.f32 %v937, %v972
    %v981 = vmul.f32 %v939, %v973
    %v982 = vmul.f32 %v941, %v974
    %v983 = vmul.f32 %v943, %v975
    %v984 = vpack.c.bf16 %v976, %v976
    %v985 = vpack.c.bf16 %v977, %v977
    %v986 = vpack.c.bf16 %v978, %v978
    %v987 = vpack.c.bf16 %v979, %v979
    %v988 = vpack.c.bf16 %v980, %v980
    %v989 = vpack.c.bf16 %v981, %v981
    %v990 = vpack.c.bf16 %v982, %v982
    %v991 = vpack.c.bf16 %v983, %v983
    %992 = vrot.lane.b32.xlu0 %v487, 64
    %v993 = vpop.permute.xlu0 %992
    %v995 = vsel %vm498, %v984, 0
    %vm997 = vcmask 1043456
    %v999 = vsel %vm997, %v993, 0
    %1001 = vmatprep.subr.bf16.mxu0 0
    %1002 = vmatpush1.bf16.msra.mxu0 %v999
    %1003 = vmatprep.subr.bf16.mxu0 0
    %1004 = vmatpush1.bf16.msra.mxu0 0
    %1005 = vmatprep.subr.bf16.mxu0 0
    %1006 = vmatpush1.bf16.msra.mxu0 0
    %1007 = vmatprep.subr.bf16.mxu0 0
    %1008 = vmatpush1.bf16.msra.mxu0 0
    %1009 = vmatprep.subr.bf16.mxu0 0
    %1010 = vmatpush1.bf16.msra.mxu0 0
    %1011 = vmatprep.subr.bf16.mxu0 0
    %1012 = vmatpush1.bf16.msra.mxu0 0
    %1013 = vmatprep.subr.bf16.mxu0 0
    %1014 = vmatpush1.bf16.msra.mxu0 0
    %1015 = vmatprep.subr.bf16.mxu0 0
    %1016 = vmatpush1.bf16.msra.mxu0 0
    %1017 = vmatprep.subr.bf16.mxu0 0
    %1018 = vmatpush1.bf16.msra.mxu0 0
    %1019 = vmatprep.subr.bf16.mxu0 0
    %1020 = vmatpush1.bf16.msra.mxu0 0
    %1021 = vmatprep.subr.bf16.mxu0 0
    %1022 = vmatpush1.bf16.msra.mxu0 0
    %1023 = vmatprep.subr.bf16.mxu0 0
    %1024 = vmatpush1.bf16.msra.mxu0 0
    %1025 = vmatprep.subr.bf16.mxu0 0
    %1026 = vmatpush1.bf16.msra.mxu0 0
    %1027 = vmatprep.subr.bf16.mxu0 0
    %1028 = vmatpush1.bf16.msra.mxu0 0
    %1029 = vmatprep.subr.bf16.mxu0 0
    %1030 = vmatpush1.bf16.msra.mxu0 0
    %1031 = vmatprep.subr.bf16.mxu0 0
    %1032 = vmatpush1.bf16.msra.mxu0 0
    %1033 = vmatprep.mubr.bf16.mxu0 0
    %1034 = vmatmul.mubr.bf16.gmra.mrb[0].mxu0 %v995
    %v1035 = vpop.f32.mrb[0].mxu0
    %v1036 = vadd.f32 0.0, %v1035
    %v1037 = vpop.f32.mrb[0].mxu0
    %v1038 = vpop.f32.mrb[0].mxu0
    %v1039 = vpop.f32.mrb[0].mxu0
    %1040 = vdwg.mxu0
    %1041 = vrot.lane.b32.xlu0 %v488, 64
    %v1042 = vpop.permute.xlu0 %1041
    %v1044 = vsel %vm498, %v985, 0
    %v1047 = vsel %vm997, %v1042, 0
    %1049 = vmatprep.subr.bf16.mxu0 0
    %1050 = vmatpush1.bf16.msra.mxu0 %v1047
    %1051 = vmatprep.subr.bf16.mxu0 0
    %1052 = vmatpush1.bf16.msra.mxu0 0
    %1053 = vmatprep.subr.bf16.mxu0 0
    %1054 = vmatpush1.bf16.msra.mxu0 0
    %1055 = vmatprep.subr.bf16.mxu0 0
    %1056 = vmatpush1.bf16.msra.mxu0 0
    %1057 = vmatprep.subr.bf16.mxu0 0
    %1058 = vmatpush1.bf16.msra.mxu0 0
    %1059 = vmatprep.subr.bf16.mxu0 0
    %1060 = vmatpush1.bf16.msra.mxu0 0
    %1061 = vmatprep.subr.bf16.mxu0 0
    %1062 = vmatpush1.bf16.msra.mxu0 0
    %1063 = vmatprep.subr.bf16.mxu0 0
    %1064 = vmatpush1.bf16.msra.mxu0 0
    %1065 = vmatprep.subr.bf16.mxu0 0
    %1066 = vmatpush1.bf16.msra.mxu0 0
    %1067 = vmatprep.subr.bf16.mxu0 0
    %1068 = vmatpush1.bf16.msra.mxu0 0
    %1069 = vmatprep.subr.bf16.mxu0 0
    %1070 = vmatpush1.bf16.msra.mxu0 0
    %1071 = vmatprep.subr.bf16.mxu0 0
    %1072 = vmatpush1.bf16.msra.mxu0 0
    %1073 = vmatprep.subr.bf16.mxu0 0
    %1074 = vmatpush1.bf16.msra.mxu0 0
    %1075 = vmatprep.subr.bf16.mxu0 0
    %1076 = vmatpush1.bf16.msra.mxu0 0
    %1077 = vmatprep.subr.bf16.mxu0 0
    %1078 = vmatpush1.bf16.msra.mxu0 0
    %1079 = vmatprep.subr.bf16.mxu0 0
    %1080 = vmatpush1.bf16.msra.mxu0 0
    %1081 = vmatprep.mubr.bf16.mxu0 0
    %1082 = vmatmul.mubr.bf16.gmra.mrb[0].mxu0 %v1044
    %v1083 = vpop.f32.mrb[0].mxu0
    %v1084 = vadd.f32 0.0, %v1083
    %v1085 = vpop.f32.mrb[0].mxu0
    %v1086 = vpop.f32.mrb[0].mxu0
    %v1087 = vpop.f32.mrb[0].mxu0
    %1088 = vdwg.mxu0
    %1089 = vrot.lane.b32.xlu0 %v489, 64
    %v1090 = vpop.permute.xlu0 %1089
    %v1092 = vsel %vm498, %v986, 0
    %v1095 = vsel %vm997, %v1090, 0
    %1097 = vmatprep.subr.bf16.mxu0 0
    %1098 = vmatpush1.bf16.msra.mxu0 %v1095
    %1099 = vmatprep.subr.bf16.mxu0 0
    %1100 = vmatpush1.bf16.msra.mxu0 0
    %1101 = vmatprep.subr.bf16.mxu0 0
    %1102 = vmatpush1.bf16.msra.mxu0 0
    %1103 = vmatprep.subr.bf16.mxu0 0
    %1104 = vmatpush1.bf16.msra.mxu0 0
    %1105 = vmatprep.subr.bf16.mxu0 0
    %1106 = vmatpush1.bf16.msra.mxu0 0
    %1107 = vmatprep.subr.bf16.mxu0 0
    %1108 = vmatpush1.bf16.msra.mxu0 0
    %1109 = vmatprep.subr.bf16.mxu0 0
    %1110 = vmatpush1.bf16.msra.mxu0 0
    %1111 = vmatprep.subr.bf16.mxu0 0
    %1112 = vmatpush1.bf16.msra.mxu0 0
    %1113 = vmatprep.subr.bf16.mxu0 0
    %1114 = vmatpush1.bf16.msra.mxu0 0
    %1115 = vmatprep.subr.bf16.mxu0 0
    %1116 = vmatpush1.bf16.msra.mxu0 0
    %1117 = vmatprep.subr.bf16.mxu0 0
    %1118 = vmatpush1.bf16.msra.mxu0 0
    %1119 = vmatprep.subr.bf16.mxu0 0
    %1120 = vmatpush1.bf16.msra.mxu0 0
    %1121 = vmatprep.subr.bf16.mxu0 0
    %1122 = vmatpush1.bf16.msra.mxu0 0
    %1123 = vmatprep.subr.bf16.mxu0 0
    %1124 = vmatpush1.bf16.msra.mxu0 0
    %1125 = vmatprep.subr.bf16.mxu0 0
    %1126 = vmatpush1.bf16.msra.mxu0 0
    %1127 = vmatprep.subr.bf16.mxu0 0
    %1128 = vmatpush1.bf16.msra.mxu0 0
    %1129 = vmatprep.mubr.bf16.mxu0 0
    %1130 = vmatmul.mubr.bf16.gmra.mrb[0].mxu0 %v1092
    %v1131 = vpop.f32.mrb[0].mxu0
    %v1132 = vadd.f32 0.0, %v1131
    %v1133 = vpop.f32.mrb[0].mxu0
    %v1134 = vpop.f32.mrb[0].mxu0
    %v1135 = vpop.f32.mrb[0].mxu0
    %1136 = vdwg.mxu0
    %1137 = vrot.lane.b32.xlu0 %v490, 64
    %v1138 = vpop.permute.xlu0 %1137
    %v1140 = vsel %vm498, %v987, 0
    %v1143 = vsel %vm997, %v1138, 0
    %1145 = vmatprep.subr.bf16.mxu0 0
    %1146 = vmatpush1.bf16.msra.mxu0 %v1143
    %1147 = vmatprep.subr.bf16.mxu0 0
    %1148 = vmatpush1.bf16.msra.mxu0 0
    %1149 = vmatprep.subr.bf16.mxu0 0
    %1150 = vmatpush1.bf16.msra.mxu0 0
    %1151 = vmatprep.subr.bf16.mxu0 0
    %1152 = vmatpush1.bf16.msra.mxu0 0
    %1153 = vmatprep.subr.bf16.mxu0 0
    %1154 = vmatpush1.bf16.msra.mxu0 0
    %1155 = vmatprep.subr.bf16.mxu0 0
    %1156 = vmatpush1.bf16.msra.mxu0 0
    %1157 = vmatprep.subr.bf16.mxu0 0
    %1158 = vmatpush1.bf16.msra.mxu0 0
    %1159 = vmatprep.subr.bf16.mxu0 0
    %1160 = vmatpush1.bf16.msra.mxu0 0
    %1161 = vmatprep.subr.bf16.mxu0 0
    %1162 = vmatpush1.bf16.msra.mxu0 0
    %1163 = vmatprep.subr.bf16.mxu0 0
    %1164 = vmatpush1.bf16.msra.mxu0 0
    %1165 = vmatprep.subr.bf16.mxu0 0
    %1166 = vmatpush1.bf16.msra.mxu0 0
    %1167 = vmatprep.subr.bf16.mxu0 0
    %1168 = vmatpush1.bf16.msra.mxu0 0
    %1169 = vmatprep.subr.bf16.mxu0 0
    %1170 = vmatpush1.bf16.msra.mxu0 0
    %1171 = vmatprep.subr.bf16.mxu0 0
    %1172 = vmatpush1.bf16.msra.mxu0 0
    %1173 = vmatprep.subr.bf16.mxu0 0
    %1174 = vmatpush1.bf16.msra.mxu0 0
    %1175 = vmatprep.subr.bf16.mxu0 0
    %1176 = vmatpush1.bf16.msra.mxu0 0
    %1177 = vmatprep.mubr.bf16.mxu0 0
    %1178 = vmatmul.mubr.bf16.gmra.mrb[0].mxu0 %v1140
    %v1179 = vpop.f32.mrb[0].mxu0
    %v1180 = vadd.f32 0.0, %v1179
    %v1181 = vpop.f32.mrb[0].mxu0
    %v1182 = vpop.f32.mrb[0].mxu0
    %v1183 = vpop.f32.mrb[0].mxu0
    %1184 = vdwg.mxu0
    %1185 = vrot.lane.b32.xlu0 %v491, 64
    %v1186 = vpop.permute.xlu0 %1185
    %v1188 = vsel %vm498, %v988, 0
    %v1191 = vsel %vm997, %v1186, 0
    %1193 = vmatprep.subr.bf16.mxu0 0
    %1194 = vmatpush1.bf16.msra.mxu0 %v1191
    %1195 = vmatprep.subr.bf16.mxu0 0
    %1196 = vmatpush1.bf16.msra.mxu0 0
    %1197 = vmatprep.subr.bf16.mxu0 0
    %1198 = vmatpush1.bf16.msra.mxu0 0
    %1199 = vmatprep.subr.bf16.mxu0 0
    %1200 = vmatpush1.bf16.msra.mxu0 0
    %1201 = vmatprep.subr.bf16.mxu0 0
    %1202 = vmatpush1.bf16.msra.mxu0 0
    %1203 = vmatprep.subr.bf16.mxu0 0
    %1204 = vmatpush1.bf16.msra.mxu0 0
    %1205 = vmatprep.subr.bf16.mxu0 0
    %1206 = vmatpush1.bf16.msra.mxu0 0
    %1207 = vmatprep.subr.bf16.mxu0 0
    %1208 = vmatpush1.bf16.msra.mxu0 0
    %1209 = vmatprep.subr.bf16.mxu0 0
    %1210 = vmatpush1.bf16.msra.mxu0 0
    %1211 = vmatprep.subr.bf16.mxu0 0
    %1212 = vmatpush1.bf16.msra.mxu0 0
    %1213 = vmatprep.subr.bf16.mxu0 0
    %1214 = vmatpush1.bf16.msra.mxu0 0
    %1215 = vmatprep.subr.bf16.mxu0 0
    %1216 = vmatpush1.bf16.msra.mxu0 0
    %1217 = vmatprep.subr.bf16.mxu0 0
    %1218 = vmatpush1.bf16.msra.mxu0 0
    %1219 = vmatprep.subr.bf16.mxu0 0
    %1220 = vmatpush1.bf16.msra.mxu0 0
    %1221 = vmatprep.subr.bf16.mxu0 0
    %1222 = vmatpush1.bf16.msra.mxu0 0
    %1223 = vmatprep.subr.bf16.mxu0 0
    %1224 = vmatpush1.bf16.msra.mxu0 0
    %1225 = vmatprep.mubr.bf16.mxu0 0
    %1226 = vmatmul.mubr.bf16.gmra.mrb[0].mxu0 %v1188
    %v1227 = vpop.f32.mrb[0].mxu0
    %v1228 = vadd.f32 0.0, %v1227
    %v1229 = vpop.f32.mrb[0].mxu0
    %v1230 = vpop.f32.mrb[0].mxu0
    %v1231 = vpop.f32.mrb[0].mxu0
    %1232 = vdwg.mxu0
    %1233 = vrot.lane.b32.xlu0 %v492, 64
    %v1234 = vpop.permute.xlu0 %1233
    %v1236 = vsel %vm498, %v989, 0
    %v1239 = vsel %vm997, %v1234, 0
    %1241 = vmatprep.subr.bf16.mxu0 0
    %1242 = vmatpush1.bf16.msra.mxu0 %v1239
    %1243 = vmatprep.subr.bf16.mxu0 0
    %1244 = vmatpush1.bf16.msra.mxu0 0
    %1245 = vmatprep.subr.bf16.mxu0 0
    %1246 = vmatpush1.bf16.msra.mxu0 0
    %1247 = vmatprep.subr.bf16.mxu0 0
    %1248 = vmatpush1.bf16.msra.mxu0 0
    %1249 = vmatprep.subr.bf16.mxu0 0
    %1250 = vmatpush1.bf16.msra.mxu0 0
    %1251 = vmatprep.subr.bf16.mxu0 0
    %1252 = vmatpush1.bf16.msra.mxu0 0
    %1253 = vmatprep.subr.bf16.mxu0 0
    %1254 = vmatpush1.bf16.msra.mxu0 0
    %1255 = vmatprep.subr.bf16.mxu0 0
    %1256 = vmatpush1.bf16.msra.mxu0 0
    %1257 = vmatprep.subr.bf16.mxu0 0
    %1258 = vmatpush1.bf16.msra.mxu0 0
    %1259 = vmatprep.subr.bf16.mxu0 0
    %1260 = vmatpush1.bf16.msra.mxu0 0
    %1261 = vmatprep.subr.bf16.mxu0 0
    %1262 = vmatpush1.bf16.msra.mxu0 0
    %1263 = vmatprep.subr.bf16.mxu0 0
    %1264 = vmatpush1.bf16.msra.mxu0 0
    %1265 = vmatprep.subr.bf16.mxu0 0
    %1266 = vmatpush1.bf16.msra.mxu0 0
    %1267 = vmatprep.subr.bf16.mxu0 0
    %1268 = vmatpush1.bf16.msra.mxu0 0
    %1269 = vmatprep.subr.bf16.mxu0 0
    %1270 = vmatpush1.bf16.msra.mxu0 0
    %1271 = vmatprep.subr.bf16.mxu0 0
    %1272 = vmatpush1.bf16.msra.mxu0 0
    %1273 = vmatprep.mubr.bf16.mxu0 0
    %1274 = vmatmul.mubr.bf16.gmra.mrb[0].mxu0 %v1236
    %v1275 = vpop.f32.mrb[0].mxu0
    %v1276 = vadd.f32 0.0, %v1275
    %v1277 = vpop.f32.mrb[0].mxu0
    %v1278 = vpop.f32.mrb[0].mxu0
    %v1279 = vpop.f32.mrb[0].mxu0
    %1280 = vdwg.mxu0
    %1281 = vrot.lane.b32.xlu0 %v493, 64
    %v1282 = vpop.permute.xlu0 %1281
    %v1284 = vsel %vm498, %v990, 0
    %v1287 = vsel %vm997, %v1282, 0
    %1289 = vmatprep.subr.bf16.mxu0 0
    %1290 = vmatpush1.bf16.msra.mxu0 %v1287
    %1291 = vmatprep.subr.bf16.mxu0 0
    %1292 = vmatpush1.bf16.msra.mxu0 0
    %1293 = vmatprep.subr.bf16.mxu0 0
    %1294 = vmatpush1.bf16.msra.mxu0 0
    %1295 = vmatprep.subr.bf16.mxu0 0
    %1296 = vmatpush1.bf16.msra.mxu0 0
    %1297 = vmatprep.subr.bf16.mxu0 0
    %1298 = vmatpush1.bf16.msra.mxu0 0
    %1299 = vmatprep.subr.bf16.mxu0 0
    %1300 = vmatpush1.bf16.msra.mxu0 0
    %1301 = vmatprep.subr.bf16.mxu0 0
    %1302 = vmatpush1.bf16.msra.mxu0 0
    %1303 = vmatprep.subr.bf16.mxu0 0
    %1304 = vmatpush1.bf16.msra.mxu0 0
    %1305 = vmatprep.subr.bf16.mxu0 0
    %1306 = vmatpush1.bf16.msra.mxu0 0
    %1307 = vmatprep.subr.bf16.mxu0 0
    %1308 = vmatpush1.bf16.msra.mxu0 0
    %1309 = vmatprep.subr.bf16.mxu0 0
    %1310 = vmatpush1.bf16.msra.mxu0 0
    %1311 = vmatprep.subr.bf16.mxu0 0
    %1312 = vmatpush1.bf16.msra.mxu0 0
    %1313 = vmatprep.subr.bf16.mxu0 0
    %1314 = vmatpush1.bf16.msra.mxu0 0
    %1315 = vmatprep.subr.bf16.mxu0 0
    %1316 = vmatpush1.bf16.msra.mxu0 0
    %1317 = vmatprep.subr.bf16.mxu0 0
    %1318 = vmatpush1.bf16.msra.mxu0 0
    %1319 = vmatprep.subr.bf16.mxu0 0
    %1320 = vmatpush1.bf16.msra.mxu0 0
    %1321 = vmatprep.mubr.bf16.mxu0 0
    %1322 = vmatmul.mubr.bf16.gmra.mrb[0].mxu0 %v1284
    %v1323 = vpop.f32.mrb[0].mxu0
    %v1324 = vadd.f32 0.0, %v1323
    %v1325 = vpop.f32.mrb[0].mxu0
    %v1326 = vpop.f32.mrb[0].mxu0
    %v1327 = vpop.f32.mrb[0].mxu0
    %1328 = vdwg.mxu0
    %1329 = vrot.lane.b32.xlu0 %v494, 64
    %v1330 = vpop.permute.xlu0 %1329
    %v1332 = vsel %vm498, %v991, 0
    %v1335 = vsel %vm997, %v1330, 0
    %1337 = vmatprep.subr.bf16.mxu0 0
    %1338 = vmatpush1.bf16.msra.mxu0 %v1335
    %1339 = vmatprep.subr.bf16.mxu0 0
    %1340 = vmatpush1.bf16.msra.mxu0 0
    %1341 = vmatprep.subr.bf16.mxu0 0
    %1342 = vmatpush1.bf16.msra.mxu0 0
    %1343 = vmatprep.subr.bf16.mxu0 0
    %1344 = vmatpush1.bf16.msra.mxu0 0
    %1345 = vmatprep.subr.bf16.mxu0 0
    %1346 = vmatpush1.bf16.msra.mxu0 0
    %1347 = vmatprep.subr.bf16.mxu0 0
    %1348 = vmatpush1.bf16.msra.mxu0 0
    %1349 = vmatprep.subr.bf16.mxu0 0
    %1350 = vmatpush1.bf16.msra.mxu0 0
    %1351 = vmatprep.subr.bf16.mxu0 0
    %1352 = vmatpush1.bf16.msra.mxu0 0
    %1353 = vmatprep.subr.bf16.mxu0 0
    %1354 = vmatpush1.bf16.msra.mxu0 0
    %1355 = vmatprep.subr.bf16.mxu0 0
    %1356 = vmatpush1.bf16.msra.mxu0 0
    %1357 = vmatprep.subr.bf16.mxu0 0
    %1358 = vmatpush1.bf16.msra.mxu0 0
    %1359 = vmatprep.subr.bf16.mxu0 0
    %1360 = vmatpush1.bf16.msra.mxu0 0
    %1361 = vmatprep.subr.bf16.mxu0 0
    %1362 = vmatpush1.bf16.msra.mxu0 0
    %1363 = vmatprep.subr.bf16.mxu0 0
    %1364 = vmatpush1.bf16.msra.mxu0 0
    %1365 = vmatprep.subr.bf16.mxu0 0
    %1366 = vmatpush1.bf16.msra.mxu0 0
    %1367 = vmatprep.subr.bf16.mxu0 0
    %1368 = vmatpush1.bf16.msra.mxu0 0
    %1369 = vmatprep.mubr.bf16.mxu0 0
    %1370 = vmatmul.mubr.bf16.gmra.mrb[0].mxu0 %v1332
    %v1371 = vpop.f32.mrb[0].mxu0
    %v1372 = vadd.f32 0.0, %v1371
    %v1373 = vpop.f32.mrb[0].mxu0
    %v1374 = vpop.f32.mrb[0].mxu0
    %v1375 = vpop.f32.mrb[0].mxu0
    %1376 = vdwg.mxu0
    %1377 = vrot.lane.b32.xlu0 %v487, 120
    %v1378 = vpop.permute.xlu0 %1377
    %1379 = vrot.lane.b32.xlu0 %v487, 88
    %v1380 = vpop.permute.xlu0 %1379
    %v1382 = vsel %vm498, %v1378, 0
    %v1385 = vsel %vm498, %v1380, 0
    %1387 = vmatprep.subr.bf16.mxu0 0
    %1388 = vmatpush1.bf16.xpose.msra.mxu0 %v1385
    %1389 = vmatprep.subr.bf16.mxu0 0
    %1390 = vmatpush1.bf16.xpose.msra.mxu0 0
    %1391 = vmatprep.subr.bf16.mxu0 0
    %1392 = vmatpush1.bf16.xpose.msra.mxu0 0
    %1393 = vmatprep.subr.bf16.mxu0 0
    %1394 = vmatpush1.bf16.xpose.msra.mxu0 0
    %1395 = vmatprep.subr.bf16.mxu0 0
    %1396 = vmatpush1.bf16.xpose.msra.mxu0 0
    %1397 = vmatprep.subr.bf16.mxu0 0
    %1398 = vmatpush1.bf16.xpose.msra.mxu0 0
    %1399 = vmatprep.subr.bf16.mxu0 0
    %1400 = vmatpush1.bf16.xpose.msra.mxu0 0
    %1401 = vmatprep.subr.bf16.mxu0 0
    %1402 = vmatpush1.bf16.xpose.msra.mxu0 0
    %1403 = vmatprep.subr.bf16.mxu0 0
    %1404 = vmatpush1.bf16.xpose.msra.mxu0 0
    %1405 = vmatprep.subr.bf16.mxu0 0
    %1406 = vmatpush1.bf16.xpose.msra.mxu0 0
    %1407 = vmatprep.subr.bf16.mxu0 0
    %1408 = vmatpush1.bf16.xpose.msra.mxu0 0
    %1409 = vmatprep.subr.bf16.mxu0 0
    %1410 = vmatpush1.bf16.xpose.msra.mxu0 0
    %1411 = vmatprep.subr.bf16.mxu0 0
    %1412 = vmatpush1.bf16.xpose.msra.mxu0 0
    %1413 = vmatprep.subr.bf16.mxu0 0
    %1414 = vmatpush1.bf16.xpose.msra.mxu0 0
    %1415 = vmatprep.subr.bf16.mxu0 0
    %1416 = vmatpush1.bf16.xpose.msra.mxu0 0
    %1417 = vmatprep.subr.bf16.mxu0 0
    %1418 = vmatpush1.bf16.xpose.msra.mxu0 0
    %1419 = vmatprep.mubr.bf16.mxu0 0
    %1420 = vmatmul.mubr.bf16.gmra.mrb[0].mxu0 %v1382
    %v1421 = vpop.f32.mrb[0].mxu0
    %v1422 = vadd.f32 0.0, %v1421
    %v1423 = vpop.f32.mrb[0].mxu0
    %v1424 = vpop.f32.mrb[0].mxu0
    %v1425 = vpop.f32.mrb[0].mxu0
    %1426 = vdwg.mxu0
    %1427 = vrot.lane.b32.xlu0 %v488, 120
    %v1428 = vpop.permute.xlu0 %1427
    %1429 = vrot.lane.b32.xlu0 %v488, 88
    %v1430 = vpop.permute.xlu0 %1429
    %v1432 = vsel %vm498, %v1428, 0
    %v1435 = vsel %vm498, %v1430, 0
    %1437 = vmatprep.subr.bf16.mxu0 0
    %1438 = vmatpush1.bf16.xpose.msra.mxu0 %v1435
    %1439 = vmatprep.subr.bf16.mxu0 0
    %1440 = vmatpush1.bf16.xpose.msra.mxu0 0
    %1441 = vmatprep.subr.bf16.mxu0 0
    %1442 = vmatpush1.bf16.xpose.msra.mxu0 0
    %1443 = vmatprep.subr.bf16.mxu0 0
    %1444 = vmatpush1.bf16.xpose.msra.mxu0 0
    %1445 = vmatprep.subr.bf16.mxu0 0
    %1446 = vmatpush1.bf16.xpose.msra.mxu0 0
    %1447 = vmatprep.subr.bf16.mxu0 0
    %1448 = vmatpush1.bf16.xpose.msra.mxu0 0
    %1449 = vmatprep.subr.bf16.mxu0 0
    %1450 = vmatpush1.bf16.xpose.msra.mxu0 0
    %1451 = vmatprep.subr.bf16.mxu0 0
    %1452 = vmatpush1.bf16.xpose.msra.mxu0 0
    %1453 = vmatprep.subr.bf16.mxu0 0
    %1454 = vmatpush1.bf16.xpose.msra.mxu0 0
    %1455 = vmatprep.subr.bf16.mxu0 0
    %1456 = vmatpush1.bf16.xpose.msra.mxu0 0
    %1457 = vmatprep.subr.bf16.mxu0 0
    %1458 = vmatpush1.bf16.xpose.msra.mxu0 0
    %1459 = vmatprep.subr.bf16.mxu0 0
    %1460 = vmatpush1.bf16.xpose.msra.mxu0 0
    %1461 = vmatprep.subr.bf16.mxu0 0
    %1462 = vmatpush1.bf16.xpose.msra.mxu0 0
    %1463 = vmatprep.subr.bf16.mxu0 0
    %1464 = vmatpush1.bf16.xpose.msra.mxu0 0
    %1465 = vmatprep.subr.bf16.mxu0 0
    %1466 = vmatpush1.bf16.xpose.msra.mxu0 0
    %1467 = vmatprep.subr.bf16.mxu0 0
    %1468 = vmatpush1.bf16.xpose.msra.mxu0 0
    %1469 = vmatprep.mubr.bf16.mxu0 0
    %1470 = vmatmul.mubr.bf16.gmra.mrb[0].mxu0 %v1432
    %v1471 = vpop.f32.mrb[0].mxu0
    %v1472 = vadd.f32 0.0, %v1471
    %v1473 = vpop.f32.mrb[0].mxu0
    %v1474 = vpop.f32.mrb[0].mxu0
    %v1475 = vpop.f32.mrb[0].mxu0
    %1476 = vdwg.mxu0
    %1477 = vrot.lane.b32.xlu0 %v489, 120
    %v1478 = vpop.permute.xlu0 %1477
    %1479 = vrot.lane.b32.xlu0 %v489, 88
    %v1480 = vpop.permute.xlu0 %1479
    %v1482 = vsel %vm498, %v1478, 0
    %v1485 = vsel %vm498, %v1480, 0
    %1487 = vmatprep.subr.bf16.mxu0 0
    %1488 = vmatpush1.bf16.xpose.msra.mxu0 %v1485
    %1489 = vmatprep.subr.bf16.mxu0 0
    %1490 = vmatpush1.bf16.xpose.msra.mxu0 0
    %1491 = vmatprep.subr.bf16.mxu0 0
    %1492 = vmatpush1.bf16.xpose.msra.mxu0 0
    %1493 = vmatprep.subr.bf16.mxu0 0
    %1494 = vmatpush1.bf16.xpose.msra.mxu0 0
    %1495 = vmatprep.subr.bf16.mxu0 0
    %1496 = vmatpush1.bf16.xpose.msra.mxu0 0
    %1497 = vmatprep.subr.bf16.mxu0 0
    %1498 = vmatpush1.bf16.xpose.msra.mxu0 0
    %1499 = vmatprep.subr.bf16.mxu0 0
    %1500 = vmatpush1.bf16.xpose.msra.mxu0 0
    %1501 = vmatprep.subr.bf16.mxu0 0
    %1502 = vmatpush1.bf16.xpose.msra.mxu0 0
    %1503 = vmatprep.subr.bf16.mxu0 0
    %1504 = vmatpush1.bf16.xpose.msra.mxu0 0
    %1505 = vmatprep.subr.bf16.mxu0 0
    %1506 = vmatpush1.bf16.xpose.msra.mxu0 0
    %1507 = vmatprep.subr.bf16.mxu0 0
    %1508 = vmatpush1.bf16.xpose.msra.mxu0 0
    %1509 = vmatprep.subr.bf16.mxu0 0
    %1510 = vmatpush1.bf16.xpose.msra.mxu0 0
    %1511 = vmatprep.subr.bf16.mxu0 0
    %1512 = vmatpush1.bf16.xpose.msra.mxu0 0
    %1513 = vmatprep.subr.bf16.mxu0 0
    %1514 = vmatpush1.bf16.xpose.msra.mxu0 0
    %1515 = vmatprep.subr.bf16.mxu0 0
    %1516 = vmatpush1.bf16.xpose.msra.mxu0 0
    %1517 = vmatprep.subr.bf16.mxu0 0
    %1518 = vmatpush1.bf16.xpose.msra.mxu0 0
    %1519 = vmatprep.mubr.bf16.mxu0 0
    %1520 = vmatmul.mubr.bf16.gmra.mrb[0].mxu0 %v1482
    %v1521 = vpop.f32.mrb[0].mxu0
    %v1522 = vadd.f32 0.0, %v1521
    %v1523 = vpop.f32.mrb[0].mxu0
    %v1524 = vpop.f32.mrb[0].mxu0
    %v1525 = vpop.f32.mrb[0].mxu0
    %1526 = vdwg.mxu0
    %1527 = vrot.lane.b32.xlu0 %v490, 120
    %v1528 = vpop.permute.xlu0 %1527
    %1529 = vrot.lane.b32.xlu0 %v490, 88
    %v1530 = vpop.permute.xlu0 %1529
    %v1532 = vsel %vm498, %v1528, 0
    %v1535 = vsel %vm498, %v1530, 0
    %1537 = vmatprep.subr.bf16.mxu0 0
    %1538 = vmatpush1.bf16.xpose.msra.mxu0 %v1535
    %1539 = vmatprep.subr.bf16.mxu0 0
    %1540 = vmatpush1.bf16.xpose.msra.mxu0 0
    %1541 = vmatprep.subr.bf16.mxu0 0
    %1542 = vmatpush1.bf16.xpose.msra.mxu0 0
    %1543 = vmatprep.subr.bf16.mxu0 0
    %1544 = vmatpush1.bf16.xpose.msra.mxu0 0
    %1545 = vmatprep.subr.bf16.mxu0 0
    %1546 = vmatpush1.bf16.xpose.msra.mxu0 0
    %1547 = vmatprep.subr.bf16.mxu0 0
    %1548 = vmatpush1.bf16.xpose.msra.mxu0 0
    %1549 = vmatprep.subr.bf16.mxu0 0
    %1550 = vmatpush1.bf16.xpose.msra.mxu0 0
    %1551 = vmatprep.subr.bf16.mxu0 0
    %1552 = vmatpush1.bf16.xpose.msra.mxu0 0
    %1553 = vmatprep.subr.bf16.mxu0 0
    %1554 = vmatpush1.bf16.xpose.msra.mxu0 0
    %1555 = vmatprep.subr.bf16.mxu0 0
    %1556 = vmatpush1.bf16.xpose.msra.mxu0 0
    %1557 = vmatprep.subr.bf16.mxu0 0
    %1558 = vmatpush1.bf16.xpose.msra.mxu0 0
    %1559 = vmatprep.subr.bf16.mxu0 0
    %1560 = vmatpush1.bf16.xpose.msra.mxu0 0
    %1561 = vmatprep.subr.bf16.mxu0 0
    %1562 = vmatpush1.bf16.xpose.msra.mxu0 0
    %1563 = vmatprep.subr.bf16.mxu0 0
    %1564 = vmatpush1.bf16.xpose.msra.mxu0 0
    %1565 = vmatprep.subr.bf16.mxu0 0
    %1566 = vmatpush1.bf16.xpose.msra.mxu0 0
    %1567 = vmatprep.subr.bf16.mxu0 0
    %1568 = vmatpush1.bf16.xpose.msra.mxu0 0
    %1569 = vmatprep.mubr.bf16.mxu0 0
    %1570 = vmatmul.mubr.bf16.gmra.mrb[0].mxu0 %v1532
    %v1571 = vpop.f32.mrb[0].mxu0
    %v1572 = vadd.f32 0.0, %v1571
    %v1573 = vpop.f32.mrb[0].mxu0
    %v1574 = vpop.f32.mrb[0].mxu0
    %v1575 = vpop.f32.mrb[0].mxu0
    %1576 = vdwg.mxu0
    %1577 = vrot.lane.b32.xlu0 %v491, 120
    %v1578 = vpop.permute.xlu0 %1577
    %1579 = vrot.lane.b32.xlu0 %v491, 88
    %v1580 = vpop.permute.xlu0 %1579
    %v1582 = vsel %vm498, %v1578, 0
    %v1585 = vsel %vm498, %v1580, 0
    %1587 = vmatprep.subr.bf16.mxu0 0
    %1588 = vmatpush1.bf16.xpose.msra.mxu0 %v1585
    %1589 = vmatprep.subr.bf16.mxu0 0
    %1590 = vmatpush1.bf16.xpose.msra.mxu0 0
    %1591 = vmatprep.subr.bf16.mxu0 0
    %1592 = vmatpush1.bf16.xpose.msra.mxu0 0
    %1593 = vmatprep.subr.bf16.mxu0 0
    %1594 = vmatpush1.bf16.xpose.msra.mxu0 0
    %1595 = vmatprep.subr.bf16.mxu0 0
    %1596 = vmatpush1.bf16.xpose.msra.mxu0 0
    %1597 = vmatprep.subr.bf16.mxu0 0
    %1598 = vmatpush1.bf16.xpose.msra.mxu0 0
    %1599 = vmatprep.subr.bf16.mxu0 0
    %1600 = vmatpush1.bf16.xpose.msra.mxu0 0
    %1601 = vmatprep.subr.bf16.mxu0 0
    %1602 = vmatpush1.bf16.xpose.msra.mxu0 0
    %1603 = vmatprep.subr.bf16.mxu0 0
    %1604 = vmatpush1.bf16.xpose.msra.mxu0 0
    %1605 = vmatprep.subr.bf16.mxu0 0
    %1606 = vmatpush1.bf16.xpose.msra.mxu0 0
    %1607 = vmatprep.subr.bf16.mxu0 0
    %1608 = vmatpush1.bf16.xpose.msra.mxu0 0
    %1609 = vmatprep.subr.bf16.mxu0 0
    %1610 = vmatpush1.bf16.xpose.msra.mxu0 0
    %1611 = vmatprep.subr.bf16.mxu0 0
    %1612 = vmatpush1.bf16.xpose.msra.mxu0 0
    %1613 = vmatprep.subr.bf16.mxu0 0
    %1614 = vmatpush1.bf16.xpose.msra.mxu0 0
    %1615 = vmatprep.subr.bf16.mxu0 0
    %1616 = vmatpush1.bf16.xpose.msra.mxu0 0
    %1617 = vmatprep.subr.bf16.mxu0 0
    %1618 = vmatpush1.bf16.xpose.msra.mxu0 0
    %1619 = vmatprep.mubr.bf16.mxu0 0
    %1620 = vmatmul.mubr.bf16.gmra.mrb[0].mxu0 %v1582
    %v1621 = vpop.f32.mrb[0].mxu0
    %v1622 = vadd.f32 0.0, %v1621
    %v1623 = vpop.f32.mrb[0].mxu0
    %v1624 = vpop.f32.mrb[0].mxu0
    %v1625 = vpop.f32.mrb[0].mxu0
    %1626 = vdwg.mxu0
    %1627 = vrot.lane.b32.xlu0 %v492, 120
    %v1628 = vpop.permute.xlu0 %1627
    %1629 = vrot.lane.b32.xlu0 %v492, 88
    %v1630 = vpop.permute.xlu0 %1629
    %v1632 = vsel %vm498, %v1628, 0
    %v1635 = vsel %vm498, %v1630, 0
    %1637 = vmatprep.subr.bf16.mxu0 0
    %1638 = vmatpush1.bf16.xpose.msra.mxu0 %v1635
    %1639 = vmatprep.subr.bf16.mxu0 0
    %1640 = vmatpush1.bf16.xpose.msra.mxu0 0
    %1641 = vmatprep.subr.bf16.mxu0 0
    %1642 = vmatpush1.bf16.xpose.msra.mxu0 0
    %1643 = vmatprep.subr.bf16.mxu0 0
    %1644 = vmatpush1.bf16.xpose.msra.mxu0 0
    %1645 = vmatprep.subr.bf16.mxu0 0
    %1646 = vmatpush1.bf16.xpose.msra.mxu0 0
    %1647 = vmatprep.subr.bf16.mxu0 0
    %1648 = vmatpush1.bf16.xpose.msra.mxu0 0
    %1649 = vmatprep.subr.bf16.mxu0 0
    %1650 = vmatpush1.bf16.xpose.msra.mxu0 0
    %1651 = vmatprep.subr.bf16.mxu0 0
    %1652 = vmatpush1.bf16.xpose.msra.mxu0 0
    %1653 = vmatprep.subr.bf16.mxu0 0
    %1654 = vmatpush1.bf16.xpose.msra.mxu0 0
    %1655 = vmatprep.subr.bf16.mxu0 0
    %1656 = vmatpush1.bf16.xpose.msra.mxu0 0
    %1657 = vmatprep.subr.bf16.mxu0 0
    %1658 = vmatpush1.bf16.xpose.msra.mxu0 0
    %1659 = vmatprep.subr.bf16.mxu0 0
    %1660 = vmatpush1.bf16.xpose.msra.mxu0 0
    %1661 = vmatprep.subr.bf16.mxu0 0
    %1662 = vmatpush1.bf16.xpose.msra.mxu0 0
    %1663 = vmatprep.subr.bf16.mxu0 0
    %1664 = vmatpush1.bf16.xpose.msra.mxu0 0
    %1665 = vmatprep.subr.bf16.mxu0 0
    %1666 = vmatpush1.bf16.xpose.msra.mxu0 0
    %1667 = vmatprep.subr.bf16.mxu0 0
    %1668 = vmatpush1.bf16.xpose.msra.mxu0 0
    %1669 = vmatprep.mubr.bf16.mxu0 0
    %1670 = vmatmul.mubr.bf16.gmra.mrb[0].mxu0 %v1632
    %v1671 = vpop.f32.mrb[0].mxu0
    %v1672 = vadd.f32 0.0, %v1671
    %v1673 = vpop.f32.mrb[0].mxu0
    %v1674 = vpop.f32.mrb[0].mxu0
    %v1675 = vpop.f32.mrb[0].mxu0
    %1676 = vdwg.mxu0
    %1677 = vrot.lane.b32.xlu0 %v493, 120
    %v1678 = vpop.permute.xlu0 %1677
    %1679 = vrot.lane.b32.xlu0 %v493, 88
    %v1680 = vpop.permute.xlu0 %1679
    %v1682 = vsel %vm498, %v1678, 0
    %v1685 = vsel %vm498, %v1680, 0
    %1687 = vmatprep.subr.bf16.mxu0 0
    %1688 = vmatpush1.bf16.xpose.msra.mxu0 %v1685
    %1689 = vmatprep.subr.bf16.mxu0 0
    %1690 = vmatpush1.bf16.xpose.msra.mxu0 0
    %1691 = vmatprep.subr.bf16.mxu0 0
    %1692 = vmatpush1.bf16.xpose.msra.mxu0 0
    %1693 = vmatprep.subr.bf16.mxu0 0
    %1694 = vmatpush1.bf16.xpose.msra.mxu0 0
    %1695 = vmatprep.subr.bf16.mxu0 0
    %1696 = vmatpush1.bf16.xpose.msra.mxu0 0
    %1697 = vmatprep.subr.bf16.mxu0 0
    %1698 = vmatpush1.bf16.xpose.msra.mxu0 0
    %1699 = vmatprep.subr.bf16.mxu0 0
    %1700 = vmatpush1.bf16.xpose.msra.mxu0 0
    %1701 = vmatprep.subr.bf16.mxu0 0
    %1702 = vmatpush1.bf16.xpose.msra.mxu0 0
    %1703 = vmatprep.subr.bf16.mxu0 0
    %1704 = vmatpush1.bf16.xpose.msra.mxu0 0
    %1705 = vmatprep.subr.bf16.mxu0 0
    %1706 = vmatpush1.bf16.xpose.msra.mxu0 0
    %1707 = vmatprep.subr.bf16.mxu0 0
    %1708 = vmatpush1.bf16.xpose.msra.mxu0 0
    %1709 = vmatprep.subr.bf16.mxu0 0
    %1710 = vmatpush1.bf16.xpose.msra.mxu0 0
    %1711 = vmatprep.subr.bf16.mxu0 0
    %1712 = vmatpush1.bf16.xpose.msra.mxu0 0
    %1713 = vmatprep.subr.bf16.mxu0 0
    %1714 = vmatpush1.bf16.xpose.msra.mxu0 0
    %1715 = vmatprep.subr.bf16.mxu0 0
    %1716 = vmatpush1.bf16.xpose.msra.mxu0 0
    %1717 = vmatprep.subr.bf16.mxu0 0
    %1718 = vmatpush1.bf16.xpose.msra.mxu0 0
    %1719 = vmatprep.mubr.bf16.mxu0 0
    %1720 = vmatmul.mubr.bf16.gmra.mrb[0].mxu0 %v1682
    %v1721 = vpop.f32.mrb[0].mxu0
    %v1722 = vadd.f32 0.0, %v1721
    %v1723 = vpop.f32.mrb[0].mxu0
    %v1724 = vpop.f32.mrb[0].mxu0
    %v1725 = vpop.f32.mrb[0].mxu0
    %1726 = vdwg.mxu0
    %1727 = vrot.lane.b32.xlu0 %v494, 120
    %v1728 = vpop.permute.xlu0 %1727
    %1729 = vrot.lane.b32.xlu0 %v494, 88
    %v1730 = vpop.permute.xlu0 %1729
    %v1732 = vsel %vm498, %v1728, 0
    %v1735 = vsel %vm498, %v1730, 0
    %1737 = vmatprep.subr.bf16.mxu0 0
    %1738 = vmatpush1.bf16.xpose.msra.mxu0 %v1735
    %1739 = vmatprep.subr.bf16.mxu0 0
    %1740 = vmatpush1.bf16.xpose.msra.mxu0 0
    %1741 = vmatprep.subr.bf16.mxu0 0
    %1742 = vmatpush1.bf16.xpose.msra.mxu0 0
    %1743 = vmatprep.subr.bf16.mxu0 0
    %1744 = vmatpush1.bf16.xpose.msra.mxu0 0
    %1745 = vmatprep.subr.bf16.mxu0 0
    %1746 = vmatpush1.bf16.xpose.msra.mxu0 0
    %1747 = vmatprep.subr.bf16.mxu0 0
    %1748 = vmatpush1.bf16.xpose.msra.mxu0 0
    %1749 = vmatprep.subr.bf16.mxu0 0
    %1750 = vmatpush1.bf16.xpose.msra.mxu0 0
    %1751 = vmatprep.subr.bf16.mxu0 0
    %1752 = vmatpush1.bf16.xpose.msra.mxu0 0
    %1753 = vmatprep.subr.bf16.mxu0 0
    %1754 = vmatpush1.bf16.xpose.msra.mxu0 0
    %1755 = vmatprep.subr.bf16.mxu0 0
    %1756 = vmatpush1.bf16.xpose.msra.mxu0 0
    %1757 = vmatprep.subr.bf16.mxu0 0
    %1758 = vmatpush1.bf16.xpose.msra.mxu0 0
    %1759 = vmatprep.subr.bf16.mxu0 0
    %1760 = vmatpush1.bf16.xpose.msra.mxu0 0
    %1761 = vmatprep.subr.bf16.mxu0 0
    %1762 = vmatpush1.bf16.xpose.msra.mxu0 0
    %1763 = vmatprep.subr.bf16.mxu0 0
    %1764 = vmatpush1.bf16.xpose.msra.mxu0 0
    %1765 = vmatprep.subr.bf16.mxu0 0
    %1766 = vmatpush1.bf16.xpose.msra.mxu0 0
    %1767 = vmatprep.subr.bf16.mxu0 0
    %1768 = vmatpush1.bf16.xpose.msra.mxu0 0
    %1769 = vmatprep.mubr.bf16.mxu0 0
    %1770 = vmatmul.mubr.bf16.gmra.mrb[0].mxu0 %v1732
    %v1771 = vpop.f32.mrb[0].mxu0
    %v1772 = vadd.f32 0.0, %v1771
    %v1773 = vpop.f32.mrb[0].mxu0
    %v1774 = vpop.f32.mrb[0].mxu0
    %v1775 = vpop.f32.mrb[0].mxu0
    %1776 = vdwg.mxu0
    %v1777 = vmul.f32 %v1422, 0.35355338
    %v1778 = vmul.f32 %v1472, 0.35355338
    %v1779 = vmul.f32 %v1522, 0.35355338
    %v1780 = vmul.f32 %v1572, 0.35355338
    %v1781 = vmul.f32 %v1622, 0.35355338
    %v1782 = vmul.f32 %v1672, 0.35355338
    %v1783 = vmul.f32 %v1722, 0.35355338
    %v1784 = vmul.f32 %v1772, 0.35355338
    %v1785 = vsel %vm498, %v1777, -inf
    %1786 = vmax.xlane.f32.xlu0 %v1785
    %v1787 = vpop.xlane.xlu0 %1786
    %v1788 = vsel %vm498, %v1778, -inf
    %1789 = vmax.xlane.f32.xlu0 %v1788
    %v1790 = vpop.xlane.xlu0 %1789
    %v1791 = vsel %vm498, %v1779, -inf
    %1792 = vmax.xlane.f32.xlu0 %v1791
    %v1793 = vpop.xlane.xlu0 %1792
    %v1794 = vsel %vm498, %v1780, -inf
    %1795 = vmax.xlane.f32.xlu0 %v1794
    %v1796 = vpop.xlane.xlu0 %1795
    %v1797 = vsel %vm498, %v1781, -inf
    %1798 = vmax.xlane.f32.xlu0 %v1797
    %v1799 = vpop.xlane.xlu0 %1798
    %v1800 = vsel %vm498, %v1782, -inf
    %1801 = vmax.xlane.f32.xlu0 %v1800
    %v1802 = vpop.xlane.xlu0 %1801
    %v1803 = vsel %vm498, %v1783, -inf
    %1804 = vmax.xlane.f32.xlu0 %v1803
    %v1805 = vpop.xlane.xlu0 %1804
    %v1806 = vsel %vm498, %v1784, -inf
    %1807 = vmax.xlane.f32.xlu0 %v1806
    %v1808 = vpop.xlane.xlu0 %1807
    %v1809 = vsub.f32 %v1777, %v1787
    %v1810 = vsub.f32 %v1778, %v1790
    %v1811 = vsub.f32 %v1779, %v1793
    %v1812 = vsub.f32 %v1780, %v1796
    %v1813 = vsub.f32 %v1781, %v1799
    %v1814 = vsub.f32 %v1782, %v1802
    %v1815 = vsub.f32 %v1783, %v1805
    %v1816 = vsub.f32 %v1784, %v1808
    %v1817 = vmul.f32 %v1809, 1.442695
    %v1818 = vpow.pop %v1817
    %v1819 = vmul.f32 %v1810, 1.442695
    %v1820 = vpow.pop %v1819
    %v1821 = vmul.f32 %v1811, 1.442695
    %v1822 = vpow.pop %v1821
    %v1823 = vmul.f32 %v1812, 1.442695
    %v1824 = vpow.pop %v1823
    %v1825 = vmul.f32 %v1813, 1.442695
    %v1826 = vpow.pop %v1825
    %v1827 = vmul.f32 %v1814, 1.442695
    %v1828 = vpow.pop %v1827
    %v1829 = vmul.f32 %v1815, 1.442695
    %v1830 = vpow.pop %v1829
    %v1831 = vmul.f32 %v1816, 1.442695
    %v1832 = vpow.pop %v1831
    %v1833 = vsel %vm498, %v1818, 0.0
    %1834 = vadd.xlane.f32.xlu0 %v1833
    %v1835 = vpop.xlane.xlu0 %1834
    %v1836 = vsel %vm498, %v1820, 0.0
    %1837 = vadd.xlane.f32.xlu0 %v1836
    %v1838 = vpop.xlane.xlu0 %1837
    %v1839 = vsel %vm498, %v1822, 0.0
    %1840 = vadd.xlane.f32.xlu0 %v1839
    %v1841 = vpop.xlane.xlu0 %1840
    %v1842 = vsel %vm498, %v1824, 0.0
    %1843 = vadd.xlane.f32.xlu0 %v1842
    %v1844 = vpop.xlane.xlu0 %1843
    %v1845 = vsel %vm498, %v1826, 0.0
    %1846 = vadd.xlane.f32.xlu0 %v1845
    %v1847 = vpop.xlane.xlu0 %1846
    %v1848 = vsel %vm498, %v1828, 0.0
    %1849 = vadd.xlane.f32.xlu0 %v1848
    %v1850 = vpop.xlane.xlu0 %1849
    %v1851 = vsel %vm498, %v1830, 0.0
    %1852 = vadd.xlane.f32.xlu0 %v1851
    %v1853 = vpop.xlane.xlu0 %1852
    %v1854 = vsel %vm498, %v1832, 0.0
    %1855 = vadd.xlane.f32.xlu0 %v1854
    %v1856 = vpop.xlane.xlu0 %1855
    %v1857 = vrcp.pop %v1835
    %v1858 = vrcp.pop %v1838
    %v1859 = vrcp.pop %v1841
    %v1860 = vrcp.pop %v1844
    %v1861 = vrcp.pop %v1847
    %v1862 = vrcp.pop %v1850
    %v1863 = vrcp.pop %v1853
    %v1864 = vrcp.pop %v1856
    %v1865 = vmul.f32 %v1818, %v1857
    %v1866 = vmul.f32 %v1820, %v1858
    %v1867 = vmul.f32 %v1822, %v1859
    %v1868 = vmul.f32 %v1824, %v1860
    %v1869 = vmul.f32 %v1826, %v1861
    %v1870 = vmul.f32 %v1828, %v1862
    %v1871 = vmul.f32 %v1830, %v1863
    %v1872 = vmul.f32 %v1832, %v1864
    %v1873 = vpack.c.bf16 %v1865, %v1865
    %v1874 = vpack.c.bf16 %v1866, %v1866
    %v1875 = vpack.c.bf16 %v1867, %v1867
    %v1876 = vpack.c.bf16 %v1868, %v1868
    %v1877 = vpack.c.bf16 %v1869, %v1869
    %v1878 = vpack.c.bf16 %v1870, %v1870
    %v1879 = vpack.c.bf16 %v1871, %v1871
    %v1880 = vpack.c.bf16 %v1872, %v1872
    %1881 = vrot.lane.b32.xlu0 %v487, 56
    %v1882 = vpop.permute.xlu0 %1881
    %v1884 = vsel %vm498, %v1873, 0
    %v1887 = vsel %vm997, %v1882, 0
    %1889 = vmatprep.subr.bf16.mxu0 0
    %1890 = vmatpush1.bf16.msra.mxu0 %v1887
    %1891 = vmatprep.subr.bf16.mxu0 0
    %1892 = vmatpush1.bf16.msra.mxu0 0
    %1893 = vmatprep.subr.bf16.mxu0 0
    %1894 = vmatpush1.bf16.msra.mxu0 0
    %1895 = vmatprep.subr.bf16.mxu0 0
    %1896 = vmatpush1.bf16.msra.mxu0 0
    %1897 = vmatprep.subr.bf16.mxu0 0
    %1898 = vmatpush1.bf16.msra.mxu0 0
    %1899 = vmatprep.subr.bf16.mxu0 0
    %1900 = vmatpush1.bf16.msra.mxu0 0
    %1901 = vmatprep.subr.bf16.mxu0 0
    %1902 = vmatpush1.bf16.msra.mxu0 0
    %1903 = vmatprep.subr.bf16.mxu0 0
    %1904 = vmatpush1.bf16.msra.mxu0 0
    %1905 = vmatprep.subr.bf16.mxu0 0
    %1906 = vmatpush1.bf16.msra.mxu0 0
    %1907 = vmatprep.subr.bf16.mxu0 0
    %1908 = vmatpush1.bf16.msra.mxu0 0
    %1909 = vmatprep.subr.bf16.mxu0 0
    %1910 = vmatpush1.bf16.msra.mxu0 0
    %1911 = vmatprep.subr.bf16.mxu0 0
    %1912 = vmatpush1.bf16.msra.mxu0 0
    %1913 = vmatprep.subr.bf16.mxu0 0
    %1914 = vmatpush1.bf16.msra.mxu0 0
    %1915 = vmatprep.subr.bf16.mxu0 0
    %1916 = vmatpush1.bf16.msra.mxu0 0
    %1917 = vmatprep.subr.bf16.mxu0 0
    %1918 = vmatpush1.bf16.msra.mxu0 0
    %1919 = vmatprep.subr.bf16.mxu0 0
    %1920 = vmatpush1.bf16.msra.mxu0 0
    %1921 = vmatprep.mubr.bf16.mxu0 0
    %1922 = vmatmul.mubr.bf16.gmra.mrb[0].mxu0 %v1884
    %v1923 = vpop.f32.mrb[0].mxu0
    %v1924 = vadd.f32 0.0, %v1923
    %v1925 = vpop.f32.mrb[0].mxu0
    %v1926 = vpop.f32.mrb[0].mxu0
    %v1927 = vpop.f32.mrb[0].mxu0
    %1928 = vdwg.mxu0
    %1929 = vrot.lane.b32.xlu0 %v488, 56
    %v1930 = vpop.permute.xlu0 %1929
    %v1932 = vsel %vm498, %v1874, 0
    %v1935 = vsel %vm997, %v1930, 0
    %1937 = vmatprep.subr.bf16.mxu0 0
    %1938 = vmatpush1.bf16.msra.mxu0 %v1935
    %1939 = vmatprep.subr.bf16.mxu0 0
    %1940 = vmatpush1.bf16.msra.mxu0 0
    %1941 = vmatprep.subr.bf16.mxu0 0
    %1942 = vmatpush1.bf16.msra.mxu0 0
    %1943 = vmatprep.subr.bf16.mxu0 0
    %1944 = vmatpush1.bf16.msra.mxu0 0
    %1945 = vmatprep.subr.bf16.mxu0 0
    %1946 = vmatpush1.bf16.msra.mxu0 0
    %1947 = vmatprep.subr.bf16.mxu0 0
    %1948 = vmatpush1.bf16.msra.mxu0 0
    %1949 = vmatprep.subr.bf16.mxu0 0
    %1950 = vmatpush1.bf16.msra.mxu0 0
    %1951 = vmatprep.subr.bf16.mxu0 0
    %1952 = vmatpush1.bf16.msra.mxu0 0
    %1953 = vmatprep.subr.bf16.mxu0 0
    %1954 = vmatpush1.bf16.msra.mxu0 0
    %1955 = vmatprep.subr.bf16.mxu0 0
    %1956 = vmatpush1.bf16.msra.mxu0 0
    %1957 = vmatprep.subr.bf16.mxu0 0
    %1958 = vmatpush1.bf16.msra.mxu0 0
    %1959 = vmatprep.subr.bf16.mxu0 0
    %1960 = vmatpush1.bf16.msra.mxu0 0
    %1961 = vmatprep.subr.bf16.mxu0 0
    %1962 = vmatpush1.bf16.msra.mxu0 0
    %1963 = vmatprep.subr.bf16.mxu0 0
    %1964 = vmatpush1.bf16.msra.mxu0 0
    %1965 = vmatprep.subr.bf16.mxu0 0
    %1966 = vmatpush1.bf16.msra.mxu0 0
    %1967 = vmatprep.subr.bf16.mxu0 0
    %1968 = vmatpush1.bf16.msra.mxu0 0
    %1969 = vmatprep.mubr.bf16.mxu0 0
    %1970 = vmatmul.mubr.bf16.gmra.mrb[0].mxu0 %v1932
    %v1971 = vpop.f32.mrb[0].mxu0
    %v1972 = vadd.f32 0.0, %v1971
    %v1973 = vpop.f32.mrb[0].mxu0
    %v1974 = vpop.f32.mrb[0].mxu0
    %v1975 = vpop.f32.mrb[0].mxu0
    %1976 = vdwg.mxu0
    %1977 = vrot.lane.b32.xlu0 %v489, 56
    %v1978 = vpop.permute.xlu0 %1977
    %v1980 = vsel %vm498, %v1875, 0
    %v1983 = vsel %vm997, %v1978, 0
    %1985 = vmatprep.subr.bf16.mxu0 0
    %1986 = vmatpush1.bf16.msra.mxu0 %v1983
    %1987 = vmatprep.subr.bf16.mxu0 0
    %1988 = vmatpush1.bf16.msra.mxu0 0
    %1989 = vmatprep.subr.bf16.mxu0 0
    %1990 = vmatpush1.bf16.msra.mxu0 0
    %1991 = vmatprep.subr.bf16.mxu0 0
    %1992 = vmatpush1.bf16.msra.mxu0 0
    %1993 = vmatprep.subr.bf16.mxu0 0
    %1994 = vmatpush1.bf16.msra.mxu0 0
    %1995 = vmatprep.subr.bf16.mxu0 0
    %1996 = vmatpush1.bf16.msra.mxu0 0
    %1997 = vmatprep.subr.bf16.mxu0 0
    %1998 = vmatpush1.bf16.msra.mxu0 0
    %1999 = vmatprep.subr.bf16.mxu0 0
    %2000 = vmatpush1.bf16.msra.mxu0 0
    %2001 = vmatprep.subr.bf16.mxu0 0
    %2002 = vmatpush1.bf16.msra.mxu0 0
    %2003 = vmatprep.subr.bf16.mxu0 0
    %2004 = vmatpush1.bf16.msra.mxu0 0
    %2005 = vmatprep.subr.bf16.mxu0 0
    %2006 = vmatpush1.bf16.msra.mxu0 0
    %2007 = vmatprep.subr.bf16.mxu0 0
    %2008 = vmatpush1.bf16.msra.mxu0 0
    %2009 = vmatprep.subr.bf16.mxu0 0
    %2010 = vmatpush1.bf16.msra.mxu0 0
    %2011 = vmatprep.subr.bf16.mxu0 0
    %2012 = vmatpush1.bf16.msra.mxu0 0
    %2013 = vmatprep.subr.bf16.mxu0 0
    %2014 = vmatpush1.bf16.msra.mxu0 0
    %2015 = vmatprep.subr.bf16.mxu0 0
    %2016 = vmatpush1.bf16.msra.mxu0 0
    %2017 = vmatprep.mubr.bf16.mxu0 0
    %2018 = vmatmul.mubr.bf16.gmra.mrb[0].mxu0 %v1980
    %v2019 = vpop.f32.mrb[0].mxu0
    %v2020 = vadd.f32 0.0, %v2019
    %v2021 = vpop.f32.mrb[0].mxu0
    %v2022 = vpop.f32.mrb[0].mxu0
    %v2023 = vpop.f32.mrb[0].mxu0
    %2024 = vdwg.mxu0
    %2025 = vrot.lane.b32.xlu0 %v490, 56
    %v2026 = vpop.permute.xlu0 %2025
    %v2028 = vsel %vm498, %v1876, 0
    %v2031 = vsel %vm997, %v2026, 0
    %2033 = vmatprep.subr.bf16.mxu0 0
    %2034 = vmatpush1.bf16.msra.mxu0 %v2031
    %2035 = vmatprep.subr.bf16.mxu0 0
    %2036 = vmatpush1.bf16.msra.mxu0 0
    %2037 = vmatprep.subr.bf16.mxu0 0
    %2038 = vmatpush1.bf16.msra.mxu0 0
    %2039 = vmatprep.subr.bf16.mxu0 0
    %2040 = vmatpush1.bf16.msra.mxu0 0
    %2041 = vmatprep.subr.bf16.mxu0 0
    %2042 = vmatpush1.bf16.msra.mxu0 0
    %2043 = vmatprep.subr.bf16.mxu0 0
    %2044 = vmatpush1.bf16.msra.mxu0 0
    %2045 = vmatprep.subr.bf16.mxu0 0
    %2046 = vmatpush1.bf16.msra.mxu0 0
    %2047 = vmatprep.subr.bf16.mxu0 0
    %2048 = vmatpush1.bf16.msra.mxu0 0
    %2049 = vmatprep.subr.bf16.mxu0 0
    %2050 = vmatpush1.bf16.msra.mxu0 0
    %2051 = vmatprep.subr.bf16.mxu0 0
    %2052 = vmatpush1.bf16.msra.mxu0 0
    %2053 = vmatprep.subr.bf16.mxu0 0
    %2054 = vmatpush1.bf16.msra.mxu0 0
    %2055 = vmatprep.subr.bf16.mxu0 0
    %2056 = vmatpush1.bf16.msra.mxu0 0
    %2057 = vmatprep.subr.bf16.mxu0 0
    %2058 = vmatpush1.bf16.msra.mxu0 0
    %2059 = vmatprep.subr.bf16.mxu0 0
    %2060 = vmatpush1.bf16.msra.mxu0 0
    %2061 = vmatprep.subr.bf16.mxu0 0
    %2062 = vmatpush1.bf16.msra.mxu0 0
    %2063 = vmatprep.subr.bf16.mxu0 0
    %2064 = vmatpush1.bf16.msra.mxu0 0
    %2065 = vmatprep.mubr.bf16.mxu0 0
    %2066 = vmatmul.mubr.bf16.gmra.mrb[0].mxu0 %v2028
    %v2067 = vpop.f32.mrb[0].mxu0
    %v2068 = vadd.f32 0.0, %v2067
    %v2069 = vpop.f32.mrb[0].mxu0
    %v2070 = vpop.f32.mrb[0].mxu0
    %v2071 = vpop.f32.mrb[0].mxu0
    %2072 = vdwg.mxu0
    %2073 = vrot.lane.b32.xlu0 %v491, 56
    %v2074 = vpop.permute.xlu0 %2073
    %v2076 = vsel %vm498, %v1877, 0
    %v2079 = vsel %vm997, %v2074, 0
    %2081 = vmatprep.subr.bf16.mxu0 0
    %2082 = vmatpush1.bf16.msra.mxu0 %v2079
    %2083 = vmatprep.subr.bf16.mxu0 0
    %2084 = vmatpush1.bf16.msra.mxu0 0
    %2085 = vmatprep.subr.bf16.mxu0 0
    %2086 = vmatpush1.bf16.msra.mxu0 0
    %2087 = vmatprep.subr.bf16.mxu0 0
    %2088 = vmatpush1.bf16.msra.mxu0 0
    %2089 = vmatprep.subr.bf16.mxu0 0
    %2090 = vmatpush1.bf16.msra.mxu0 0
    %2091 = vmatprep.subr.bf16.mxu0 0
    %2092 = vmatpush1.bf16.msra.mxu0 0
    %2093 = vmatprep.subr.bf16.mxu0 0
    %2094 = vmatpush1.bf16.msra.mxu0 0
    %2095 = vmatprep.subr.bf16.mxu0 0
    %2096 = vmatpush1.bf16.msra.mxu0 0
    %2097 = vmatprep.subr.bf16.mxu0 0
    %2098 = vmatpush1.bf16.msra.mxu0 0
    %2099 = vmatprep.subr.bf16.mxu0 0
    %2100 = vmatpush1.bf16.msra.mxu0 0
    %2101 = vmatprep.subr.bf16.mxu0 0
    %2102 = vmatpush1.bf16.msra.mxu0 0
    %2103 = vmatprep.subr.bf16.mxu0 0
    %2104 = vmatpush1.bf16.msra.mxu0 0
    %2105 = vmatprep.subr.bf16.mxu0 0
    %2106 = vmatpush1.bf16.msra.mxu0 0
    %2107 = vmatprep.subr.bf16.mxu0 0
    %2108 = vmatpush1.bf16.msra.mxu0 0
    %2109 = vmatprep.subr.bf16.mxu0 0
    %2110 = vmatpush1.bf16.msra.mxu0 0
    %2111 = vmatprep.subr.bf16.mxu0 0
    %2112 = vmatpush1.bf16.msra.mxu0 0
    %2113 = vmatprep.mubr.bf16.mxu0 0
    %2114 = vmatmul.mubr.bf16.gmra.mrb[0].mxu0 %v2076
    %v2115 = vpop.f32.mrb[0].mxu0
    %v2116 = vadd.f32 0.0, %v2115
    %v2117 = vpop.f32.mrb[0].mxu0
    %v2118 = vpop.f32.mrb[0].mxu0
    %v2119 = vpop.f32.mrb[0].mxu0
    %2120 = vdwg.mxu0
    %2121 = vrot.lane.b32.xlu0 %v492, 56
    %v2122 = vpop.permute.xlu0 %2121
    %v2124 = vsel %vm498, %v1878, 0
    %v2127 = vsel %vm997, %v2122, 0
    %2129 = vmatprep.subr.bf16.mxu0 0
    %2130 = vmatpush1.bf16.msra.mxu0 %v2127
    %2131 = vmatprep.subr.bf16.mxu0 0
    %2132 = vmatpush1.bf16.msra.mxu0 0
    %2133 = vmatprep.subr.bf16.mxu0 0
    %2134 = vmatpush1.bf16.msra.mxu0 0
    %2135 = vmatprep.subr.bf16.mxu0 0
    %2136 = vmatpush1.bf16.msra.mxu0 0
    %2137 = vmatprep.subr.bf16.mxu0 0
    %2138 = vmatpush1.bf16.msra.mxu0 0
    %2139 = vmatprep.subr.bf16.mxu0 0
    %2140 = vmatpush1.bf16.msra.mxu0 0
    %2141 = vmatprep.subr.bf16.mxu0 0
    %2142 = vmatpush1.bf16.msra.mxu0 0
    %2143 = vmatprep.subr.bf16.mxu0 0
    %2144 = vmatpush1.bf16.msra.mxu0 0
    %2145 = vmatprep.subr.bf16.mxu0 0
    %2146 = vmatpush1.bf16.msra.mxu0 0
    %2147 = vmatprep.subr.bf16.mxu0 0
    %2148 = vmatpush1.bf16.msra.mxu0 0
    %2149 = vmatprep.subr.bf16.mxu0 0
    %2150 = vmatpush1.bf16.msra.mxu0 0
    %2151 = vmatprep.subr.bf16.mxu0 0
    %2152 = vmatpush1.bf16.msra.mxu0 0
    %2153 = vmatprep.subr.bf16.mxu0 0
    %2154 = vmatpush1.bf16.msra.mxu0 0
    %2155 = vmatprep.subr.bf16.mxu0 0
    %2156 = vmatpush1.bf16.msra.mxu0 0
    %2157 = vmatprep.subr.bf16.mxu0 0
    %2158 = vmatpush1.bf16.msra.mxu0 0
    %2159 = vmatprep.subr.bf16.mxu0 0
    %2160 = vmatpush1.bf16.msra.mxu0 0
    %2161 = vmatprep.mubr.bf16.mxu0 0
    %2162 = vmatmul.mubr.bf16.gmra.mrb[0].mxu0 %v2124
    %v2163 = vpop.f32.mrb[0].mxu0
    %v2164 = vadd.f32 0.0, %v2163
    %v2165 = vpop.f32.mrb[0].mxu0
    %v2166 = vpop.f32.mrb[0].mxu0
    %v2167 = vpop.f32.mrb[0].mxu0
    %2168 = vdwg.mxu0
    %2169 = vrot.lane.b32.xlu0 %v493, 56
    %v2170 = vpop.permute.xlu0 %2169
    %v2172 = vsel %vm498, %v1879, 0
    %v2175 = vsel %vm997, %v2170, 0
    %2177 = vmatprep.subr.bf16.mxu0 0
    %2178 = vmatpush1.bf16.msra.mxu0 %v2175
    %2179 = vmatprep.subr.bf16.mxu0 0
    %2180 = vmatpush1.bf16.msra.mxu0 0
    %2181 = vmatprep.subr.bf16.mxu0 0
    %2182 = vmatpush1.bf16.msra.mxu0 0
    %2183 = vmatprep.subr.bf16.mxu0 0
    %2184 = vmatpush1.bf16.msra.mxu0 0
    %2185 = vmatprep.subr.bf16.mxu0 0
    %2186 = vmatpush1.bf16.msra.mxu0 0
    %2187 = vmatprep.subr.bf16.mxu0 0
    %2188 = vmatpush1.bf16.msra.mxu0 0
    %2189 = vmatprep.subr.bf16.mxu0 0
    %2190 = vmatpush1.bf16.msra.mxu0 0
    %2191 = vmatprep.subr.bf16.mxu0 0
    %2192 = vmatpush1.bf16.msra.mxu0 0
    %2193 = vmatprep.subr.bf16.mxu0 0
    %2194 = vmatpush1.bf16.msra.mxu0 0
    %2195 = vmatprep.subr.bf16.mxu0 0
    %2196 = vmatpush1.bf16.msra.mxu0 0
    %2197 = vmatprep.subr.bf16.mxu0 0
    %2198 = vmatpush1.bf16.msra.mxu0 0
    %2199 = vmatprep.subr.bf16.mxu0 0
    %2200 = vmatpush1.bf16.msra.mxu0 0
    %2201 = vmatprep.subr.bf16.mxu0 0
    %2202 = vmatpush1.bf16.msra.mxu0 0
    %2203 = vmatprep.subr.bf16.mxu0 0
    %2204 = vmatpush1.bf16.msra.mxu0 0
    %2205 = vmatprep.subr.bf16.mxu0 0
    %2206 = vmatpush1.bf16.msra.mxu0 0
    %2207 = vmatprep.subr.bf16.mxu0 0
    %2208 = vmatpush1.bf16.msra.mxu0 0
    %2209 = vmatprep.mubr.bf16.mxu0 0
    %2210 = vmatmul.mubr.bf16.gmra.mrb[0].mxu0 %v2172
    %v2211 = vpop.f32.mrb[0].mxu0
    %v2212 = vadd.f32 0.0, %v2211
    %v2213 = vpop.f32.mrb[0].mxu0
    %v2214 = vpop.f32.mrb[0].mxu0
    %v2215 = vpop.f32.mrb[0].mxu0
    %2216 = vdwg.mxu0
    %2217 = vrot.lane.b32.xlu0 %v494, 56
    %v2218 = vpop.permute.xlu0 %2217
    %v2220 = vsel %vm498, %v1880, 0
    %v2223 = vsel %vm997, %v2218, 0
    %2225 = vmatprep.subr.bf16.mxu0 0
    %2226 = vmatpush1.bf16.msra.mxu0 %v2223
    %2227 = vmatprep.subr.bf16.mxu0 0
    %2228 = vmatpush1.bf16.msra.mxu0 0
    %2229 = vmatprep.subr.bf16.mxu0 0
    %2230 = vmatpush1.bf16.msra.mxu0 0
    %2231 = vmatprep.subr.bf16.mxu0 0
    %2232 = vmatpush1.bf16.msra.mxu0 0
    %2233 = vmatprep.subr.bf16.mxu0 0
    %2234 = vmatpush1.bf16.msra.mxu0 0
    %2235 = vmatprep.subr.bf16.mxu0 0
    %2236 = vmatpush1.bf16.msra.mxu0 0
    %2237 = vmatprep.subr.bf16.mxu0 0
    %2238 = vmatpush1.bf16.msra.mxu0 0
    %2239 = vmatprep.subr.bf16.mxu0 0
    %2240 = vmatpush1.bf16.msra.mxu0 0
    %2241 = vmatprep.subr.bf16.mxu0 0
    %2242 = vmatpush1.bf16.msra.mxu0 0
    %2243 = vmatprep.subr.bf16.mxu0 0
    %2244 = vmatpush1.bf16.msra.mxu0 0
    %2245 = vmatprep.subr.bf16.mxu0 0
    %2246 = vmatpush1.bf16.msra.mxu0 0
    %2247 = vmatprep.subr.bf16.mxu0 0
    %2248 = vmatpush1.bf16.msra.mxu0 0
    %2249 = vmatprep.subr.bf16.mxu0 0
    %2250 = vmatpush1.bf16.msra.mxu0 0
    %2251 = vmatprep.subr.bf16.mxu0 0
    %2252 = vmatpush1.bf16.msra.mxu0 0
    %2253 = vmatprep.subr.bf16.mxu0 0
    %2254 = vmatpush1.bf16.msra.mxu0 0
    %2255 = vmatprep.subr.bf16.mxu0 0
    %2256 = vmatpush1.bf16.msra.mxu0 0
    %2257 = vmatprep.mubr.bf16.mxu0 0
    %2258 = vmatmul.mubr.bf16.gmra.mrb[0].mxu0 %v2220
    %v2259 = vpop.f32.mrb[0].mxu0
    %v2260 = vadd.f32 0.0, %v2259
    %v2261 = vpop.f32.mrb[0].mxu0
    %v2262 = vpop.f32.mrb[0].mxu0
    %v2263 = vpop.f32.mrb[0].mxu0
    %2264 = vdwg.mxu0
    %2265 = vrot.lane.b32.xlu0 %v487, 112
    %v2266 = vpop.permute.xlu0 %2265
    %2267 = vrot.lane.b32.xlu0 %v487, 80
    %v2268 = vpop.permute.xlu0 %2267
    %v2270 = vsel %vm498, %v2266, 0
    %v2273 = vsel %vm498, %v2268, 0
    %2275 = vmatprep.subr.bf16.mxu0 0
    %2276 = vmatpush1.bf16.xpose.msra.mxu0 %v2273
    %2277 = vmatprep.subr.bf16.mxu0 0
    %2278 = vmatpush1.bf16.xpose.msra.mxu0 0
    %2279 = vmatprep.subr.bf16.mxu0 0
    %2280 = vmatpush1.bf16.xpose.msra.mxu0 0
    %2281 = vmatprep.subr.bf16.mxu0 0
    %2282 = vmatpush1.bf16.xpose.msra.mxu0 0
    %2283 = vmatprep.subr.bf16.mxu0 0
    %2284 = vmatpush1.bf16.xpose.msra.mxu0 0
    %2285 = vmatprep.subr.bf16.mxu0 0
    %2286 = vmatpush1.bf16.xpose.msra.mxu0 0
    %2287 = vmatprep.subr.bf16.mxu0 0
    %2288 = vmatpush1.bf16.xpose.msra.mxu0 0
    %2289 = vmatprep.subr.bf16.mxu0 0
    %2290 = vmatpush1.bf16.xpose.msra.mxu0 0
    %2291 = vmatprep.subr.bf16.mxu0 0
    %2292 = vmatpush1.bf16.xpose.msra.mxu0 0
    %2293 = vmatprep.subr.bf16.mxu0 0
    %2294 = vmatpush1.bf16.xpose.msra.mxu0 0
    %2295 = vmatprep.subr.bf16.mxu0 0
    %2296 = vmatpush1.bf16.xpose.msra.mxu0 0
    %2297 = vmatprep.subr.bf16.mxu0 0
    %2298 = vmatpush1.bf16.xpose.msra.mxu0 0
    %2299 = vmatprep.subr.bf16.mxu0 0
    %2300 = vmatpush1.bf16.xpose.msra.mxu0 0
    %2301 = vmatprep.subr.bf16.mxu0 0
    %2302 = vmatpush1.bf16.xpose.msra.mxu0 0
    %2303 = vmatprep.subr.bf16.mxu0 0
    %2304 = vmatpush1.bf16.xpose.msra.mxu0 0
    %2305 = vmatprep.subr.bf16.mxu0 0
    %2306 = vmatpush1.bf16.xpose.msra.mxu0 0
    %2307 = vmatprep.mubr.bf16.mxu0 0
    %2308 = vmatmul.mubr.bf16.gmra.mrb[0].mxu0 %v2270
    %v2309 = vpop.f32.mrb[0].mxu0
    %v2310 = vadd.f32 0.0, %v2309
    %v2311 = vpop.f32.mrb[0].mxu0
    %v2312 = vpop.f32.mrb[0].mxu0
    %v2313 = vpop.f32.mrb[0].mxu0
    %2314 = vdwg.mxu0
    %2315 = vrot.lane.b32.xlu0 %v488, 112
    %v2316 = vpop.permute.xlu0 %2315
    %2317 = vrot.lane.b32.xlu0 %v488, 80
    %v2318 = vpop.permute.xlu0 %2317
    %v2320 = vsel %vm498, %v2316, 0
    %v2323 = vsel %vm498, %v2318, 0
    %2325 = vmatprep.subr.bf16.mxu0 0
    %2326 = vmatpush1.bf16.xpose.msra.mxu0 %v2323
    %2327 = vmatprep.subr.bf16.mxu0 0
    %2328 = vmatpush1.bf16.xpose.msra.mxu0 0
    %2329 = vmatprep.subr.bf16.mxu0 0
    %2330 = vmatpush1.bf16.xpose.msra.mxu0 0
    %2331 = vmatprep.subr.bf16.mxu0 0
    %2332 = vmatpush1.bf16.xpose.msra.mxu0 0
    %2333 = vmatprep.subr.bf16.mxu0 0
    %2334 = vmatpush1.bf16.xpose.msra.mxu0 0
    %2335 = vmatprep.subr.bf16.mxu0 0
    %2336 = vmatpush1.bf16.xpose.msra.mxu0 0
    %2337 = vmatprep.subr.bf16.mxu0 0
    %2338 = vmatpush1.bf16.xpose.msra.mxu0 0
    %2339 = vmatprep.subr.bf16.mxu0 0
    %2340 = vmatpush1.bf16.xpose.msra.mxu0 0
    %2341 = vmatprep.subr.bf16.mxu0 0
    %2342 = vmatpush1.bf16.xpose.msra.mxu0 0
    %2343 = vmatprep.subr.bf16.mxu0 0
    %2344 = vmatpush1.bf16.xpose.msra.mxu0 0
    %2345 = vmatprep.subr.bf16.mxu0 0
    %2346 = vmatpush1.bf16.xpose.msra.mxu0 0
    %2347 = vmatprep.subr.bf16.mxu0 0
    %2348 = vmatpush1.bf16.xpose.msra.mxu0 0
    %2349 = vmatprep.subr.bf16.mxu0 0
    %2350 = vmatpush1.bf16.xpose.msra.mxu0 0
    %2351 = vmatprep.subr.bf16.mxu0 0
    %2352 = vmatpush1.bf16.xpose.msra.mxu0 0
    %2353 = vmatprep.subr.bf16.mxu0 0
    %2354 = vmatpush1.bf16.xpose.msra.mxu0 0
    %2355 = vmatprep.subr.bf16.mxu0 0
    %2356 = vmatpush1.bf16.xpose.msra.mxu0 0
    %2357 = vmatprep.mubr.bf16.mxu0 0
    %2358 = vmatmul.mubr.bf16.gmra.mrb[0].mxu0 %v2320
    %v2359 = vpop.f32.mrb[0].mxu0
    %v2360 = vadd.f32 0.0, %v2359
    %v2361 = vpop.f32.mrb[0].mxu0
    %v2362 = vpop.f32.mrb[0].mxu0
    %v2363 = vpop.f32.mrb[0].mxu0
    %2364 = vdwg.mxu0
    %2365 = vrot.lane.b32.xlu0 %v489, 112
    %v2366 = vpop.permute.xlu0 %2365
    %2367 = vrot.lane.b32.xlu0 %v489, 80
    %v2368 = vpop.permute.xlu0 %2367
    %v2370 = vsel %vm498, %v2366, 0
    %v2373 = vsel %vm498, %v2368, 0
    %2375 = vmatprep.subr.bf16.mxu0 0
    %2376 = vmatpush1.bf16.xpose.msra.mxu0 %v2373
    %2377 = vmatprep.subr.bf16.mxu0 0
    %2378 = vmatpush1.bf16.xpose.msra.mxu0 0
    %2379 = vmatprep.subr.bf16.mxu0 0
    %2380 = vmatpush1.bf16.xpose.msra.mxu0 0
    %2381 = vmatprep.subr.bf16.mxu0 0
    %2382 = vmatpush1.bf16.xpose.msra.mxu0 0
    %2383 = vmatprep.subr.bf16.mxu0 0
    %2384 = vmatpush1.bf16.xpose.msra.mxu0 0
    %2385 = vmatprep.subr.bf16.mxu0 0
    %2386 = vmatpush1.bf16.xpose.msra.mxu0 0
    %2387 = vmatprep.subr.bf16.mxu0 0
    %2388 = vmatpush1.bf16.xpose.msra.mxu0 0
    %2389 = vmatprep.subr.bf16.mxu0 0
    %2390 = vmatpush1.bf16.xpose.msra.mxu0 0
    %2391 = vmatprep.subr.bf16.mxu0 0
    %2392 = vmatpush1.bf16.xpose.msra.mxu0 0
    %2393 = vmatprep.subr.bf16.mxu0 0
    %2394 = vmatpush1.bf16.xpose.msra.mxu0 0
    %2395 = vmatprep.subr.bf16.mxu0 0
    %2396 = vmatpush1.bf16.xpose.msra.mxu0 0
    %2397 = vmatprep.subr.bf16.mxu0 0
    %2398 = vmatpush1.bf16.xpose.msra.mxu0 0
    %2399 = vmatprep.subr.bf16.mxu0 0
    %2400 = vmatpush1.bf16.xpose.msra.mxu0 0
    %2401 = vmatprep.subr.bf16.mxu0 0
    %2402 = vmatpush1.bf16.xpose.msra.mxu0 0
    %2403 = vmatprep.subr.bf16.mxu0 0
    %2404 = vmatpush1.bf16.xpose.msra.mxu0 0
    %2405 = vmatprep.subr.bf16.mxu0 0
    %2406 = vmatpush1.bf16.xpose.msra.mxu0 0
    %2407 = vmatprep.mubr.bf16.mxu0 0
    %2408 = vmatmul.mubr.bf16.gmra.mrb[0].mxu0 %v2370
    %v2409 = vpop.f32.mrb[0].mxu0
    %v2410 = vadd.f32 0.0, %v2409
    %v2411 = vpop.f32.mrb[0].mxu0
    %v2412 = vpop.f32.mrb[0].mxu0
    %v2413 = vpop.f32.mrb[0].mxu0
    %2414 = vdwg.mxu0
    %2415 = vrot.lane.b32.xlu0 %v490, 112
    %v2416 = vpop.permute.xlu0 %2415
    %2417 = vrot.lane.b32.xlu0 %v490, 80
    %v2418 = vpop.permute.xlu0 %2417
    %v2420 = vsel %vm498, %v2416, 0
    %v2423 = vsel %vm498, %v2418, 0
    %2425 = vmatprep.subr.bf16.mxu0 0
    %2426 = vmatpush1.bf16.xpose.msra.mxu0 %v2423
    %2427 = vmatprep.subr.bf16.mxu0 0
    %2428 = vmatpush1.bf16.xpose.msra.mxu0 0
    %2429 = vmatprep.subr.bf16.mxu0 0
    %2430 = vmatpush1.bf16.xpose.msra.mxu0 0
    %2431 = vmatprep.subr.bf16.mxu0 0
    %2432 = vmatpush1.bf16.xpose.msra.mxu0 0
    %2433 = vmatprep.subr.bf16.mxu0 0
    %2434 = vmatpush1.bf16.xpose.msra.mxu0 0
    %2435 = vmatprep.subr.bf16.mxu0 0
    %2436 = vmatpush1.bf16.xpose.msra.mxu0 0
    %2437 = vmatprep.subr.bf16.mxu0 0
    %2438 = vmatpush1.bf16.xpose.msra.mxu0 0
    %2439 = vmatprep.subr.bf16.mxu0 0
    %2440 = vmatpush1.bf16.xpose.msra.mxu0 0
    %2441 = vmatprep.subr.bf16.mxu0 0
    %2442 = vmatpush1.bf16.xpose.msra.mxu0 0
    %2443 = vmatprep.subr.bf16.mxu0 0
    %2444 = vmatpush1.bf16.xpose.msra.mxu0 0
    %2445 = vmatprep.subr.bf16.mxu0 0
    %2446 = vmatpush1.bf16.xpose.msra.mxu0 0
    %2447 = vmatprep.subr.bf16.mxu0 0
    %2448 = vmatpush1.bf16.xpose.msra.mxu0 0
    %2449 = vmatprep.subr.bf16.mxu0 0
    %2450 = vmatpush1.bf16.xpose.msra.mxu0 0
    %2451 = vmatprep.subr.bf16.mxu0 0
    %2452 = vmatpush1.bf16.xpose.msra.mxu0 0
    %2453 = vmatprep.subr.bf16.mxu0 0
    %2454 = vmatpush1.bf16.xpose.msra.mxu0 0
    %2455 = vmatprep.subr.bf16.mxu0 0
    %2456 = vmatpush1.bf16.xpose.msra.mxu0 0
    %2457 = vmatprep.mubr.bf16.mxu0 0
    %2458 = vmatmul.mubr.bf16.gmra.mrb[0].mxu0 %v2420
    %v2459 = vpop.f32.mrb[0].mxu0
    %v2460 = vadd.f32 0.0, %v2459
    %v2461 = vpop.f32.mrb[0].mxu0
    %v2462 = vpop.f32.mrb[0].mxu0
    %v2463 = vpop.f32.mrb[0].mxu0
    %2464 = vdwg.mxu0
    %2465 = vrot.lane.b32.xlu0 %v491, 112
    %v2466 = vpop.permute.xlu0 %2465
    %2467 = vrot.lane.b32.xlu0 %v491, 80
    %v2468 = vpop.permute.xlu0 %2467
    %v2470 = vsel %vm498, %v2466, 0
    %v2473 = vsel %vm498, %v2468, 0
    %2475 = vmatprep.subr.bf16.mxu0 0
    %2476 = vmatpush1.bf16.xpose.msra.mxu0 %v2473
    %2477 = vmatprep.subr.bf16.mxu0 0
    %2478 = vmatpush1.bf16.xpose.msra.mxu0 0
    %2479 = vmatprep.subr.bf16.mxu0 0
    %2480 = vmatpush1.bf16.xpose.msra.mxu0 0
    %2481 = vmatprep.subr.bf16.mxu0 0
    %2482 = vmatpush1.bf16.xpose.msra.mxu0 0
    %2483 = vmatprep.subr.bf16.mxu0 0
    %2484 = vmatpush1.bf16.xpose.msra.mxu0 0
    %2485 = vmatprep.subr.bf16.mxu0 0
    %2486 = vmatpush1.bf16.xpose.msra.mxu0 0
    %2487 = vmatprep.subr.bf16.mxu0 0
    %2488 = vmatpush1.bf16.xpose.msra.mxu0 0
    %2489 = vmatprep.subr.bf16.mxu0 0
    %2490 = vmatpush1.bf16.xpose.msra.mxu0 0
    %2491 = vmatprep.subr.bf16.mxu0 0
    %2492 = vmatpush1.bf16.xpose.msra.mxu0 0
    %2493 = vmatprep.subr.bf16.mxu0 0
    %2494 = vmatpush1.bf16.xpose.msra.mxu0 0
    %2495 = vmatprep.subr.bf16.mxu0 0
    %2496 = vmatpush1.bf16.xpose.msra.mxu0 0
    %2497 = vmatprep.subr.bf16.mxu0 0
    %2498 = vmatpush1.bf16.xpose.msra.mxu0 0
    %2499 = vmatprep.subr.bf16.mxu0 0
    %2500 = vmatpush1.bf16.xpose.msra.mxu0 0
    %2501 = vmatprep.subr.bf16.mxu0 0
    %2502 = vmatpush1.bf16.xpose.msra.mxu0 0
    %2503 = vmatprep.subr.bf16.mxu0 0
    %2504 = vmatpush1.bf16.xpose.msra.mxu0 0
    %2505 = vmatprep.subr.bf16.mxu0 0
    %2506 = vmatpush1.bf16.xpose.msra.mxu0 0
    %2507 = vmatprep.mubr.bf16.mxu0 0
    %2508 = vmatmul.mubr.bf16.gmra.mrb[0].mxu0 %v2470
    %v2509 = vpop.f32.mrb[0].mxu0
    %v2510 = vadd.f32 0.0, %v2509
    %v2511 = vpop.f32.mrb[0].mxu0
    %v2512 = vpop.f32.mrb[0].mxu0
    %v2513 = vpop.f32.mrb[0].mxu0
    %2514 = vdwg.mxu0
    %2515 = vrot.lane.b32.xlu0 %v492, 112
    %v2516 = vpop.permute.xlu0 %2515
    %2517 = vrot.lane.b32.xlu0 %v492, 80
    %v2518 = vpop.permute.xlu0 %2517
    %v2520 = vsel %vm498, %v2516, 0
    %v2523 = vsel %vm498, %v2518, 0
    %2525 = vmatprep.subr.bf16.mxu0 0
    %2526 = vmatpush1.bf16.xpose.msra.mxu0 %v2523
    %2527 = vmatprep.subr.bf16.mxu0 0
    %2528 = vmatpush1.bf16.xpose.msra.mxu0 0
    %2529 = vmatprep.subr.bf16.mxu0 0
    %2530 = vmatpush1.bf16.xpose.msra.mxu0 0
    %2531 = vmatprep.subr.bf16.mxu0 0
    %2532 = vmatpush1.bf16.xpose.msra.mxu0 0
    %2533 = vmatprep.subr.bf16.mxu0 0
    %2534 = vmatpush1.bf16.xpose.msra.mxu0 0
    %2535 = vmatprep.subr.bf16.mxu0 0
    %2536 = vmatpush1.bf16.xpose.msra.mxu0 0
    %2537 = vmatprep.subr.bf16.mxu0 0
    %2538 = vmatpush1.bf16.xpose.msra.mxu0 0
    %2539 = vmatprep.subr.bf16.mxu0 0
    %2540 = vmatpush1.bf16.xpose.msra.mxu0 0
    %2541 = vmatprep.subr.bf16.mxu0 0
    %2542 = vmatpush1.bf16.xpose.msra.mxu0 0
    %2543 = vmatprep.subr.bf16.mxu0 0
    %2544 = vmatpush1.bf16.xpose.msra.mxu0 0
    %2545 = vmatprep.subr.bf16.mxu0 0
    %2546 = vmatpush1.bf16.xpose.msra.mxu0 0
    %2547 = vmatprep.subr.bf16.mxu0 0
    %2548 = vmatpush1.bf16.xpose.msra.mxu0 0
    %2549 = vmatprep.subr.bf16.mxu0 0
    %2550 = vmatpush1.bf16.xpose.msra.mxu0 0
    %2551 = vmatprep.subr.bf16.mxu0 0
    %2552 = vmatpush1.bf16.xpose.msra.mxu0 0
    %2553 = vmatprep.subr.bf16.mxu0 0
    %2554 = vmatpush1.bf16.xpose.msra.mxu0 0
    %2555 = vmatprep.subr.bf16.mxu0 0
    %2556 = vmatpush1.bf16.xpose.msra.mxu0 0
    %2557 = vmatprep.mubr.bf16.mxu0 0
    %2558 = vmatmul.mubr.bf16.gmra.mrb[0].mxu0 %v2520
    %v2559 = vpop.f32.mrb[0].mxu0
    %v2560 = vadd.f32 0.0, %v2559
    %v2561 = vpop.f32.mrb[0].mxu0
    %v2562 = vpop.f32.mrb[0].mxu0
    %v2563 = vpop.f32.mrb[0].mxu0
    %2564 = vdwg.mxu0
    %2565 = vrot.lane.b32.xlu0 %v493, 112
    %v2566 = vpop.permute.xlu0 %2565
    %2567 = vrot.lane.b32.xlu0 %v493, 80
    %v2568 = vpop.permute.xlu0 %2567
    %v2570 = vsel %vm498, %v2566, 0
    %v2573 = vsel %vm498, %v2568, 0
    %2575 = vmatprep.subr.bf16.mxu0 0
    %2576 = vmatpush1.bf16.xpose.msra.mxu0 %v2573
    %2577 = vmatprep.subr.bf16.mxu0 0
    %2578 = vmatpush1.bf16.xpose.msra.mxu0 0
    %2579 = vmatprep.subr.bf16.mxu0 0
    %2580 = vmatpush1.bf16.xpose.msra.mxu0 0
    %2581 = vmatprep.subr.bf16.mxu0 0
    %2582 = vmatpush1.bf16.xpose.msra.mxu0 0
    %2583 = vmatprep.subr.bf16.mxu0 0
    %2584 = vmatpush1.bf16.xpose.msra.mxu0 0
    %2585 = vmatprep.subr.bf16.mxu0 0
    %2586 = vmatpush1.bf16.xpose.msra.mxu0 0
    %2587 = vmatprep.subr.bf16.mxu0 0
    %2588 = vmatpush1.bf16.xpose.msra.mxu0 0
    %2589 = vmatprep.subr.bf16.mxu0 0
    %2590 = vmatpush1.bf16.xpose.msra.mxu0 0
    %2591 = vmatprep.subr.bf16.mxu0 0
    %2592 = vmatpush1.bf16.xpose.msra.mxu0 0
    %2593 = vmatprep.subr.bf16.mxu0 0
    %2594 = vmatpush1.bf16.xpose.msra.mxu0 0
    %2595 = vmatprep.subr.bf16.mxu0 0
    %2596 = vmatpush1.bf16.xpose.msra.mxu0 0
    %2597 = vmatprep.subr.bf16.mxu0 0
    %2598 = vmatpush1.bf16.xpose.msra.mxu0 0
    %2599 = vmatprep.subr.bf16.mxu0 0
    %2600 = vmatpush1.bf16.xpose.msra.mxu0 0
    %2601 = vmatprep.subr.bf16.mxu0 0
    %2602 = vmatpush1.bf16.xpose.msra.mxu0 0
    %2603 = vmatprep.subr.bf16.mxu0 0
    %2604 = vmatpush1.bf16.xpose.msra.mxu0 0
    %2605 = vmatprep.subr.bf16.mxu0 0
    %2606 = vmatpush1.bf16.xpose.msra.mxu0 0
    %2607 = vmatprep.mubr.bf16.mxu0 0
    %2608 = vmatmul.mubr.bf16.gmra.mrb[0].mxu0 %v2570
    %v2609 = vpop.f32.mrb[0].mxu0
    %v2610 = vadd.f32 0.0, %v2609
    %v2611 = vpop.f32.mrb[0].mxu0
    %v2612 = vpop.f32.mrb[0].mxu0
    %v2613 = vpop.f32.mrb[0].mxu0
    %2614 = vdwg.mxu0
    %2615 = vrot.lane.b32.xlu0 %v494, 112
    %v2616 = vpop.permute.xlu0 %2615
    %2617 = vrot.lane.b32.xlu0 %v494, 80
    %v2618 = vpop.permute.xlu0 %2617
    %v2620 = vsel %vm498, %v2616, 0
    %v2623 = vsel %vm498, %v2618, 0
    %2625 = vmatprep.subr.bf16.mxu0 0
    %2626 = vmatpush1.bf16.xpose.msra.mxu0 %v2623
    %2627 = vmatprep.subr.bf16.mxu0 0
    %2628 = vmatpush1.bf16.xpose.msra.mxu0 0
    %2629 = vmatprep.subr.bf16.mxu0 0
    %2630 = vmatpush1.bf16.xpose.msra.mxu0 0
    %2631 = vmatprep.subr.bf16.mxu0 0
    %2632 = vmatpush1.bf16.xpose.msra.mxu0 0
    %2633 = vmatprep.subr.bf16.mxu0 0
    %2634 = vmatpush1.bf16.xpose.msra.mxu0 0
    %2635 = vmatprep.subr.bf16.mxu0 0
    %2636 = vmatpush1.bf16.xpose.msra.mxu0 0
    %2637 = vmatprep.subr.bf16.mxu0 0
    %2638 = vmatpush1.bf16.xpose.msra.mxu0 0
    %2639 = vmatprep.subr.bf16.mxu0 0
    %2640 = vmatpush1.bf16.xpose.msra.mxu0 0
    %2641 = vmatprep.subr.bf16.mxu0 0
    %2642 = vmatpush1.bf16.xpose.msra.mxu0 0
    %2643 = vmatprep.subr.bf16.mxu0 0
    %2644 = vmatpush1.bf16.xpose.msra.mxu0 0
    %2645 = vmatprep.subr.bf16.mxu0 0
    %2646 = vmatpush1.bf16.xpose.msra.mxu0 0
    %2647 = vmatprep.subr.bf16.mxu0 0
    %2648 = vmatpush1.bf16.xpose.msra.mxu0 0
    %2649 = vmatprep.subr.bf16.mxu0 0
    %2650 = vmatpush1.bf16.xpose.msra.mxu0 0
    %2651 = vmatprep.subr.bf16.mxu0 0
    %2652 = vmatpush1.bf16.xpose.msra.mxu0 0
    %2653 = vmatprep.subr.bf16.mxu0 0
    %2654 = vmatpush1.bf16.xpose.msra.mxu0 0
    %2655 = vmatprep.subr.bf16.mxu0 0
    %2656 = vmatpush1.bf16.xpose.msra.mxu0 0
    %2657 = vmatprep.mubr.bf16.mxu0 0
    %2658 = vmatmul.mubr.bf16.gmra.mrb[0].mxu0 %v2620
    %v2659 = vpop.f32.mrb[0].mxu0
    %v2660 = vadd.f32 0.0, %v2659
    %v2661 = vpop.f32.mrb[0].mxu0
    %v2662 = vpop.f32.mrb[0].mxu0
    %v2663 = vpop.f32.mrb[0].mxu0
    %2664 = vdwg.mxu0
    %v2665 = vmul.f32 %v2310, 0.35355338
    %v2666 = vmul.f32 %v2360, 0.35355338
    %v2667 = vmul.f32 %v2410, 0.35355338
    %v2668 = vmul.f32 %v2460, 0.35355338
    %v2669 = vmul.f32 %v2510, 0.35355338
    %v2670 = vmul.f32 %v2560, 0.35355338
    %v2671 = vmul.f32 %v2610, 0.35355338
    %v2672 = vmul.f32 %v2660, 0.35355338
    %v2673 = vsel %vm498, %v2665, -inf
    %2674 = vmax.xlane.f32.xlu0 %v2673
    %v2675 = vpop.xlane.xlu0 %2674
    %v2676 = vsel %vm498, %v2666, -inf
    %2677 = vmax.xlane.f32.xlu0 %v2676
    %v2678 = vpop.xlane.xlu0 %2677
    %v2679 = vsel %vm498, %v2667, -inf
    %2680 = vmax.xlane.f32.xlu0 %v2679
    %v2681 = vpop.xlane.xlu0 %2680
    %v2682 = vsel %vm498, %v2668, -inf
    %2683 = vmax.xlane.f32.xlu0 %v2682
    %v2684 = vpop.xlane.xlu0 %2683
    %v2685 = vsel %vm498, %v2669, -inf
    %2686 = vmax.xlane.f32.xlu0 %v2685
    %v2687 = vpop.xlane.xlu0 %2686
    %v2688 = vsel %vm498, %v2670, -inf
    %2689 = vmax.xlane.f32.xlu0 %v2688
    %v2690 = vpop.xlane.xlu0 %2689
    %v2691 = vsel %vm498, %v2671, -inf
    %2692 = vmax.xlane.f32.xlu0 %v2691
    %v2693 = vpop.xlane.xlu0 %2692
    %v2694 = vsel %vm498, %v2672, -inf
    %2695 = vmax.xlane.f32.xlu0 %v2694
    %v2696 = vpop.xlane.xlu0 %2695
    %v2697 = vsub.f32 %v2665, %v2675
    %v2698 = vsub.f32 %v2666, %v2678
    %v2699 = vsub.f32 %v2667, %v2681
    %v2700 = vsub.f32 %v2668, %v2684
    %v2701 = vsub.f32 %v2669, %v2687
    %v2702 = vsub.f32 %v2670, %v2690
    %v2703 = vsub.f32 %v2671, %v2693
    %v2704 = vsub.f32 %v2672, %v2696
    %v2705 = vmul.f32 %v2697, 1.442695
    %v2706 = vpow.pop %v2705
    %v2707 = vmul.f32 %v2698, 1.442695
    %v2708 = vpow.pop %v2707
    %v2709 = vmul.f32 %v2699, 1.442695
    %v2710 = vpow.pop %v2709
    %v2711 = vmul.f32 %v2700, 1.442695
    %v2712 = vpow.pop %v2711
    %v2713 = vmul.f32 %v2701, 1.442695
    %v2714 = vpow.pop %v2713
    %v2715 = vmul.f32 %v2702, 1.442695
    %v2716 = vpow.pop %v2715
    %v2717 = vmul.f32 %v2703, 1.442695
    %v2718 = vpow.pop %v2717
    %v2719 = vmul.f32 %v2704, 1.442695
    %v2720 = vpow.pop %v2719
    %v2721 = vsel %vm498, %v2706, 0.0
    %2722 = vadd.xlane.f32.xlu0 %v2721
    %v2723 = vpop.xlane.xlu0 %2722
    %v2724 = vsel %vm498, %v2708, 0.0
    %2725 = vadd.xlane.f32.xlu0 %v2724
    %v2726 = vpop.xlane.xlu0 %2725
    %v2727 = vsel %vm498, %v2710, 0.0
    %2728 = vadd.xlane.f32.xlu0 %v2727
    %v2729 = vpop.xlane.xlu0 %2728
    %v2730 = vsel %vm498, %v2712, 0.0
    %2731 = vadd.xlane.f32.xlu0 %v2730
    %v2732 = vpop.xlane.xlu0 %2731
    %v2733 = vsel %vm498, %v2714, 0.0
    %2734 = vadd.xlane.f32.xlu0 %v2733
    %v2735 = vpop.xlane.xlu0 %2734
    %v2736 = vsel %vm498, %v2716, 0.0
    %2737 = vadd.xlane.f32.xlu0 %v2736
    %v2738 = vpop.xlane.xlu0 %2737
    %v2739 = vsel %vm498, %v2718, 0.0
    %2740 = vadd.xlane.f32.xlu0 %v2739
    %v2741 = vpop.xlane.xlu0 %2740
    %v2742 = vsel %vm498, %v2720, 0.0
    %2743 = vadd.xlane.f32.xlu0 %v2742
    %v2744 = vpop.xlane.xlu0 %2743
    %v2745 = vrcp.pop %v2723
    %v2746 = vrcp.pop %v2726
    %v2747 = vrcp.pop %v2729
    %v2748 = vrcp.pop %v2732
    %v2749 = vrcp.pop %v2735
    %v2750 = vrcp.pop %v2738
    %v2751 = vrcp.pop %v2741
    %v2752 = vrcp.pop %v2744
    %v2753 = vmul.f32 %v2706, %v2745
    %v2754 = vmul.f32 %v2708, %v2746
    %v2755 = vmul.f32 %v2710, %v2747
    %v2756 = vmul.f32 %v2712, %v2748
    %v2757 = vmul.f32 %v2714, %v2749
    %v2758 = vmul.f32 %v2716, %v2750
    %v2759 = vmul.f32 %v2718, %v2751
    %v2760 = vmul.f32 %v2720, %v2752
    %v2761 = vpack.c.bf16 %v2753, %v2753
    %v2762 = vpack.c.bf16 %v2754, %v2754
    %v2763 = vpack.c.bf16 %v2755, %v2755
    %v2764 = vpack.c.bf16 %v2756, %v2756
    %v2765 = vpack.c.bf16 %v2757, %v2757
    %v2766 = vpack.c.bf16 %v2758, %v2758
    %v2767 = vpack.c.bf16 %v2759, %v2759
    %v2768 = vpack.c.bf16 %v2760, %v2760
    %2769 = vrot.lane.b32.xlu0 %v487, 48
    %v2770 = vpop.permute.xlu0 %2769
    %v2772 = vsel %vm498, %v2761, 0
    %v2775 = vsel %vm997, %v2770, 0
    %2777 = vmatprep.subr.bf16.mxu0 0
    %2778 = vmatpush1.bf16.msra.mxu0 %v2775
    %2779 = vmatprep.subr.bf16.mxu0 0
    %2780 = vmatpush1.bf16.msra.mxu0 0
    %2781 = vmatprep.subr.bf16.mxu0 0
    %2782 = vmatpush1.bf16.msra.mxu0 0
    %2783 = vmatprep.subr.bf16.mxu0 0
    %2784 = vmatpush1.bf16.msra.mxu0 0
    %2785 = vmatprep.subr.bf16.mxu0 0
    %2786 = vmatpush1.bf16.msra.mxu0 0
    %2787 = vmatprep.subr.bf16.mxu0 0
    %2788 = vmatpush1.bf16.msra.mxu0 0
    %2789 = vmatprep.subr.bf16.mxu0 0
    %2790 = vmatpush1.bf16.msra.mxu0 0
    %2791 = vmatprep.subr.bf16.mxu0 0
    %2792 = vmatpush1.bf16.msra.mxu0 0
    %2793 = vmatprep.subr.bf16.mxu0 0
    %2794 = vmatpush1.bf16.msra.mxu0 0
    %2795 = vmatprep.subr.bf16.mxu0 0
    %2796 = vmatpush1.bf16.msra.mxu0 0
    %2797 = vmatprep.subr.bf16.mxu0 0
    %2798 = vmatpush1.bf16.msra.mxu0 0
    %2799 = vmatprep.subr.bf16.mxu0 0
    %2800 = vmatpush1.bf16.msra.mxu0 0
    %2801 = vmatprep.subr.bf16.mxu0 0
    %2802 = vmatpush1.bf16.msra.mxu0 0
    %2803 = vmatprep.subr.bf16.mxu0 0
    %2804 = vmatpush1.bf16.msra.mxu0 0
    %2805 = vmatprep.subr.bf16.mxu0 0
    %2806 = vmatpush1.bf16.msra.mxu0 0
    %2807 = vmatprep.subr.bf16.mxu0 0
    %2808 = vmatpush1.bf16.msra.mxu0 0
    %2809 = vmatprep.mubr.bf16.mxu0 0
    %2810 = vmatmul.mubr.bf16.gmra.mrb[0].mxu0 %v2772
    %v2811 = vpop.f32.mrb[0].mxu0
    %v2812 = vadd.f32 0.0, %v2811
    %v2813 = vpop.f32.mrb[0].mxu0
    %v2814 = vpop.f32.mrb[0].mxu0
    %v2815 = vpop.f32.mrb[0].mxu0
    %2816 = vdwg.mxu0
    %2817 = vrot.lane.b32.xlu0 %v488, 48
    %v2818 = vpop.permute.xlu0 %2817
    %v2820 = vsel %vm498, %v2762, 0
    %v2823 = vsel %vm997, %v2818, 0
    %2825 = vmatprep.subr.bf16.mxu0 0
    %2826 = vmatpush1.bf16.msra.mxu0 %v2823
    %2827 = vmatprep.subr.bf16.mxu0 0
    %2828 = vmatpush1.bf16.msra.mxu0 0
    %2829 = vmatprep.subr.bf16.mxu0 0
    %2830 = vmatpush1.bf16.msra.mxu0 0
    %2831 = vmatprep.subr.bf16.mxu0 0
    %2832 = vmatpush1.bf16.msra.mxu0 0
    %2833 = vmatprep.subr.bf16.mxu0 0
    %2834 = vmatpush1.bf16.msra.mxu0 0
    %2835 = vmatprep.subr.bf16.mxu0 0
    %2836 = vmatpush1.bf16.msra.mxu0 0
    %2837 = vmatprep.subr.bf16.mxu0 0
    %2838 = vmatpush1.bf16.msra.mxu0 0
    %2839 = vmatprep.subr.bf16.mxu0 0
    %2840 = vmatpush1.bf16.msra.mxu0 0
    %2841 = vmatprep.subr.bf16.mxu0 0
    %2842 = vmatpush1.bf16.msra.mxu0 0
    %2843 = vmatprep.subr.bf16.mxu0 0
    %2844 = vmatpush1.bf16.msra.mxu0 0
    %2845 = vmatprep.subr.bf16.mxu0 0
    %2846 = vmatpush1.bf16.msra.mxu0 0
    %2847 = vmatprep.subr.bf16.mxu0 0
    %2848 = vmatpush1.bf16.msra.mxu0 0
    %2849 = vmatprep.subr.bf16.mxu0 0
    %2850 = vmatpush1.bf16.msra.mxu0 0
    %2851 = vmatprep.subr.bf16.mxu0 0
    %2852 = vmatpush1.bf16.msra.mxu0 0
    %2853 = vmatprep.subr.bf16.mxu0 0
    %2854 = vmatpush1.bf16.msra.mxu0 0
    %2855 = vmatprep.subr.bf16.mxu0 0
    %2856 = vmatpush1.bf16.msra.mxu0 0
    %2857 = vmatprep.mubr.bf16.mxu0 0
    %2858 = vmatmul.mubr.bf16.gmra.mrb[0].mxu0 %v2820
    %v2859 = vpop.f32.mrb[0].mxu0
    %v2860 = vadd.f32 0.0, %v2859
    %v2861 = vpop.f32.mrb[0].mxu0
    %v2862 = vpop.f32.mrb[0].mxu0
    %v2863 = vpop.f32.mrb[0].mxu0
    %2864 = vdwg.mxu0
    %2865 = vrot.lane.b32.xlu0 %v489, 48
    %v2866 = vpop.permute.xlu0 %2865
    %v2868 = vsel %vm498, %v2763, 0
    %v2871 = vsel %vm997, %v2866, 0
    %2873 = vmatprep.subr.bf16.mxu0 0
    %2874 = vmatpush1.bf16.msra.mxu0 %v2871
    %2875 = vmatprep.subr.bf16.mxu0 0
    %2876 = vmatpush1.bf16.msra.mxu0 0
    %2877 = vmatprep.subr.bf16.mxu0 0
    %2878 = vmatpush1.bf16.msra.mxu0 0
    %2879 = vmatprep.subr.bf16.mxu0 0
    %2880 = vmatpush1.bf16.msra.mxu0 0
    %2881 = vmatprep.subr.bf16.mxu0 0
    %2882 = vmatpush1.bf16.msra.mxu0 0
    %2883 = vmatprep.subr.bf16.mxu0 0
    %2884 = vmatpush1.bf16.msra.mxu0 0
    %2885 = vmatprep.subr.bf16.mxu0 0
    %2886 = vmatpush1.bf16.msra.mxu0 0
    %2887 = vmatprep.subr.bf16.mxu0 0
    %2888 = vmatpush1.bf16.msra.mxu0 0
    %2889 = vmatprep.subr.bf16.mxu0 0
    %2890 = vmatpush1.bf16.msra.mxu0 0
    %2891 = vmatprep.subr.bf16.mxu0 0
    %2892 = vmatpush1.bf16.msra.mxu0 0
    %2893 = vmatprep.subr.bf16.mxu0 0
    %2894 = vmatpush1.bf16.msra.mxu0 0
    %2895 = vmatprep.subr.bf16.mxu0 0
    %2896 = vmatpush1.bf16.msra.mxu0 0
    %2897 = vmatprep.subr.bf16.mxu0 0
    %2898 = vmatpush1.bf16.msra.mxu0 0
    %2899 = vmatprep.subr.bf16.mxu0 0
    %2900 = vmatpush1.bf16.msra.mxu0 0
    %2901 = vmatprep.subr.bf16.mxu0 0
    %2902 = vmatpush1.bf16.msra.mxu0 0
    %2903 = vmatprep.subr.bf16.mxu0 0
    %2904 = vmatpush1.bf16.msra.mxu0 0
    %2905 = vmatprep.mubr.bf16.mxu0 0
    %2906 = vmatmul.mubr.bf16.gmra.mrb[0].mxu0 %v2868
    %v2907 = vpop.f32.mrb[0].mxu0
    %v2908 = vadd.f32 0.0, %v2907
    %v2909 = vpop.f32.mrb[0].mxu0
    %v2910 = vpop.f32.mrb[0].mxu0
    %v2911 = vpop.f32.mrb[0].mxu0
    %2912 = vdwg.mxu0
    %2913 = vrot.lane.b32.xlu0 %v490, 48
    %v2914 = vpop.permute.xlu0 %2913
    %v2916 = vsel %vm498, %v2764, 0
    %v2919 = vsel %vm997, %v2914, 0
    %2921 = vmatprep.subr.bf16.mxu0 0
    %2922 = vmatpush1.bf16.msra.mxu0 %v2919
    %2923 = vmatprep.subr.bf16.mxu0 0
    %2924 = vmatpush1.bf16.msra.mxu0 0
    %2925 = vmatprep.subr.bf16.mxu0 0
    %2926 = vmatpush1.bf16.msra.mxu0 0
    %2927 = vmatprep.subr.bf16.mxu0 0
    %2928 = vmatpush1.bf16.msra.mxu0 0
    %2929 = vmatprep.subr.bf16.mxu0 0
    %2930 = vmatpush1.bf16.msra.mxu0 0
    %2931 = vmatprep.subr.bf16.mxu0 0
    %2932 = vmatpush1.bf16.msra.mxu0 0
    %2933 = vmatprep.subr.bf16.mxu0 0
    %2934 = vmatpush1.bf16.msra.mxu0 0
    %2935 = vmatprep.subr.bf16.mxu0 0
    %2936 = vmatpush1.bf16.msra.mxu0 0
    %2937 = vmatprep.subr.bf16.mxu0 0
    %2938 = vmatpush1.bf16.msra.mxu0 0
    %2939 = vmatprep.subr.bf16.mxu0 0
    %2940 = vmatpush1.bf16.msra.mxu0 0
    %2941 = vmatprep.subr.bf16.mxu0 0
    %2942 = vmatpush1.bf16.msra.mxu0 0
    %2943 = vmatprep.subr.bf16.mxu0 0
    %2944 = vmatpush1.bf16.msra.mxu0 0
    %2945 = vmatprep.subr.bf16.mxu0 0
    %2946 = vmatpush1.bf16.msra.mxu0 0
    %2947 = vmatprep.subr.bf16.mxu0 0
    %2948 = vmatpush1.bf16.msra.mxu0 0
    %2949 = vmatprep.subr.bf16.mxu0 0
    %2950 = vmatpush1.bf16.msra.mxu0 0
    %2951 = vmatprep.subr.bf16.mxu0 0
    %2952 = vmatpush1.bf16.msra.mxu0 0
    %2953 = vmatprep.mubr.bf16.mxu0 0
    %2954 = vmatmul.mubr.bf16.gmra.mrb[0].mxu0 %v2916
    %v2955 = vpop.f32.mrb[0].mxu0
    %v2956 = vadd.f32 0.0, %v2955
    %v2957 = vpop.f32.mrb[0].mxu0
    %v2958 = vpop.f32.mrb[0].mxu0
    %v2959 = vpop.f32.mrb[0].mxu0
    %2960 = vdwg.mxu0
    %2961 = vrot.lane.b32.xlu0 %v491, 48
    %v2962 = vpop.permute.xlu0 %2961
    %v2964 = vsel %vm498, %v2765, 0
    %v2967 = vsel %vm997, %v2962, 0
    %2969 = vmatprep.subr.bf16.mxu0 0
    %2970 = vmatpush1.bf16.msra.mxu0 %v2967
    %2971 = vmatprep.subr.bf16.mxu0 0
    %2972 = vmatpush1.bf16.msra.mxu0 0
    %2973 = vmatprep.subr.bf16.mxu0 0
    %2974 = vmatpush1.bf16.msra.mxu0 0
    %2975 = vmatprep.subr.bf16.mxu0 0
    %2976 = vmatpush1.bf16.msra.mxu0 0
    %2977 = vmatprep.subr.bf16.mxu0 0
    %2978 = vmatpush1.bf16.msra.mxu0 0
    %2979 = vmatprep.subr.bf16.mxu0 0
    %2980 = vmatpush1.bf16.msra.mxu0 0
    %2981 = vmatprep.subr.bf16.mxu0 0
    %2982 = vmatpush1.bf16.msra.mxu0 0
    %2983 = vmatprep.subr.bf16.mxu0 0
    %2984 = vmatpush1.bf16.msra.mxu0 0
    %2985 = vmatprep.subr.bf16.mxu0 0
    %2986 = vmatpush1.bf16.msra.mxu0 0
    %2987 = vmatprep.subr.bf16.mxu0 0
    %2988 = vmatpush1.bf16.msra.mxu0 0
    %2989 = vmatprep.subr.bf16.mxu0 0
    %2990 = vmatpush1.bf16.msra.mxu0 0
    %2991 = vmatprep.subr.bf16.mxu0 0
    %2992 = vmatpush1.bf16.msra.mxu0 0
    %2993 = vmatprep.subr.bf16.mxu0 0
    %2994 = vmatpush1.bf16.msra.mxu0 0
    %2995 = vmatprep.subr.bf16.mxu0 0
    %2996 = vmatpush1.bf16.msra.mxu0 0
    %2997 = vmatprep.subr.bf16.mxu0 0
    %2998 = vmatpush1.bf16.msra.mxu0 0
    %2999 = vmatprep.subr.bf16.mxu0 0
    %3000 = vmatpush1.bf16.msra.mxu0 0
    %3001 = vmatprep.mubr.bf16.mxu0 0
    %3002 = vmatmul.mubr.bf16.gmra.mrb[0].mxu0 %v2964
    %v3003 = vpop.f32.mrb[0].mxu0
    %v3004 = vadd.f32 0.0, %v3003
    %v3005 = vpop.f32.mrb[0].mxu0
    %v3006 = vpop.f32.mrb[0].mxu0
    %v3007 = vpop.f32.mrb[0].mxu0
    %3008 = vdwg.mxu0
    %3009 = vrot.lane.b32.xlu0 %v492, 48
    %v3010 = vpop.permute.xlu0 %3009
    %v3012 = vsel %vm498, %v2766, 0
    %v3015 = vsel %vm997, %v3010, 0
    %3017 = vmatprep.subr.bf16.mxu0 0
    %3018 = vmatpush1.bf16.msra.mxu0 %v3015
    %3019 = vmatprep.subr.bf16.mxu0 0
    %3020 = vmatpush1.bf16.msra.mxu0 0
    %3021 = vmatprep.subr.bf16.mxu0 0
    %3022 = vmatpush1.bf16.msra.mxu0 0
    %3023 = vmatprep.subr.bf16.mxu0 0
    %3024 = vmatpush1.bf16.msra.mxu0 0
    %3025 = vmatprep.subr.bf16.mxu0 0
    %3026 = vmatpush1.bf16.msra.mxu0 0
    %3027 = vmatprep.subr.bf16.mxu0 0
    %3028 = vmatpush1.bf16.msra.mxu0 0
    %3029 = vmatprep.subr.bf16.mxu0 0
    %3030 = vmatpush1.bf16.msra.mxu0 0
    %3031 = vmatprep.subr.bf16.mxu0 0
    %3032 = vmatpush1.bf16.msra.mxu0 0
    %3033 = vmatprep.subr.bf16.mxu0 0
    %3034 = vmatpush1.bf16.msra.mxu0 0
    %3035 = vmatprep.subr.bf16.mxu0 0
    %3036 = vmatpush1.bf16.msra.mxu0 0
    %3037 = vmatprep.subr.bf16.mxu0 0
    %3038 = vmatpush1.bf16.msra.mxu0 0
    %3039 = vmatprep.subr.bf16.mxu0 0
    %3040 = vmatpush1.bf16.msra.mxu0 0
    %3041 = vmatprep.subr.bf16.mxu0 0
    %3042 = vmatpush1.bf16.msra.mxu0 0
    %3043 = vmatprep.subr.bf16.mxu0 0
    %3044 = vmatpush1.bf16.msra.mxu0 0
    %3045 = vmatprep.subr.bf16.mxu0 0
    %3046 = vmatpush1.bf16.msra.mxu0 0
    %3047 = vmatprep.subr.bf16.mxu0 0
    %3048 = vmatpush1.bf16.msra.mxu0 0
    %3049 = vmatprep.mubr.bf16.mxu0 0
    %3050 = vmatmul.mubr.bf16.gmra.mrb[0].mxu0 %v3012
    %v3051 = vpop.f32.mrb[0].mxu0
    %v3052 = vadd.f32 0.0, %v3051
    %v3053 = vpop.f32.mrb[0].mxu0
    %v3054 = vpop.f32.mrb[0].mxu0
    %v3055 = vpop.f32.mrb[0].mxu0
    %3056 = vdwg.mxu0
    %3057 = vrot.lane.b32.xlu0 %v493, 48
    %v3058 = vpop.permute.xlu0 %3057
    %v3060 = vsel %vm498, %v2767, 0
    %v3063 = vsel %vm997, %v3058, 0
    %3065 = vmatprep.subr.bf16.mxu0 0
    %3066 = vmatpush1.bf16.msra.mxu0 %v3063
    %3067 = vmatprep.subr.bf16.mxu0 0
    %3068 = vmatpush1.bf16.msra.mxu0 0
    %3069 = vmatprep.subr.bf16.mxu0 0
    %3070 = vmatpush1.bf16.msra.mxu0 0
    %3071 = vmatprep.subr.bf16.mxu0 0
    %3072 = vmatpush1.bf16.msra.mxu0 0
    %3073 = vmatprep.subr.bf16.mxu0 0
    %3074 = vmatpush1.bf16.msra.mxu0 0
    %3075 = vmatprep.subr.bf16.mxu0 0
    %3076 = vmatpush1.bf16.msra.mxu0 0
    %3077 = vmatprep.subr.bf16.mxu0 0
    %3078 = vmatpush1.bf16.msra.mxu0 0
    %3079 = vmatprep.subr.bf16.mxu0 0
    %3080 = vmatpush1.bf16.msra.mxu0 0
    %3081 = vmatprep.subr.bf16.mxu0 0
    %3082 = vmatpush1.bf16.msra.mxu0 0
    %3083 = vmatprep.subr.bf16.mxu0 0
    %3084 = vmatpush1.bf16.msra.mxu0 0
    %3085 = vmatprep.subr.bf16.mxu0 0
    %3086 = vmatpush1.bf16.msra.mxu0 0
    %3087 = vmatprep.subr.bf16.mxu0 0
    %3088 = vmatpush1.bf16.msra.mxu0 0
    %3089 = vmatprep.subr.bf16.mxu0 0
    %3090 = vmatpush1.bf16.msra.mxu0 0
    %3091 = vmatprep.subr.bf16.mxu0 0
    %3092 = vmatpush1.bf16.msra.mxu0 0
    %3093 = vmatprep.subr.bf16.mxu0 0
    %3094 = vmatpush1.bf16.msra.mxu0 0
    %3095 = vmatprep.subr.bf16.mxu0 0
    %3096 = vmatpush1.bf16.msra.mxu0 0
    %3097 = vmatprep.mubr.bf16.mxu0 0
    %3098 = vmatmul.mubr.bf16.gmra.mrb[0].mxu0 %v3060
    %v3099 = vpop.f32.mrb[0].mxu0
    %v3100 = vadd.f32 0.0, %v3099
    %v3101 = vpop.f32.mrb[0].mxu0
    %v3102 = vpop.f32.mrb[0].mxu0
    %v3103 = vpop.f32.mrb[0].mxu0
    %3104 = vdwg.mxu0
    %3105 = vrot.lane.b32.xlu0 %v494, 48
    %v3106 = vpop.permute.xlu0 %3105
    %v3108 = vsel %vm498, %v2768, 0
    %v3111 = vsel %vm997, %v3106, 0
    %3113 = vmatprep.subr.bf16.mxu0 0
    %3114 = vmatpush1.bf16.msra.mxu0 %v3111
    %3115 = vmatprep.subr.bf16.mxu0 0
    %3116 = vmatpush1.bf16.msra.mxu0 0
    %3117 = vmatprep.subr.bf16.mxu0 0
    %3118 = vmatpush1.bf16.msra.mxu0 0
    %3119 = vmatprep.subr.bf16.mxu0 0
    %3120 = vmatpush1.bf16.msra.mxu0 0
    %3121 = vmatprep.subr.bf16.mxu0 0
    %3122 = vmatpush1.bf16.msra.mxu0 0
    %3123 = vmatprep.subr.bf16.mxu0 0
    %3124 = vmatpush1.bf16.msra.mxu0 0
    %3125 = vmatprep.subr.bf16.mxu0 0
    %3126 = vmatpush1.bf16.msra.mxu0 0
    %3127 = vmatprep.subr.bf16.mxu0 0
    %3128 = vmatpush1.bf16.msra.mxu0 0
    %3129 = vmatprep.subr.bf16.mxu0 0
    %3130 = vmatpush1.bf16.msra.mxu0 0
    %3131 = vmatprep.subr.bf16.mxu0 0
    %3132 = vmatpush1.bf16.msra.mxu0 0
    %3133 = vmatprep.subr.bf16.mxu0 0
    %3134 = vmatpush1.bf16.msra.mxu0 0
    %3135 = vmatprep.subr.bf16.mxu0 0
    %3136 = vmatpush1.bf16.msra.mxu0 0
    %3137 = vmatprep.subr.bf16.mxu0 0
    %3138 = vmatpush1.bf16.msra.mxu0 0
    %3139 = vmatprep.subr.bf16.mxu0 0
    %3140 = vmatpush1.bf16.msra.mxu0 0
    %3141 = vmatprep.subr.bf16.mxu0 0
    %3142 = vmatpush1.bf16.msra.mxu0 0
    %3143 = vmatprep.subr.bf16.mxu0 0
    %3144 = vmatpush1.bf16.msra.mxu0 0
    %3145 = vmatprep.mubr.bf16.mxu0 0
    %3146 = vmatmul.mubr.bf16.gmra.mrb[0].mxu0 %v3108
    %v3147 = vpop.f32.mrb[0].mxu0
    %v3148 = vadd.f32 0.0, %v3147
    %v3149 = vpop.f32.mrb[0].mxu0
    %v3150 = vpop.f32.mrb[0].mxu0
    %v3151 = vpop.f32.mrb[0].mxu0
    %3152 = vdwg.mxu0
    %3153 = vrot.lane.b32.xlu0 %v487, 104
    %v3154 = vpop.permute.xlu0 %3153
    %3155 = vrot.lane.b32.xlu0 %v487, 72
    %v3156 = vpop.permute.xlu0 %3155
    %v3158 = vsel %vm498, %v3154, 0
    %v3161 = vsel %vm498, %v3156, 0
    %3163 = vmatprep.subr.bf16.mxu0 0
    %3164 = vmatpush1.bf16.xpose.msra.mxu0 %v3161
    %3165 = vmatprep.subr.bf16.mxu0 0
    %3166 = vmatpush1.bf16.xpose.msra.mxu0 0
    %3167 = vmatprep.subr.bf16.mxu0 0
    %3168 = vmatpush1.bf16.xpose.msra.mxu0 0
    %3169 = vmatprep.subr.bf16.mxu0 0
    %3170 = vmatpush1.bf16.xpose.msra.mxu0 0
    %3171 = vmatprep.subr.bf16.mxu0 0
    %3172 = vmatpush1.bf16.xpose.msra.mxu0 0
    %3173 = vmatprep.subr.bf16.mxu0 0
    %3174 = vmatpush1.bf16.xpose.msra.mxu0 0
    %3175 = vmatprep.subr.bf16.mxu0 0
    %3176 = vmatpush1.bf16.xpose.msra.mxu0 0
    %3177 = vmatprep.subr.bf16.mxu0 0
    %3178 = vmatpush1.bf16.xpose.msra.mxu0 0
    %3179 = vmatprep.subr.bf16.mxu0 0
    %3180 = vmatpush1.bf16.xpose.msra.mxu0 0
    %3181 = vmatprep.subr.bf16.mxu0 0
    %3182 = vmatpush1.bf16.xpose.msra.mxu0 0
    %3183 = vmatprep.subr.bf16.mxu0 0
    %3184 = vmatpush1.bf16.xpose.msra.mxu0 0
    %3185 = vmatprep.subr.bf16.mxu0 0
    %3186 = vmatpush1.bf16.xpose.msra.mxu0 0
    %3187 = vmatprep.subr.bf16.mxu0 0
    %3188 = vmatpush1.bf16.xpose.msra.mxu0 0
    %3189 = vmatprep.subr.bf16.mxu0 0
    %3190 = vmatpush1.bf16.xpose.msra.mxu0 0
    %3191 = vmatprep.subr.bf16.mxu0 0
    %3192 = vmatpush1.bf16.xpose.msra.mxu0 0
    %3193 = vmatprep.subr.bf16.mxu0 0
    %3194 = vmatpush1.bf16.xpose.msra.mxu0 0
    %3195 = vmatprep.mubr.bf16.mxu0 0
    %3196 = vmatmul.mubr.bf16.gmra.mrb[0].mxu0 %v3158
    %v3197 = vpop.f32.mrb[0].mxu0
    %v3198 = vadd.f32 0.0, %v3197
    %v3199 = vpop.f32.mrb[0].mxu0
    %v3200 = vpop.f32.mrb[0].mxu0
    %v3201 = vpop.f32.mrb[0].mxu0
    %3202 = vdwg.mxu0
    %3203 = vrot.lane.b32.xlu0 %v488, 104
    %v3204 = vpop.permute.xlu0 %3203
    %3205 = vrot.lane.b32.xlu0 %v488, 72
    %v3206 = vpop.permute.xlu0 %3205
    %v3208 = vsel %vm498, %v3204, 0
    %v3211 = vsel %vm498, %v3206, 0
    %3213 = vmatprep.subr.bf16.mxu0 0
    %3214 = vmatpush1.bf16.xpose.msra.mxu0 %v3211
    %3215 = vmatprep.subr.bf16.mxu0 0
    %3216 = vmatpush1.bf16.xpose.msra.mxu0 0
    %3217 = vmatprep.subr.bf16.mxu0 0
    %3218 = vmatpush1.bf16.xpose.msra.mxu0 0
    %3219 = vmatprep.subr.bf16.mxu0 0
    %3220 = vmatpush1.bf16.xpose.msra.mxu0 0
    %3221 = vmatprep.subr.bf16.mxu0 0
    %3222 = vmatpush1.bf16.xpose.msra.mxu0 0
    %3223 = vmatprep.subr.bf16.mxu0 0
    %3224 = vmatpush1.bf16.xpose.msra.mxu0 0
    %3225 = vmatprep.subr.bf16.mxu0 0
    %3226 = vmatpush1.bf16.xpose.msra.mxu0 0
    %3227 = vmatprep.subr.bf16.mxu0 0
    %3228 = vmatpush1.bf16.xpose.msra.mxu0 0
    %3229 = vmatprep.subr.bf16.mxu0 0
    %3230 = vmatpush1.bf16.xpose.msra.mxu0 0
    %3231 = vmatprep.subr.bf16.mxu0 0
    %3232 = vmatpush1.bf16.xpose.msra.mxu0 0
    %3233 = vmatprep.subr.bf16.mxu0 0
    %3234 = vmatpush1.bf16.xpose.msra.mxu0 0
    %3235 = vmatprep.subr.bf16.mxu0 0
    %3236 = vmatpush1.bf16.xpose.msra.mxu0 0
    %3237 = vmatprep.subr.bf16.mxu0 0
    %3238 = vmatpush1.bf16.xpose.msra.mxu0 0
    %3239 = vmatprep.subr.bf16.mxu0 0
    %3240 = vmatpush1.bf16.xpose.msra.mxu0 0
    %3241 = vmatprep.subr.bf16.mxu0 0
    %3242 = vmatpush1.bf16.xpose.msra.mxu0 0
    %3243 = vmatprep.subr.bf16.mxu0 0
    %3244 = vmatpush1.bf16.xpose.msra.mxu0 0
    %3245 = vmatprep.mubr.bf16.mxu0 0
    %3246 = vmatmul.mubr.bf16.gmra.mrb[0].mxu0 %v3208
    %v3247 = vpop.f32.mrb[0].mxu0
    %v3248 = vadd.f32 0.0, %v3247
    %v3249 = vpop.f32.mrb[0].mxu0
    %v3250 = vpop.f32.mrb[0].mxu0
    %v3251 = vpop.f32.mrb[0].mxu0
    %3252 = vdwg.mxu0
    %3253 = vrot.lane.b32.xlu0 %v489, 104
    %v3254 = vpop.permute.xlu0 %3253
    %3255 = vrot.lane.b32.xlu0 %v489, 72
    %v3256 = vpop.permute.xlu0 %3255
    %v3258 = vsel %vm498, %v3254, 0
    %v3261 = vsel %vm498, %v3256, 0
    %3263 = vmatprep.subr.bf16.mxu0 0
    %3264 = vmatpush1.bf16.xpose.msra.mxu0 %v3261
    %3265 = vmatprep.subr.bf16.mxu0 0
    %3266 = vmatpush1.bf16.xpose.msra.mxu0 0
    %3267 = vmatprep.subr.bf16.mxu0 0
    %3268 = vmatpush1.bf16.xpose.msra.mxu0 0
    %3269 = vmatprep.subr.bf16.mxu0 0
    %3270 = vmatpush1.bf16.xpose.msra.mxu0 0
    %3271 = vmatprep.subr.bf16.mxu0 0
    %3272 = vmatpush1.bf16.xpose.msra.mxu0 0
    %3273 = vmatprep.subr.bf16.mxu0 0
    %3274 = vmatpush1.bf16.xpose.msra.mxu0 0
    %3275 = vmatprep.subr.bf16.mxu0 0
    %3276 = vmatpush1.bf16.xpose.msra.mxu0 0
    %3277 = vmatprep.subr.bf16.mxu0 0
    %3278 = vmatpush1.bf16.xpose.msra.mxu0 0
    %3279 = vmatprep.subr.bf16.mxu0 0
    %3280 = vmatpush1.bf16.xpose.msra.mxu0 0
    %3281 = vmatprep.subr.bf16.mxu0 0
    %3282 = vmatpush1.bf16.xpose.msra.mxu0 0
    %3283 = vmatprep.subr.bf16.mxu0 0
    %3284 = vmatpush1.bf16.xpose.msra.mxu0 0
    %3285 = vmatprep.subr.bf16.mxu0 0
    %3286 = vmatpush1.bf16.xpose.msra.mxu0 0
    %3287 = vmatprep.subr.bf16.mxu0 0
    %3288 = vmatpush1.bf16.xpose.msra.mxu0 0
    %3289 = vmatprep.subr.bf16.mxu0 0
    %3290 = vmatpush1.bf16.xpose.msra.mxu0 0
    %3291 = vmatprep.subr.bf16.mxu0 0
    %3292 = vmatpush1.bf16.xpose.msra.mxu0 0
    %3293 = vmatprep.subr.bf16.mxu0 0
    %3294 = vmatpush1.bf16.xpose.msra.mxu0 0
    %3295 = vmatprep.mubr.bf16.mxu0 0
    %3296 = vmatmul.mubr.bf16.gmra.mrb[0].mxu0 %v3258
    %v3297 = vpop.f32.mrb[0].mxu0
    %v3298 = vadd.f32 0.0, %v3297
    %v3299 = vpop.f32.mrb[0].mxu0
    %v3300 = vpop.f32.mrb[0].mxu0
    %v3301 = vpop.f32.mrb[0].mxu0
    %3302 = vdwg.mxu0
    %3303 = vrot.lane.b32.xlu0 %v490, 104
    %v3304 = vpop.permute.xlu0 %3303
    %3305 = vrot.lane.b32.xlu0 %v490, 72
    %v3306 = vpop.permute.xlu0 %3305
    %v3308 = vsel %vm498, %v3304, 0
    %v3311 = vsel %vm498, %v3306, 0
    %3313 = vmatprep.subr.bf16.mxu0 0
    %3314 = vmatpush1.bf16.xpose.msra.mxu0 %v3311
    %3315 = vmatprep.subr.bf16.mxu0 0
    %3316 = vmatpush1.bf16.xpose.msra.mxu0 0
    %3317 = vmatprep.subr.bf16.mxu0 0
    %3318 = vmatpush1.bf16.xpose.msra.mxu0 0
    %3319 = vmatprep.subr.bf16.mxu0 0
    %3320 = vmatpush1.bf16.xpose.msra.mxu0 0
    %3321 = vmatprep.subr.bf16.mxu0 0
    %3322 = vmatpush1.bf16.xpose.msra.mxu0 0
    %3323 = vmatprep.subr.bf16.mxu0 0
    %3324 = vmatpush1.bf16.xpose.msra.mxu0 0
    %3325 = vmatprep.subr.bf16.mxu0 0
    %3326 = vmatpush1.bf16.xpose.msra.mxu0 0
    %3327 = vmatprep.subr.bf16.mxu0 0
    %3328 = vmatpush1.bf16.xpose.msra.mxu0 0
    %3329 = vmatprep.subr.bf16.mxu0 0
    %3330 = vmatpush1.bf16.xpose.msra.mxu0 0
    %3331 = vmatprep.subr.bf16.mxu0 0
    %3332 = vmatpush1.bf16.xpose.msra.mxu0 0
    %3333 = vmatprep.subr.bf16.mxu0 0
    %3334 = vmatpush1.bf16.xpose.msra.mxu0 0
    %3335 = vmatprep.subr.bf16.mxu0 0
    %3336 = vmatpush1.bf16.xpose.msra.mxu0 0
    %3337 = vmatprep.subr.bf16.mxu0 0
    %3338 = vmatpush1.bf16.xpose.msra.mxu0 0
    %3339 = vmatprep.subr.bf16.mxu0 0
    %3340 = vmatpush1.bf16.xpose.msra.mxu0 0
    %3341 = vmatprep.subr.bf16.mxu0 0
    %3342 = vmatpush1.bf16.xpose.msra.mxu0 0
    %3343 = vmatprep.subr.bf16.mxu0 0
    %3344 = vmatpush1.bf16.xpose.msra.mxu0 0
    %3345 = vmatprep.mubr.bf16.mxu0 0
    %3346 = vmatmul.mubr.bf16.gmra.mrb[0].mxu0 %v3308
    %v3347 = vpop.f32.mrb[0].mxu0
    %v3348 = vadd.f32 0.0, %v3347
    %v3349 = vpop.f32.mrb[0].mxu0
    %v3350 = vpop.f32.mrb[0].mxu0
    %v3351 = vpop.f32.mrb[0].mxu0
    %3352 = vdwg.mxu0
    %3353 = vrot.lane.b32.xlu0 %v491, 104
    %v3354 = vpop.permute.xlu0 %3353
    %3355 = vrot.lane.b32.xlu0 %v491, 72
    %v3356 = vpop.permute.xlu0 %3355
    %v3358 = vsel %vm498, %v3354, 0
    %v3361 = vsel %vm498, %v3356, 0
    %3363 = vmatprep.subr.bf16.mxu0 0
    %3364 = vmatpush1.bf16.xpose.msra.mxu0 %v3361
    %3365 = vmatprep.subr.bf16.mxu0 0
    %3366 = vmatpush1.bf16.xpose.msra.mxu0 0
    %3367 = vmatprep.subr.bf16.mxu0 0
    %3368 = vmatpush1.bf16.xpose.msra.mxu0 0
    %3369 = vmatprep.subr.bf16.mxu0 0
    %3370 = vmatpush1.bf16.xpose.msra.mxu0 0
    %3371 = vmatprep.subr.bf16.mxu0 0
    %3372 = vmatpush1.bf16.xpose.msra.mxu0 0
    %3373 = vmatprep.subr.bf16.mxu0 0
    %3374 = vmatpush1.bf16.xpose.msra.mxu0 0
    %3375 = vmatprep.subr.bf16.mxu0 0
    %3376 = vmatpush1.bf16.xpose.msra.mxu0 0
    %3377 = vmatprep.subr.bf16.mxu0 0
    %3378 = vmatpush1.bf16.xpose.msra.mxu0 0
    %3379 = vmatprep.subr.bf16.mxu0 0
    %3380 = vmatpush1.bf16.xpose.msra.mxu0 0
    %3381 = vmatprep.subr.bf16.mxu0 0
    %3382 = vmatpush1.bf16.xpose.msra.mxu0 0
    %3383 = vmatprep.subr.bf16.mxu0 0
    %3384 = vmatpush1.bf16.xpose.msra.mxu0 0
    %3385 = vmatprep.subr.bf16.mxu0 0
    %3386 = vmatpush1.bf16.xpose.msra.mxu0 0
    %3387 = vmatprep.subr.bf16.mxu0 0
    %3388 = vmatpush1.bf16.xpose.msra.mxu0 0
    %3389 = vmatprep.subr.bf16.mxu0 0
    %3390 = vmatpush1.bf16.xpose.msra.mxu0 0
    %3391 = vmatprep.subr.bf16.mxu0 0
    %3392 = vmatpush1.bf16.xpose.msra.mxu0 0
    %3393 = vmatprep.subr.bf16.mxu0 0
    %3394 = vmatpush1.bf16.xpose.msra.mxu0 0
    %3395 = vmatprep.mubr.bf16.mxu0 0
    %3396 = vmatmul.mubr.bf16.gmra.mrb[0].mxu0 %v3358
    %v3397 = vpop.f32.mrb[0].mxu0
    %v3398 = vadd.f32 0.0, %v3397
    %v3399 = vpop.f32.mrb[0].mxu0
    %v3400 = vpop.f32.mrb[0].mxu0
    %v3401 = vpop.f32.mrb[0].mxu0
    %3402 = vdwg.mxu0
    %3403 = vrot.lane.b32.xlu0 %v492, 104
    %v3404 = vpop.permute.xlu0 %3403
    %3405 = vrot.lane.b32.xlu0 %v492, 72
    %v3406 = vpop.permute.xlu0 %3405
    %v3408 = vsel %vm498, %v3404, 0
    %v3411 = vsel %vm498, %v3406, 0
    %3413 = vmatprep.subr.bf16.mxu0 0
    %3414 = vmatpush1.bf16.xpose.msra.mxu0 %v3411
    %3415 = vmatprep.subr.bf16.mxu0 0
    %3416 = vmatpush1.bf16.xpose.msra.mxu0 0
    %3417 = vmatprep.subr.bf16.mxu0 0
    %3418 = vmatpush1.bf16.xpose.msra.mxu0 0
    %3419 = vmatprep.subr.bf16.mxu0 0
    %3420 = vmatpush1.bf16.xpose.msra.mxu0 0
    %3421 = vmatprep.subr.bf16.mxu0 0
    %3422 = vmatpush1.bf16.xpose.msra.mxu0 0
    %3423 = vmatprep.subr.bf16.mxu0 0
    %3424 = vmatpush1.bf16.xpose.msra.mxu0 0
    %3425 = vmatprep.subr.bf16.mxu0 0
    %3426 = vmatpush1.bf16.xpose.msra.mxu0 0
    %3427 = vmatprep.subr.bf16.mxu0 0
    %3428 = vmatpush1.bf16.xpose.msra.mxu0 0
    %3429 = vmatprep.subr.bf16.mxu0 0
    %3430 = vmatpush1.bf16.xpose.msra.mxu0 0
    %3431 = vmatprep.subr.bf16.mxu0 0
    %3432 = vmatpush1.bf16.xpose.msra.mxu0 0
    %3433 = vmatprep.subr.bf16.mxu0 0
    %3434 = vmatpush1.bf16.xpose.msra.mxu0 0
    %3435 = vmatprep.subr.bf16.mxu0 0
    %3436 = vmatpush1.bf16.xpose.msra.mxu0 0
    %3437 = vmatprep.subr.bf16.mxu0 0
    %3438 = vmatpush1.bf16.xpose.msra.mxu0 0
    %3439 = vmatprep.subr.bf16.mxu0 0
    %3440 = vmatpush1.bf16.xpose.msra.mxu0 0
    %3441 = vmatprep.subr.bf16.mxu0 0
    %3442 = vmatpush1.bf16.xpose.msra.mxu0 0
    %3443 = vmatprep.subr.bf16.mxu0 0
    %3444 = vmatpush1.bf16.xpose.msra.mxu0 0
    %3445 = vmatprep.mubr.bf16.mxu0 0
    %3446 = vmatmul.mubr.bf16.gmra.mrb[0].mxu0 %v3408
    %v3447 = vpop.f32.mrb[0].mxu0
    %v3448 = vadd.f32 0.0, %v3447
    %v3449 = vpop.f32.mrb[0].mxu0
    %v3450 = vpop.f32.mrb[0].mxu0
    %v3451 = vpop.f32.mrb[0].mxu0
    %3452 = vdwg.mxu0
    %3453 = vrot.lane.b32.xlu0 %v493, 104
    %v3454 = vpop.permute.xlu0 %3453
    %3455 = vrot.lane.b32.xlu0 %v493, 72
    %v3456 = vpop.permute.xlu0 %3455
    %v3458 = vsel %vm498, %v3454, 0
    %v3461 = vsel %vm498, %v3456, 0
    %3463 = vmatprep.subr.bf16.mxu0 0
    %3464 = vmatpush1.bf16.xpose.msra.mxu0 %v3461
    %3465 = vmatprep.subr.bf16.mxu0 0
    %3466 = vmatpush1.bf16.xpose.msra.mxu0 0
    %3467 = vmatprep.subr.bf16.mxu0 0
    %3468 = vmatpush1.bf16.xpose.msra.mxu0 0
    %3469 = vmatprep.subr.bf16.mxu0 0
    %3470 = vmatpush1.bf16.xpose.msra.mxu0 0
    %3471 = vmatprep.subr.bf16.mxu0 0
    %3472 = vmatpush1.bf16.xpose.msra.mxu0 0
    %3473 = vmatprep.subr.bf16.mxu0 0
    %3474 = vmatpush1.bf16.xpose.msra.mxu0 0
    %3475 = vmatprep.subr.bf16.mxu0 0
    %3476 = vmatpush1.bf16.xpose.msra.mxu0 0
    %3477 = vmatprep.subr.bf16.mxu0 0
    %3478 = vmatpush1.bf16.xpose.msra.mxu0 0
    %3479 = vmatprep.subr.bf16.mxu0 0
    %3480 = vmatpush1.bf16.xpose.msra.mxu0 0
    %3481 = vmatprep.subr.bf16.mxu0 0
    %3482 = vmatpush1.bf16.xpose.msra.mxu0 0
    %3483 = vmatprep.subr.bf16.mxu0 0
    %3484 = vmatpush1.bf16.xpose.msra.mxu0 0
    %3485 = vmatprep.subr.bf16.mxu0 0
    %3486 = vmatpush1.bf16.xpose.msra.mxu0 0
    %3487 = vmatprep.subr.bf16.mxu0 0
    %3488 = vmatpush1.bf16.xpose.msra.mxu0 0
    %3489 = vmatprep.subr.bf16.mxu0 0
    %3490 = vmatpush1.bf16.xpose.msra.mxu0 0
    %3491 = vmatprep.subr.bf16.mxu0 0
    %3492 = vmatpush1.bf16.xpose.msra.mxu0 0
    %3493 = vmatprep.subr.bf16.mxu0 0
    %3494 = vmatpush1.bf16.xpose.msra.mxu0 0
    %3495 = vmatprep.mubr.bf16.mxu0 0
    %3496 = vmatmul.mubr.bf16.gmra.mrb[0].mxu0 %v3458
    %v3497 = vpop.f32.mrb[0].mxu0
    %v3498 = vadd.f32 0.0, %v3497
    %v3499 = vpop.f32.mrb[0].mxu0
    %v3500 = vpop.f32.mrb[0].mxu0
    %v3501 = vpop.f32.mrb[0].mxu0
    %3502 = vdwg.mxu0
    %3503 = vrot.lane.b32.xlu0 %v494, 104
    %v3504 = vpop.permute.xlu0 %3503
    %3505 = vrot.lane.b32.xlu0 %v494, 72
    %v3506 = vpop.permute.xlu0 %3505
    %v3508 = vsel %vm498, %v3504, 0
    %v3511 = vsel %vm498, %v3506, 0
    %3513 = vmatprep.subr.bf16.mxu0 0
    %3514 = vmatpush1.bf16.xpose.msra.mxu0 %v3511
    %3515 = vmatprep.subr.bf16.mxu0 0
    %3516 = vmatpush1.bf16.xpose.msra.mxu0 0
    %3517 = vmatprep.subr.bf16.mxu0 0
    %3518 = vmatpush1.bf16.xpose.msra.mxu0 0
    %3519 = vmatprep.subr.bf16.mxu0 0
    %3520 = vmatpush1.bf16.xpose.msra.mxu0 0
    %3521 = vmatprep.subr.bf16.mxu0 0
    %3522 = vmatpush1.bf16.xpose.msra.mxu0 0
    %3523 = vmatprep.subr.bf16.mxu0 0
    %3524 = vmatpush1.bf16.xpose.msra.mxu0 0
    %3525 = vmatprep.subr.bf16.mxu0 0
    %3526 = vmatpush1.bf16.xpose.msra.mxu0 0
    %3527 = vmatprep.subr.bf16.mxu0 0
    %3528 = vmatpush1.bf16.xpose.msra.mxu0 0
    %3529 = vmatprep.subr.bf16.mxu0 0
    %3530 = vmatpush1.bf16.xpose.msra.mxu0 0
    %3531 = vmatprep.subr.bf16.mxu0 0
    %3532 = vmatpush1.bf16.xpose.msra.mxu0 0
    %3533 = vmatprep.subr.bf16.mxu0 0
    %3534 = vmatpush1.bf16.xpose.msra.mxu0 0
    %3535 = vmatprep.subr.bf16.mxu0 0
    %3536 = vmatpush1.bf16.xpose.msra.mxu0 0
    %3537 = vmatprep.subr.bf16.mxu0 0
    %3538 = vmatpush1.bf16.xpose.msra.mxu0 0
    %3539 = vmatprep.subr.bf16.mxu0 0
    %3540 = vmatpush1.bf16.xpose.msra.mxu0 0
    %3541 = vmatprep.subr.bf16.mxu0 0
    %3542 = vmatpush1.bf16.xpose.msra.mxu0 0
    %3543 = vmatprep.subr.bf16.mxu0 0
    %3544 = vmatpush1.bf16.xpose.msra.mxu0 0
    %3545 = vmatprep.mubr.bf16.mxu0 0
    %3546 = vmatmul.mubr.bf16.gmra.mrb[0].mxu0 %v3508
    %v3547 = vpop.f32.mrb[0].mxu0
    %v3548 = vadd.f32 0.0, %v3547
    %v3549 = vpop.f32.mrb[0].mxu0
    %v3550 = vpop.f32.mrb[0].mxu0
    %v3551 = vpop.f32.mrb[0].mxu0
    %3552 = vdwg.mxu0
    %v3553 = vmul.f32 %v3198, 0.35355338
    %v3554 = vmul.f32 %v3248, 0.35355338
    %v3555 = vmul.f32 %v3298, 0.35355338
    %v3556 = vmul.f32 %v3348, 0.35355338
    %v3557 = vmul.f32 %v3398, 0.35355338
    %v3558 = vmul.f32 %v3448, 0.35355338
    %v3559 = vmul.f32 %v3498, 0.35355338
    %v3560 = vmul.f32 %v3548, 0.35355338
    %v3561 = vsel %vm498, %v3553, -inf
    %3562 = vmax.xlane.f32.xlu0 %v3561
    %v3563 = vpop.xlane.xlu0 %3562
    %v3564 = vsel %vm498, %v3554, -inf
    %3565 = vmax.xlane.f32.xlu0 %v3564
    %v3566 = vpop.xlane.xlu0 %3565
    %v3567 = vsel %vm498, %v3555, -inf
    %3568 = vmax.xlane.f32.xlu0 %v3567
    %v3569 = vpop.xlane.xlu0 %3568
    %v3570 = vsel %vm498, %v3556, -inf
    %3571 = vmax.xlane.f32.xlu0 %v3570
    %v3572 = vpop.xlane.xlu0 %3571
    %v3573 = vsel %vm498, %v3557, -inf
    %3574 = vmax.xlane.f32.xlu0 %v3573
    %v3575 = vpop.xlane.xlu0 %3574
    %v3576 = vsel %vm498, %v3558, -inf
    %3577 = vmax.xlane.f32.xlu0 %v3576
    %v3578 = vpop.xlane.xlu0 %3577
    %v3579 = vsel %vm498, %v3559, -inf
    %3580 = vmax.xlane.f32.xlu0 %v3579
    %v3581 = vpop.xlane.xlu0 %3580
    %v3582 = vsel %vm498, %v3560, -inf
    %3583 = vmax.xlane.f32.xlu0 %v3582
    %v3584 = vpop.xlane.xlu0 %3583
    %v3585 = vsub.f32 %v3553, %v3563
    %v3586 = vsub.f32 %v3554, %v3566
    %v3587 = vsub.f32 %v3555, %v3569
    %v3588 = vsub.f32 %v3556, %v3572
    %v3589 = vsub.f32 %v3557, %v3575
    %v3590 = vsub.f32 %v3558, %v3578
    %v3591 = vsub.f32 %v3559, %v3581
    %v3592 = vsub.f32 %v3560, %v3584
    %v3593 = vmul.f32 %v3585, 1.442695
    %v3594 = vpow.pop %v3593
    %v3595 = vmul.f32 %v3586, 1.442695
    %v3596 = vpow.pop %v3595
    %v3597 = vmul.f32 %v3587, 1.442695
    %v3598 = vpow.pop %v3597
    %v3599 = vmul.f32 %v3588, 1.442695
    %v3600 = vpow.pop %v3599
    %v3601 = vmul.f32 %v3589, 1.442695
    %v3602 = vpow.pop %v3601
    %v3603 = vmul.f32 %v3590, 1.442695
    %v3604 = vpow.pop %v3603
    %v3605 = vmul.f32 %v3591, 1.442695
    %v3606 = vpow.pop %v3605
    %v3607 = vmul.f32 %v3592, 1.442695
    %v3608 = vpow.pop %v3607
    %v3609 = vsel %vm498, %v3594, 0.0
    %3610 = vadd.xlane.f32.xlu0 %v3609
    %v3611 = vpop.xlane.xlu0 %3610
    %v3612 = vsel %vm498, %v3596, 0.0
    %3613 = vadd.xlane.f32.xlu0 %v3612
    %v3614 = vpop.xlane.xlu0 %3613
    %v3615 = vsel %vm498, %v3598, 0.0
    %3616 = vadd.xlane.f32.xlu0 %v3615
    %v3617 = vpop.xlane.xlu0 %3616
    %v3618 = vsel %vm498, %v3600, 0.0
    %3619 = vadd.xlane.f32.xlu0 %v3618
    %v3620 = vpop.xlane.xlu0 %3619
    %v3621 = vsel %vm498, %v3602, 0.0
    %3622 = vadd.xlane.f32.xlu0 %v3621
    %v3623 = vpop.xlane.xlu0 %3622
    %v3624 = vsel %vm498, %v3604, 0.0
    %3625 = vadd.xlane.f32.xlu0 %v3624
    %v3626 = vpop.xlane.xlu0 %3625
    %v3627 = vsel %vm498, %v3606, 0.0
    %3628 = vadd.xlane.f32.xlu0 %v3627
    %v3629 = vpop.xlane.xlu0 %3628
    %v3630 = vsel %vm498, %v3608, 0.0
    %3631 = vadd.xlane.f32.xlu0 %v3630
    %v3632 = vpop.xlane.xlu0 %3631
    %v3633 = vrcp.pop %v3611
    %v3634 = vrcp.pop %v3614
    %v3635 = vrcp.pop %v3617
    %v3636 = vrcp.pop %v3620
    %v3637 = vrcp.pop %v3623
    %v3638 = vrcp.pop %v3626
    %v3639 = vrcp.pop %v3629
    %v3640 = vrcp.pop %v3632
    %v3641 = vmul.f32 %v3594, %v3633
    %v3642 = vmul.f32 %v3596, %v3634
    %v3643 = vmul.f32 %v3598, %v3635
    %v3644 = vmul.f32 %v3600, %v3636
    %v3645 = vmul.f32 %v3602, %v3637
    %v3646 = vmul.f32 %v3604, %v3638
    %v3647 = vmul.f32 %v3606, %v3639
    %v3648 = vmul.f32 %v3608, %v3640
    %v3649 = vpack.c.bf16 %v3641, %v3641
    %v3650 = vpack.c.bf16 %v3642, %v3642
    %v3651 = vpack.c.bf16 %v3643, %v3643
    %v3652 = vpack.c.bf16 %v3644, %v3644
    %v3653 = vpack.c.bf16 %v3645, %v3645
    %v3654 = vpack.c.bf16 %v3646, %v3646
    %v3655 = vpack.c.bf16 %v3647, %v3647
    %v3656 = vpack.c.bf16 %v3648, %v3648
    %3657 = vrot.lane.b32.xlu0 %v487, 40
    %v3658 = vpop.permute.xlu0 %3657
    %v3660 = vsel %vm498, %v3649, 0
    %v3663 = vsel %vm997, %v3658, 0
    %3665 = vmatprep.subr.bf16.mxu0 0
    %3666 = vmatpush1.bf16.msra.mxu0 %v3663
    %3667 = vmatprep.subr.bf16.mxu0 0
    %3668 = vmatpush1.bf16.msra.mxu0 0
    %3669 = vmatprep.subr.bf16.mxu0 0
    %3670 = vmatpush1.bf16.msra.mxu0 0
    %3671 = vmatprep.subr.bf16.mxu0 0
    %3672 = vmatpush1.bf16.msra.mxu0 0
    %3673 = vmatprep.subr.bf16.mxu0 0
    %3674 = vmatpush1.bf16.msra.mxu0 0
    %3675 = vmatprep.subr.bf16.mxu0 0
    %3676 = vmatpush1.bf16.msra.mxu0 0
    %3677 = vmatprep.subr.bf16.mxu0 0
    %3678 = vmatpush1.bf16.msra.mxu0 0
    %3679 = vmatprep.subr.bf16.mxu0 0
    %3680 = vmatpush1.bf16.msra.mxu0 0
    %3681 = vmatprep.subr.bf16.mxu0 0
    %3682 = vmatpush1.bf16.msra.mxu0 0
    %3683 = vmatprep.subr.bf16.mxu0 0
    %3684 = vmatpush1.bf16.msra.mxu0 0
    %3685 = vmatprep.subr.bf16.mxu0 0
    %3686 = vmatpush1.bf16.msra.mxu0 0
    %3687 = vmatprep.subr.bf16.mxu0 0
    %3688 = vmatpush1.bf16.msra.mxu0 0
    %3689 = vmatprep.subr.bf16.mxu0 0
    %3690 = vmatpush1.bf16.msra.mxu0 0
    %3691 = vmatprep.subr.bf16.mxu0 0
    %3692 = vmatpush1.bf16.msra.mxu0 0
    %3693 = vmatprep.subr.bf16.mxu0 0
    %3694 = vmatpush1.bf16.msra.mxu0 0
    %3695 = vmatprep.subr.bf16.mxu0 0
    %3696 = vmatpush1.bf16.msra.mxu0 0
    %3697 = vmatprep.mubr.bf16.mxu0 0
    %3698 = vmatmul.mubr.bf16.gmra.mrb[0].mxu0 %v3660
    %v3699 = vpop.f32.mrb[0].mxu0
    %v3700 = vadd.f32 0.0, %v3699
    %v3701 = vpop.f32.mrb[0].mxu0
    %v3702 = vpop.f32.mrb[0].mxu0
    %v3703 = vpop.f32.mrb[0].mxu0
    %3704 = vdwg.mxu0
    %3705 = vrot.lane.b32.xlu0 %v488, 40
    %v3706 = vpop.permute.xlu0 %3705
    %v3708 = vsel %vm498, %v3650, 0
    %v3711 = vsel %vm997, %v3706, 0
    %3713 = vmatprep.subr.bf16.mxu0 0
    %3714 = vmatpush1.bf16.msra.mxu0 %v3711
    %3715 = vmatprep.subr.bf16.mxu0 0
    %3716 = vmatpush1.bf16.msra.mxu0 0
    %3717 = vmatprep.subr.bf16.mxu0 0
    %3718 = vmatpush1.bf16.msra.mxu0 0
    %3719 = vmatprep.subr.bf16.mxu0 0
    %3720 = vmatpush1.bf16.msra.mxu0 0
    %3721 = vmatprep.subr.bf16.mxu0 0
    %3722 = vmatpush1.bf16.msra.mxu0 0
    %3723 = vmatprep.subr.bf16.mxu0 0
    %3724 = vmatpush1.bf16.msra.mxu0 0
    %3725 = vmatprep.subr.bf16.mxu0 0
    %3726 = vmatpush1.bf16.msra.mxu0 0
    %3727 = vmatprep.subr.bf16.mxu0 0
    %3728 = vmatpush1.bf16.msra.mxu0 0
    %3729 = vmatprep.subr.bf16.mxu0 0
    %3730 = vmatpush1.bf16.msra.mxu0 0
    %3731 = vmatprep.subr.bf16.mxu0 0
    %3732 = vmatpush1.bf16.msra.mxu0 0
    %3733 = vmatprep.subr.bf16.mxu0 0
    %3734 = vmatpush1.bf16.msra.mxu0 0
    %3735 = vmatprep.subr.bf16.mxu0 0
    %3736 = vmatpush1.bf16.msra.mxu0 0
    %3737 = vmatprep.subr.bf16.mxu0 0
    %3738 = vmatpush1.bf16.msra.mxu0 0
    %3739 = vmatprep.subr.bf16.mxu0 0
    %3740 = vmatpush1.bf16.msra.mxu0 0
    %3741 = vmatprep.subr.bf16.mxu0 0
    %3742 = vmatpush1.bf16.msra.mxu0 0
    %3743 = vmatprep.subr.bf16.mxu0 0
    %3744 = vmatpush1.bf16.msra.mxu0 0
    %3745 = vmatprep.mubr.bf16.mxu0 0
    %3746 = vmatmul.mubr.bf16.gmra.mrb[0].mxu0 %v3708
    %v3747 = vpop.f32.mrb[0].mxu0
    %v3748 = vadd.f32 0.0, %v3747
    %v3749 = vpop.f32.mrb[0].mxu0
    %v3750 = vpop.f32.mrb[0].mxu0
    %v3751 = vpop.f32.mrb[0].mxu0
    %3752 = vdwg.mxu0
    %3753 = vrot.lane.b32.xlu0 %v489, 40
    %v3754 = vpop.permute.xlu0 %3753
    %v3756 = vsel %vm498, %v3651, 0
    %v3759 = vsel %vm997, %v3754, 0
    %3761 = vmatprep.subr.bf16.mxu0 0
    %3762 = vmatpush1.bf16.msra.mxu0 %v3759
    %3763 = vmatprep.subr.bf16.mxu0 0
    %3764 = vmatpush1.bf16.msra.mxu0 0
    %3765 = vmatprep.subr.bf16.mxu0 0
    %3766 = vmatpush1.bf16.msra.mxu0 0
    %3767 = vmatprep.subr.bf16.mxu0 0
    %3768 = vmatpush1.bf16.msra.mxu0 0
    %3769 = vmatprep.subr.bf16.mxu0 0
    %3770 = vmatpush1.bf16.msra.mxu0 0
    %3771 = vmatprep.subr.bf16.mxu0 0
    %3772 = vmatpush1.bf16.msra.mxu0 0
    %3773 = vmatprep.subr.bf16.mxu0 0
    %3774 = vmatpush1.bf16.msra.mxu0 0
    %3775 = vmatprep.subr.bf16.mxu0 0
    %3776 = vmatpush1.bf16.msra.mxu0 0
    %3777 = vmatprep.subr.bf16.mxu0 0
    %3778 = vmatpush1.bf16.msra.mxu0 0
    %3779 = vmatprep.subr.bf16.mxu0 0
    %3780 = vmatpush1.bf16.msra.mxu0 0
    %3781 = vmatprep.subr.bf16.mxu0 0
    %3782 = vmatpush1.bf16.msra.mxu0 0
    %3783 = vmatprep.subr.bf16.mxu0 0
    %3784 = vmatpush1.bf16.msra.mxu0 0
    %3785 = vmatprep.subr.bf16.mxu0 0
    %3786 = vmatpush1.bf16.msra.mxu0 0
    %3787 = vmatprep.subr.bf16.mxu0 0
    %3788 = vmatpush1.bf16.msra.mxu0 0
    %3789 = vmatprep.subr.bf16.mxu0 0
    %3790 = vmatpush1.bf16.msra.mxu0 0
    %3791 = vmatprep.subr.bf16.mxu0 0
    %3792 = vmatpush1.bf16.msra.mxu0 0
    %3793 = vmatprep.mubr.bf16.mxu0 0
    %3794 = vmatmul.mubr.bf16.gmra.mrb[0].mxu0 %v3756
    %v3795 = vpop.f32.mrb[0].mxu0
    %v3796 = vadd.f32 0.0, %v3795
    %v3797 = vpop.f32.mrb[0].mxu0
    %v3798 = vpop.f32.mrb[0].mxu0
    %v3799 = vpop.f32.mrb[0].mxu0
    %3800 = vdwg.mxu0
    %3801 = vrot.lane.b32.xlu0 %v490, 40
    %v3802 = vpop.permute.xlu0 %3801
    %v3804 = vsel %vm498, %v3652, 0
    %v3807 = vsel %vm997, %v3802, 0
    %3809 = vmatprep.subr.bf16.mxu0 0
    %3810 = vmatpush1.bf16.msra.mxu0 %v3807
    %3811 = vmatprep.subr.bf16.mxu0 0
    %3812 = vmatpush1.bf16.msra.mxu0 0
    %3813 = vmatprep.subr.bf16.mxu0 0
    %3814 = vmatpush1.bf16.msra.mxu0 0
    %3815 = vmatprep.subr.bf16.mxu0 0
    %3816 = vmatpush1.bf16.msra.mxu0 0
    %3817 = vmatprep.subr.bf16.mxu0 0
    %3818 = vmatpush1.bf16.msra.mxu0 0
    %3819 = vmatprep.subr.bf16.mxu0 0
    %3820 = vmatpush1.bf16.msra.mxu0 0
    %3821 = vmatprep.subr.bf16.mxu0 0
    %3822 = vmatpush1.bf16.msra.mxu0 0
    %3823 = vmatprep.subr.bf16.mxu0 0
    %3824 = vmatpush1.bf16.msra.mxu0 0
    %3825 = vmatprep.subr.bf16.mxu0 0
    %3826 = vmatpush1.bf16.msra.mxu0 0
    %3827 = vmatprep.subr.bf16.mxu0 0
    %3828 = vmatpush1.bf16.msra.mxu0 0
    %3829 = vmatprep.subr.bf16.mxu0 0
    %3830 = vmatpush1.bf16.msra.mxu0 0
    %3831 = vmatprep.subr.bf16.mxu0 0
    %3832 = vmatpush1.bf16.msra.mxu0 0
    %3833 = vmatprep.subr.bf16.mxu0 0
    %3834 = vmatpush1.bf16.msra.mxu0 0
    %3835 = vmatprep.subr.bf16.mxu0 0
    %3836 = vmatpush1.bf16.msra.mxu0 0
    %3837 = vmatprep.subr.bf16.mxu0 0
    %3838 = vmatpush1.bf16.msra.mxu0 0
    %3839 = vmatprep.subr.bf16.mxu0 0
    %3840 = vmatpush1.bf16.msra.mxu0 0
    %3841 = vmatprep.mubr.bf16.mxu0 0
    %3842 = vmatmul.mubr.bf16.gmra.mrb[0].mxu0 %v3804
    %v3843 = vpop.f32.mrb[0].mxu0
    %v3844 = vadd.f32 0.0, %v3843
    %v3845 = vpop.f32.mrb[0].mxu0
    %v3846 = vpop.f32.mrb[0].mxu0
    %v3847 = vpop.f32.mrb[0].mxu0
    %3848 = vdwg.mxu0
    %3849 = vrot.lane.b32.xlu0 %v491, 40
    %v3850 = vpop.permute.xlu0 %3849
    %v3852 = vsel %vm498, %v3653, 0
    %v3855 = vsel %vm997, %v3850, 0
    %3857 = vmatprep.subr.bf16.mxu0 0
    %3858 = vmatpush1.bf16.msra.mxu0 %v3855
    %3859 = vmatprep.subr.bf16.mxu0 0
    %3860 = vmatpush1.bf16.msra.mxu0 0
    %3861 = vmatprep.subr.bf16.mxu0 0
    %3862 = vmatpush1.bf16.msra.mxu0 0
    %3863 = vmatprep.subr.bf16.mxu0 0
    %3864 = vmatpush1.bf16.msra.mxu0 0
    %3865 = vmatprep.subr.bf16.mxu0 0
    %3866 = vmatpush1.bf16.msra.mxu0 0
    %3867 = vmatprep.subr.bf16.mxu0 0
    %3868 = vmatpush1.bf16.msra.mxu0 0
    %3869 = vmatprep.subr.bf16.mxu0 0
    %3870 = vmatpush1.bf16.msra.mxu0 0
    %3871 = vmatprep.subr.bf16.mxu0 0
    %3872 = vmatpush1.bf16.msra.mxu0 0
    %3873 = vmatprep.subr.bf16.mxu0 0
    %3874 = vmatpush1.bf16.msra.mxu0 0
    %3875 = vmatprep.subr.bf16.mxu0 0
    %3876 = vmatpush1.bf16.msra.mxu0 0
    %3877 = vmatprep.subr.bf16.mxu0 0
    %3878 = vmatpush1.bf16.msra.mxu0 0
    %3879 = vmatprep.subr.bf16.mxu0 0
    %3880 = vmatpush1.bf16.msra.mxu0 0
    %3881 = vmatprep.subr.bf16.mxu0 0
    %3882 = vmatpush1.bf16.msra.mxu0 0
    %3883 = vmatprep.subr.bf16.mxu0 0
    %3884 = vmatpush1.bf16.msra.mxu0 0
    %3885 = vmatprep.subr.bf16.mxu0 0
    %3886 = vmatpush1.bf16.msra.mxu0 0
    %3887 = vmatprep.subr.bf16.mxu0 0
    %3888 = vmatpush1.bf16.msra.mxu0 0
    %3889 = vmatprep.mubr.bf16.mxu0 0
    %3890 = vmatmul.mubr.bf16.gmra.mrb[0].mxu0 %v3852
    %v3891 = vpop.f32.mrb[0].mxu0
    %v3892 = vadd.f32 0.0, %v3891
    %v3893 = vpop.f32.mrb[0].mxu0
    %v3894 = vpop.f32.mrb[0].mxu0
    %v3895 = vpop.f32.mrb[0].mxu0
    %3896 = vdwg.mxu0
    %3897 = vrot.lane.b32.xlu0 %v492, 40
    %v3898 = vpop.permute.xlu0 %3897
    %v3900 = vsel %vm498, %v3654, 0
    %v3903 = vsel %vm997, %v3898, 0
    %3905 = vmatprep.subr.bf16.mxu0 0
    %3906 = vmatpush1.bf16.msra.mxu0 %v3903
    %3907 = vmatprep.subr.bf16.mxu0 0
    %3908 = vmatpush1.bf16.msra.mxu0 0
    %3909 = vmatprep.subr.bf16.mxu0 0
    %3910 = vmatpush1.bf16.msra.mxu0 0
    %3911 = vmatprep.subr.bf16.mxu0 0
    %3912 = vmatpush1.bf16.msra.mxu0 0
    %3913 = vmatprep.subr.bf16.mxu0 0
    %3914 = vmatpush1.bf16.msra.mxu0 0
    %3915 = vmatprep.subr.bf16.mxu0 0
    %3916 = vmatpush1.bf16.msra.mxu0 0
    %3917 = vmatprep.subr.bf16.mxu0 0
    %3918 = vmatpush1.bf16.msra.mxu0 0
    %3919 = vmatprep.subr.bf16.mxu0 0
    %3920 = vmatpush1.bf16.msra.mxu0 0
    %3921 = vmatprep.subr.bf16.mxu0 0
    %3922 = vmatpush1.bf16.msra.mxu0 0
    %3923 = vmatprep.subr.bf16.mxu0 0
    %3924 = vmatpush1.bf16.msra.mxu0 0
    %3925 = vmatprep.subr.bf16.mxu0 0
    %3926 = vmatpush1.bf16.msra.mxu0 0
    %3927 = vmatprep.subr.bf16.mxu0 0
    %3928 = vmatpush1.bf16.msra.mxu0 0
    %3929 = vmatprep.subr.bf16.mxu0 0
    %3930 = vmatpush1.bf16.msra.mxu0 0
    %3931 = vmatprep.subr.bf16.mxu0 0
    %3932 = vmatpush1.bf16.msra.mxu0 0
    %3933 = vmatprep.subr.bf16.mxu0 0
    %3934 = vmatpush1.bf16.msra.mxu0 0
    %3935 = vmatprep.subr.bf16.mxu0 0
    %3936 = vmatpush1.bf16.msra.mxu0 0
    %3937 = vmatprep.mubr.bf16.mxu0 0
    %3938 = vmatmul.mubr.bf16.gmra.mrb[0].mxu0 %v3900
    %v3939 = vpop.f32.mrb[0].mxu0
    %v3940 = vadd.f32 0.0, %v3939
    %v3941 = vpop.f32.mrb[0].mxu0
    %v3942 = vpop.f32.mrb[0].mxu0
    %v3943 = vpop.f32.mrb[0].mxu0
    %3944 = vdwg.mxu0
    %3945 = vrot.lane.b32.xlu0 %v493, 40
    %v3946 = vpop.permute.xlu0 %3945
    %v3948 = vsel %vm498, %v3655, 0
    %v3951 = vsel %vm997, %v3946, 0
    %3953 = vmatprep.subr.bf16.mxu0 0
    %3954 = vmatpush1.bf16.msra.mxu0 %v3951
    %3955 = vmatprep.subr.bf16.mxu0 0
    %3956 = vmatpush1.bf16.msra.mxu0 0
    %3957 = vmatprep.subr.bf16.mxu0 0
    %3958 = vmatpush1.bf16.msra.mxu0 0
    %3959 = vmatprep.subr.bf16.mxu0 0
    %3960 = vmatpush1.bf16.msra.mxu0 0
    %3961 = vmatprep.subr.bf16.mxu0 0
    %3962 = vmatpush1.bf16.msra.mxu0 0
    %3963 = vmatprep.subr.bf16.mxu0 0
    %3964 = vmatpush1.bf16.msra.mxu0 0
    %3965 = vmatprep.subr.bf16.mxu0 0
    %3966 = vmatpush1.bf16.msra.mxu0 0
    %3967 = vmatprep.subr.bf16.mxu0 0
    %3968 = vmatpush1.bf16.msra.mxu0 0
    %3969 = vmatprep.subr.bf16.mxu0 0
    %3970 = vmatpush1.bf16.msra.mxu0 0
    %3971 = vmatprep.subr.bf16.mxu0 0
    %3972 = vmatpush1.bf16.msra.mxu0 0
    %3973 = vmatprep.subr.bf16.mxu0 0
    %3974 = vmatpush1.bf16.msra.mxu0 0
    %3975 = vmatprep.subr.bf16.mxu0 0
    %3976 = vmatpush1.bf16.msra.mxu0 0
    %3977 = vmatprep.subr.bf16.mxu0 0
    %3978 = vmatpush1.bf16.msra.mxu0 0
    %3979 = vmatprep.subr.bf16.mxu0 0
    %3980 = vmatpush1.bf16.msra.mxu0 0
    %3981 = vmatprep.subr.bf16.mxu0 0
    %3982 = vmatpush1.bf16.msra.mxu0 0
    %3983 = vmatprep.subr.bf16.mxu0 0
    %3984 = vmatpush1.bf16.msra.mxu0 0
    %3985 = vmatprep.mubr.bf16.mxu0 0
    %3986 = vmatmul.mubr.bf16.gmra.mrb[0].mxu0 %v3948
    %v3987 = vpop.f32.mrb[0].mxu0
    %v3988 = vadd.f32 0.0, %v3987
    %v3989 = vpop.f32.mrb[0].mxu0
    %v3990 = vpop.f32.mrb[0].mxu0
    %v3991 = vpop.f32.mrb[0].mxu0
    %3992 = vdwg.mxu0
    %3993 = vrot.lane.b32.xlu0 %v494, 40
    %v3994 = vpop.permute.xlu0 %3993
    %v3996 = vsel %vm498, %v3656, 0
    %v3999 = vsel %vm997, %v3994, 0
    %4001 = vmatprep.subr.bf16.mxu0 0
    %4002 = vmatpush1.bf16.msra.mxu0 %v3999
    %4003 = vmatprep.subr.bf16.mxu0 0
    %4004 = vmatpush1.bf16.msra.mxu0 0
    %4005 = vmatprep.subr.bf16.mxu0 0
    %4006 = vmatpush1.bf16.msra.mxu0 0
    %4007 = vmatprep.subr.bf16.mxu0 0
    %4008 = vmatpush1.bf16.msra.mxu0 0
    %4009 = vmatprep.subr.bf16.mxu0 0
    %4010 = vmatpush1.bf16.msra.mxu0 0
    %4011 = vmatprep.subr.bf16.mxu0 0
    %4012 = vmatpush1.bf16.msra.mxu0 0
    %4013 = vmatprep.subr.bf16.mxu0 0
    %4014 = vmatpush1.bf16.msra.mxu0 0
    %4015 = vmatprep.subr.bf16.mxu0 0
    %4016 = vmatpush1.bf16.msra.mxu0 0
    %4017 = vmatprep.subr.bf16.mxu0 0
    %4018 = vmatpush1.bf16.msra.mxu0 0
    %4019 = vmatprep.subr.bf16.mxu0 0
    %4020 = vmatpush1.bf16.msra.mxu0 0
    %4021 = vmatprep.subr.bf16.mxu0 0
    %4022 = vmatpush1.bf16.msra.mxu0 0
    %4023 = vmatprep.subr.bf16.mxu0 0
    %4024 = vmatpush1.bf16.msra.mxu0 0
    %4025 = vmatprep.subr.bf16.mxu0 0
    %4026 = vmatpush1.bf16.msra.mxu0 0
    %4027 = vmatprep.subr.bf16.mxu0 0
    %4028 = vmatpush1.bf16.msra.mxu0 0
    %4029 = vmatprep.subr.bf16.mxu0 0
    %4030 = vmatpush1.bf16.msra.mxu0 0
    %4031 = vmatprep.subr.bf16.mxu0 0
    %4032 = vmatpush1.bf16.msra.mxu0 0
    %4033 = vmatprep.mubr.bf16.mxu0 0
    %4034 = vmatmul.mubr.bf16.gmra.mrb[0].mxu0 %v3996
    %v4035 = vpop.f32.mrb[0].mxu0
    %v4036 = vadd.f32 0.0, %v4035
    %v4037 = vpop.f32.mrb[0].mxu0
    %v4038 = vpop.f32.mrb[0].mxu0
    %v4039 = vpop.f32.mrb[0].mxu0
    %4040 = vdwg.mxu0
    %4049 = vrot.lane.b32.xlu0 %v1924, 8
    %v4050 = vpop.permute.xlu0 %4049
    %4051 = vrot.lane.b32.xlu0 %v1972, 8
    %v4052 = vpop.permute.xlu0 %4051
    %4053 = vrot.lane.b32.xlu0 %v2020, 8
    %v4054 = vpop.permute.xlu0 %4053
    %4055 = vrot.lane.b32.xlu0 %v2068, 8
    %v4056 = vpop.permute.xlu0 %4055
    %4057 = vrot.lane.b32.xlu0 %v2116, 8
    %v4058 = vpop.permute.xlu0 %4057
    %4059 = vrot.lane.b32.xlu0 %v2164, 8
    %v4060 = vpop.permute.xlu0 %4059
    %4061 = vrot.lane.b32.xlu0 %v2212, 8
    %v4062 = vpop.permute.xlu0 %4061
    %4063 = vrot.lane.b32.xlu0 %v2260, 8
    %v4064 = vpop.permute.xlu0 %4063
    %4081 = vrot.lane.b32.xlu0 %v2812, 16
    %v4082 = vpop.permute.xlu0 %4081
    %4083 = vrot.lane.b32.xlu0 %v2860, 16
    %v4084 = vpop.permute.xlu0 %4083
    %4085 = vrot.lane.b32.xlu0 %v2908, 16
    %v4086 = vpop.permute.xlu0 %4085
    %4087 = vrot.lane.b32.xlu0 %v2956, 16
    %v4088 = vpop.permute.xlu0 %4087
    %4089 = vrot.lane.b32.xlu0 %v3004, 16
    %v4090 = vpop.permute.xlu0 %4089
    %4091 = vrot.lane.b32.xlu0 %v3052, 16
    %v4092 = vpop.permute.xlu0 %4091
    %4093 = vrot.lane.b32.xlu0 %v3100, 16
    %v4094 = vpop.permute.xlu0 %4093
    %4095 = vrot.lane.b32.xlu0 %v3148, 16
    %v4096 = vpop.permute.xlu0 %4095
    %4113 = vrot.lane.b32.xlu0 %v3700, 24
    %v4114 = vpop.permute.xlu0 %4113
    %4115 = vrot.lane.b32.xlu0 %v3748, 24
    %v4116 = vpop.permute.xlu0 %4115
    %4117 = vrot.lane.b32.xlu0 %v3796, 24
    %v4118 = vpop.permute.xlu0 %4117
    %4119 = vrot.lane.b32.xlu0 %v3844, 24
    %v4120 = vpop.permute.xlu0 %4119
    %4121 = vrot.lane.b32.xlu0 %v3892, 24
    %v4122 = vpop.permute.xlu0 %4121
    %4123 = vrot.lane.b32.xlu0 %v3940, 24
    %v4124 = vpop.permute.xlu0 %4123
    %4125 = vrot.lane.b32.xlu0 %v3988, 24
    %v4126 = vpop.permute.xlu0 %4125
    %4127 = vrot.lane.b32.xlu0 %v4036, 24
    %v4128 = vpop.permute.xlu0 %4127
    %v4137 = vsel %vm498, %v1036, %v4050
    %v4138 = vsel %vm498, %v1084, %v4052
    %v4139 = vsel %vm498, %v1132, %v4054
    %v4140 = vsel %vm498, %v1180, %v4056
    %v4141 = vsel %vm498, %v1228, %v4058
    %v4142 = vsel %vm498, %v1276, %v4060
    %v4143 = vsel %vm498, %v1324, %v4062
    %v4144 = vsel %vm498, %v1372, %v4064
    %v4145 = vsel %vm295, %v4137, %v4082
    %v4146 = vsel %vm295, %v4138, %v4084
    %v4147 = vsel %vm295, %v4139, %v4086
    %v4148 = vsel %vm295, %v4140, %v4088
    %v4149 = vsel %vm295, %v4141, %v4090
    %v4150 = vsel %vm295, %v4142, %v4092
    %v4151 = vsel %vm295, %v4143, %v4094
    %v4152 = vsel %vm295, %v4144, %v4096
    %vm4153 = vcmask 195584
    %v4154 = vsel %vm4153, %v4145, %v4114
    %v4155 = vsel %vm4153, %v4146, %v4116
    %v4156 = vsel %vm4153, %v4147, %v4118
    %v4157 = vsel %vm4153, %v4148, %v4120
    %v4158 = vsel %vm4153, %v4149, %v4122
    %v4159 = vsel %vm4153, %v4150, %v4124
    %v4160 = vsel %vm4153, %v4151, %v4126
    %v4161 = vsel %vm4153, %v4152, %v4128
    %v4162 = vpack.c.bf16 %v4155, %v4154
    %v4163 = vpack.c.bf16 %v4157, %v4156
    %v4164 = vpack.c.bf16 %v4159, %v4158
    %v4165 = vpack.c.bf16 %v4161, %v4160
    %v4166 = vld [vmem:[#allocation13] sm:$0xf]
    %v4167 = vld [vmem:[#allocation13 + $0x4] sm:$0xf]
    %v4168 = vld [vmem:[#allocation13 + $0x8] sm:$0xf]
    %v4169 = vld [vmem:[#allocation13 + $0xc] sm:$0xf]
    %v4170 = vld [vmem:[#allocation14] sm:$0x1]
    %v4172 = vlaneseq
    %v4173 = vshrl.u32 %v4172, 7
    %v4174 = vsub.s32 0, %v4173
    %v4175 = vrot.slane %v4170, %v4174
    %v4181 = vunpack.c.l.b16 %v4166
    %v4182 = vunpack.c.l.b16 %v4167
    %v4183 = vunpack.c.l.b16 %v4168
    %v4184 = vunpack.c.l.b16 %v4169
    %v4185 = vpack.c.b16 %v4182, %v4181
    %v4186 = vpack.c.b16 %v4184, %v4183
    %v4190 = vsel %vm409, %v4162, 0
    %v4193 = vsel %vm409, %v4163, 0
    %v4196 = vsel %vm409, %v4164, 0
    %v4199 = vsel %vm409, %v4165, 0
    %4201 = vmatprep.subr.bf16.mxu0 0
    %4202 = vmatpush1.bf16.msra.mxu0 %v4185
    %4203 = vmatprep.subr.bf16.mxu0 0
    %4204 = vmatpush1.bf16.msra.mxu0 %v4186
    %4205 = vmatprep.subr.bf16.mxu0 0
    %4206 = vmatpush1.bf16.msra.mxu0 0
    %4207 = vmatprep.subr.bf16.mxu0 0
    %4208 = vmatpush1.bf16.msra.mxu0 0
    %4209 = vmatprep.subr.bf16.mxu0 0
    %4210 = vmatpush1.bf16.msra.mxu0 0
    %4211 = vmatprep.subr.bf16.mxu0 0
    %4212 = vmatpush1.bf16.msra.mxu0 0
    %4213 = vmatprep.subr.bf16.mxu0 0
    %4214 = vmatpush1.bf16.msra.mxu0 0
    %4215 = vmatprep.subr.bf16.mxu0 0
    %4216 = vmatpush1.bf16.msra.mxu0 0
    %4217 = vmatprep.subr.bf16.mxu0 0
    %4218 = vmatpush1.bf16.msra.mxu0 0
    %4219 = vmatprep.subr.bf16.mxu0 0
    %4220 = vmatpush1.bf16.msra.mxu0 0
    %4221 = vmatprep.subr.bf16.mxu0 0
    %4222 = vmatpush1.bf16.msra.mxu0 0
    %4223 = vmatprep.subr.bf16.mxu0 0
    %4224 = vmatpush1.bf16.msra.mxu0 0
    %4225 = vmatprep.subr.bf16.mxu0 0
    %4226 = vmatpush1.bf16.msra.mxu0 0
    %4227 = vmatprep.subr.bf16.mxu0 0
    %4228 = vmatpush1.bf16.msra.mxu0 0
    %4229 = vmatprep.subr.bf16.mxu0 0
    %4230 = vmatpush1.bf16.msra.mxu0 0
    %4231 = vmatprep.subr.bf16.mxu0 0
    %4232 = vmatpush1.bf16.msra.mxu0 0
    %4233 = vmatprep.mubr.bf16.mxu0 0
    %4234 = vmatmul.mubr.bf16.gmra.mrb[0].mxu0 %v4190
    %v4235 = vpop.f32.mrb[0].mxu0
    %v4236 = vadd.f32 %v4175, %v4235
    %v4237 = vpop.f32.mrb[0].mxu0
    %v4238 = vpop.f32.mrb[0].mxu0
    %v4239 = vadd.f32 %v4175, %v4238
    %v4240 = vpop.f32.mrb[0].mxu0
    %4241 = vmatprep.mubr.bf16.mxu0 0
    %4242 = vmatmul.mubr.bf16.gmra.mrb[0].mxu0 %v4193
    %v4243 = vpop.f32.mrb[0].mxu0
    %v4244 = vadd.f32 %v4175, %v4243
    %v4245 = vpop.f32.mrb[0].mxu0
    %v4246 = vpop.f32.mrb[0].mxu0
    %v4247 = vadd.f32 %v4175, %v4246
    %v4248 = vpop.f32.mrb[0].mxu0
    %4249 = vmatprep.mubr.bf16.mxu0 0
    %4250 = vmatmul.mubr.bf16.gmra.mrb[0].mxu0 %v4196
    %v4251 = vpop.f32.mrb[0].mxu0
    %v4252 = vadd.f32 %v4175, %v4251
    %v4253 = vpop.f32.mrb[0].mxu0
    %v4254 = vpop.f32.mrb[0].mxu0
    %v4255 = vadd.f32 %v4175, %v4254
    %v4256 = vpop.f32.mrb[0].mxu0
    %4257 = vmatprep.mubr.bf16.mxu0 0
    %4258 = vmatmul.mubr.bf16.gmra.mrb[0].mxu0 %v4199
    %v4259 = vpop.f32.mrb[0].mxu0
    %v4260 = vadd.f32 %v4175, %v4259
    %v4261 = vpop.f32.mrb[0].mxu0
    %v4262 = vpop.f32.mrb[0].mxu0
    %v4263 = vadd.f32 %v4175, %v4262
    %v4264 = vpop.f32.mrb[0].mxu0
    %4265 = vdwg.mxu0
    %v4266 = vadd.f32 %v374, %v4236
    %v4267 = vadd.f32 %v375, %v4239
    %v4268 = vadd.f32 %v376, %v4244
    %v4269 = vadd.f32 %v377, %v4247
    %v4270 = vadd.f32 %v378, %v4252
    %v4271 = vadd.f32 %v379, %v4255
    %v4272 = vadd.f32 %v380, %v4260
    %v4273 = vadd.f32 %v381, %v4263
    %v4274 = vsel %vm409, %v4266, 0.0
    %v4275 = vsel %vm409, %v4267, 0.0
    %v4276 = vadd.f32 %v4274, %v4275
    %v4277 = vsel %vm409, %v4268, 0.0
    %v4278 = vadd.f32 %v4276, %v4277
    %v4279 = vsel %vm409, %v4269, 0.0
    %v4280 = vadd.f32 %v4278, %v4279
    %v4281 = vsel %vm409, %v4270, 0.0
    %v4282 = vadd.f32 %v4280, %v4281
    %v4283 = vsel %vm409, %v4271, 0.0
    %v4284 = vadd.f32 %v4282, %v4283
    %v4285 = vsel %vm409, %v4272, 0.0
    %v4286 = vadd.f32 %v4284, %v4285
    %v4287 = vsel %vm409, %v4273, 0.0
    %v4288 = vadd.f32 %v4286, %v4287
    %v4289 = vrot.slane %v4288, 4
    %v4290 = vadd.f32 %v4288, %v4289
    %v4291 = vrot.slane %v4290, 2
    %v4292 = vadd.f32 %v4290, %v4291
    %v4293 = vrot.slane %v4292, 1
    %v4294 = vadd.f32 %v4292, %v4293
    %v4295 = vrcp.pop 64.0
    %v4296 = vmul.f32 %v4294, %v4295
    %v4297 = vsub.f32 %v4266, %v4296
    %v4298 = vsub.f32 %v4267, %v4296
    %v4299 = vsub.f32 %v4268, %v4296
    %v4300 = vsub.f32 %v4269, %v4296
    %v4301 = vsub.f32 %v4270, %v4296
    %v4302 = vsub.f32 %v4271, %v4296
    %v4303 = vsub.f32 %v4272, %v4296
    %v4304 = vsub.f32 %v4273, %v4296
    %v4305 = vmul.f32 %v4297, %v4297
    %v4306 = vmul.f32 %v4298, %v4298
    %v4307 = vmul.f32 %v4299, %v4299
    %v4308 = vmul.f32 %v4300, %v4300
    %v4309 = vmul.f32 %v4301, %v4301
    %v4310 = vmul.f32 %v4302, %v4302
    %v4311 = vmul.f32 %v4303, %v4303
    %v4312 = vmul.f32 %v4304, %v4304
    %v4313 = vsel %vm409, %v4305, 0.0
    %v4314 = vsel %vm409, %v4306, 0.0
    %v4315 = vadd.f32 %v4313, %v4314
    %v4316 = vsel %vm409, %v4307, 0.0
    %v4317 = vadd.f32 %v4315, %v4316
    %v4318 = vsel %vm409, %v4308, 0.0
    %v4319 = vadd.f32 %v4317, %v4318
    %v4320 = vsel %vm409, %v4309, 0.0
    %v4321 = vadd.f32 %v4319, %v4320
    %v4322 = vsel %vm409, %v4310, 0.0
    %v4323 = vadd.f32 %v4321, %v4322
    %v4324 = vsel %vm409, %v4311, 0.0
    %v4325 = vadd.f32 %v4323, %v4324
    %v4326 = vsel %vm409, %v4312, 0.0
    %v4327 = vadd.f32 %v4325, %v4326
    %v4328 = vrot.slane %v4327, 4
    %v4329 = vadd.f32 %v4327, %v4328
    %v4330 = vrot.slane %v4329, 2
    %v4331 = vadd.f32 %v4329, %v4330
    %v4332 = vrot.slane %v4331, 1
    %v4333 = vadd.f32 %v4331, %v4332
    %v4334 = vmul.f32 %v4333, %v4295
    %v4335 = vadd.f32 %v4334, 1e-05
    %v4336 = vrsqrt.pop %v4335
    %v4337 = vmul.f32 %v4297, %v4336
    %v4338 = vmul.f32 %v4298, %v4336
    %v4339 = vmul.f32 %v4299, %v4336
    %v4340 = vmul.f32 %v4300, %v4336
    %v4341 = vmul.f32 %v4301, %v4336
    %v4342 = vmul.f32 %v4302, %v4336
    %v4343 = vmul.f32 %v4303, %v4336
    %v4344 = vmul.f32 %v4304, %v4336
    %v4345 = vld [vmem:[#allocation16] sm:$0x1]
    %v4347 = vlaneseq
    %v4348 = vshrl.u32 %v4347, 7
    %v4349 = vsub.s32 0, %v4348
    %v4350 = vrot.slane %v4345, %v4349
    %v4352 = vmul.f32 %v4337, %v4350
    %v4353 = vmul.f32 %v4338, %v4350
    %v4354 = vmul.f32 %v4339, %v4350
    %v4355 = vmul.f32 %v4340, %v4350
    %v4356 = vmul.f32 %v4341, %v4350
    %v4357 = vmul.f32 %v4342, %v4350
    %v4358 = vmul.f32 %v4343, %v4350
    %v4359 = vmul.f32 %v4344, %v4350
    %v4360 = vld [vmem:[#allocation17] sm:$0x1]
    %v4362 = vlaneseq
    %v4363 = vshrl.u32 %v4362, 7
    %v4364 = vsub.s32 0, %v4363
    %v4365 = vrot.slane %v4360, %v4364
    %v4367 = vadd.f32 %v4352, %v4365
    %v4368 = vadd.f32 %v4353, %v4365
    %v4369 = vadd.f32 %v4354, %v4365
    %v4370 = vadd.f32 %v4355, %v4365
    %v4371 = vadd.f32 %v4356, %v4365
    %v4372 = vadd.f32 %v4357, %v4365
    %v4373 = vadd.f32 %v4358, %v4365
    %v4374 = vadd.f32 %v4359, %v4365
    %v4375 = vpack.c.bf16 %v4368, %v4367
    %v4376 = vpack.c.bf16 %v4370, %v4369
    %v4377 = vpack.c.bf16 %v4372, %v4371
    %v4378 = vpack.c.bf16 %v4374, %v4373
    %v4379 = vld [vmem:[#allocation19] sm:$0xf]
    %v4380 = vld [vmem:[#allocation19 + $0x4] sm:$0xf]
    %v4381 = vld [vmem:[#allocation19 + $0x8] sm:$0xf]
    %v4382 = vld [vmem:[#allocation19 + $0xc] sm:$0xf]
    %v4383 = vld [vmem:[#allocation20] sm:$0x1]
    %v4385 = vlaneseq
    %v4386 = vshrl.u32 %v4385, 7
    %v4387 = vsub.s32 0, %v4386
    %v4388 = vrot.slane %v4383, %v4387
    %v4394 = vunpack.c.l.b16 %v4379
    %v4395 = vunpack.c.l.b16 %v4380
    %v4396 = vunpack.c.l.b16 %v4381
    %v4397 = vunpack.c.l.b16 %v4382
    %v4398 = vpack.c.b16 %v4395, %v4394
    %v4399 = vpack.c.b16 %v4397, %v4396
    %v4403 = vsel %vm409, %v4375, 0
    %v4406 = vsel %vm409, %v4376, 0
    %v4409 = vsel %vm409, %v4377, 0
    %v4412 = vsel %vm409, %v4378, 0
    %4414 = vmatprep.subr.bf16.mxu0 0
    %4415 = vmatpush1.bf16.msra.mxu0 %v4398
    %4416 = vmatprep.subr.bf16.mxu0 0
    %4417 = vmatpush1.bf16.msra.mxu0 %v4399
    %4418 = vmatprep.subr.bf16.mxu0 0
    %4419 = vmatpush1.bf16.msra.mxu0 0
    %4420 = vmatprep.subr.bf16.mxu0 0
    %4421 = vmatpush1.bf16.msra.mxu0 0
    %4422 = vmatprep.subr.bf16.mxu0 0
    %4423 = vmatpush1.bf16.msra.mxu0 0
    %4424 = vmatprep.subr.bf16.mxu0 0
    %4425 = vmatpush1.bf16.msra.mxu0 0
    %4426 = vmatprep.subr.bf16.mxu0 0
    %4427 = vmatpush1.bf16.msra.mxu0 0
    %4428 = vmatprep.subr.bf16.mxu0 0
    %4429 = vmatpush1.bf16.msra.mxu0 0
    %4430 = vmatprep.subr.bf16.mxu0 0
    %4431 = vmatpush1.bf16.msra.mxu0 0
    %4432 = vmatprep.subr.bf16.mxu0 0
    %4433 = vmatpush1.bf16.msra.mxu0 0
    %4434 = vmatprep.subr.bf16.mxu0 0
    %4435 = vmatpush1.bf16.msra.mxu0 0
    %4436 = vmatprep.subr.bf16.mxu0 0
    %4437 = vmatpush1.bf16.msra.mxu0 0
    %4438 = vmatprep.subr.bf16.mxu0 0
    %4439 = vmatpush1.bf16.msra.mxu0 0
    %4440 = vmatprep.subr.bf16.mxu0 0
    %4441 = vmatpush1.bf16.msra.mxu0 0
    %4442 = vmatprep.subr.bf16.mxu0 0
    %4443 = vmatpush1.bf16.msra.mxu0 0
    %4444 = vmatprep.subr.bf16.mxu0 0
    %4445 = vmatpush1.bf16.msra.mxu0 0
    %4446 = vmatprep.mubr.bf16.mxu0 0
    %4447 = vmatmul.mubr.bf16.gmra.mrb[0].mxu0 %v4403
    %v4448 = vpop.f32.mrb[0].mxu0
    %v4449 = vadd.f32 %v4388, %v4448
    %v4450 = vpop.f32.mrb[0].mxu0
    %v4451 = vpop.f32.mrb[0].mxu0
    %v4452 = vadd.f32 %v4388, %v4451
    %v4453 = vpop.f32.mrb[0].mxu0
    %4454 = vmatprep.mubr.bf16.mxu0 0
    %4455 = vmatmul.mubr.bf16.gmra.mrb[0].mxu0 %v4406
    %v4456 = vpop.f32.mrb[0].mxu0
    %v4457 = vadd.f32 %v4388, %v4456
    %v4458 = vpop.f32.mrb[0].mxu0
    %v4459 = vpop.f32.mrb[0].mxu0
    %v4460 = vadd.f32 %v4388, %v4459
    %v4461 = vpop.f32.mrb[0].mxu0
    %4462 = vmatprep.mubr.bf16.mxu0 0
    %4463 = vmatmul.mubr.bf16.gmra.mrb[0].mxu0 %v4409
    %v4464 = vpop.f32.mrb[0].mxu0
    %v4465 = vadd.f32 %v4388, %v4464
    %v4466 = vpop.f32.mrb[0].mxu0
    %v4467 = vpop.f32.mrb[0].mxu0
    %v4468 = vadd.f32 %v4388, %v4467
    %v4469 = vpop.f32.mrb[0].mxu0
    %4470 = vmatprep.mubr.bf16.mxu0 0
    %4471 = vmatmul.mubr.bf16.gmra.mrb[0].mxu0 %v4412
    %v4472 = vpop.f32.mrb[0].mxu0
    %v4473 = vadd.f32 %v4388, %v4472
    %v4474 = vpop.f32.mrb[0].mxu0
    %v4475 = vpop.f32.mrb[0].mxu0
    %v4476 = vadd.f32 %v4388, %v4475
    %v4477 = vpop.f32.mrb[0].mxu0
    %4478 = vdwg.mxu0
    %v4479 = vmul.f32 %v4449, %v4449
    %v4480 = vmul.f32 %v4452, %v4452
    %v4481 = vmul.f32 %v4457, %v4457
    %v4482 = vmul.f32 %v4460, %v4460
    %v4483 = vmul.f32 %v4465, %v4465
    %v4484 = vmul.f32 %v4468, %v4468
    %v4485 = vmul.f32 %v4473, %v4473
    %v4486 = vmul.f32 %v4476, %v4476
    %v4487 = vmul.f32 %v4449, %v4479
    %v4488 = vmul.f32 %v4452, %v4480
    %v4489 = vmul.f32 %v4457, %v4481
    %v4490 = vmul.f32 %v4460, %v4482
    %v4491 = vmul.f32 %v4465, %v4483
    %v4492 = vmul.f32 %v4468, %v4484
    %v4493 = vmul.f32 %v4473, %v4485
    %v4494 = vmul.f32 %v4476, %v4486
    %v4495 = vmul.f32 %v4487, 0.044715
    %v4496 = vmul.f32 %v4488, 0.044715
    %v4497 = vmul.f32 %v4489, 0.044715
    %v4498 = vmul.f32 %v4490, 0.044715
    %v4499 = vmul.f32 %v4491, 0.044715
    %v4500 = vmul.f32 %v4492, 0.044715
    %v4501 = vmul.f32 %v4493, 0.044715
    %v4502 = vmul.f32 %v4494, 0.044715
    %v4503 = vadd.f32 %v4449, %v4495
    %v4504 = vadd.f32 %v4452, %v4496
    %v4505 = vadd.f32 %v4457, %v4497
    %v4506 = vadd.f32 %v4460, %v4498
    %v4507 = vadd.f32 %v4465, %v4499
    %v4508 = vadd.f32 %v4468, %v4500
    %v4509 = vadd.f32 %v4473, %v4501
    %v4510 = vadd.f32 %v4476, %v4502
    %v4511 = vmul.f32 %v4503, 0.7978846
    %v4512 = vmul.f32 %v4504, 0.7978846
    %v4513 = vmul.f32 %v4505, 0.7978846
    %v4514 = vmul.f32 %v4506, 0.7978846
    %v4515 = vmul.f32 %v4507, 0.7978846
    %v4516 = vmul.f32 %v4508, 0.7978846
    %v4517 = vmul.f32 %v4509, 0.7978846
    %v4518 = vmul.f32 %v4510, 0.7978846
    %v4519 = vtanh.pop %v4511
    %v4520 = vtanh.pop %v4512
    %v4521 = vtanh.pop %v4513
    %v4522 = vtanh.pop %v4514
    %v4523 = vtanh.pop %v4515
    %v4524 = vtanh.pop %v4516
    %v4525 = vtanh.pop %v4517
    %v4526 = vtanh.pop %v4518
    %v4527 = vadd.f32 %v4519, 1.0
    %v4528 = vadd.f32 %v4520, 1.0
    %v4529 = vadd.f32 %v4521, 1.0
    %v4530 = vadd.f32 %v4522, 1.0
    %v4531 = vadd.f32 %v4523, 1.0
    %v4532 = vadd.f32 %v4524, 1.0
    %v4533 = vadd.f32 %v4525, 1.0
    %v4534 = vadd.f32 %v4526, 1.0
    %v4535 = vmul.f32 %v4527, 0.5
    %v4536 = vmul.f32 %v4528, 0.5
    %v4537 = vmul.f32 %v4529, 0.5
    %v4538 = vmul.f32 %v4530, 0.5
    %v4539 = vmul.f32 %v4531, 0.5
    %v4540 = vmul.f32 %v4532, 0.5
    %v4541 = vmul.f32 %v4533, 0.5
    %v4542 = vmul.f32 %v4534, 0.5
    %v4543 = vmul.f32 %v4449, %v4535
    %v4544 = vmul.f32 %v4452, %v4536
    %v4545 = vmul.f32 %v4457, %v4537
    %v4546 = vmul.f32 %v4460, %v4538
    %v4547 = vmul.f32 %v4465, %v4539
    %v4548 = vmul.f32 %v4468, %v4540
    %v4549 = vmul.f32 %v4473, %v4541
    %v4550 = vmul.f32 %v4476, %v4542
    %v4551 = vpack.c.bf16 %v4544, %v4543
    %v4552 = vpack.c.bf16 %v4546, %v4545
    %v4553 = vpack.c.bf16 %v4548, %v4547
    %v4554 = vpack.c.bf16 %v4550, %v4549
    %v4555 = vld [vmem:[#allocation22] sm:$0xf]
    %v4556 = vld [vmem:[#allocation22 + $0x4] sm:$0xf]
    %v4557 = vld [vmem:[#allocation22 + $0x8] sm:$0xf]
    %v4558 = vld [vmem:[#allocation22 + $0xc] sm:$0xf]
    %v4559 = vld [vmem:[#allocation22 + $0x10] sm:$0xf]
    %v4560 = vld [vmem:[#allocation22 + $0x14] sm:$0xf]
    %v4561 = vld [vmem:[#allocation22 + $0x18] sm:$0xf]
    %v4562 = vld [vmem:[#allocation22 + $0x1c] sm:$0xf]
    %v4563 = vld [vmem:[#allocation23] sm:$0x1]
    %v4565 = vlaneseq
    %v4566 = vshrl.u32 %v4565, 7
    %v4567 = vsub.s32 0, %v4566
    %v4568 = vrot.slane %v4563, %v4567
    %v4578 = vunpack.c.l.b16 %v4555
    %v4579 = vunpack.c.l.b16 %v4556
    %v4580 = vunpack.c.l.b16 %v4557
    %v4581 = vunpack.c.l.b16 %v4558
    %v4582 = vunpack.c.l.b16 %v4559
    %v4583 = vunpack.c.l.b16 %v4560
    %v4584 = vunpack.c.l.b16 %v4561
    %v4585 = vunpack.c.l.b16 %v4562
    %v4586 = vpack.c.b16 %v4579, %v4578
    %v4587 = vpack.c.b16 %v4581, %v4580
    %v4588 = vpack.c.b16 %v4583, %v4582
    %v4589 = vpack.c.b16 %v4585, %v4584
    %vm4594 = vcmask 523264
    %v4596 = vsel %vm4594, %v4551, 0
    %v4599 = vsel %vm4594, %v4552, 0
    %v4602 = vsel %vm4594, %v4553, 0
    %v4605 = vsel %vm4594, %v4554, 0
    %4607 = vmatprep.subr.bf16.mxu0 0
    %4608 = vmatpush1.bf16.msra.mxu0 %v4586
    %4609 = vmatprep.subr.bf16.mxu0 0
    %4610 = vmatpush1.bf16.msra.mxu0 %v4587
    %4611 = vmatprep.subr.bf16.mxu0 0
    %4612 = vmatpush1.bf16.msra.mxu0 %v4588
    %4613 = vmatprep.subr.bf16.mxu0 0
    %4614 = vmatpush1.bf16.msra.mxu0 %v4589
    %4615 = vmatprep.subr.bf16.mxu0 0
    %4616 = vmatpush1.bf16.msra.mxu0 0
    %4617 = vmatprep.subr.bf16.mxu0 0
    %4618 = vmatpush1.bf16.msra.mxu0 0
    %4619 = vmatprep.subr.bf16.mxu0 0
    %4620 = vmatpush1.bf16.msra.mxu0 0
    %4621 = vmatprep.subr.bf16.mxu0 0
    %4622 = vmatpush1.bf16.msra.mxu0 0
    %4623 = vmatprep.subr.bf16.mxu0 0
    %4624 = vmatpush1.bf16.msra.mxu0 0
    %4625 = vmatprep.subr.bf16.mxu0 0
    %4626 = vmatpush1.bf16.msra.mxu0 0
    %4627 = vmatprep.subr.bf16.mxu0 0
    %4628 = vmatpush1.bf16.msra.mxu0 0
    %4629 = vmatprep.subr.bf16.mxu0 0
    %4630 = vmatpush1.bf16.msra.mxu0 0
    %4631 = vmatprep.subr.bf16.mxu0 0
    %4632 = vmatpush1.bf16.msra.mxu0 0
    %4633 = vmatprep.subr.bf16.mxu0 0
    %4634 = vmatpush1.bf16.msra.mxu0 0
    %4635 = vmatprep.subr.bf16.mxu0 0
    %4636 = vmatpush1.bf16.msra.mxu0 0
    %4637 = vmatprep.subr.bf16.mxu0 0
    %4638 = vmatpush1.bf16.msra.mxu0 0
    %4639 = vmatprep.mubr.bf16.mxu0 0
    %4640 = vmatmul.mubr.bf16.gmra.mrb[0].mxu0 %v4596
    %v4641 = vpop.f32.mrb[0].mxu0
    %v4642 = vadd.f32 %v4568, %v4641
    %v4643 = vpop.f32.mrb[0].mxu0
    %v4644 = vpop.f32.mrb[0].mxu0
    %v4645 = vadd.f32 %v4568, %v4644
    %v4646 = vpop.f32.mrb[0].mxu0
    %4647 = vmatprep.mubr.bf16.mxu0 0
    %4648 = vmatmul.mubr.bf16.gmra.mrb[0].mxu0 %v4599
    %v4649 = vpop.f32.mrb[0].mxu0
    %v4650 = vadd.f32 %v4568, %v4649
    %v4651 = vpop.f32.mrb[0].mxu0
    %v4652 = vpop.f32.mrb[0].mxu0
    %v4653 = vadd.f32 %v4568, %v4652
    %v4654 = vpop.f32.mrb[0].mxu0
    %4655 = vmatprep.mubr.bf16.mxu0 0
    %4656 = vmatmul.mubr.bf16.gmra.mrb[0].mxu0 %v4602
    %v4657 = vpop.f32.mrb[0].mxu0
    %v4658 = vadd.f32 %v4568, %v4657
    %v4659 = vpop.f32.mrb[0].mxu0
    %v4660 = vpop.f32.mrb[0].mxu0
    %v4661 = vadd.f32 %v4568, %v4660
    %v4662 = vpop.f32.mrb[0].mxu0
    %4663 = vmatprep.mubr.bf16.mxu0 0
    %4664 = vmatmul.mubr.bf16.gmra.mrb[0].mxu0 %v4605
    %v4665 = vpop.f32.mrb[0].mxu0
    %v4666 = vadd.f32 %v4568, %v4665
    %v4667 = vpop.f32.mrb[0].mxu0
    %v4668 = vpop.f32.mrb[0].mxu0
    %v4669 = vadd.f32 %v4568, %v4668
    %v4670 = vpop.f32.mrb[0].mxu0
    %4671 = vdwg.mxu0
    %v4672 = vadd.f32 %v4367, %v4642
    %v4673 = vadd.f32 %v4368, %v4645
    %v4674 = vadd.f32 %v4369, %v4650
    %v4675 = vadd.f32 %v4370, %v4653
    %v4676 = vadd.f32 %v4371, %v4658
    %v4677 = vadd.f32 %v4372, %v4661
    %v4678 = vadd.f32 %v4373, %v4666
    %v4679 = vadd.f32 %v4374, %v4669
    %v4680 = vsel %vm409, %v4672, 0.0
    %v4681 = vsel %vm409, %v4673, 0.0
    %v4682 = vadd.f32 %v4680, %v4681
    %v4683 = vsel %vm409, %v4674, 0.0
    %v4684 = vadd.f32 %v4682, %v4683
    %v4685 = vsel %vm409, %v4675, 0.0
    %v4686 = vadd.f32 %v4684, %v4685
    %v4687 = vsel %vm409, %v4676, 0.0
    %v4688 = vadd.f32 %v4686, %v4687
    %v4689 = vsel %vm409, %v4677, 0.0
    %v4690 = vadd.f32 %v4688, %v4689
    %v4691 = vsel %vm409, %v4678, 0.0
    %v4692 = vadd.f32 %v4690, %v4691
    %v4693 = vsel %vm409, %v4679, 0.0
    %v4694 = vadd.f32 %v4692, %v4693
    %v4695 = vrot.slane %v4694, 4
    %v4696 = vadd.f32 %v4694, %v4695
    %v4697 = vrot.slane %v4696, 2
    %v4698 = vadd.f32 %v4696, %v4697
    %v4699 = vrot.slane %v4698, 1
    %v4700 = vadd.f32 %v4698, %v4699
    %v4701 = vmul.f32 %v4700, %v4295
    %v4702 = vsub.f32 %v4672, %v4701
    %v4703 = vsub.f32 %v4673, %v4701
    %v4704 = vsub.f32 %v4674, %v4701
    %v4705 = vsub.f32 %v4675, %v4701
    %v4706 = vsub.f32 %v4676, %v4701
    %v4707 = vsub.f32 %v4677, %v4701
    %v4708 = vsub.f32 %v4678, %v4701
    %v4709 = vsub.f32 %v4679, %v4701
    %v4710 = vmul.f32 %v4702, %v4702
    %v4711 = vmul.f32 %v4703, %v4703
    %v4712 = vmul.f32 %v4704, %v4704
    %v4713 = vmul.f32 %v4705, %v4705
    %v4714 = vmul.f32 %v4706, %v4706
    %v4715 = vmul.f32 %v4707, %v4707
    %v4716 = vmul.f32 %v4708, %v4708
    %v4717 = vmul.f32 %v4709, %v4709
    %v4718 = vsel %vm409, %v4710, 0.0
    %v4719 = vsel %vm409, %v4711, 0.0
    %v4720 = vadd.f32 %v4718, %v4719
    %v4721 = vsel %vm409, %v4712, 0.0
    %v4722 = vadd.f32 %v4720, %v4721
    %v4723 = vsel %vm409, %v4713, 0.0
    %v4724 = vadd.f32 %v4722, %v4723
    %v4725 = vsel %vm409, %v4714, 0.0
    %v4726 = vadd.f32 %v4724, %v4725
    %v4727 = vsel %vm409, %v4715, 0.0
    %v4728 = vadd.f32 %v4726, %v4727
    %v4729 = vsel %vm409, %v4716, 0.0
    %v4730 = vadd.f32 %v4728, %v4729
    %v4731 = vsel %vm409, %v4717, 0.0
    %v4732 = vadd.f32 %v4730, %v4731
    %v4733 = vrot.slane %v4732, 4
    %v4734 = vadd.f32 %v4732, %v4733
    %v4735 = vrot.slane %v4734, 2
    %v4736 = vadd.f32 %v4734, %v4735
    %v4737 = vrot.slane %v4736, 1
    %v4738 = vadd.f32 %v4736, %v4737
    %v4739 = vmul.f32 %v4738, %v4295
    %v4740 = vadd.f32 %v4739, 1e-05
    %v4741 = vrsqrt.pop %v4740
    %v4742 = vmul.f32 %v4702, %v4741
    %v4743 = vmul.f32 %v4703, %v4741
    %v4744 = vmul.f32 %v4704, %v4741
    %v4745 = vmul.f32 %v4705, %v4741
    %v4746 = vmul.f32 %v4706, %v4741
    %v4747 = vmul.f32 %v4707, %v4741
    %v4748 = vmul.f32 %v4708, %v4741
    %v4749 = vmul.f32 %v4709, %v4741
    %v4750 = vld [vmem:[#allocation25] sm:$0x1]
    %v4752 = vlaneseq
    %v4753 = vshrl.u32 %v4752, 7
    %v4754 = vsub.s32 0, %v4753
    %v4755 = vrot.slane %v4750, %v4754
    %v4757 = vmul.f32 %v4742, %v4755
    %v4758 = vmul.f32 %v4743, %v4755
    %v4759 = vmul.f32 %v4744, %v4755
    %v4760 = vmul.f32 %v4745, %v4755
    %v4761 = vmul.f32 %v4746, %v4755
    %v4762 = vmul.f32 %v4747, %v4755
    %v4763 = vmul.f32 %v4748, %v4755
    %v4764 = vmul.f32 %v4749, %v4755
    %v4765 = vld [vmem:[#allocation26] sm:$0x1]
    %v4767 = vlaneseq
    %v4768 = vshrl.u32 %v4767, 7
    %v4769 = vsub.s32 0, %v4768
    %v4770 = vrot.slane %v4765, %v4769
    %v4772 = vadd.f32 %v4757, %v4770
    %v4773 = vadd.f32 %v4758, %v4770
    %v4774 = vadd.f32 %v4759, %v4770
    %v4775 = vadd.f32 %v4760, %v4770
    %v4776 = vadd.f32 %v4761, %v4770
    %v4777 = vadd.f32 %v4762, %v4770
    %v4778 = vadd.f32 %v4763, %v4770
    %v4779 = vadd.f32 %v4764, %v4770
    %v4780 = vpack.c.bf16 %v4773, %v4772
    %v4781 = vpack.c.bf16 %v4775, %v4774
    %v4782 = vpack.c.bf16 %v4777, %v4776
    %v4783 = vpack.c.bf16 %v4779, %v4778
    %s4784 = scalar_lea.vmem [#allocation10], 16
    %v4785 = vld [vmem:[%s4784] sm:$0xf]
    %v4786 = vld [vmem:[%s4784 + $0x4] sm:$0xf]
    %v4787 = vld [vmem:[%s4784 + $0x8] sm:$0xf]
    %v4788 = vld [vmem:[%s4784 + $0xc] sm:$0xf]
    %s4789 = scalar_lea.vmem [#allocation11], 1
    %v4790 = vld [vmem:[%s4789] sm:$0x1]
    %v4792 = vlaneseq
    %v4793 = vshrl.u32 %v4792, 7
    %v4794 = vsub.s32 0, %v4793
    %v4795 = vrot.slane %v4790, %v4794
    %v4801 = vunpack.c.l.b16 %v4785
    %v4802 = vunpack.c.l.b16 %v4786
    %v4803 = vunpack.c.l.b16 %v4787
    %v4804 = vunpack.c.l.b16 %v4788
    %v4805 = vpack.c.b16 %v4802, %v4801
    %v4806 = vpack.c.b16 %v4804, %v4803
    %v4810 = vsel %vm409, %v4780, 0
    %v4813 = vsel %vm409, %v4781, 0
    %v4816 = vsel %vm409, %v4782, 0
    %v4819 = vsel %vm409, %v4783, 0
    %4821 = vmatprep.subr.bf16.mxu0 0
    %4822 = vmatpush1.bf16.msra.mxu0 %v4805
    %4823 = vmatprep.subr.bf16.mxu0 0
    %4824 = vmatpush1.bf16.msra.mxu0 %v4806
    %4825 = vmatprep.subr.bf16.mxu0 0
    %4826 = vmatpush1.bf16.msra.mxu0 0
    %4827 = vmatprep.subr.bf16.mxu0 0
    %4828 = vmatpush1.bf16.msra.mxu0 0
    %4829 = vmatprep.subr.bf16.mxu0 0
    %4830 = vmatpush1.bf16.msra.mxu0 0
    %4831 = vmatprep.subr.bf16.mxu0 0
    %4832 = vmatpush1.bf16.msra.mxu0 0
    %4833 = vmatprep.subr.bf16.mxu0 0
    %4834 = vmatpush1.bf16.msra.mxu0 0
    %4835 = vmatprep.subr.bf16.mxu0 0
    %4836 = vmatpush1.bf16.msra.mxu0 0
    %4837 = vmatprep.subr.bf16.mxu0 0
    %4838 = vmatpush1.bf16.msra.mxu0 0
    %4839 = vmatprep.subr.bf16.mxu0 0
    %4840 = vmatpush1.bf16.msra.mxu0 0
    %4841 = vmatprep.subr.bf16.mxu0 0
    %4842 = vmatpush1.bf16.msra.mxu0 0
    %4843 = vmatprep.subr.bf16.mxu0 0
    %4844 = vmatpush1.bf16.msra.mxu0 0
    %4845 = vmatprep.subr.bf16.mxu0 0
    %4846 = vmatpush1.bf16.msra.mxu0 0
    %4847 = vmatprep.subr.bf16.mxu0 0
    %4848 = vmatpush1.bf16.msra.mxu0 0
    %4849 = vmatprep.subr.bf16.mxu0 0
    %4850 = vmatpush1.bf16.msra.mxu0 0
    %4851 = vmatprep.subr.bf16.mxu0 0
    %4852 = vmatpush1.bf16.msra.mxu0 0
    %4853 = vmatprep.mubr.bf16.mxu0 0
    %4854 = vmatmul.mubr.bf16.gmra.mrb[0].mxu0 %v4810
    %v4855 = vpop.f32.mrb[0].mxu0
    %v4856 = vadd.f32 %v4795, %v4855
    %v4857 = vpop.f32.mrb[0].mxu0
    %v4858 = vpop.f32.mrb[0].mxu0
    %v4859 = vadd.f32 %v4795, %v4858
    %v4860 = vpop.f32.mrb[0].mxu0
    %4861 = vmatprep.mubr.bf16.mxu0 0
    %4862 = vmatmul.mubr.bf16.gmra.mrb[0].mxu0 %v4813
    %v4863 = vpop.f32.mrb[0].mxu0
    %v4864 = vadd.f32 %v4795, %v4863
    %v4865 = vpop.f32.mrb[0].mxu0
    %v4866 = vpop.f32.mrb[0].mxu0
    %v4867 = vadd.f32 %v4795, %v4866
    %v4868 = vpop.f32.mrb[0].mxu0
    %4869 = vmatprep.mubr.bf16.mxu0 0
    %4870 = vmatmul.mubr.bf16.gmra.mrb[0].mxu0 %v4816
    %v4871 = vpop.f32.mrb[0].mxu0
    %v4872 = vadd.f32 %v4795, %v4871
    %v4873 = vpop.f32.mrb[0].mxu0
    %v4874 = vpop.f32.mrb[0].mxu0
    %v4875 = vadd.f32 %v4795, %v4874
    %v4876 = vpop.f32.mrb[0].mxu0
    %4877 = vmatprep.mubr.bf16.mxu0 0
    %4878 = vmatmul.mubr.bf16.gmra.mrb[0].mxu0 %v4819
    %v4879 = vpop.f32.mrb[0].mxu0
    %v4880 = vadd.f32 %v4795, %v4879
    %v4881 = vpop.f32.mrb[0].mxu0
    %v4882 = vpop.f32.mrb[0].mxu0
    %v4883 = vadd.f32 %v4795, %v4882
    %v4884 = vpop.f32.mrb[0].mxu0
    %4885 = vdwg.mxu0
    %v4886 = vpack.c.bf16 %v4856, %v4856
    %v4887 = vpack.c.bf16 %v4859, %v4859
    %v4888 = vpack.c.bf16 %v4864, %v4864
    %v4889 = vpack.c.bf16 %v4867, %v4867
    %v4890 = vpack.c.bf16 %v4872, %v4872
    %v4891 = vpack.c.bf16 %v4875, %v4875
    %v4892 = vpack.c.bf16 %v4880, %v4880
    %v4893 = vpack.c.bf16 %v4883, %v4883
    %4895 = vrot.lane.b32.xlu0 %v4886, 96
    %v4896 = vpop.permute.xlu0 %4895
    %v4898 = vsel %vm498, %v4886, 0
    %v4901 = vsel %vm498, %v4896, 0
    %4903 = vmatprep.subr.bf16.mxu0 0
    %4904 = vmatpush1.bf16.xpose.msra.mxu0 %v4901
    %4905 = vmatprep.subr.bf16.mxu0 0
    %4906 = vmatpush1.bf16.xpose.msra.mxu0 0
    %4907 = vmatprep.subr.bf16.mxu0 0
    %4908 = vmatpush1.bf16.xpose.msra.mxu0 0
    %4909 = vmatprep.subr.bf16.mxu0 0
    %4910 = vmatpush1.bf16.xpose.msra.mxu0 0
    %4911 = vmatprep.subr.bf16.mxu0 0
    %4912 = vmatpush1.bf16.xpose.msra.mxu0 0
    %4913 = vmatprep.subr.bf16.mxu0 0
    %4914 = vmatpush1.bf16.xpose.msra.mxu0 0
    %4915 = vmatprep.subr.bf16.mxu0 0
    %4916 = vmatpush1.bf16.xpose.msra.mxu0 0
    %4917 = vmatprep.subr.bf16.mxu0 0
    %4918 = vmatpush1.bf16.xpose.msra.mxu0 0
    %4919 = vmatprep.subr.bf16.mxu0 0
    %4920 = vmatpush1.bf16.xpose.msra.mxu0 0
    %4921 = vmatprep.subr.bf16.mxu0 0
    %4922 = vmatpush1.bf16.xpose.msra.mxu0 0
    %4923 = vmatprep.subr.bf16.mxu0 0
    %4924 = vmatpush1.bf16.xpose.msra.mxu0 0
    %4925 = vmatprep.subr.bf16.mxu0 0
    %4926 = vmatpush1.bf16.xpose.msra.mxu0 0
    %4927 = vmatprep.subr.bf16.mxu0 0
    %4928 = vmatpush1.bf16.xpose.msra.mxu0 0
    %4929 = vmatprep.subr.bf16.mxu0 0
    %4930 = vmatpush1.bf16.xpose.msra.mxu0 0
    %4931 = vmatprep.subr.bf16.mxu0 0
    %4932 = vmatpush1.bf16.xpose.msra.mxu0 0
    %4933 = vmatprep.subr.bf16.mxu0 0
    %4934 = vmatpush1.bf16.xpose.msra.mxu0 0
    %4935 = vmatprep.mubr.bf16.mxu0 0
    %4936 = vmatmul.mubr.bf16.gmra.mrb[0].mxu0 %v4898
    %v4937 = vpop.f32.mrb[0].mxu0
    %v4938 = vadd.f32 0.0, %v4937
    %v4939 = vpop.f32.mrb[0].mxu0
    %v4940 = vpop.f32.mrb[0].mxu0
    %v4941 = vpop.f32.mrb[0].mxu0
    %4942 = vdwg.mxu0
    %4944 = vrot.lane.b32.xlu0 %v4887, 96
    %v4945 = vpop.permute.xlu0 %4944
    %v4947 = vsel %vm498, %v4887, 0
    %v4950 = vsel %vm498, %v4945, 0
    %4952 = vmatprep.subr.bf16.mxu0 0
    %4953 = vmatpush1.bf16.xpose.msra.mxu0 %v4950
    %4954 = vmatprep.subr.bf16.mxu0 0
    %4955 = vmatpush1.bf16.xpose.msra.mxu0 0
    %4956 = vmatprep.subr.bf16.mxu0 0
    %4957 = vmatpush1.bf16.xpose.msra.mxu0 0
    %4958 = vmatprep.subr.bf16.mxu0 0
    %4959 = vmatpush1.bf16.xpose.msra.mxu0 0
    %4960 = vmatprep.subr.bf16.mxu0 0
    %4961 = vmatpush1.bf16.xpose.msra.mxu0 0
    %4962 = vmatprep.subr.bf16.mxu0 0
    %4963 = vmatpush1.bf16.xpose.msra.mxu0 0
    %4964 = vmatprep.subr.bf16.mxu0 0
    %4965 = vmatpush1.bf16.xpose.msra.mxu0 0
    %4966 = vmatprep.subr.bf16.mxu0 0
    %4967 = vmatpush1.bf16.xpose.msra.mxu0 0
    %4968 = vmatprep.subr.bf16.mxu0 0
    %4969 = vmatpush1.bf16.xpose.msra.mxu0 0
    %4970 = vmatprep.subr.bf16.mxu0 0
    %4971 = vmatpush1.bf16.xpose.msra.mxu0 0
    %4972 = vmatprep.subr.bf16.mxu0 0
    %4973 = vmatpush1.bf16.xpose.msra.mxu0 0
    %4974 = vmatprep.subr.bf16.mxu0 0
    %4975 = vmatpush1.bf16.xpose.msra.mxu0 0
    %4976 = vmatprep.subr.bf16.mxu0 0
    %4977 = vmatpush1.bf16.xpose.msra.mxu0 0
    %4978 = vmatprep.subr.bf16.mxu0 0
    %4979 = vmatpush1.bf16.xpose.msra.mxu0 0
    %4980 = vmatprep.subr.bf16.mxu0 0
    %4981 = vmatpush1.bf16.xpose.msra.mxu0 0
    %4982 = vmatprep.subr.bf16.mxu0 0
    %4983 = vmatpush1.bf16.xpose.msra.mxu0 0
    %4984 = vmatprep.mubr.bf16.mxu0 0
    %4985 = vmatmul.mubr.bf16.gmra.mrb[0].mxu0 %v4947
    %v4986 = vpop.f32.mrb[0].mxu0
    %v4987 = vadd.f32 0.0, %v4986
    %v4988 = vpop.f32.mrb[0].mxu0
    %v4989 = vpop.f32.mrb[0].mxu0
    %v4990 = vpop.f32.mrb[0].mxu0
    %4991 = vdwg.mxu0
    %4993 = vrot.lane.b32.xlu0 %v4888, 96
    %v4994 = vpop.permute.xlu0 %4993
    %v4996 = vsel %vm498, %v4888, 0
    %v4999 = vsel %vm498, %v4994, 0
    %5001 = vmatprep.subr.bf16.mxu0 0
    %5002 = vmatpush1.bf16.xpose.msra.mxu0 %v4999
    %5003 = vmatprep.subr.bf16.mxu0 0
    %5004 = vmatpush1.bf16.xpose.msra.mxu0 0
    %5005 = vmatprep.subr.bf16.mxu0 0
    %5006 = vmatpush1.bf16.xpose.msra.mxu0 0
    %5007 = vmatprep.subr.bf16.mxu0 0
    %5008 = vmatpush1.bf16.xpose.msra.mxu0 0
    %5009 = vmatprep.subr.bf16.mxu0 0
    %5010 = vmatpush1.bf16.xpose.msra.mxu0 0
    %5011 = vmatprep.subr.bf16.mxu0 0
    %5012 = vmatpush1.bf16.xpose.msra.mxu0 0
    %5013 = vmatprep.subr.bf16.mxu0 0
    %5014 = vmatpush1.bf16.xpose.msra.mxu0 0
    %5015 = vmatprep.subr.bf16.mxu0 0
    %5016 = vmatpush1.bf16.xpose.msra.mxu0 0
    %5017 = vmatprep.subr.bf16.mxu0 0
    %5018 = vmatpush1.bf16.xpose.msra.mxu0 0
    %5019 = vmatprep.subr.bf16.mxu0 0
    %5020 = vmatpush1.bf16.xpose.msra.mxu0 0
    %5021 = vmatprep.subr.bf16.mxu0 0
    %5022 = vmatpush1.bf16.xpose.msra.mxu0 0
    %5023 = vmatprep.subr.bf16.mxu0 0
    %5024 = vmatpush1.bf16.xpose.msra.mxu0 0
    %5025 = vmatprep.subr.bf16.mxu0 0
    %5026 = vmatpush1.bf16.xpose.msra.mxu0 0
    %5027 = vmatprep.subr.bf16.mxu0 0
    %5028 = vmatpush1.bf16.xpose.msra.mxu0 0
    %5029 = vmatprep.subr.bf16.mxu0 0
    %5030 = vmatpush1.bf16.xpose.msra.mxu0 0
    %5031 = vmatprep.subr.bf16.mxu0 0
    %5032 = vmatpush1.bf16.xpose.msra.mxu0 0
    %5033 = vmatprep.mubr.bf16.mxu0 0
    %5034 = vmatmul.mubr.bf16.gmra.mrb[0].mxu0 %v4996
    %v5035 = vpop.f32.mrb[0].mxu0
    %v5036 = vadd.f32 0.0, %v5035
    %v5037 = vpop.f32.mrb[0].mxu0
    %v5038 = vpop.f32.mrb[0].mxu0
    %v5039 = vpop.f32.mrb[0].mxu0
    %5040 = vdwg.mxu0
    %5042 = vrot.lane.b32.xlu0 %v4889, 96
    %v5043 = vpop.permute.xlu0 %5042
    %v5045 = vsel %vm498, %v4889, 0
    %v5048 = vsel %vm498, %v5043, 0
    %5050 = vmatprep.subr.bf16.mxu0 0
    %5051 = vmatpush1.bf16.xpose.msra.mxu0 %v5048
    %5052 = vmatprep.subr.bf16.mxu0 0
    %5053 = vmatpush1.bf16.xpose.msra.mxu0 0
    %5054 = vmatprep.subr.bf16.mxu0 0
    %5055 = vmatpush1.bf16.xpose.msra.mxu0 0
    %5056 = vmatprep.subr.bf16.mxu0 0
    %5057 = vmatpush1.bf16.xpose.msra.mxu0 0
    %5058 = vmatprep.subr.bf16.mxu0 0
    %5059 = vmatpush1.bf16.xpose.msra.mxu0 0
    %5060 = vmatprep.subr.bf16.mxu0 0
    %5061 = vmatpush1.bf16.xpose.msra.mxu0 0
    %5062 = vmatprep.subr.bf16.mxu0 0
    %5063 = vmatpush1.bf16.xpose.msra.mxu0 0
    %5064 = vmatprep.subr.bf16.mxu0 0
    %5065 = vmatpush1.bf16.xpose.msra.mxu0 0
    %5066 = vmatprep.subr.bf16.mxu0 0
    %5067 = vmatpush1.bf16.xpose.msra.mxu0 0
    %5068 = vmatprep.subr.bf16.mxu0 0
    %5069 = vmatpush1.bf16.xpose.msra.mxu0 0
    %5070 = vmatprep.subr.bf16.mxu0 0
    %5071 = vmatpush1.bf16.xpose.msra.mxu0 0
    %5072 = vmatprep.subr.bf16.mxu0 0
    %5073 = vmatpush1.bf16.xpose.msra.mxu0 0
    %5074 = vmatprep.subr.bf16.mxu0 0
    %5075 = vmatpush1.bf16.xpose.msra.mxu0 0
    %5076 = vmatprep.subr.bf16.mxu0 0
    %5077 = vmatpush1.bf16.xpose.msra.mxu0 0
    %5078 = vmatprep.subr.bf16.mxu0 0
    %5079 = vmatpush1.bf16.xpose.msra.mxu0 0
    %5080 = vmatprep.subr.bf16.mxu0 0
    %5081 = vmatpush1.bf16.xpose.msra.mxu0 0
    %5082 = vmatprep.mubr.bf16.mxu0 0
    %5083 = vmatmul.mubr.bf16.gmra.mrb[0].mxu0 %v5045
    %v5084 = vpop.f32.mrb[0].mxu0
    %v5085 = vadd.f32 0.0, %v5084
    %v5086 = vpop.f32.mrb[0].mxu0
    %v5087 = vpop.f32.mrb[0].mxu0
    %v5088 = vpop.f32.mrb[0].mxu0
    %5089 = vdwg.mxu0
    %5091 = vrot.lane.b32.xlu0 %v4890, 96
    %v5092 = vpop.permute.xlu0 %5091
    %v5094 = vsel %vm498, %v4890, 0
    %v5097 = vsel %vm498, %v5092, 0
    %5099 = vmatprep.subr.bf16.mxu0 0
    %5100 = vmatpush1.bf16.xpose.msra.mxu0 %v5097
    %5101 = vmatprep.subr.bf16.mxu0 0
    %5102 = vmatpush1.bf16.xpose.msra.mxu0 0
    %5103 = vmatprep.subr.bf16.mxu0 0
    %5104 = vmatpush1.bf16.xpose.msra.mxu0 0
    %5105 = vmatprep.subr.bf16.mxu0 0
    %5106 = vmatpush1.bf16.xpose.msra.mxu0 0
    %5107 = vmatprep.subr.bf16.mxu0 0
    %5108 = vmatpush1.bf16.xpose.msra.mxu0 0
    %5109 = vmatprep.subr.bf16.mxu0 0
    %5110 = vmatpush1.bf16.xpose.msra.mxu0 0
    %5111 = vmatprep.subr.bf16.mxu0 0
    %5112 = vmatpush1.bf16.xpose.msra.mxu0 0
    %5113 = vmatprep.subr.bf16.mxu0 0
    %5114 = vmatpush1.bf16.xpose.msra.mxu0 0
    %5115 = vmatprep.subr.bf16.mxu0 0
    %5116 = vmatpush1.bf16.xpose.msra.mxu0 0
    %5117 = vmatprep.subr.bf16.mxu0 0
    %5118 = vmatpush1.bf16.xpose.msra.mxu0 0
    %5119 = vmatprep.subr.bf16.mxu0 0
    %5120 = vmatpush1.bf16.xpose.msra.mxu0 0
    %5121 = vmatprep.subr.bf16.mxu0 0
    %5122 = vmatpush1.bf16.xpose.msra.mxu0 0
    %5123 = vmatprep.subr.bf16.mxu0 0
    %5124 = vmatpush1.bf16.xpose.msra.mxu0 0
    %5125 = vmatprep.subr.bf16.mxu0 0
    %5126 = vmatpush1.bf16.xpose.msra.mxu0 0
    %5127 = vmatprep.subr.bf16.mxu0 0
    %5128 = vmatpush1.bf16.xpose.msra.mxu0 0
    %5129 = vmatprep.subr.bf16.mxu0 0
    %5130 = vmatpush1.bf16.xpose.msra.mxu0 0
    %5131 = vmatprep.mubr.bf16.mxu0 0
    %5132 = vmatmul.mubr.bf16.gmra.mrb[0].mxu0 %v5094
    %v5133 = vpop.f32.mrb[0].mxu0
    %v5134 = vadd.f32 0.0, %v5133
    %v5135 = vpop.f32.mrb[0].mxu0
    %v5136 = vpop.f32.mrb[0].mxu0
    %v5137 = vpop.f32.mrb[0].mxu0
    %5138 = vdwg.mxu0
    %5140 = vrot.lane.b32.xlu0 %v4891, 96
    %v5141 = vpop.permute.xlu0 %5140
    %v5143 = vsel %vm498, %v4891, 0
    %v5146 = vsel %vm498, %v5141, 0
    %5148 = vmatprep.subr.bf16.mxu0 0
    %5149 = vmatpush1.bf16.xpose.msra.mxu0 %v5146
    %5150 = vmatprep.subr.bf16.mxu0 0
    %5151 = vmatpush1.bf16.xpose.msra.mxu0 0
    %5152 = vmatprep.subr.bf16.mxu0 0
    %5153 = vmatpush1.bf16.xpose.msra.mxu0 0
    %5154 = vmatprep.subr.bf16.mxu0 0
    %5155 = vmatpush1.bf16.xpose.msra.mxu0 0
    %5156 = vmatprep.subr.bf16.mxu0 0
    %5157 = vmatpush1.bf16.xpose.msra.mxu0 0
    %5158 = vmatprep.subr.bf16.mxu0 0
    %5159 = vmatpush1.bf16.xpose.msra.mxu0 0
    %5160 = vmatprep.subr.bf16.mxu0 0
    %5161 = vmatpush1.bf16.xpose.msra.mxu0 0
    %5162 = vmatprep.subr.bf16.mxu0 0
    %5163 = vmatpush1.bf16.xpose.msra.mxu0 0
    %5164 = vmatprep.subr.bf16.mxu0 0
    %5165 = vmatpush1.bf16.xpose.msra.mxu0 0
    %5166 = vmatprep.subr.bf16.mxu0 0
    %5167 = vmatpush1.bf16.xpose.msra.mxu0 0
    %5168 = vmatprep.subr.bf16.mxu0 0
    %5169 = vmatpush1.bf16.xpose.msra.mxu0 0
    %5170 = vmatprep.subr.bf16.mxu0 0
    %5171 = vmatpush1.bf16.xpose.msra.mxu0 0
    %5172 = vmatprep.subr.bf16.mxu0 0
    %5173 = vmatpush1.bf16.xpose.msra.mxu0 0
    %5174 = vmatprep.subr.bf16.mxu0 0
    %5175 = vmatpush1.bf16.xpose.msra.mxu0 0
    %5176 = vmatprep.subr.bf16.mxu0 0
    %5177 = vmatpush1.bf16.xpose.msra.mxu0 0
    %5178 = vmatprep.subr.bf16.mxu0 0
    %5179 = vmatpush1.bf16.xpose.msra.mxu0 0
    %5180 = vmatprep.mubr.bf16.mxu0 0
    %5181 = vmatmul.mubr.bf16.gmra.mrb[0].mxu0 %v5143
    %v5182 = vpop.f32.mrb[0].mxu0
    %v5183 = vadd.f32 0.0, %v5182
    %v5184 = vpop.f32.mrb[0].mxu0
    %v5185 = vpop.f32.mrb[0].mxu0
    %v5186 = vpop.f32.mrb[0].mxu0
    %5187 = vdwg.mxu0
    %5189 = vrot.lane.b32.xlu0 %v4892, 96
    %v5190 = vpop.permute.xlu0 %5189
    %v5192 = vsel %vm498, %v4892, 0
    %v5195 = vsel %vm498, %v5190, 0
    %5197 = vmatprep.subr.bf16.mxu0 0
    %5198 = vmatpush1.bf16.xpose.msra.mxu0 %v5195
    %5199 = vmatprep.subr.bf16.mxu0 0
    %5200 = vmatpush1.bf16.xpose.msra.mxu0 0
    %5201 = vmatprep.subr.bf16.mxu0 0
    %5202 = vmatpush1.bf16.xpose.msra.mxu0 0
    %5203 = vmatprep.subr.bf16.mxu0 0
    %5204 = vmatpush1.bf16.xpose.msra.mxu0 0
    %5205 = vmatprep.subr.bf16.mxu0 0
    %5206 = vmatpush1.bf16.xpose.msra.mxu0 0
    %5207 = vmatprep.subr.bf16.mxu0 0
    %5208 = vmatpush1.bf16.xpose.msra.mxu0 0
    %5209 = vmatprep.subr.bf16.mxu0 0
    %5210 = vmatpush1.bf16.xpose.msra.mxu0 0
    %5211 = vmatprep.subr.bf16.mxu0 0
    %5212 = vmatpush1.bf16.xpose.msra.mxu0 0
    %5213 = vmatprep.subr.bf16.mxu0 0
    %5214 = vmatpush1.bf16.xpose.msra.mxu0 0
    %5215 = vmatprep.subr.bf16.mxu0 0
    %5216 = vmatpush1.bf16.xpose.msra.mxu0 0
    %5217 = vmatprep.subr.bf16.mxu0 0
    %5218 = vmatpush1.bf16.xpose.msra.mxu0 0
    %5219 = vmatprep.subr.bf16.mxu0 0
    %5220 = vmatpush1.bf16.xpose.msra.mxu0 0
    %5221 = vmatprep.subr.bf16.mxu0 0
    %5222 = vmatpush1.bf16.xpose.msra.mxu0 0
    %5223 = vmatprep.subr.bf16.mxu0 0
    %5224 = vmatpush1.bf16.xpose.msra.mxu0 0
    %5225 = vmatprep.subr.bf16.mxu0 0
    %5226 = vmatpush1.bf16.xpose.msra.mxu0 0
    %5227 = vmatprep.subr.bf16.mxu0 0
    %5228 = vmatpush1.bf16.xpose.msra.mxu0 0
    %5229 = vmatprep.mubr.bf16.mxu0 0
    %5230 = vmatmul.mubr.bf16.gmra.mrb[0].mxu0 %v5192
    %v5231 = vpop.f32.mrb[0].mxu0
    %v5232 = vadd.f32 0.0, %v5231
    %v5233 = vpop.f32.mrb[0].mxu0
    %v5234 = vpop.f32.mrb[0].mxu0
    %v5235 = vpop.f32.mrb[0].mxu0
    %5236 = vdwg.mxu0
    %5238 = vrot.lane.b32.xlu0 %v4893, 96
    %v5239 = vpop.permute.xlu0 %5238
    %v5241 = vsel %vm498, %v4893, 0
    %v5244 = vsel %vm498, %v5239, 0
    %5246 = vmatprep.subr.bf16.mxu0 0
    %5247 = vmatpush1.bf16.xpose.msra.mxu0 %v5244
    %5248 = vmatprep.subr.bf16.mxu0 0
    %5249 = vmatpush1.bf16.xpose.msra.mxu0 0
    %5250 = vmatprep.subr.bf16.mxu0 0
    %5251 = vmatpush1.bf16.xpose.msra.mxu0 0
    %5252 = vmatprep.subr.bf16.mxu0 0
    %5253 = vmatpush1.bf16.xpose.msra.mxu0 0
    %5254 = vmatprep.subr.bf16.mxu0 0
    %5255 = vmatpush1.bf16.xpose.msra.mxu0 0
    %5256 = vmatprep.subr.bf16.mxu0 0
    %5257 = vmatpush1.bf16.xpose.msra.mxu0 0
    %5258 = vmatprep.subr.bf16.mxu0 0
    %5259 = vmatpush1.bf16.xpose.msra.mxu0 0
    %5260 = vmatprep.subr.bf16.mxu0 0
    %5261 = vmatpush1.bf16.xpose.msra.mxu0 0
    %5262 = vmatprep.subr.bf16.mxu0 0
    %5263 = vmatpush1.bf16.xpose.msra.mxu0 0
    %5264 = vmatprep.subr.bf16.mxu0 0
    %5265 = vmatpush1.bf16.xpose.msra.mxu0 0
    %5266 = vmatprep.subr.bf16.mxu0 0
    %5267 = vmatpush1.bf16.xpose.msra.mxu0 0
    %5268 = vmatprep.subr.bf16.mxu0 0
    %5269 = vmatpush1.bf16.xpose.msra.mxu0 0
    %5270 = vmatprep.subr.bf16.mxu0 0
    %5271 = vmatpush1.bf16.xpose.msra.mxu0 0
    %5272 = vmatprep.subr.bf16.mxu0 0
    %5273 = vmatpush1.bf16.xpose.msra.mxu0 0
    %5274 = vmatprep.subr.bf16.mxu0 0
    %5275 = vmatpush1.bf16.xpose.msra.mxu0 0
    %5276 = vmatprep.subr.bf16.mxu0 0
    %5277 = vmatpush1.bf16.xpose.msra.mxu0 0
    %5278 = vmatprep.mubr.bf16.mxu0 0
    %5279 = vmatmul.mubr.bf16.gmra.mrb[0].mxu0 %v5241
    %v5280 = vpop.f32.mrb[0].mxu0
    %v5281 = vadd.f32 0.0, %v5280
    %v5282 = vpop.f32.mrb[0].mxu0
    %v5283 = vpop.f32.mrb[0].mxu0
    %v5284 = vpop.f32.mrb[0].mxu0
    %5285 = vdwg.mxu0
    %v5286 = vmul.f32 %v4938, 0.35355338
    %v5287 = vmul.f32 %v4987, 0.35355338
    %v5288 = vmul.f32 %v5036, 0.35355338
    %v5289 = vmul.f32 %v5085, 0.35355338
    %v5290 = vmul.f32 %v5134, 0.35355338
    %v5291 = vmul.f32 %v5183, 0.35355338
    %v5292 = vmul.f32 %v5232, 0.35355338
    %v5293 = vmul.f32 %v5281, 0.35355338
    %v5294 = vsel %vm498, %v5286, -inf
    %5295 = vmax.xlane.f32.xlu0 %v5294
    %v5296 = vpop.xlane.xlu0 %5295
    %v5297 = vsel %vm498, %v5287, -inf
    %5298 = vmax.xlane.f32.xlu0 %v5297
    %v5299 = vpop.xlane.xlu0 %5298
    %v5300 = vsel %vm498, %v5288, -inf
    %5301 = vmax.xlane.f32.xlu0 %v5300
    %v5302 = vpop.xlane.xlu0 %5301
    %v5303 = vsel %vm498, %v5289, -inf
    %5304 = vmax.xlane.f32.xlu0 %v5303
    %v5305 = vpop.xlane.xlu0 %5304
    %v5306 = vsel %vm498, %v5290, -inf
    %5307 = vmax.xlane.f32.xlu0 %v5306
    %v5308 = vpop.xlane.xlu0 %5307
    %v5309 = vsel %vm498, %v5291, -inf
    %5310 = vmax.xlane.f32.xlu0 %v5309
    %v5311 = vpop.xlane.xlu0 %5310
    %v5312 = vsel %vm498, %v5292, -inf
    %5313 = vmax.xlane.f32.xlu0 %v5312
    %v5314 = vpop.xlane.xlu0 %5313
    %v5315 = vsel %vm498, %v5293, -inf
    %5316 = vmax.xlane.f32.xlu0 %v5315
    %v5317 = vpop.xlane.xlu0 %5316
    %v5318 = vsub.f32 %v5286, %v5296
    %v5319 = vsub.f32 %v5287, %v5299
    %v5320 = vsub.f32 %v5288, %v5302
    %v5321 = vsub.f32 %v5289, %v5305
    %v5322 = vsub.f32 %v5290, %v5308
    %v5323 = vsub.f32 %v5291, %v5311
    %v5324 = vsub.f32 %v5292, %v5314
    %v5325 = vsub.f32 %v5293, %v5317
    %v5326 = vmul.f32 %v5318, 1.442695
    %v5327 = vpow.pop %v5326
    %v5328 = vmul.f32 %v5319, 1.442695
    %v5329 = vpow.pop %v5328
    %v5330 = vmul.f32 %v5320, 1.442695
    %v5331 = vpow.pop %v5330
    %v5332 = vmul.f32 %v5321, 1.442695
    %v5333 = vpow.pop %v5332
    %v5334 = vmul.f32 %v5322, 1.442695
    %v5335 = vpow.pop %v5334
    %v5336 = vmul.f32 %v5323, 1.442695
    %v5337 = vpow.pop %v5336
    %v5338 = vmul.f32 %v5324, 1.442695
    %v5339 = vpow.pop %v5338
    %v5340 = vmul.f32 %v5325, 1.442695
    %v5341 = vpow.pop %v5340
    %v5342 = vsel %vm498, %v5327, 0.0
    %5343 = vadd.xlane.f32.xlu0 %v5342
    %v5344 = vpop.xlane.xlu0 %5343
    %v5345 = vsel %vm498, %v5329, 0.0
    %5346 = vadd.xlane.f32.xlu0 %v5345
    %v5347 = vpop.xlane.xlu0 %5346
    %v5348 = vsel %vm498, %v5331, 0.0
    %5349 = vadd.xlane.f32.xlu0 %v5348
    %v5350 = vpop.xlane.xlu0 %5349
    %v5351 = vsel %vm498, %v5333, 0.0
    %5352 = vadd.xlane.f32.xlu0 %v5351
    %v5353 = vpop.xlane.xlu0 %5352
    %v5354 = vsel %vm498, %v5335, 0.0
    %5355 = vadd.xlane.f32.xlu0 %v5354
    %v5356 = vpop.xlane.xlu0 %5355
    %v5357 = vsel %vm498, %v5337, 0.0
    %5358 = vadd.xlane.f32.xlu0 %v5357
    %v5359 = vpop.xlane.xlu0 %5358
    %v5360 = vsel %vm498, %v5339, 0.0
    %5361 = vadd.xlane.f32.xlu0 %v5360
    %v5362 = vpop.xlane.xlu0 %5361
    %v5363 = vsel %vm498, %v5341, 0.0
    %5364 = vadd.xlane.f32.xlu0 %v5363
    %v5365 = vpop.xlane.xlu0 %5364
    %v5366 = vrcp.pop %v5344
    %v5367 = vrcp.pop %v5347
    %v5368 = vrcp.pop %v5350
    %v5369 = vrcp.pop %v5353
    %v5370 = vrcp.pop %v5356
    %v5371 = vrcp.pop %v5359
    %v5372 = vrcp.pop %v5362
    %v5373 = vrcp.pop %v5365
    %v5374 = vmul.f32 %v5327, %v5366
    %v5375 = vmul.f32 %v5329, %v5367
    %v5376 = vmul.f32 %v5331, %v5368
    %v5377 = vmul.f32 %v5333, %v5369
    %v5378 = vmul.f32 %v5335, %v5370
    %v5379 = vmul.f32 %v5337, %v5371
    %v5380 = vmul.f32 %v5339, %v5372
    %v5381 = vmul.f32 %v5341, %v5373
    %v5382 = vpack.c.bf16 %v5374, %v5374
    %v5383 = vpack.c.bf16 %v5375, %v5375
    %v5384 = vpack.c.bf16 %v5376, %v5376
    %v5385 = vpack.c.bf16 %v5377, %v5377
    %v5386 = vpack.c.bf16 %v5378, %v5378
    %v5387 = vpack.c.bf16 %v5379, %v5379
    %v5388 = vpack.c.bf16 %v5380, %v5380
    %v5389 = vpack.c.bf16 %v5381, %v5381
    %5390 = vrot.lane.b32.xlu0 %v4886, 64
    %v5391 = vpop.permute.xlu0 %5390
    %v5393 = vsel %vm498, %v5382, 0
    %v5396 = vsel %vm997, %v5391, 0
    %5398 = vmatprep.subr.bf16.mxu0 0
    %5399 = vmatpush1.bf16.msra.mxu0 %v5396
    %5400 = vmatprep.subr.bf16.mxu0 0
    %5401 = vmatpush1.bf16.msra.mxu0 0
    %5402 = vmatprep.subr.bf16.mxu0 0
    %5403 = vmatpush1.bf16.msra.mxu0 0
    %5404 = vmatprep.subr.bf16.mxu0 0
    %5405 = vmatpush1.bf16.msra.mxu0 0
    %5406 = vmatprep.subr.bf16.mxu0 0
    %5407 = vmatpush1.bf16.msra.mxu0 0
    %5408 = vmatprep.subr.bf16.mxu0 0
    %5409 = vmatpush1.bf16.msra.mxu0 0
    %5410 = vmatprep.subr.bf16.mxu0 0
    %5411 = vmatpush1.bf16.msra.mxu0 0
    %5412 = vmatprep.subr.bf16.mxu0 0
    %5413 = vmatpush1.bf16.msra.mxu0 0
    %5414 = vmatprep.subr.bf16.mxu0 0
    %5415 = vmatpush1.bf16.msra.mxu0 0
    %5416 = vmatprep.subr.bf16.mxu0 0
    %5417 = vmatpush1.bf16.msra.mxu0 0
    %5418 = vmatprep.subr.bf16.mxu0 0
    %5419 = vmatpush1.bf16.msra.mxu0 0
    %5420 = vmatprep.subr.bf16.mxu0 0
    %5421 = vmatpush1.bf16.msra.mxu0 0
    %5422 = vmatprep.subr.bf16.mxu0 0
    %5423 = vmatpush1.bf16.msra.mxu0 0
    %5424 = vmatprep.subr.bf16.mxu0 0
    %5425 = vmatpush1.bf16.msra.mxu0 0
    %5426 = vmatprep.subr.bf16.mxu0 0
    %5427 = vmatpush1.bf16.msra.mxu0 0
    %5428 = vmatprep.subr.bf16.mxu0 0
    %5429 = vmatpush1.bf16.msra.mxu0 0
    %5430 = vmatprep.mubr.bf16.mxu0 0
    %5431 = vmatmul.mubr.bf16.gmra.mrb[0].mxu0 %v5393
    %v5432 = vpop.f32.mrb[0].mxu0
    %v5433 = vadd.f32 0.0, %v5432
    %v5434 = vpop.f32.mrb[0].mxu0
    %v5435 = vpop.f32.mrb[0].mxu0
    %v5436 = vpop.f32.mrb[0].mxu0
    %5437 = vdwg.mxu0
    %5438 = vrot.lane.b32.xlu0 %v4887, 64
    %v5439 = vpop.permute.xlu0 %5438
    %v5441 = vsel %vm498, %v5383, 0
    %v5444 = vsel %vm997, %v5439, 0
    %5446 = vmatprep.subr.bf16.mxu0 0
    %5447 = vmatpush1.bf16.msra.mxu0 %v5444
    %5448 = vmatprep.subr.bf16.mxu0 0
    %5449 = vmatpush1.bf16.msra.mxu0 0
    %5450 = vmatprep.subr.bf16.mxu0 0
    %5451 = vmatpush1.bf16.msra.mxu0 0
    %5452 = vmatprep.subr.bf16.mxu0 0
    %5453 = vmatpush1.bf16.msra.mxu0 0
    %5454 = vmatprep.subr.bf16.mxu0 0
    %5455 = vmatpush1.bf16.msra.mxu0 0
    %5456 = vmatprep.subr.bf16.mxu0 0
    %5457 = vmatpush1.bf16.msra.mxu0 0
    %5458 = vmatprep.subr.bf16.mxu0 0
    %5459 = vmatpush1.bf16.msra.mxu0 0
    %5460 = vmatprep.subr.bf16.mxu0 0
    %5461 = vmatpush1.bf16.msra.mxu0 0
    %5462 = vmatprep.subr.bf16.mxu0 0
    %5463 = vmatpush1.bf16.msra.mxu0 0
    %5464 = vmatprep.subr.bf16.mxu0 0
    %5465 = vmatpush1.bf16.msra.mxu0 0
    %5466 = vmatprep.subr.bf16.mxu0 0
    %5467 = vmatpush1.bf16.msra.mxu0 0
    %5468 = vmatprep.subr.bf16.mxu0 0
    %5469 = vmatpush1.bf16.msra.mxu0 0
    %5470 = vmatprep.subr.bf16.mxu0 0
    %5471 = vmatpush1.bf16.msra.mxu0 0
    %5472 = vmatprep.subr.bf16.mxu0 0
    %5473 = vmatpush1.bf16.msra.mxu0 0
    %5474 = vmatprep.subr.bf16.mxu0 0
    %5475 = vmatpush1.bf16.msra.mxu0 0
    %5476 = vmatprep.subr.bf16.mxu0 0
    %5477 = vmatpush1.bf16.msra.mxu0 0
    %5478 = vmatprep.mubr.bf16.mxu0 0
    %5479 = vmatmul.mubr.bf16.gmra.mrb[0].mxu0 %v5441
    %v5480 = vpop.f32.mrb[0].mxu0
    %v5481 = vadd.f32 0.0, %v5480
    %v5482 = vpop.f32.mrb[0].mxu0
    %v5483 = vpop.f32.mrb[0].mxu0
    %v5484 = vpop.f32.mrb[0].mxu0
    %5485 = vdwg.mxu0
    %5486 = vrot.lane.b32.xlu0 %v4888, 64
    %v5487 = vpop.permute.xlu0 %5486
    %v5489 = vsel %vm498, %v5384, 0
    %v5492 = vsel %vm997, %v5487, 0
    %5494 = vmatprep.subr.bf16.mxu0 0
    %5495 = vmatpush1.bf16.msra.mxu0 %v5492
    %5496 = vmatprep.subr.bf16.mxu0 0
    %5497 = vmatpush1.bf16.msra.mxu0 0
    %5498 = vmatprep.subr.bf16.mxu0 0
    %5499 = vmatpush1.bf16.msra.mxu0 0
    %5500 = vmatprep.subr.bf16.mxu0 0
    %5501 = vmatpush1.bf16.msra.mxu0 0
    %5502 = vmatprep.subr.bf16.mxu0 0
    %5503 = vmatpush1.bf16.msra.mxu0 0
    %5504 = vmatprep.subr.bf16.mxu0 0
    %5505 = vmatpush1.bf16.msra.mxu0 0
    %5506 = vmatprep.subr.bf16.mxu0 0
    %5507 = vmatpush1.bf16.msra.mxu0 0
    %5508 = vmatprep.subr.bf16.mxu0 0
    %5509 = vmatpush1.bf16.msra.mxu0 0
    %5510 = vmatprep.subr.bf16.mxu0 0
    %5511 = vmatpush1.bf16.msra.mxu0 0
    %5512 = vmatprep.subr.bf16.mxu0 0
    %5513 = vmatpush1.bf16.msra.mxu0 0
    %5514 = vmatprep.subr.bf16.mxu0 0
    %5515 = vmatpush1.bf16.msra.mxu0 0
    %5516 = vmatprep.subr.bf16.mxu0 0
    %5517 = vmatpush1.bf16.msra.mxu0 0
    %5518 = vmatprep.subr.bf16.mxu0 0
    %5519 = vmatpush1.bf16.msra.mxu0 0
    %5520 = vmatprep.subr.bf16.mxu0 0
    %5521 = vmatpush1.bf16.msra.mxu0 0
    %5522 = vmatprep.subr.bf16.mxu0 0
    %5523 = vmatpush1.bf16.msra.mxu0 0
    %5524 = vmatprep.subr.bf16.mxu0 0
    %5525 = vmatpush1.bf16.msra.mxu0 0
    %5526 = vmatprep.mubr.bf16.mxu0 0
    %5527 = vmatmul.mubr.bf16.gmra.mrb[0].mxu0 %v5489
    %v5528 = vpop.f32.mrb[0].mxu0
    %v5529 = vadd.f32 0.0, %v5528
    %v5530 = vpop.f32.mrb[0].mxu0
    %v5531 = vpop.f32.mrb[0].mxu0
    %v5532 = vpop.f32.mrb[0].mxu0
    %5533 = vdwg.mxu0
    %5534 = vrot.lane.b32.xlu0 %v4889, 64
    %v5535 = vpop.permute.xlu0 %5534
    %v5537 = vsel %vm498, %v5385, 0
    %v5540 = vsel %vm997, %v5535, 0
    %5542 = vmatprep.subr.bf16.mxu0 0
    %5543 = vmatpush1.bf16.msra.mxu0 %v5540
    %5544 = vmatprep.subr.bf16.mxu0 0
    %5545 = vmatpush1.bf16.msra.mxu0 0
    %5546 = vmatprep.subr.bf16.mxu0 0
    %5547 = vmatpush1.bf16.msra.mxu0 0
    %5548 = vmatprep.subr.bf16.mxu0 0
    %5549 = vmatpush1.bf16.msra.mxu0 0
    %5550 = vmatprep.subr.bf16.mxu0 0
    %5551 = vmatpush1.bf16.msra.mxu0 0
    %5552 = vmatprep.subr.bf16.mxu0 0
    %5553 = vmatpush1.bf16.msra.mxu0 0
    %5554 = vmatprep.subr.bf16.mxu0 0
    %5555 = vmatpush1.bf16.msra.mxu0 0
    %5556 = vmatprep.subr.bf16.mxu0 0
    %5557 = vmatpush1.bf16.msra.mxu0 0
    %5558 = vmatprep.subr.bf16.mxu0 0
    %5559 = vmatpush1.bf16.msra.mxu0 0
    %5560 = vmatprep.subr.bf16.mxu0 0
    %5561 = vmatpush1.bf16.msra.mxu0 0
    %5562 = vmatprep.subr.bf16.mxu0 0
    %5563 = vmatpush1.bf16.msra.mxu0 0
    %5564 = vmatprep.subr.bf16.mxu0 0
    %5565 = vmatpush1.bf16.msra.mxu0 0
    %5566 = vmatprep.subr.bf16.mxu0 0
    %5567 = vmatpush1.bf16.msra.mxu0 0
    %5568 = vmatprep.subr.bf16.mxu0 0
    %5569 = vmatpush1.bf16.msra.mxu0 0
    %5570 = vmatprep.subr.bf16.mxu0 0
    %5571 = vmatpush1.bf16.msra.mxu0 0
    %5572 = vmatprep.subr.bf16.mxu0 0
    %5573 = vmatpush1.bf16.msra.mxu0 0
    %5574 = vmatprep.mubr.bf16.mxu0 0
    %5575 = vmatmul.mubr.bf16.gmra.mrb[0].mxu0 %v5537
    %v5576 = vpop.f32.mrb[0].mxu0
    %v5577 = vadd.f32 0.0, %v5576
    %v5578 = vpop.f32.mrb[0].mxu0
    %v5579 = vpop.f32.mrb[0].mxu0
    %v5580 = vpop.f32.mrb[0].mxu0
    %5581 = vdwg.mxu0
    %5582 = vrot.lane.b32.xlu0 %v4890, 64
    %v5583 = vpop.permute.xlu0 %5582
    %v5585 = vsel %vm498, %v5386, 0
    %v5588 = vsel %vm997, %v5583, 0
    %5590 = vmatprep.subr.bf16.mxu0 0
    %5591 = vmatpush1.bf16.msra.mxu0 %v5588
    %5592 = vmatprep.subr.bf16.mxu0 0
    %5593 = vmatpush1.bf16.msra.mxu0 0
    %5594 = vmatprep.subr.bf16.mxu0 0
    %5595 = vmatpush1.bf16.msra.mxu0 0
    %5596 = vmatprep.subr.bf16.mxu0 0
    %5597 = vmatpush1.bf16.msra.mxu0 0
    %5598 = vmatprep.subr.bf16.mxu0 0
    %5599 = vmatpush1.bf16.msra.mxu0 0
    %5600 = vmatprep.subr.bf16.mxu0 0
    %5601 = vmatpush1.bf16.msra.mxu0 0
    %5602 = vmatprep.subr.bf16.mxu0 0
    %5603 = vmatpush1.bf16.msra.mxu0 0
    %5604 = vmatprep.subr.bf16.mxu0 0
    %5605 = vmatpush1.bf16.msra.mxu0 0
    %5606 = vmatprep.subr.bf16.mxu0 0
    %5607 = vmatpush1.bf16.msra.mxu0 0
    %5608 = vmatprep.subr.bf16.mxu0 0
    %5609 = vmatpush1.bf16.msra.mxu0 0
    %5610 = vmatprep.subr.bf16.mxu0 0
    %5611 = vmatpush1.bf16.msra.mxu0 0
    %5612 = vmatprep.subr.bf16.mxu0 0
    %5613 = vmatpush1.bf16.msra.mxu0 0
    %5614 = vmatprep.subr.bf16.mxu0 0
    %5615 = vmatpush1.bf16.msra.mxu0 0
    %5616 = vmatprep.subr.bf16.mxu0 0
    %5617 = vmatpush1.bf16.msra.mxu0 0
    %5618 = vmatprep.subr.bf16.mxu0 0
    %5619 = vmatpush1.bf16.msra.mxu0 0
    %5620 = vmatprep.subr.bf16.mxu0 0
    %5621 = vmatpush1.bf16.msra.mxu0 0
    %5622 = vmatprep.mubr.bf16.mxu0 0
    %5623 = vmatmul.mubr.bf16.gmra.mrb[0].mxu0 %v5585
    %v5624 = vpop.f32.mrb[0].mxu0
    %v5625 = vadd.f32 0.0, %v5624
    %v5626 = vpop.f32.mrb[0].mxu0
    %v5627 = vpop.f32.mrb[0].mxu0
    %v5628 = vpop.f32.mrb[0].mxu0
    %5629 = vdwg.mxu0
    %5630 = vrot.lane.b32.xlu0 %v4891, 64
    %v5631 = vpop.permute.xlu0 %5630
    %v5633 = vsel %vm498, %v5387, 0
    %v5636 = vsel %vm997, %v5631, 0
    %5638 = vmatprep.subr.bf16.mxu0 0
    %5639 = vmatpush1.bf16.msra.mxu0 %v5636
    %5640 = vmatprep.subr.bf16.mxu0 0
    %5641 = vmatpush1.bf16.msra.mxu0 0
    %5642 = vmatprep.subr.bf16.mxu0 0
    %5643 = vmatpush1.bf16.msra.mxu0 0
    %5644 = vmatprep.subr.bf16.mxu0 0
    %5645 = vmatpush1.bf16.msra.mxu0 0
    %5646 = vmatprep.subr.bf16.mxu0 0
    %5647 = vmatpush1.bf16.msra.mxu0 0
    %5648 = vmatprep.subr.bf16.mxu0 0
    %5649 = vmatpush1.bf16.msra.mxu0 0
    %5650 = vmatprep.subr.bf16.mxu0 0
    %5651 = vmatpush1.bf16.msra.mxu0 0
    %5652 = vmatprep.subr.bf16.mxu0 0
    %5653 = vmatpush1.bf16.msra.mxu0 0
    %5654 = vmatprep.subr.bf16.mxu0 0
    %5655 = vmatpush1.bf16.msra.mxu0 0
    %5656 = vmatprep.subr.bf16.mxu0 0
    %5657 = vmatpush1.bf16.msra.mxu0 0
    %5658 = vmatprep.subr.bf16.mxu0 0
    %5659 = vmatpush1.bf16.msra.mxu0 0
    %5660 = vmatprep.subr.bf16.mxu0 0
    %5661 = vmatpush1.bf16.msra.mxu0 0
    %5662 = vmatprep.subr.bf16.mxu0 0
    %5663 = vmatpush1.bf16.msra.mxu0 0
    %5664 = vmatprep.subr.bf16.mxu0 0
    %5665 = vmatpush1.bf16.msra.mxu0 0
    %5666 = vmatprep.subr.bf16.mxu0 0
    %5667 = vmatpush1.bf16.msra.mxu0 0
    %5668 = vmatprep.subr.bf16.mxu0 0
    %5669 = vmatpush1.bf16.msra.mxu0 0
    %5670 = vmatprep.mubr.bf16.mxu0 0
    %5671 = vmatmul.mubr.bf16.gmra.mrb[0].mxu0 %v5633
    %v5672 = vpop.f32.mrb[0].mxu0
    %v5673 = vadd.f32 0.0, %v5672
    %v5674 = vpop.f32.mrb[0].mxu0
    %v5675 = vpop.f32.mrb[0].mxu0
    %v5676 = vpop.f32.mrb[0].mxu0
    %5677 = vdwg.mxu0
    %5678 = vrot.lane.b32.xlu0 %v4892, 64
    %v5679 = vpop.permute.xlu0 %5678
    %v5681 = vsel %vm498, %v5388, 0
    %v5684 = vsel %vm997, %v5679, 0
    %5686 = vmatprep.subr.bf16.mxu0 0
    %5687 = vmatpush1.bf16.msra.mxu0 %v5684
    %5688 = vmatprep.subr.bf16.mxu0 0
    %5689 = vmatpush1.bf16.msra.mxu0 0
    %5690 = vmatprep.subr.bf16.mxu0 0
    %5691 = vmatpush1.bf16.msra.mxu0 0
    %5692 = vmatprep.subr.bf16.mxu0 0
    %5693 = vmatpush1.bf16.msra.mxu0 0
    %5694 = vmatprep.subr.bf16.mxu0 0
    %5695 = vmatpush1.bf16.msra.mxu0 0
    %5696 = vmatprep.subr.bf16.mxu0 0
    %5697 = vmatpush1.bf16.msra.mxu0 0
    %5698 = vmatprep.subr.bf16.mxu0 0
    %5699 = vmatpush1.bf16.msra.mxu0 0
    %5700 = vmatprep.subr.bf16.mxu0 0
    %5701 = vmatpush1.bf16.msra.mxu0 0
    %5702 = vmatprep.subr.bf16.mxu0 0
    %5703 = vmatpush1.bf16.msra.mxu0 0
    %5704 = vmatprep.subr.bf16.mxu0 0
    %5705 = vmatpush1.bf16.msra.mxu0 0
    %5706 = vmatprep.subr.bf16.mxu0 0
    %5707 = vmatpush1.bf16.msra.mxu0 0
    %5708 = vmatprep.subr.bf16.mxu0 0
    %5709 = vmatpush1.bf16.msra.mxu0 0
    %5710 = vmatprep.subr.bf16.mxu0 0
    %5711 = vmatpush1.bf16.msra.mxu0 0
    %5712 = vmatprep.subr.bf16.mxu0 0
    %5713 = vmatpush1.bf16.msra.mxu0 0
    %5714 = vmatprep.subr.bf16.mxu0 0
    %5715 = vmatpush1.bf16.msra.mxu0 0
    %5716 = vmatprep.subr.bf16.mxu0 0
    %5717 = vmatpush1.bf16.msra.mxu0 0
    %5718 = vmatprep.mubr.bf16.mxu0 0
    %5719 = vmatmul.mubr.bf16.gmra.mrb[0].mxu0 %v5681
    %v5720 = vpop.f32.mrb[0].mxu0
    %v5721 = vadd.f32 0.0, %v5720
    %v5722 = vpop.f32.mrb[0].mxu0
    %v5723 = vpop.f32.mrb[0].mxu0
    %v5724 = vpop.f32.mrb[0].mxu0
    %5725 = vdwg.mxu0
    %5726 = vrot.lane.b32.xlu0 %v4893, 64
    %v5727 = vpop.permute.xlu0 %5726
    %v5729 = vsel %vm498, %v5389, 0
    %v5732 = vsel %vm997, %v5727, 0
    %5734 = vmatprep.subr.bf16.mxu0 0
    %5735 = vmatpush1.bf16.msra.mxu0 %v5732
    %5736 = vmatprep.subr.bf16.mxu0 0
    %5737 = vmatpush1.bf16.msra.mxu0 0
    %5738 = vmatprep.subr.bf16.mxu0 0
    %5739 = vmatpush1.bf16.msra.mxu0 0
    %5740 = vmatprep.subr.bf16.mxu0 0
    %5741 = vmatpush1.bf16.msra.mxu0 0
    %5742 = vmatprep.subr.bf16.mxu0 0
    %5743 = vmatpush1.bf16.msra.mxu0 0
    %5744 = vmatprep.subr.bf16.mxu0 0
    %5745 = vmatpush1.bf16.msra.mxu0 0
    %5746 = vmatprep.subr.bf16.mxu0 0
    %5747 = vmatpush1.bf16.msra.mxu0 0
    %5748 = vmatprep.subr.bf16.mxu0 0
    %5749 = vmatpush1.bf16.msra.mxu0 0
    %5750 = vmatprep.subr.bf16.mxu0 0
    %5751 = vmatpush1.bf16.msra.mxu0 0
    %5752 = vmatprep.subr.bf16.mxu0 0
    %5753 = vmatpush1.bf16.msra.mxu0 0
    %5754 = vmatprep.subr.bf16.mxu0 0
    %5755 = vmatpush1.bf16.msra.mxu0 0
    %5756 = vmatprep.subr.bf16.mxu0 0
    %5757 = vmatpush1.bf16.msra.mxu0 0
    %5758 = vmatprep.subr.bf16.mxu0 0
    %5759 = vmatpush1.bf16.msra.mxu0 0
    %5760 = vmatprep.subr.bf16.mxu0 0
    %5761 = vmatpush1.bf16.msra.mxu0 0
    %5762 = vmatprep.subr.bf16.mxu0 0
    %5763 = vmatpush1.bf16.msra.mxu0 0
    %5764 = vmatprep.subr.bf16.mxu0 0
    %5765 = vmatpush1.bf16.msra.mxu0 0
    %5766 = vmatprep.mubr.bf16.mxu0 0
    %5767 = vmatmul.mubr.bf16.gmra.mrb[0].mxu0 %v5729
    %v5768 = vpop.f32.mrb[0].mxu0
    %v5769 = vadd.f32 0.0, %v5768
    %v5770 = vpop.f32.mrb[0].mxu0
    %v5771 = vpop.f32.mrb[0].mxu0
    %v5772 = vpop.f32.mrb[0].mxu0
    %5773 = vdwg.mxu0
    %5774 = vrot.lane.b32.xlu0 %v4886, 120
    %v5775 = vpop.permute.xlu0 %5774
    %5776 = vrot.lane.b32.xlu0 %v4886, 88
    %v5777 = vpop.permute.xlu0 %5776
    %v5779 = vsel %vm498, %v5775, 0
    %v5782 = vsel %vm498, %v5777, 0
    %5784 = vmatprep.subr.bf16.mxu0 0
    %5785 = vmatpush1.bf16.xpose.msra.mxu0 %v5782
    %5786 = vmatprep.subr.bf16.mxu0 0
    %5787 = vmatpush1.bf16.xpose.msra.mxu0 0
    %5788 = vmatprep.subr.bf16.mxu0 0
    %5789 = vmatpush1.bf16.xpose.msra.mxu0 0
    %5790 = vmatprep.subr.bf16.mxu0 0
    %5791 = vmatpush1.bf16.xpose.msra.mxu0 0
    %5792 = vmatprep.subr.bf16.mxu0 0
    %5793 = vmatpush1.bf16.xpose.msra.mxu0 0
    %5794 = vmatprep.subr.bf16.mxu0 0
    %5795 = vmatpush1.bf16.xpose.msra.mxu0 0
    %5796 = vmatprep.subr.bf16.mxu0 0
    %5797 = vmatpush1.bf16.xpose.msra.mxu0 0
    %5798 = vmatprep.subr.bf16.mxu0 0
    %5799 = vmatpush1.bf16.xpose.msra.mxu0 0
    %5800 = vmatprep.subr.bf16.mxu0 0
    %5801 = vmatpush1.bf16.xpose.msra.mxu0 0
    %5802 = vmatprep.subr.bf16.mxu0 0
    %5803 = vmatpush1.bf16.xpose.msra.mxu0 0
    %5804 = vmatprep.subr.bf16.mxu0 0
    %5805 = vmatpush1.bf16.xpose.msra.mxu0 0
    %5806 = vmatprep.subr.bf16.mxu0 0
    %5807 = vmatpush1.bf16.xpose.msra.mxu0 0
    %5808 = vmatprep.subr.bf16.mxu0 0
    %5809 = vmatpush1.bf16.xpose.msra.mxu0 0
    %5810 = vmatprep.subr.bf16.mxu0 0
    %5811 = vmatpush1.bf16.xpose.msra.mxu0 0
    %5812 = vmatprep.subr.bf16.mxu0 0
    %5813 = vmatpush1.bf16.xpose.msra.mxu0 0
    %5814 = vmatprep.subr.bf16.mxu0 0
    %5815 = vmatpush1.bf16.xpose.msra.mxu0 0
    %5816 = vmatprep.mubr.bf16.mxu0 0
    %5817 = vmatmul.mubr.bf16.gmra.mrb[0].mxu0 %v5779
    %v5818 = vpop.f32.mrb[0].mxu0
    %v5819 = vadd.f32 0.0, %v5818
    %v5820 = vpop.f32.mrb[0].mxu0
    %v5821 = vpop.f32.mrb[0].mxu0
    %v5822 = vpop.f32.mrb[0].mxu0
    %5823 = vdwg.mxu0
    %5824 = vrot.lane.b32.xlu0 %v4887, 120
    %v5825 = vpop.permute.xlu0 %5824
    %5826 = vrot.lane.b32.xlu0 %v4887, 88
    %v5827 = vpop.permute.xlu0 %5826
    %v5829 = vsel %vm498, %v5825, 0
    %v5832 = vsel %vm498, %v5827, 0
    %5834 = vmatprep.subr.bf16.mxu0 0
    %5835 = vmatpush1.bf16.xpose.msra.mxu0 %v5832
    %5836 = vmatprep.subr.bf16.mxu0 0
    %5837 = vmatpush1.bf16.xpose.msra.mxu0 0
    %5838 = vmatprep.subr.bf16.mxu0 0
    %5839 = vmatpush1.bf16.xpose.msra.mxu0 0
    %5840 = vmatprep.subr.bf16.mxu0 0
    %5841 = vmatpush1.bf16.xpose.msra.mxu0 0
    %5842 = vmatprep.subr.bf16.mxu0 0
    %5843 = vmatpush1.bf16.xpose.msra.mxu0 0
    %5844 = vmatprep.subr.bf16.mxu0 0
    %5845 = vmatpush1.bf16.xpose.msra.mxu0 0
    %5846 = vmatprep.subr.bf16.mxu0 0
    %5847 = vmatpush1.bf16.xpose.msra.mxu0 0
    %5848 = vmatprep.subr.bf16.mxu0 0
    %5849 = vmatpush1.bf16.xpose.msra.mxu0 0
    %5850 = vmatprep.subr.bf16.mxu0 0
    %5851 = vmatpush1.bf16.xpose.msra.mxu0 0
    %5852 = vmatprep.subr.bf16.mxu0 0
    %5853 = vmatpush1.bf16.xpose.msra.mxu0 0
    %5854 = vmatprep.subr.bf16.mxu0 0
    %5855 = vmatpush1.bf16.xpose.msra.mxu0 0
    %5856 = vmatprep.subr.bf16.mxu0 0
    %5857 = vmatpush1.bf16.xpose.msra.mxu0 0
    %5858 = vmatprep.subr.bf16.mxu0 0
    %5859 = vmatpush1.bf16.xpose.msra.mxu0 0
    %5860 = vmatprep.subr.bf16.mxu0 0
    %5861 = vmatpush1.bf16.xpose.msra.mxu0 0
    %5862 = vmatprep.subr.bf16.mxu0 0
    %5863 = vmatpush1.bf16.xpose.msra.mxu0 0
    %5864 = vmatprep.subr.bf16.mxu0 0
    %5865 = vmatpush1.bf16.xpose.msra.mxu0 0
    %5866 = vmatprep.mubr.bf16.mxu0 0
    %5867 = vmatmul.mubr.bf16.gmra.mrb[0].mxu0 %v5829
    %v5868 = vpop.f32.mrb[0].mxu0
    %v5869 = vadd.f32 0.0, %v5868
    %v5870 = vpop.f32.mrb[0].mxu0
    %v5871 = vpop.f32.mrb[0].mxu0
    %v5872 = vpop.f32.mrb[0].mxu0
    %5873 = vdwg.mxu0
    %5874 = vrot.lane.b32.xlu0 %v4888, 120
    %v5875 = vpop.permute.xlu0 %5874
    %5876 = vrot.lane.b32.xlu0 %v4888, 88
    %v5877 = vpop.permute.xlu0 %5876
    %v5879 = vsel %vm498, %v5875, 0
    %v5882 = vsel %vm498, %v5877, 0
    %5884 = vmatprep.subr.bf16.mxu0 0
    %5885 = vmatpush1.bf16.xpose.msra.mxu0 %v5882
    %5886 = vmatprep.subr.bf16.mxu0 0
    %5887 = vmatpush1.bf16.xpose.msra.mxu0 0
    %5888 = vmatprep.subr.bf16.mxu0 0
    %5889 = vmatpush1.bf16.xpose.msra.mxu0 0
    %5890 = vmatprep.subr.bf16.mxu0 0
    %5891 = vmatpush1.bf16.xpose.msra.mxu0 0
    %5892 = vmatprep.subr.bf16.mxu0 0
    %5893 = vmatpush1.bf16.xpose.msra.mxu0 0
    %5894 = vmatprep.subr.bf16.mxu0 0
    %5895 = vmatpush1.bf16.xpose.msra.mxu0 0
    %5896 = vmatprep.subr.bf16.mxu0 0
    %5897 = vmatpush1.bf16.xpose.msra.mxu0 0
    %5898 = vmatprep.subr.bf16.mxu0 0
    %5899 = vmatpush1.bf16.xpose.msra.mxu0 0
    %5900 = vmatprep.subr.bf16.mxu0 0
    %5901 = vmatpush1.bf16.xpose.msra.mxu0 0
    %5902 = vmatprep.subr.bf16.mxu0 0
    %5903 = vmatpush1.bf16.xpose.msra.mxu0 0
    %5904 = vmatprep.subr.bf16.mxu0 0
    %5905 = vmatpush1.bf16.xpose.msra.mxu0 0
    %5906 = vmatprep.subr.bf16.mxu0 0
    %5907 = vmatpush1.bf16.xpose.msra.mxu0 0
    %5908 = vmatprep.subr.bf16.mxu0 0
    %5909 = vmatpush1.bf16.xpose.msra.mxu0 0
    %5910 = vmatprep.subr.bf16.mxu0 0
    %5911 = vmatpush1.bf16.xpose.msra.mxu0 0
    %5912 = vmatprep.subr.bf16.mxu0 0
    %5913 = vmatpush1.bf16.xpose.msra.mxu0 0
    %5914 = vmatprep.subr.bf16.mxu0 0
    %5915 = vmatpush1.bf16.xpose.msra.mxu0 0
    %5916 = vmatprep.mubr.bf16.mxu0 0
    %5917 = vmatmul.mubr.bf16.gmra.mrb[0].mxu0 %v5879
    %v5918 = vpop.f32.mrb[0].mxu0
    %v5919 = vadd.f32 0.0, %v5918
    %v5920 = vpop.f32.mrb[0].mxu0
    %v5921 = vpop.f32.mrb[0].mxu0
    %v5922 = vpop.f32.mrb[0].mxu0
    %5923 = vdwg.mxu0
    %5924 = vrot.lane.b32.xlu0 %v4889, 120
    %v5925 = vpop.permute.xlu0 %5924
    %5926 = vrot.lane.b32.xlu0 %v4889, 88
    %v5927 = vpop.permute.xlu0 %5926
    %v5929 = vsel %vm498, %v5925, 0
    %v5932 = vsel %vm498, %v5927, 0
    %5934 = vmatprep.subr.bf16.mxu0 0
    %5935 = vmatpush1.bf16.xpose.msra.mxu0 %v5932
    %5936 = vmatprep.subr.bf16.mxu0 0
    %5937 = vmatpush1.bf16.xpose.msra.mxu0 0
    %5938 = vmatprep.subr.bf16.mxu0 0
    %5939 = vmatpush1.bf16.xpose.msra.mxu0 0
    %5940 = vmatprep.subr.bf16.mxu0 0
    %5941 = vmatpush1.bf16.xpose.msra.mxu0 0
    %5942 = vmatprep.subr.bf16.mxu0 0
    %5943 = vmatpush1.bf16.xpose.msra.mxu0 0
    %5944 = vmatprep.subr.bf16.mxu0 0
    %5945 = vmatpush1.bf16.xpose.msra.mxu0 0
    %5946 = vmatprep.subr.bf16.mxu0 0
    %5947 = vmatpush1.bf16.xpose.msra.mxu0 0
    %5948 = vmatprep.subr.bf16.mxu0 0
    %5949 = vmatpush1.bf16.xpose.msra.mxu0 0
    %5950 = vmatprep.subr.bf16.mxu0 0
    %5951 = vmatpush1.bf16.xpose.msra.mxu0 0
    %5952 = vmatprep.subr.bf16.mxu0 0
    %5953 = vmatpush1.bf16.xpose.msra.mxu0 0
    %5954 = vmatprep.subr.bf16.mxu0 0
    %5955 = vmatpush1.bf16.xpose.msra.mxu0 0
    %5956 = vmatprep.subr.bf16.mxu0 0
    %5957 = vmatpush1.bf16.xpose.msra.mxu0 0
    %5958 = vmatprep.subr.bf16.mxu0 0
    %5959 = vmatpush1.bf16.xpose.msra.mxu0 0
    %5960 = vmatprep.subr.bf16.mxu0 0
    %5961 = vmatpush1.bf16.xpose.msra.mxu0 0
    %5962 = vmatprep.subr.bf16.mxu0 0
    %5963 = vmatpush1.bf16.xpose.msra.mxu0 0
    %5964 = vmatprep.subr.bf16.mxu0 0
    %5965 = vmatpush1.bf16.xpose.msra.mxu0 0
    %5966 = vmatprep.mubr.bf16.mxu0 0
    %5967 = vmatmul.mubr.bf16.gmra.mrb[0].mxu0 %v5929
    %v5968 = vpop.f32.mrb[0].mxu0
    %v5969 = vadd.f32 0.0, %v5968
    %v5970 = vpop.f32.mrb[0].mxu0
    %v5971 = vpop.f32.mrb[0].mxu0
    %v5972 = vpop.f32.mrb[0].mxu0
    %5973 = vdwg.mxu0
    %5974 = vrot.lane.b32.xlu0 %v4890, 120
    %v5975 = vpop.permute.xlu0 %5974
    %5976 = vrot.lane.b32.xlu0 %v4890, 88
    %v5977 = vpop.permute.xlu0 %5976
    %v5979 = vsel %vm498, %v5975, 0
    %v5982 = vsel %vm498, %v5977, 0
    %5984 = vmatprep.subr.bf16.mxu0 0
    %5985 = vmatpush1.bf16.xpose.msra.mxu0 %v5982
    %5986 = vmatprep.subr.bf16.mxu0 0
    %5987 = vmatpush1.bf16.xpose.msra.mxu0 0
    %5988 = vmatprep.subr.bf16.mxu0 0
    %5989 = vmatpush1.bf16.xpose.msra.mxu0 0
    %5990 = vmatprep.subr.bf16.mxu0 0
    %5991 = vmatpush1.bf16.xpose.msra.mxu0 0
    %5992 = vmatprep.subr.bf16.mxu0 0
    %5993 = vmatpush1.bf16.xpose.msra.mxu0 0
    %5994 = vmatprep.subr.bf16.mxu0 0
    %5995 = vmatpush1.bf16.xpose.msra.mxu0 0
    %5996 = vmatprep.subr.bf16.mxu0 0
    %5997 = vmatpush1.bf16.xpose.msra.mxu0 0
    %5998 = vmatprep.subr.bf16.mxu0 0
    %5999 = vmatpush1.bf16.xpose.msra.mxu0 0
    %6000 = vmatprep.subr.bf16.mxu0 0
    %6001 = vmatpush1.bf16.xpose.msra.mxu0 0
    %6002 = vmatprep.subr.bf16.mxu0 0
    %6003 = vmatpush1.bf16.xpose.msra.mxu0 0
    %6004 = vmatprep.subr.bf16.mxu0 0
    %6005 = vmatpush1.bf16.xpose.msra.mxu0 0
    %6006 = vmatprep.subr.bf16.mxu0 0
    %6007 = vmatpush1.bf16.xpose.msra.mxu0 0
    %6008 = vmatprep.subr.bf16.mxu0 0
    %6009 = vmatpush1.bf16.xpose.msra.mxu0 0
    %6010 = vmatprep.subr.bf16.mxu0 0
    %6011 = vmatpush1.bf16.xpose.msra.mxu0 0
    %6012 = vmatprep.subr.bf16.mxu0 0
    %6013 = vmatpush1.bf16.xpose.msra.mxu0 0
    %6014 = vmatprep.subr.bf16.mxu0 0
    %6015 = vmatpush1.bf16.xpose.msra.mxu0 0
    %6016 = vmatprep.mubr.bf16.mxu0 0
    %6017 = vmatmul.mubr.bf16.gmra.mrb[0].mxu0 %v5979
    %v6018 = vpop.f32.mrb[0].mxu0
    %v6019 = vadd.f32 0.0, %v6018
    %v6020 = vpop.f32.mrb[0].mxu0
    %v6021 = vpop.f32.mrb[0].mxu0
    %v6022 = vpop.f32.mrb[0].mxu0
    %6023 = vdwg.mxu0
    %6024 = vrot.lane.b32.xlu0 %v4891, 120
    %v6025 = vpop.permute.xlu0 %6024
    %6026 = vrot.lane.b32.xlu0 %v4891, 88
    %v6027 = vpop.permute.xlu0 %6026
    %v6029 = vsel %vm498, %v6025, 0
    %v6032 = vsel %vm498, %v6027, 0
    %6034 = vmatprep.subr.bf16.mxu0 0
    %6035 = vmatpush1.bf16.xpose.msra.mxu0 %v6032
    %6036 = vmatprep.subr.bf16.mxu0 0
    %6037 = vmatpush1.bf16.xpose.msra.mxu0 0
    %6038 = vmatprep.subr.bf16.mxu0 0
    %6039 = vmatpush1.bf16.xpose.msra.mxu0 0
    %6040 = vmatprep.subr.bf16.mxu0 0
    %6041 = vmatpush1.bf16.xpose.msra.mxu0 0
    %6042 = vmatprep.subr.bf16.mxu0 0
    %6043 = vmatpush1.bf16.xpose.msra.mxu0 0
    %6044 = vmatprep.subr.bf16.mxu0 0
    %6045 = vmatpush1.bf16.xpose.msra.mxu0 0
    %6046 = vmatprep.subr.bf16.mxu0 0
    %6047 = vmatpush1.bf16.xpose.msra.mxu0 0
    %6048 = vmatprep.subr.bf16.mxu0 0
    %6049 = vmatpush1.bf16.xpose.msra.mxu0 0
    %6050 = vmatprep.subr.bf16.mxu0 0
    %6051 = vmatpush1.bf16.xpose.msra.mxu0 0
    %6052 = vmatprep.subr.bf16.mxu0 0
    %6053 = vmatpush1.bf16.xpose.msra.mxu0 0
    %6054 = vmatprep.subr.bf16.mxu0 0
    %6055 = vmatpush1.bf16.xpose.msra.mxu0 0
    %6056 = vmatprep.subr.bf16.mxu0 0
    %6057 = vmatpush1.bf16.xpose.msra.mxu0 0
    %6058 = vmatprep.subr.bf16.mxu0 0
    %6059 = vmatpush1.bf16.xpose.msra.mxu0 0
    %6060 = vmatprep.subr.bf16.mxu0 0
    %6061 = vmatpush1.bf16.xpose.msra.mxu0 0
    %6062 = vmatprep.subr.bf16.mxu0 0
    %6063 = vmatpush1.bf16.xpose.msra.mxu0 0
    %6064 = vmatprep.subr.bf16.mxu0 0
    %6065 = vmatpush1.bf16.xpose.msra.mxu0 0
    %6066 = vmatprep.mubr.bf16.mxu0 0
    %6067 = vmatmul.mubr.bf16.gmra.mrb[0].mxu0 %v6029
    %v6068 = vpop.f32.mrb[0].mxu0
    %v6069 = vadd.f32 0.0, %v6068
    %v6070 = vpop.f32.mrb[0].mxu0
    %v6071 = vpop.f32.mrb[0].mxu0
    %v6072 = vpop.f32.mrb[0].mxu0
    %6073 = vdwg.mxu0
    %6074 = vrot.lane.b32.xlu0 %v4892, 120
    %v6075 = vpop.permute.xlu0 %6074
    %6076 = vrot.lane.b32.xlu0 %v4892, 88
    %v6077 = vpop.permute.xlu0 %6076
    %v6079 = vsel %vm498, %v6075, 0
    %v6082 = vsel %vm498, %v6077, 0
    %6084 = vmatprep.subr.bf16.mxu0 0
    %6085 = vmatpush1.bf16.xpose.msra.mxu0 %v6082
    %6086 = vmatprep.subr.bf16.mxu0 0
    %6087 = vmatpush1.bf16.xpose.msra.mxu0 0
    %6088 = vmatprep.subr.bf16.mxu0 0
    %6089 = vmatpush1.bf16.xpose.msra.mxu0 0
    %6090 = vmatprep.subr.bf16.mxu0 0
    %6091 = vmatpush1.bf16.xpose.msra.mxu0 0
    %6092 = vmatprep.subr.bf16.mxu0 0
    %6093 = vmatpush1.bf16.xpose.msra.mxu0 0
    %6094 = vmatprep.subr.bf16.mxu0 0
    %6095 = vmatpush1.bf16.xpose.msra.mxu0 0
    %6096 = vmatprep.subr.bf16.mxu0 0
    %6097 = vmatpush1.bf16.xpose.msra.mxu0 0
    %6098 = vmatprep.subr.bf16.mxu0 0
    %6099 = vmatpush1.bf16.xpose.msra.mxu0 0
    %6100 = vmatprep.subr.bf16.mxu0 0
    %6101 = vmatpush1.bf16.xpose.msra.mxu0 0
    %6102 = vmatprep.subr.bf16.mxu0 0
    %6103 = vmatpush1.bf16.xpose.msra.mxu0 0
    %6104 = vmatprep.subr.bf16.mxu0 0
    %6105 = vmatpush1.bf16.xpose.msra.mxu0 0
    %6106 = vmatprep.subr.bf16.mxu0 0
    %6107 = vmatpush1.bf16.xpose.msra.mxu0 0
    %6108 = vmatprep.subr.bf16.mxu0 0
    %6109 = vmatpush1.bf16.xpose.msra.mxu0 0
    %6110 = vmatprep.subr.bf16.mxu0 0
    %6111 = vmatpush1.bf16.xpose.msra.mxu0 0
    %6112 = vmatprep.subr.bf16.mxu0 0
    %6113 = vmatpush1.bf16.xpose.msra.mxu0 0
    %6114 = vmatprep.subr.bf16.mxu0 0
    %6115 = vmatpush1.bf16.xpose.msra.mxu0 0
    %6116 = vmatprep.mubr.bf16.mxu0 0
    %6117 = vmatmul.mubr.bf16.gmra.mrb[0].mxu0 %v6079
    %v6118 = vpop.f32.mrb[0].mxu0
    %v6119 = vadd.f32 0.0, %v6118
    %v6120 = vpop.f32.mrb[0].mxu0
    %v6121 = vpop.f32.mrb[0].mxu0
    %v6122 = vpop.f32.mrb[0].mxu0
    %6123 = vdwg.mxu0
    %6124 = vrot.lane.b32.xlu0 %v4893, 120
    %v6125 = vpop.permute.xlu0 %6124
    %6126 = vrot.lane.b32.xlu0 %v4893, 88
    %v6127 = vpop.permute.xlu0 %6126
    %v6129 = vsel %vm498, %v6125, 0
    %v6132 = vsel %vm498, %v6127, 0
    %6134 = vmatprep.subr.bf16.mxu0 0
    %6135 = vmatpush1.bf16.xpose.msra.mxu0 %v6132
    %6136 = vmatprep.subr.bf16.mxu0 0
    %6137 = vmatpush1.bf16.xpose.msra.mxu0 0
    %6138 = vmatprep.subr.bf16.mxu0 0
    %6139 = vmatpush1.bf16.xpose.msra.mxu0 0
    %6140 = vmatprep.subr.bf16.mxu0 0
    %6141 = vmatpush1.bf16.xpose.msra.mxu0 0
    %6142 = vmatprep.subr.bf16.mxu0 0
    %6143 = vmatpush1.bf16.xpose.msra.mxu0 0
    %6144 = vmatprep.subr.bf16.mxu0 0
    %6145 = vmatpush1.bf16.xpose.msra.mxu0 0
    %6146 = vmatprep.subr.bf16.mxu0 0
    %6147 = vmatpush1.bf16.xpose.msra.mxu0 0
    %6148 = vmatprep.subr.bf16.mxu0 0
    %6149 = vmatpush1.bf16.xpose.msra.mxu0 0
    %6150 = vmatprep.subr.bf16.mxu0 0
    %6151 = vmatpush1.bf16.xpose.msra.mxu0 0
    %6152 = vmatprep.subr.bf16.mxu0 0
    %6153 = vmatpush1.bf16.xpose.msra.mxu0 0
    %6154 = vmatprep.subr.bf16.mxu0 0
    %6155 = vmatpush1.bf16.xpose.msra.mxu0 0
    %6156 = vmatprep.subr.bf16.mxu0 0
    %6157 = vmatpush1.bf16.xpose.msra.mxu0 0
    %6158 = vmatprep.subr.bf16.mxu0 0
    %6159 = vmatpush1.bf16.xpose.msra.mxu0 0
    %6160 = vmatprep.subr.bf16.mxu0 0
    %6161 = vmatpush1.bf16.xpose.msra.mxu0 0
    %6162 = vmatprep.subr.bf16.mxu0 0
    %6163 = vmatpush1.bf16.xpose.msra.mxu0 0
    %6164 = vmatprep.subr.bf16.mxu0 0
    %6165 = vmatpush1.bf16.xpose.msra.mxu0 0
    %6166 = vmatprep.mubr.bf16.mxu0 0
    %6167 = vmatmul.mubr.bf16.gmra.mrb[0].mxu0 %v6129
    %v6168 = vpop.f32.mrb[0].mxu0
    %v6169 = vadd.f32 0.0, %v6168
    %v6170 = vpop.f32.mrb[0].mxu0
    %v6171 = vpop.f32.mrb[0].mxu0
    %v6172 = vpop.f32.mrb[0].mxu0
    %6173 = vdwg.mxu0
    %v6174 = vmul.f32 %v5819, 0.35355338
    %v6175 = vmul.f32 %v5869, 0.35355338
    %v6176 = vmul.f32 %v5919, 0.35355338
    %v6177 = vmul.f32 %v5969, 0.35355338
    %v6178 = vmul.f32 %v6019, 0.35355338
    %v6179 = vmul.f32 %v6069, 0.35355338
    %v6180 = vmul.f32 %v6119, 0.35355338
    %v6181 = vmul.f32 %v6169, 0.35355338
    %v6182 = vsel %vm498, %v6174, -inf
    %6183 = vmax.xlane.f32.xlu0 %v6182
    %v6184 = vpop.xlane.xlu0 %6183
    %v6185 = vsel %vm498, %v6175, -inf
    %6186 = vmax.xlane.f32.xlu0 %v6185
    %v6187 = vpop.xlane.xlu0 %6186
    %v6188 = vsel %vm498, %v6176, -inf
    %6189 = vmax.xlane.f32.xlu0 %v6188
    %v6190 = vpop.xlane.xlu0 %6189
    %v6191 = vsel %vm498, %v6177, -inf
    %6192 = vmax.xlane.f32.xlu0 %v6191
    %v6193 = vpop.xlane.xlu0 %6192
    %v6194 = vsel %vm498, %v6178, -inf
    %6195 = vmax.xlane.f32.xlu0 %v6194
    %v6196 = vpop.xlane.xlu0 %6195
    %v6197 = vsel %vm498, %v6179, -inf
    %6198 = vmax.xlane.f32.xlu0 %v6197
    %v6199 = vpop.xlane.xlu0 %6198
    %v6200 = vsel %vm498, %v6180, -inf
    %6201 = vmax.xlane.f32.xlu0 %v6200
    %v6202 = vpop.xlane.xlu0 %6201
    %v6203 = vsel %vm498, %v6181, -inf
    %6204 = vmax.xlane.f32.xlu0 %v6203
    %v6205 = vpop.xlane.xlu0 %6204
    %v6206 = vsub.f32 %v6174, %v6184
    %v6207 = vsub.f32 %v6175, %v6187
    %v6208 = vsub.f32 %v6176, %v6190
    %v6209 = vsub.f32 %v6177, %v6193
    %v6210 = vsub.f32 %v6178, %v6196
    %v6211 = vsub.f32 %v6179, %v6199
    %v6212 = vsub.f32 %v6180, %v6202
    %v6213 = vsub.f32 %v6181, %v6205
    %v6214 = vmul.f32 %v6206, 1.442695
    %v6215 = vpow.pop %v6214
    %v6216 = vmul.f32 %v6207, 1.442695
    %v6217 = vpow.pop %v6216
    %v6218 = vmul.f32 %v6208, 1.442695
    %v6219 = vpow.pop %v6218
    %v6220 = vmul.f32 %v6209, 1.442695
    %v6221 = vpow.pop %v6220
    %v6222 = vmul.f32 %v6210, 1.442695
    %v6223 = vpow.pop %v6222
    %v6224 = vmul.f32 %v6211, 1.442695
    %v6225 = vpow.pop %v6224
    %v6226 = vmul.f32 %v6212, 1.442695
    %v6227 = vpow.pop %v6226
    %v6228 = vmul.f32 %v6213, 1.442695
    %v6229 = vpow.pop %v6228
    %v6230 = vsel %vm498, %v6215, 0.0
    %6231 = vadd.xlane.f32.xlu0 %v6230
    %v6232 = vpop.xlane.xlu0 %6231
    %v6233 = vsel %vm498, %v6217, 0.0
    %6234 = vadd.xlane.f32.xlu0 %v6233
    %v6235 = vpop.xlane.xlu0 %6234
    %v6236 = vsel %vm498, %v6219, 0.0
    %6237 = vadd.xlane.f32.xlu0 %v6236
    %v6238 = vpop.xlane.xlu0 %6237
    %v6239 = vsel %vm498, %v6221, 0.0
    %6240 = vadd.xlane.f32.xlu0 %v6239
    %v6241 = vpop.xlane.xlu0 %6240
    %v6242 = vsel %vm498, %v6223, 0.0
    %6243 = vadd.xlane.f32.xlu0 %v6242
    %v6244 = vpop.xlane.xlu0 %6243
    %v6245 = vsel %vm498, %v6225, 0.0
    %6246 = vadd.xlane.f32.xlu0 %v6245
    %v6247 = vpop.xlane.xlu0 %6246
    %v6248 = vsel %vm498, %v6227, 0.0
    %6249 = vadd.xlane.f32.xlu0 %v6248
    %v6250 = vpop.xlane.xlu0 %6249
    %v6251 = vsel %vm498, %v6229, 0.0
    %6252 = vadd.xlane.f32.xlu0 %v6251
    %v6253 = vpop.xlane.xlu0 %6252
    %v6254 = vrcp.pop %v6232
    %v6255 = vrcp.pop %v6235
    %v6256 = vrcp.pop %v6238
    %v6257 = vrcp.pop %v6241
    %v6258 = vrcp.pop %v6244
    %v6259 = vrcp.pop %v6247
    %v6260 = vrcp.pop %v6250
    %v6261 = vrcp.pop %v6253
    %v6262 = vmul.f32 %v6215, %v6254
    %v6263 = vmul.f32 %v6217, %v6255
    %v6264 = vmul.f32 %v6219, %v6256
    %v6265 = vmul.f32 %v6221, %v6257
    %v6266 = vmul.f32 %v6223, %v6258
    %v6267 = vmul.f32 %v6225, %v6259
    %v6268 = vmul.f32 %v6227, %v6260
    %v6269 = vmul.f32 %v6229, %v6261
    %v6270 = vpack.c.bf16 %v6262, %v6262
    %v6271 = vpack.c.bf16 %v6263, %v6263
    %v6272 = vpack.c.bf16 %v6264, %v6264
    %v6273 = vpack.c.bf16 %v6265, %v6265
    %v6274 = vpack.c.bf16 %v6266, %v6266
    %v6275 = vpack.c.bf16 %v6267, %v6267
    %v6276 = vpack.c.bf16 %v6268, %v6268
    %v6277 = vpack.c.bf16 %v6269, %v6269
    %6278 = vrot.lane.b32.xlu0 %v4886, 56
    %v6279 = vpop.permute.xlu0 %6278
    %v6281 = vsel %vm498, %v6270, 0
    %v6284 = vsel %vm997, %v6279, 0
    %6286 = vmatprep.subr.bf16.mxu0 0
    %6287 = vmatpush1.bf16.msra.mxu0 %v6284
    %6288 = vmatprep.subr.bf16.mxu0 0
    %6289 = vmatpush1.bf16.msra.mxu0 0
    %6290 = vmatprep.subr.bf16.mxu0 0
    %6291 = vmatpush1.bf16.msra.mxu0 0
    %6292 = vmatprep.subr.bf16.mxu0 0
    %6293 = vmatpush1.bf16.msra.mxu0 0
    %6294 = vmatprep.subr.bf16.mxu0 0
    %6295 = vmatpush1.bf16.msra.mxu0 0
    %6296 = vmatprep.subr.bf16.mxu0 0
    %6297 = vmatpush1.bf16.msra.mxu0 0
    %6298 = vmatprep.subr.bf16.mxu0 0
    %6299 = vmatpush1.bf16.msra.mxu0 0
    %6300 = vmatprep.subr.bf16.mxu0 0
    %6301 = vmatpush1.bf16.msra.mxu0 0
    %6302 = vmatprep.subr.bf16.mxu0 0
    %6303 = vmatpush1.bf16.msra.mxu0 0
    %6304 = vmatprep.subr.bf16.mxu0 0
    %6305 = vmatpush1.bf16.msra.mxu0 0
    %6306 = vmatprep.subr.bf16.mxu0 0
    %6307 = vmatpush1.bf16.msra.mxu0 0
    %6308 = vmatprep.subr.bf16.mxu0 0
    %6309 = vmatpush1.bf16.msra.mxu0 0
    %6310 = vmatprep.subr.bf16.mxu0 0
    %6311 = vmatpush1.bf16.msra.mxu0 0
    %6312 = vmatprep.subr.bf16.mxu0 0
    %6313 = vmatpush1.bf16.msra.mxu0 0
    %6314 = vmatprep.subr.bf16.mxu0 0
    %6315 = vmatpush1.bf16.msra.mxu0 0
    %6316 = vmatprep.subr.bf16.mxu0 0
    %6317 = vmatpush1.bf16.msra.mxu0 0
    %6318 = vmatprep.mubr.bf16.mxu0 0
    %6319 = vmatmul.mubr.bf16.gmra.mrb[0].mxu0 %v6281
    %v6320 = vpop.f32.mrb[0].mxu0
    %v6321 = vadd.f32 0.0, %v6320
    %v6322 = vpop.f32.mrb[0].mxu0
    %v6323 = vpop.f32.mrb[0].mxu0
    %v6324 = vpop.f32.mrb[0].mxu0
    %6325 = vdwg.mxu0
    %6326 = vrot.lane.b32.xlu0 %v4887, 56
    %v6327 = vpop.permute.xlu0 %6326
    %v6329 = vsel %vm498, %v6271, 0
    %v6332 = vsel %vm997, %v6327, 0
    %6334 = vmatprep.subr.bf16.mxu0 0
    %6335 = vmatpush1.bf16.msra.mxu0 %v6332
    %6336 = vmatprep.subr.bf16.mxu0 0
    %6337 = vmatpush1.bf16.msra.mxu0 0
    %6338 = vmatprep.subr.bf16.mxu0 0
    %6339 = vmatpush1.bf16.msra.mxu0 0
    %6340 = vmatprep.subr.bf16.mxu0 0
    %6341 = vmatpush1.bf16.msra.mxu0 0
    %6342 = vmatprep.subr.bf16.mxu0 0
    %6343 = vmatpush1.bf16.msra.mxu0 0
    %6344 = vmatprep.subr.bf16.mxu0 0
    %6345 = vmatpush1.bf16.msra.mxu0 0
    %6346 = vmatprep.subr.bf16.mxu0 0
    %6347 = vmatpush1.bf16.msra.mxu0 0
    %6348 = vmatprep.subr.bf16.mxu0 0
    %6349 = vmatpush1.bf16.msra.mxu0 0
    %6350 = vmatprep.subr.bf16.mxu0 0
    %6351 = vmatpush1.bf16.msra.mxu0 0
    %6352 = vmatprep.subr.bf16.mxu0 0
    %6353 = vmatpush1.bf16.msra.mxu0 0
    %6354 = vmatprep.subr.bf16.mxu0 0
    %6355 = vmatpush1.bf16.msra.mxu0 0
    %6356 = vmatprep.subr.bf16.mxu0 0
    %6357 = vmatpush1.bf16.msra.mxu0 0
    %6358 = vmatprep.subr.bf16.mxu0 0
    %6359 = vmatpush1.bf16.msra.mxu0 0
    %6360 = vmatprep.subr.bf16.mxu0 0
    %6361 = vmatpush1.bf16.msra.mxu0 0
    %6362 = vmatprep.subr.bf16.mxu0 0
    %6363 = vmatpush1.bf16.msra.mxu0 0
    %6364 = vmatprep.subr.bf16.mxu0 0
    %6365 = vmatpush1.bf16.msra.mxu0 0
    %6366 = vmatprep.mubr.bf16.mxu0 0
    %6367 = vmatmul.mubr.bf16.gmra.mrb[0].mxu0 %v6329
    %v6368 = vpop.f32.mrb[0].mxu0
    %v6369 = vadd.f32 0.0, %v6368
    %v6370 = vpop.f32.mrb[0].mxu0
    %v6371 = vpop.f32.mrb[0].mxu0
    %v6372 = vpop.f32.mrb[0].mxu0
    %6373 = vdwg.mxu0
    %6374 = vrot.lane.b32.xlu0 %v4888, 56
    %v6375 = vpop.permute.xlu0 %6374
    %v6377 = vsel %vm498, %v6272, 0
    %v6380 = vsel %vm997, %v6375, 0
    %6382 = vmatprep.subr.bf16.mxu0 0
    %6383 = vmatpush1.bf16.msra.mxu0 %v6380
    %6384 = vmatprep.subr.bf16.mxu0 0
    %6385 = vmatpush1.bf16.msra.mxu0 0
    %6386 = vmatprep.subr.bf16.mxu0 0
    %6387 = vmatpush1.bf16.msra.mxu0 0
    %6388 = vmatprep.subr.bf16.mxu0 0
    %6389 = vmatpush1.bf16.msra.mxu0 0
    %6390 = vmatprep.subr.bf16.mxu0 0
    %6391 = vmatpush1.bf16.msra.mxu0 0
    %6392 = vmatprep.subr.bf16.mxu0 0
    %6393 = vmatpush1.bf16.msra.mxu0 0
    %6394 = vmatprep.subr.bf16.mxu0 0
    %6395 = vmatpush1.bf16.msra.mxu0 0
    %6396 = vmatprep.subr.bf16.mxu0 0
    %6397 = vmatpush1.bf16.msra.mxu0 0
    %6398 = vmatprep.subr.bf16.mxu0 0
    %6399 = vmatpush1.bf16.msra.mxu0 0
    %6400 = vmatprep.subr.bf16.mxu0 0
    %6401 = vmatpush1.bf16.msra.mxu0 0
    %6402 = vmatprep.subr.bf16.mxu0 0
    %6403 = vmatpush1.bf16.msra.mxu0 0
    %6404 = vmatprep.subr.bf16.mxu0 0
    %6405 = vmatpush1.bf16.msra.mxu0 0
    %6406 = vmatprep.subr.bf16.mxu0 0
    %6407 = vmatpush1.bf16.msra.mxu0 0
    %6408 = vmatprep.subr.bf16.mxu0 0
    %6409 = vmatpush1.bf16.msra.mxu0 0
    %6410 = vmatprep.subr.bf16.mxu0 0
    %6411 = vmatpush1.bf16.msra.mxu0 0
    %6412 = vmatprep.subr.bf16.mxu0 0
    %6413 = vmatpush1.bf16.msra.mxu0 0
    %6414 = vmatprep.mubr.bf16.mxu0 0
    %6415 = vmatmul.mubr.bf16.gmra.mrb[0].mxu0 %v6377
    %v6416 = vpop.f32.mrb[0].mxu0
    %v6417 = vadd.f32 0.0, %v6416
    %v6418 = vpop.f32.mrb[0].mxu0
    %v6419 = vpop.f32.mrb[0].mxu0
    %v6420 = vpop.f32.mrb[0].mxu0
    %6421 = vdwg.mxu0
    %6422 = vrot.lane.b32.xlu0 %v4889, 56
    %v6423 = vpop.permute.xlu0 %6422
    %v6425 = vsel %vm498, %v6273, 0
    %v6428 = vsel %vm997, %v6423, 0
    %6430 = vmatprep.subr.bf16.mxu0 0
    %6431 = vmatpush1.bf16.msra.mxu0 %v6428
    %6432 = vmatprep.subr.bf16.mxu0 0
    %6433 = vmatpush1.bf16.msra.mxu0 0
    %6434 = vmatprep.subr.bf16.mxu0 0
    %6435 = vmatpush1.bf16.msra.mxu0 0
    %6436 = vmatprep.subr.bf16.mxu0 0
    %6437 = vmatpush1.bf16.msra.mxu0 0
    %6438 = vmatprep.subr.bf16.mxu0 0
    %6439 = vmatpush1.bf16.msra.mxu0 0
    %6440 = vmatprep.subr.bf16.mxu0 0
    %6441 = vmatpush1.bf16.msra.mxu0 0
    %6442 = vmatprep.subr.bf16.mxu0 0
    %6443 = vmatpush1.bf16.msra.mxu0 0
    %6444 = vmatprep.subr.bf16.mxu0 0
    %6445 = vmatpush1.bf16.msra.mxu0 0
    %6446 = vmatprep.subr.bf16.mxu0 0
    %6447 = vmatpush1.bf16.msra.mxu0 0
    %6448 = vmatprep.subr.bf16.mxu0 0
    %6449 = vmatpush1.bf16.msra.mxu0 0
    %6450 = vmatprep.subr.bf16.mxu0 0
    %6451 = vmatpush1.bf16.msra.mxu0 0
    %6452 = vmatprep.subr.bf16.mxu0 0
    %6453 = vmatpush1.bf16.msra.mxu0 0
    %6454 = vmatprep.subr.bf16.mxu0 0
    %6455 = vmatpush1.bf16.msra.mxu0 0
    %6456 = vmatprep.subr.bf16.mxu0 0
    %6457 = vmatpush1.bf16.msra.mxu0 0
    %6458 = vmatprep.subr.bf16.mxu0 0
    %6459 = vmatpush1.bf16.msra.mxu0 0
    %6460 = vmatprep.subr.bf16.mxu0 0
    %6461 = vmatpush1.bf16.msra.mxu0 0
    %6462 = vmatprep.mubr.bf16.mxu0 0
    %6463 = vmatmul.mubr.bf16.gmra.mrb[0].mxu0 %v6425
    %v6464 = vpop.f32.mrb[0].mxu0
    %v6465 = vadd.f32 0.0, %v6464
    %v6466 = vpop.f32.mrb[0].mxu0
    %v6467 = vpop.f32.mrb[0].mxu0
    %v6468 = vpop.f32.mrb[0].mxu0
    %6469 = vdwg.mxu0
    %6470 = vrot.lane.b32.xlu0 %v4890, 56
    %v6471 = vpop.permute.xlu0 %6470
    %v6473 = vsel %vm498, %v6274, 0
    %v6476 = vsel %vm997, %v6471, 0
    %6478 = vmatprep.subr.bf16.mxu0 0
    %6479 = vmatpush1.bf16.msra.mxu0 %v6476
    %6480 = vmatprep.subr.bf16.mxu0 0
    %6481 = vmatpush1.bf16.msra.mxu0 0
    %6482 = vmatprep.subr.bf16.mxu0 0
    %6483 = vmatpush1.bf16.msra.mxu0 0
    %6484 = vmatprep.subr.bf16.mxu0 0
    %6485 = vmatpush1.bf16.msra.mxu0 0
    %6486 = vmatprep.subr.bf16.mxu0 0
    %6487 = vmatpush1.bf16.msra.mxu0 0
    %6488 = vmatprep.subr.bf16.mxu0 0
    %6489 = vmatpush1.bf16.msra.mxu0 0
    %6490 = vmatprep.subr.bf16.mxu0 0
    %6491 = vmatpush1.bf16.msra.mxu0 0
    %6492 = vmatprep.subr.bf16.mxu0 0
    %6493 = vmatpush1.bf16.msra.mxu0 0
    %6494 = vmatprep.subr.bf16.mxu0 0
    %6495 = vmatpush1.bf16.msra.mxu0 0
    %6496 = vmatprep.subr.bf16.mxu0 0
    %6497 = vmatpush1.bf16.msra.mxu0 0
    %6498 = vmatprep.subr.bf16.mxu0 0
    %6499 = vmatpush1.bf16.msra.mxu0 0
    %6500 = vmatprep.subr.bf16.mxu0 0
    %6501 = vmatpush1.bf16.msra.mxu0 0
    %6502 = vmatprep.subr.bf16.mxu0 0
    %6503 = vmatpush1.bf16.msra.mxu0 0
    %6504 = vmatprep.subr.bf16.mxu0 0
    %6505 = vmatpush1.bf16.msra.mxu0 0
    %6506 = vmatprep.subr.bf16.mxu0 0
    %6507 = vmatpush1.bf16.msra.mxu0 0
    %6508 = vmatprep.subr.bf16.mxu0 0
    %6509 = vmatpush1.bf16.msra.mxu0 0
    %6510 = vmatprep.mubr.bf16.mxu0 0
    %6511 = vmatmul.mubr.bf16.gmra.mrb[0].mxu0 %v6473
    %v6512 = vpop.f32.mrb[0].mxu0
    %v6513 = vadd.f32 0.0, %v6512
    %v6514 = vpop.f32.mrb[0].mxu0
    %v6515 = vpop.f32.mrb[0].mxu0
    %v6516 = vpop.f32.mrb[0].mxu0
    %6517 = vdwg.mxu0
    %6518 = vrot.lane.b32.xlu0 %v4891, 56
    %v6519 = vpop.permute.xlu0 %6518
    %v6521 = vsel %vm498, %v6275, 0
    %v6524 = vsel %vm997, %v6519, 0
    %6526 = vmatprep.subr.bf16.mxu0 0
    %6527 = vmatpush1.bf16.msra.mxu0 %v6524
    %6528 = vmatprep.subr.bf16.mxu0 0
    %6529 = vmatpush1.bf16.msra.mxu0 0
    %6530 = vmatprep.subr.bf16.mxu0 0
    %6531 = vmatpush1.bf16.msra.mxu0 0
    %6532 = vmatprep.subr.bf16.mxu0 0
    %6533 = vmatpush1.bf16.msra.mxu0 0
    %6534 = vmatprep.subr.bf16.mxu0 0
    %6535 = vmatpush1.bf16.msra.mxu0 0
    %6536 = vmatprep.subr.bf16.mxu0 0
    %6537 = vmatpush1.bf16.msra.mxu0 0
    %6538 = vmatprep.subr.bf16.mxu0 0
    %6539 = vmatpush1.bf16.msra.mxu0 0
    %6540 = vmatprep.subr.bf16.mxu0 0
    %6541 = vmatpush1.bf16.msra.mxu0 0
    %6542 = vmatprep.subr.bf16.mxu0 0
    %6543 = vmatpush1.bf16.msra.mxu0 0
    %6544 = vmatprep.subr.bf16.mxu0 0
    %6545 = vmatpush1.bf16.msra.mxu0 0
    %6546 = vmatprep.subr.bf16.mxu0 0
    %6547 = vmatpush1.bf16.msra.mxu0 0
    %6548 = vmatprep.subr.bf16.mxu0 0
    %6549 = vmatpush1.bf16.msra.mxu0 0
    %6550 = vmatprep.subr.bf16.mxu0 0
    %6551 = vmatpush1.bf16.msra.mxu0 0
    %6552 = vmatprep.subr.bf16.mxu0 0
    %6553 = vmatpush1.bf16.msra.mxu0 0
    %6554 = vmatprep.subr.bf16.mxu0 0
    %6555 = vmatpush1.bf16.msra.mxu0 0
    %6556 = vmatprep.subr.bf16.mxu0 0
    %6557 = vmatpush1.bf16.msra.mxu0 0
    %6558 = vmatprep.mubr.bf16.mxu0 0
    %6559 = vmatmul.mubr.bf16.gmra.mrb[0].mxu0 %v6521
    %v6560 = vpop.f32.mrb[0].mxu0
    %v6561 = vadd.f32 0.0, %v6560
    %v6562 = vpop.f32.mrb[0].mxu0
    %v6563 = vpop.f32.mrb[0].mxu0
    %v6564 = vpop.f32.mrb[0].mxu0
    %6565 = vdwg.mxu0
    %6566 = vrot.lane.b32.xlu0 %v4892, 56
    %v6567 = vpop.permute.xlu0 %6566
    %v6569 = vsel %vm498, %v6276, 0
    %v6572 = vsel %vm997, %v6567, 0
    %6574 = vmatprep.subr.bf16.mxu0 0
    %6575 = vmatpush1.bf16.msra.mxu0 %v6572
    %6576 = vmatprep.subr.bf16.mxu0 0
    %6577 = vmatpush1.bf16.msra.mxu0 0
    %6578 = vmatprep.subr.bf16.mxu0 0
    %6579 = vmatpush1.bf16.msra.mxu0 0
    %6580 = vmatprep.subr.bf16.mxu0 0
    %6581 = vmatpush1.bf16.msra.mxu0 0
    %6582 = vmatprep.subr.bf16.mxu0 0
    %6583 = vmatpush1.bf16.msra.mxu0 0
    %6584 = vmatprep.subr.bf16.mxu0 0
    %6585 = vmatpush1.bf16.msra.mxu0 0
    %6586 = vmatprep.subr.bf16.mxu0 0
    %6587 = vmatpush1.bf16.msra.mxu0 0
    %6588 = vmatprep.subr.bf16.mxu0 0
    %6589 = vmatpush1.bf16.msra.mxu0 0
    %6590 = vmatprep.subr.bf16.mxu0 0
    %6591 = vmatpush1.bf16.msra.mxu0 0
    %6592 = vmatprep.subr.bf16.mxu0 0
    %6593 = vmatpush1.bf16.msra.mxu0 0
    %6594 = vmatprep.subr.bf16.mxu0 0
    %6595 = vmatpush1.bf16.msra.mxu0 0
    %6596 = vmatprep.subr.bf16.mxu0 0
    %6597 = vmatpush1.bf16.msra.mxu0 0
    %6598 = vmatprep.subr.bf16.mxu0 0
    %6599 = vmatpush1.bf16.msra.mxu0 0
    %6600 = vmatprep.subr.bf16.mxu0 0
    %6601 = vmatpush1.bf16.msra.mxu0 0
    %6602 = vmatprep.subr.bf16.mxu0 0
    %6603 = vmatpush1.bf16.msra.mxu0 0
    %6604 = vmatprep.subr.bf16.mxu0 0
    %6605 = vmatpush1.bf16.msra.mxu0 0
    %6606 = vmatprep.mubr.bf16.mxu0 0
    %6607 = vmatmul.mubr.bf16.gmra.mrb[0].mxu0 %v6569
    %v6608 = vpop.f32.mrb[0].mxu0
    %v6609 = vadd.f32 0.0, %v6608
    %v6610 = vpop.f32.mrb[0].mxu0
    %v6611 = vpop.f32.mrb[0].mxu0
    %v6612 = vpop.f32.mrb[0].mxu0
    %6613 = vdwg.mxu0
    %6614 = vrot.lane.b32.xlu0 %v4893, 56
    %v6615 = vpop.permute.xlu0 %6614
    %v6617 = vsel %vm498, %v6277, 0
    %v6620 = vsel %vm997, %v6615, 0
    %6622 = vmatprep.subr.bf16.mxu0 0
    %6623 = vmatpush1.bf16.msra.mxu0 %v6620
    %6624 = vmatprep.subr.bf16.mxu0 0
    %6625 = vmatpush1.bf16.msra.mxu0 0
    %6626 = vmatprep.subr.bf16.mxu0 0
    %6627 = vmatpush1.bf16.msra.mxu0 0
    %6628 = vmatprep.subr.bf16.mxu0 0
    %6629 = vmatpush1.bf16.msra.mxu0 0
    %6630 = vmatprep.subr.bf16.mxu0 0
    %6631 = vmatpush1.bf16.msra.mxu0 0
    %6632 = vmatprep.subr.bf16.mxu0 0
    %6633 = vmatpush1.bf16.msra.mxu0 0
    %6634 = vmatprep.subr.bf16.mxu0 0
    %6635 = vmatpush1.bf16.msra.mxu0 0
    %6636 = vmatprep.subr.bf16.mxu0 0
    %6637 = vmatpush1.bf16.msra.mxu0 0
    %6638 = vmatprep.subr.bf16.mxu0 0
    %6639 = vmatpush1.bf16.msra.mxu0 0
    %6640 = vmatprep.subr.bf16.mxu0 0
    %6641 = vmatpush1.bf16.msra.mxu0 0
    %6642 = vmatprep.subr.bf16.mxu0 0
    %6643 = vmatpush1.bf16.msra.mxu0 0
    %6644 = vmatprep.subr.bf16.mxu0 0
    %6645 = vmatpush1.bf16.msra.mxu0 0
    %6646 = vmatprep.subr.bf16.mxu0 0
    %6647 = vmatpush1.bf16.msra.mxu0 0
    %6648 = vmatprep.subr.bf16.mxu0 0
    %6649 = vmatpush1.bf16.msra.mxu0 0
    %6650 = vmatprep.subr.bf16.mxu0 0
    %6651 = vmatpush1.bf16.msra.mxu0 0
    %6652 = vmatprep.subr.bf16.mxu0 0
    %6653 = vmatpush1.bf16.msra.mxu0 0
    %6654 = vmatprep.mubr.bf16.mxu0 0
    %6655 = vmatmul.mubr.bf16.gmra.mrb[0].mxu0 %v6617
    %v6656 = vpop.f32.mrb[0].mxu0
    %v6657 = vadd.f32 0.0, %v6656
    %v6658 = vpop.f32.mrb[0].mxu0
    %v6659 = vpop.f32.mrb[0].mxu0
    %v6660 = vpop.f32.mrb[0].mxu0
    %6661 = vdwg.mxu0
    %6662 = vrot.lane.b32.xlu0 %v4886, 112
    %v6663 = vpop.permute.xlu0 %6662
    %6664 = vrot.lane.b32.xlu0 %v4886, 80
    %v6665 = vpop.permute.xlu0 %6664
    %v6667 = vsel %vm498, %v6663, 0
    %v6670 = vsel %vm498, %v6665, 0
    %6672 = vmatprep.subr.bf16.mxu0 0
    %6673 = vmatpush1.bf16.xpose.msra.mxu0 %v6670
    %6674 = vmatprep.subr.bf16.mxu0 0
    %6675 = vmatpush1.bf16.xpose.msra.mxu0 0
    %6676 = vmatprep.subr.bf16.mxu0 0
    %6677 = vmatpush1.bf16.xpose.msra.mxu0 0
    %6678 = vmatprep.subr.bf16.mxu0 0
    %6679 = vmatpush1.bf16.xpose.msra.mxu0 0
    %6680 = vmatprep.subr.bf16.mxu0 0
    %6681 = vmatpush1.bf16.xpose.msra.mxu0 0
    %6682 = vmatprep.subr.bf16.mxu0 0
    %6683 = vmatpush1.bf16.xpose.msra.mxu0 0
    %6684 = vmatprep.subr.bf16.mxu0 0
    %6685 = vmatpush1.bf16.xpose.msra.mxu0 0
    %6686 = vmatprep.subr.bf16.mxu0 0
    %6687 = vmatpush1.bf16.xpose.msra.mxu0 0
    %6688 = vmatprep.subr.bf16.mxu0 0
    %6689 = vmatpush1.bf16.xpose.msra.mxu0 0
    %6690 = vmatprep.subr.bf16.mxu0 0
    %6691 = vmatpush1.bf16.xpose.msra.mxu0 0
    %6692 = vmatprep.subr.bf16.mxu0 0
    %6693 = vmatpush1.bf16.xpose.msra.mxu0 0
    %6694 = vmatprep.subr.bf16.mxu0 0
    %6695 = vmatpush1.bf16.xpose.msra.mxu0 0
    %6696 = vmatprep.subr.bf16.mxu0 0
    %6697 = vmatpush1.bf16.xpose.msra.mxu0 0
    %6698 = vmatprep.subr.bf16.mxu0 0
    %6699 = vmatpush1.bf16.xpose.msra.mxu0 0
    %6700 = vmatprep.subr.bf16.mxu0 0
    %6701 = vmatpush1.bf16.xpose.msra.mxu0 0
    %6702 = vmatprep.subr.bf16.mxu0 0
    %6703 = vmatpush1.bf16.xpose.msra.mxu0 0
    %6704 = vmatprep.mubr.bf16.mxu0 0
    %6705 = vmatmul.mubr.bf16.gmra.mrb[0].mxu0 %v6667
    %v6706 = vpop.f32.mrb[0].mxu0
    %v6707 = vadd.f32 0.0, %v6706
    %v6708 = vpop.f32.mrb[0].mxu0
    %v6709 = vpop.f32.mrb[0].mxu0
    %v6710 = vpop.f32.mrb[0].mxu0
    %6711 = vdwg.mxu0
    %6712 = vrot.lane.b32.xlu0 %v4887, 112
    %v6713 = vpop.permute.xlu0 %6712
    %6714 = vrot.lane.b32.xlu0 %v4887, 80
    %v6715 = vpop.permute.xlu0 %6714
    %v6717 = vsel %vm498, %v6713, 0
    %v6720 = vsel %vm498, %v6715, 0
    %6722 = vmatprep.subr.bf16.mxu0 0
    %6723 = vmatpush1.bf16.xpose.msra.mxu0 %v6720
    %6724 = vmatprep.subr.bf16.mxu0 0
    %6725 = vmatpush1.bf16.xpose.msra.mxu0 0
    %6726 = vmatprep.subr.bf16.mxu0 0
    %6727 = vmatpush1.bf16.xpose.msra.mxu0 0
    %6728 = vmatprep.subr.bf16.mxu0 0
    %6729 = vmatpush1.bf16.xpose.msra.mxu0 0
    %6730 = vmatprep.subr.bf16.mxu0 0
    %6731 = vmatpush1.bf16.xpose.msra.mxu0 0
    %6732 = vmatprep.subr.bf16.mxu0 0
    %6733 = vmatpush1.bf16.xpose.msra.mxu0 0
    %6734 = vmatprep.subr.bf16.mxu0 0
    %6735 = vmatpush1.bf16.xpose.msra.mxu0 0
    %6736 = vmatprep.subr.bf16.mxu0 0
    %6737 = vmatpush1.bf16.xpose.msra.mxu0 0
    %6738 = vmatprep.subr.bf16.mxu0 0
    %6739 = vmatpush1.bf16.xpose.msra.mxu0 0
    %6740 = vmatprep.subr.bf16.mxu0 0
    %6741 = vmatpush1.bf16.xpose.msra.mxu0 0
    %6742 = vmatprep.subr.bf16.mxu0 0
    %6743 = vmatpush1.bf16.xpose.msra.mxu0 0
    %6744 = vmatprep.subr.bf16.mxu0 0
    %6745 = vmatpush1.bf16.xpose.msra.mxu0 0
    %6746 = vmatprep.subr.bf16.mxu0 0
    %6747 = vmatpush1.bf16.xpose.msra.mxu0 0
    %6748 = vmatprep.subr.bf16.mxu0 0
    %6749 = vmatpush1.bf16.xpose.msra.mxu0 0
    %6750 = vmatprep.subr.bf16.mxu0 0
    %6751 = vmatpush1.bf16.xpose.msra.mxu0 0
    %6752 = vmatprep.subr.bf16.mxu0 0
    %6753 = vmatpush1.bf16.xpose.msra.mxu0 0
    %6754 = vmatprep.mubr.bf16.mxu0 0
    %6755 = vmatmul.mubr.bf16.gmra.mrb[0].mxu0 %v6717
    %v6756 = vpop.f32.mrb[0].mxu0
    %v6757 = vadd.f32 0.0, %v6756
    %v6758 = vpop.f32.mrb[0].mxu0
    %v6759 = vpop.f32.mrb[0].mxu0
    %v6760 = vpop.f32.mrb[0].mxu0
    %6761 = vdwg.mxu0
    %6762 = vrot.lane.b32.xlu0 %v4888, 112
    %v6763 = vpop.permute.xlu0 %6762
    %6764 = vrot.lane.b32.xlu0 %v4888, 80
    %v6765 = vpop.permute.xlu0 %6764
    %v6767 = vsel %vm498, %v6763, 0
    %v6770 = vsel %vm498, %v6765, 0
    %6772 = vmatprep.subr.bf16.mxu0 0
    %6773 = vmatpush1.bf16.xpose.msra.mxu0 %v6770
    %6774 = vmatprep.subr.bf16.mxu0 0
    %6775 = vmatpush1.bf16.xpose.msra.mxu0 0
    %6776 = vmatprep.subr.bf16.mxu0 0
    %6777 = vmatpush1.bf16.xpose.msra.mxu0 0
    %6778 = vmatprep.subr.bf16.mxu0 0
    %6779 = vmatpush1.bf16.xpose.msra.mxu0 0
    %6780 = vmatprep.subr.bf16.mxu0 0
    %6781 = vmatpush1.bf16.xpose.msra.mxu0 0
    %6782 = vmatprep.subr.bf16.mxu0 0
    %6783 = vmatpush1.bf16.xpose.msra.mxu0 0
    %6784 = vmatprep.subr.bf16.mxu0 0
    %6785 = vmatpush1.bf16.xpose.msra.mxu0 0
    %6786 = vmatprep.subr.bf16.mxu0 0
    %6787 = vmatpush1.bf16.xpose.msra.mxu0 0
    %6788 = vmatprep.subr.bf16.mxu0 0
    %6789 = vmatpush1.bf16.xpose.msra.mxu0 0
    %6790 = vmatprep.subr.bf16.mxu0 0
    %6791 = vmatpush1.bf16.xpose.msra.mxu0 0
    %6792 = vmatprep.subr.bf16.mxu0 0
    %6793 = vmatpush1.bf16.xpose.msra.mxu0 0
    %6794 = vmatprep.subr.bf16.mxu0 0
    %6795 = vmatpush1.bf16.xpose.msra.mxu0 0
    %6796 = vmatprep.subr.bf16.mxu0 0
    %6797 = vmatpush1.bf16.xpose.msra.mxu0 0
    %6798 = vmatprep.subr.bf16.mxu0 0
    %6799 = vmatpush1.bf16.xpose.msra.mxu0 0
    %6800 = vmatprep.subr.bf16.mxu0 0
    %6801 = vmatpush1.bf16.xpose.msra.mxu0 0
    %6802 = vmatprep.subr.bf16.mxu0 0
    %6803 = vmatpush1.bf16.xpose.msra.mxu0 0
    %6804 = vmatprep.mubr.bf16.mxu0 0
    %6805 = vmatmul.mubr.bf16.gmra.mrb[0].mxu0 %v6767
    %v6806 = vpop.f32.mrb[0].mxu0
    %v6807 = vadd.f32 0.0, %v6806
    %v6808 = vpop.f32.mrb[0].mxu0
    %v6809 = vpop.f32.mrb[0].mxu0
    %v6810 = vpop.f32.mrb[0].mxu0
    %6811 = vdwg.mxu0
    %6812 = vrot.lane.b32.xlu0 %v4889, 112
    %v6813 = vpop.permute.xlu0 %6812
    %6814 = vrot.lane.b32.xlu0 %v4889, 80
    %v6815 = vpop.permute.xlu0 %6814
    %v6817 = vsel %vm498, %v6813, 0
    %v6820 = vsel %vm498, %v6815, 0
    %6822 = vmatprep.subr.bf16.mxu0 0
    %6823 = vmatpush1.bf16.xpose.msra.mxu0 %v6820
    %6824 = vmatprep.subr.bf16.mxu0 0
    %6825 = vmatpush1.bf16.xpose.msra.mxu0 0
    %6826 = vmatprep.subr.bf16.mxu0 0
    %6827 = vmatpush1.bf16.xpose.msra.mxu0 0
    %6828 = vmatprep.subr.bf16.mxu0 0
    %6829 = vmatpush1.bf16.xpose.msra.mxu0 0
    %6830 = vmatprep.subr.bf16.mxu0 0
    %6831 = vmatpush1.bf16.xpose.msra.mxu0 0
    %6832 = vmatprep.subr.bf16.mxu0 0
    %6833 = vmatpush1.bf16.xpose.msra.mxu0 0
    %6834 = vmatprep.subr.bf16.mxu0 0
    %6835 = vmatpush1.bf16.xpose.msra.mxu0 0
    %6836 = vmatprep.subr.bf16.mxu0 0
    %6837 = vmatpush1.bf16.xpose.msra.mxu0 0
    %6838 = vmatprep.subr.bf16.mxu0 0
    %6839 = vmatpush1.bf16.xpose.msra.mxu0 0
    %6840 = vmatprep.subr.bf16.mxu0 0
    %6841 = vmatpush1.bf16.xpose.msra.mxu0 0
    %6842 = vmatprep.subr.bf16.mxu0 0
    %6843 = vmatpush1.bf16.xpose.msra.mxu0 0
    %6844 = vmatprep.subr.bf16.mxu0 0
    %6845 = vmatpush1.bf16.xpose.msra.mxu0 0
    %6846 = vmatprep.subr.bf16.mxu0 0
    %6847 = vmatpush1.bf16.xpose.msra.mxu0 0
    %6848 = vmatprep.subr.bf16.mxu0 0
    %6849 = vmatpush1.bf16.xpose.msra.mxu0 0
    %6850 = vmatprep.subr.bf16.mxu0 0
    %6851 = vmatpush1.bf16.xpose.msra.mxu0 0
    %6852 = vmatprep.subr.bf16.mxu0 0
    %6853 = vmatpush1.bf16.xpose.msra.mxu0 0
    %6854 = vmatprep.mubr.bf16.mxu0 0
    %6855 = vmatmul.mubr.bf16.gmra.mrb[0].mxu0 %v6817
    %v6856 = vpop.f32.mrb[0].mxu0
    %v6857 = vadd.f32 0.0, %v6856
    %v6858 = vpop.f32.mrb[0].mxu0
    %v6859 = vpop.f32.mrb[0].mxu0
    %v6860 = vpop.f32.mrb[0].mxu0
    %6861 = vdwg.mxu0
    %6862 = vrot.lane.b32.xlu0 %v4890, 112
    %v6863 = vpop.permute.xlu0 %6862
    %6864 = vrot.lane.b32.xlu0 %v4890, 80
    %v6865 = vpop.permute.xlu0 %6864
    %v6867 = vsel %vm498, %v6863, 0
    %v6870 = vsel %vm498, %v6865, 0
    %6872 = vmatprep.subr.bf16.mxu0 0
    %6873 = vmatpush1.bf16.xpose.msra.mxu0 %v6870
    %6874 = vmatprep.subr.bf16.mxu0 0
    %6875 = vmatpush1.bf16.xpose.msra.mxu0 0
    %6876 = vmatprep.subr.bf16.mxu0 0
    %6877 = vmatpush1.bf16.xpose.msra.mxu0 0
    %6878 = vmatprep.subr.bf16.mxu0 0
    %6879 = vmatpush1.bf16.xpose.msra.mxu0 0
    %6880 = vmatprep.subr.bf16.mxu0 0
    %6881 = vmatpush1.bf16.xpose.msra.mxu0 0
    %6882 = vmatprep.subr.bf16.mxu0 0
    %6883 = vmatpush1.bf16.xpose.msra.mxu0 0
    %6884 = vmatprep.subr.bf16.mxu0 0
    %6885 = vmatpush1.bf16.xpose.msra.mxu0 0
    %6886 = vmatprep.subr.bf16.mxu0 0
    %6887 = vmatpush1.bf16.xpose.msra.mxu0 0
    %6888 = vmatprep.subr.bf16.mxu0 0
    %6889 = vmatpush1.bf16.xpose.msra.mxu0 0
    %6890 = vmatprep.subr.bf16.mxu0 0
    %6891 = vmatpush1.bf16.xpose.msra.mxu0 0
    %6892 = vmatprep.subr.bf16.mxu0 0
    %6893 = vmatpush1.bf16.xpose.msra.mxu0 0
    %6894 = vmatprep.subr.bf16.mxu0 0
    %6895 = vmatpush1.bf16.xpose.msra.mxu0 0
    %6896 = vmatprep.subr.bf16.mxu0 0
    %6897 = vmatpush1.bf16.xpose.msra.mxu0 0
    %6898 = vmatprep.subr.bf16.mxu0 0
    %6899 = vmatpush1.bf16.xpose.msra.mxu0 0
    %6900 = vmatprep.subr.bf16.mxu0 0
    %6901 = vmatpush1.bf16.xpose.msra.mxu0 0
    %6902 = vmatprep.subr.bf16.mxu0 0
    %6903 = vmatpush1.bf16.xpose.msra.mxu0 0
    %6904 = vmatprep.mubr.bf16.mxu0 0
    %6905 = vmatmul.mubr.bf16.gmra.mrb[0].mxu0 %v6867
    %v6906 = vpop.f32.mrb[0].mxu0
    %v6907 = vadd.f32 0.0, %v6906
    %v6908 = vpop.f32.mrb[0].mxu0
    %v6909 = vpop.f32.mrb[0].mxu0
    %v6910 = vpop.f32.mrb[0].mxu0
    %6911 = vdwg.mxu0
    %6912 = vrot.lane.b32.xlu0 %v4891, 112
    %v6913 = vpop.permute.xlu0 %6912
    %6914 = vrot.lane.b32.xlu0 %v4891, 80
    %v6915 = vpop.permute.xlu0 %6914
    %v6917 = vsel %vm498, %v6913, 0
    %v6920 = vsel %vm498, %v6915, 0
    %6922 = vmatprep.subr.bf16.mxu0 0
    %6923 = vmatpush1.bf16.xpose.msra.mxu0 %v6920
    %6924 = vmatprep.subr.bf16.mxu0 0
    %6925 = vmatpush1.bf16.xpose.msra.mxu0 0
    %6926 = vmatprep.subr.bf16.mxu0 0
    %6927 = vmatpush1.bf16.xpose.msra.mxu0 0
    %6928 = vmatprep.subr.bf16.mxu0 0
    %6929 = vmatpush1.bf16.xpose.msra.mxu0 0
    %6930 = vmatprep.subr.bf16.mxu0 0
    %6931 = vmatpush1.bf16.xpose.msra.mxu0 0
    %6932 = vmatprep.subr.bf16.mxu0 0
    %6933 = vmatpush1.bf16.xpose.msra.mxu0 0
    %6934 = vmatprep.subr.bf16.mxu0 0
    %6935 = vmatpush1.bf16.xpose.msra.mxu0 0
    %6936 = vmatprep.subr.bf16.mxu0 0
    %6937 = vmatpush1.bf16.xpose.msra.mxu0 0
    %6938 = vmatprep.subr.bf16.mxu0 0
    %6939 = vmatpush1.bf16.xpose.msra.mxu0 0
    %6940 = vmatprep.subr.bf16.mxu0 0
    %6941 = vmatpush1.bf16.xpose.msra.mxu0 0
    %6942 = vmatprep.subr.bf16.mxu0 0
    %6943 = vmatpush1.bf16.xpose.msra.mxu0 0
    %6944 = vmatprep.subr.bf16.mxu0 0
    %6945 = vmatpush1.bf16.xpose.msra.mxu0 0
    %6946 = vmatprep.subr.bf16.mxu0 0
    %6947 = vmatpush1.bf16.xpose.msra.mxu0 0
    %6948 = vmatprep.subr.bf16.mxu0 0
    %6949 = vmatpush1.bf16.xpose.msra.mxu0 0
    %6950 = vmatprep.subr.bf16.mxu0 0
    %6951 = vmatpush1.bf16.xpose.msra.mxu0 0
    %6952 = vmatprep.subr.bf16.mxu0 0
    %6953 = vmatpush1.bf16.xpose.msra.mxu0 0
    %6954 = vmatprep.mubr.bf16.mxu0 0
    %6955 = vmatmul.mubr.bf16.gmra.mrb[0].mxu0 %v6917
    %v6956 = vpop.f32.mrb[0].mxu0
    %v6957 = vadd.f32 0.0, %v6956
    %v6958 = vpop.f32.mrb[0].mxu0
    %v6959 = vpop.f32.mrb[0].mxu0
    %v6960 = vpop.f32.mrb[0].mxu0
    %6961 = vdwg.mxu0
    %6962 = vrot.lane.b32.xlu0 %v4892, 112
    %v6963 = vpop.permute.xlu0 %6962
    %6964 = vrot.lane.b32.xlu0 %v4892, 80
    %v6965 = vpop.permute.xlu0 %6964
    %v6967 = vsel %vm498, %v6963, 0
    %v6970 = vsel %vm498, %v6965, 0
    %6972 = vmatprep.subr.bf16.mxu0 0
    %6973 = vmatpush1.bf16.xpose.msra.mxu0 %v6970
    %6974 = vmatprep.subr.bf16.mxu0 0
    %6975 = vmatpush1.bf16.xpose.msra.mxu0 0
    %6976 = vmatprep.subr.bf16.mxu0 0
    %6977 = vmatpush1.bf16.xpose.msra.mxu0 0
    %6978 = vmatprep.subr.bf16.mxu0 0
    %6979 = vmatpush1.bf16.xpose.msra.mxu0 0
    %6980 = vmatprep.subr.bf16.mxu0 0
    %6981 = vmatpush1.bf16.xpose.msra.mxu0 0
    %6982 = vmatprep.subr.bf16.mxu0 0
    %6983 = vmatpush1.bf16.xpose.msra.mxu0 0
    %6984 = vmatprep.subr.bf16.mxu0 0
    %6985 = vmatpush1.bf16.xpose.msra.mxu0 0
    %6986 = vmatprep.subr.bf16.mxu0 0
    %6987 = vmatpush1.bf16.xpose.msra.mxu0 0
    %6988 = vmatprep.subr.bf16.mxu0 0
    %6989 = vmatpush1.bf16.xpose.msra.mxu0 0
    %6990 = vmatprep.subr.bf16.mxu0 0
    %6991 = vmatpush1.bf16.xpose.msra.mxu0 0
    %6992 = vmatprep.subr.bf16.mxu0 0
    %6993 = vmatpush1.bf16.xpose.msra.mxu0 0
    %6994 = vmatprep.subr.bf16.mxu0 0
    %6995 = vmatpush1.bf16.xpose.msra.mxu0 0
    %6996 = vmatprep.subr.bf16.mxu0 0
    %6997 = vmatpush1.bf16.xpose.msra.mxu0 0
    %6998 = vmatprep.subr.bf16.mxu0 0
    %6999 = vmatpush1.bf16.xpose.msra.mxu0 0
    %7000 = vmatprep.subr.bf16.mxu0 0
    %7001 = vmatpush1.bf16.xpose.msra.mxu0 0
    %7002 = vmatprep.subr.bf16.mxu0 0
    %7003 = vmatpush1.bf16.xpose.msra.mxu0 0
    %7004 = vmatprep.mubr.bf16.mxu0 0
    %7005 = vmatmul.mubr.bf16.gmra.mrb[0].mxu0 %v6967
    %v7006 = vpop.f32.mrb[0].mxu0
    %v7007 = vadd.f32 0.0, %v7006
    %v7008 = vpop.f32.mrb[0].mxu0
    %v7009 = vpop.f32.mrb[0].mxu0
    %v7010 = vpop.f32.mrb[0].mxu0
    %7011 = vdwg.mxu0
    %7012 = vrot.lane.b32.xlu0 %v4893, 112
    %v7013 = vpop.permute.xlu0 %7012
    %7014 = vrot.lane.b32.xlu0 %v4893, 80
    %v7015 = vpop.permute.xlu0 %7014
    %v7017 = vsel %vm498, %v7013, 0
    %v7020 = vsel %vm498, %v7015, 0
    %7022 = vmatprep.subr.bf16.mxu0 0
    %7023 = vmatpush1.bf16.xpose.msra.mxu0 %v7020
    %7024 = vmatprep.subr.bf16.mxu0 0
    %7025 = vmatpush1.bf16.xpose.msra.mxu0 0
    %7026 = vmatprep.subr.bf16.mxu0 0
    %7027 = vmatpush1.bf16.xpose.msra.mxu0 0
    %7028 = vmatprep.subr.bf16.mxu0 0
    %7029 = vmatpush1.bf16.xpose.msra.mxu0 0
    %7030 = vmatprep.subr.bf16.mxu0 0
    %7031 = vmatpush1.bf16.xpose.msra.mxu0 0
    %7032 = vmatprep.subr.bf16.mxu0 0
    %7033 = vmatpush1.bf16.xpose.msra.mxu0 0
    %7034 = vmatprep.subr.bf16.mxu0 0
    %7035 = vmatpush1.bf16.xpose.msra.mxu0 0
    %7036 = vmatprep.subr.bf16.mxu0 0
    %7037 = vmatpush1.bf16.xpose.msra.mxu0 0
    %7038 = vmatprep.subr.bf16.mxu0 0
    %7039 = vmatpush1.bf16.xpose.msra.mxu0 0
    %7040 = vmatprep.subr.bf16.mxu0 0
    %7041 = vmatpush1.bf16.xpose.msra.mxu0 0
    %7042 = vmatprep.subr.bf16.mxu0 0
    %7043 = vmatpush1.bf16.xpose.msra.mxu0 0
    %7044 = vmatprep.subr.bf16.mxu0 0
    %7045 = vmatpush1.bf16.xpose.msra.mxu0 0
    %7046 = vmatprep.subr.bf16.mxu0 0
    %7047 = vmatpush1.bf16.xpose.msra.mxu0 0
    %7048 = vmatprep.subr.bf16.mxu0 0
    %7049 = vmatpush1.bf16.xpose.msra.mxu0 0
    %7050 = vmatprep.subr.bf16.mxu0 0
    %7051 = vmatpush1.bf16.xpose.msra.mxu0 0
    %7052 = vmatprep.subr.bf16.mxu0 0
    %7053 = vmatpush1.bf16.xpose.msra.mxu0 0
    %7054 = vmatprep.mubr.bf16.mxu0 0
    %7055 = vmatmul.mubr.bf16.gmra.mrb[0].mxu0 %v7017
    %v7056 = vpop.f32.mrb[0].mxu0
    %v7057 = vadd.f32 0.0, %v7056
    %v7058 = vpop.f32.mrb[0].mxu0
    %v7059 = vpop.f32.mrb[0].mxu0
    %v7060 = vpop.f32.mrb[0].mxu0
    %7061 = vdwg.mxu0
    %v7062 = vmul.f32 %v6707, 0.35355338
    %v7063 = vmul.f32 %v6757, 0.35355338
    %v7064 = vmul.f32 %v6807, 0.35355338
    %v7065 = vmul.f32 %v6857, 0.35355338
    %v7066 = vmul.f32 %v6907, 0.35355338
    %v7067 = vmul.f32 %v6957, 0.35355338
    %v7068 = vmul.f32 %v7007, 0.35355338
    %v7069 = vmul.f32 %v7057, 0.35355338
    %v7070 = vsel %vm498, %v7062, -inf
    %7071 = vmax.xlane.f32.xlu0 %v7070
    %v7072 = vpop.xlane.xlu0 %7071
    %v7073 = vsel %vm498, %v7063, -inf
    %7074 = vmax.xlane.f32.xlu0 %v7073
    %v7075 = vpop.xlane.xlu0 %7074
    %v7076 = vsel %vm498, %v7064, -inf
    %7077 = vmax.xlane.f32.xlu0 %v7076
    %v7078 = vpop.xlane.xlu0 %7077
    %v7079 = vsel %vm498, %v7065, -inf
    %7080 = vmax.xlane.f32.xlu0 %v7079
    %v7081 = vpop.xlane.xlu0 %7080
    %v7082 = vsel %vm498, %v7066, -inf
    %7083 = vmax.xlane.f32.xlu0 %v7082
    %v7084 = vpop.xlane.xlu0 %7083
    %v7085 = vsel %vm498, %v7067, -inf
    %7086 = vmax.xlane.f32.xlu0 %v7085
    %v7087 = vpop.xlane.xlu0 %7086
    %v7088 = vsel %vm498, %v7068, -inf
    %7089 = vmax.xlane.f32.xlu0 %v7088
    %v7090 = vpop.xlane.xlu0 %7089
    %v7091 = vsel %vm498, %v7069, -inf
    %7092 = vmax.xlane.f32.xlu0 %v7091
    %v7093 = vpop.xlane.xlu0 %7092
    %v7094 = vsub.f32 %v7062, %v7072
    %v7095 = vsub.f32 %v7063, %v7075
    %v7096 = vsub.f32 %v7064, %v7078
    %v7097 = vsub.f32 %v7065, %v7081
    %v7098 = vsub.f32 %v7066, %v7084
    %v7099 = vsub.f32 %v7067, %v7087
    %v7100 = vsub.f32 %v7068, %v7090
    %v7101 = vsub.f32 %v7069, %v7093
    %v7102 = vmul.f32 %v7094, 1.442695
    %v7103 = vpow.pop %v7102
    %v7104 = vmul.f32 %v7095, 1.442695
    %v7105 = vpow.pop %v7104
    %v7106 = vmul.f32 %v7096, 1.442695
    %v7107 = vpow.pop %v7106
    %v7108 = vmul.f32 %v7097, 1.442695
    %v7109 = vpow.pop %v7108
    %v7110 = vmul.f32 %v7098, 1.442695
    %v7111 = vpow.pop %v7110
    %v7112 = vmul.f32 %v7099, 1.442695
    %v7113 = vpow.pop %v7112
    %v7114 = vmul.f32 %v7100, 1.442695
    %v7115 = vpow.pop %v7114
    %v7116 = vmul.f32 %v7101, 1.442695
    %v7117 = vpow.pop %v7116
    %v7118 = vsel %vm498, %v7103, 0.0
    %7119 = vadd.xlane.f32.xlu0 %v7118
    %v7120 = vpop.xlane.xlu0 %7119
    %v7121 = vsel %vm498, %v7105, 0.0
    %7122 = vadd.xlane.f32.xlu0 %v7121
    %v7123 = vpop.xlane.xlu0 %7122
    %v7124 = vsel %vm498, %v7107, 0.0
    %7125 = vadd.xlane.f32.xlu0 %v7124
    %v7126 = vpop.xlane.xlu0 %7125
    %v7127 = vsel %vm498, %v7109, 0.0
    %7128 = vadd.xlane.f32.xlu0 %v7127
    %v7129 = vpop.xlane.xlu0 %7128
    %v7130 = vsel %vm498, %v7111, 0.0
    %7131 = vadd.xlane.f32.xlu0 %v7130
    %v7132 = vpop.xlane.xlu0 %7131
    %v7133 = vsel %vm498, %v7113, 0.0
    %7134 = vadd.xlane.f32.xlu0 %v7133
    %v7135 = vpop.xlane.xlu0 %7134
    %v7136 = vsel %vm498, %v7115, 0.0
    %7137 = vadd.xlane.f32.xlu0 %v7136
    %v7138 = vpop.xlane.xlu0 %7137
    %v7139 = vsel %vm498, %v7117, 0.0
    %7140 = vadd.xlane.f32.xlu0 %v7139
    %v7141 = vpop.xlane.xlu0 %7140
    %v7142 = vrcp.pop %v7120
    %v7143 = vrcp.pop %v7123
    %v7144 = vrcp.pop %v7126
    %v7145 = vrcp.pop %v7129
    %v7146 = vrcp.pop %v7132
    %v7147 = vrcp.pop %v7135
    %v7148 = vrcp.pop %v7138
    %v7149 = vrcp.pop %v7141
    %v7150 = vmul.f32 %v7103, %v7142
    %v7151 = vmul.f32 %v7105, %v7143
    %v7152 = vmul.f32 %v7107, %v7144
    %v7153 = vmul.f32 %v7109, %v7145
    %v7154 = vmul.f32 %v7111, %v7146
    %v7155 = vmul.f32 %v7113, %v7147
    %v7156 = vmul.f32 %v7115, %v7148
    %v7157 = vmul.f32 %v7117, %v7149
    %v7158 = vpack.c.bf16 %v7150, %v7150
    %v7159 = vpack.c.bf16 %v7151, %v7151
    %v7160 = vpack.c.bf16 %v7152, %v7152
    %v7161 = vpack.c.bf16 %v7153, %v7153
    %v7162 = vpack.c.bf16 %v7154, %v7154
    %v7163 = vpack.c.bf16 %v7155, %v7155
    %v7164 = vpack.c.bf16 %v7156, %v7156
    %v7165 = vpack.c.bf16 %v7157, %v7157
    %7166 = vrot.lane.b32.xlu0 %v4886, 48
    %v7167 = vpop.permute.xlu0 %7166
    %v7169 = vsel %vm498, %v7158, 0
    %v7172 = vsel %vm997, %v7167, 0
    %7174 = vmatprep.subr.bf16.mxu0 0
    %7175 = vmatpush1.bf16.msra.mxu0 %v7172
    %7176 = vmatprep.subr.bf16.mxu0 0
    %7177 = vmatpush1.bf16.msra.mxu0 0
    %7178 = vmatprep.subr.bf16.mxu0 0
    %7179 = vmatpush1.bf16.msra.mxu0 0
    %7180 = vmatprep.subr.bf16.mxu0 0
    %7181 = vmatpush1.bf16.msra.mxu0 0
    %7182 = vmatprep.subr.bf16.mxu0 0
    %7183 = vmatpush1.bf16.msra.mxu0 0
    %7184 = vmatprep.subr.bf16.mxu0 0
    %7185 = vmatpush1.bf16.msra.mxu0 0
    %7186 = vmatprep.subr.bf16.mxu0 0
    %7187 = vmatpush1.bf16.msra.mxu0 0
    %7188 = vmatprep.subr.bf16.mxu0 0
    %7189 = vmatpush1.bf16.msra.mxu0 0
    %7190 = vmatprep.subr.bf16.mxu0 0
    %7191 = vmatpush1.bf16.msra.mxu0 0
    %7192 = vmatprep.subr.bf16.mxu0 0
    %7193 = vmatpush1.bf16.msra.mxu0 0
    %7194 = vmatprep.subr.bf16.mxu0 0
    %7195 = vmatpush1.bf16.msra.mxu0 0
    %7196 = vmatprep.subr.bf16.mxu0 0
    %7197 = vmatpush1.bf16.msra.mxu0 0
    %7198 = vmatprep.subr.bf16.mxu0 0
    %7199 = vmatpush1.bf16.msra.mxu0 0
    %7200 = vmatprep.subr.bf16.mxu0 0
    %7201 = vmatpush1.bf16.msra.mxu0 0
    %7202 = vmatprep.subr.bf16.mxu0 0
    %7203 = vmatpush1.bf16.msra.mxu0 0
    %7204 = vmatprep.subr.bf16.mxu0 0
    %7205 = vmatpush1.bf16.msra.mxu0 0
    %7206 = vmatprep.mubr.bf16.mxu0 0
    %7207 = vmatmul.mubr.bf16.gmra.mrb[0].mxu0 %v7169
    %v7208 = vpop.f32.mrb[0].mxu0
    %v7209 = vadd.f32 0.0, %v7208
    %v7210 = vpop.f32.mrb[0].mxu0
    %v7211 = vpop.f32.mrb[0].mxu0
    %v7212 = vpop.f32.mrb[0].mxu0
    %7213 = vdwg.mxu0
    %7214 = vrot.lane.b32.xlu0 %v4887, 48
    %v7215 = vpop.permute.xlu0 %7214
    %v7217 = vsel %vm498, %v7159, 0
    %v7220 = vsel %vm997, %v7215, 0
    %7222 = vmatprep.subr.bf16.mxu0 0
    %7223 = vmatpush1.bf16.msra.mxu0 %v7220
    %7224 = vmatprep.subr.bf16.mxu0 0
    %7225 = vmatpush1.bf16.msra.mxu0 0
    %7226 = vmatprep.subr.bf16.mxu0 0
    %7227 = vmatpush1.bf16.msra.mxu0 0
    %7228 = vmatprep.subr.bf16.mxu0 0
    %7229 = vmatpush1.bf16.msra.mxu0 0
    %7230 = vmatprep.subr.bf16.mxu0 0
    %7231 = vmatpush1.bf16.msra.mxu0 0
    %7232 = vmatprep.subr.bf16.mxu0 0
    %7233 = vmatpush1.bf16.msra.mxu0 0
    %7234 = vmatprep.subr.bf16.mxu0 0
    %7235 = vmatpush1.bf16.msra.mxu0 0
    %7236 = vmatprep.subr.bf16.mxu0 0
    %7237 = vmatpush1.bf16.msra.mxu0 0
    %7238 = vmatprep.subr.bf16.mxu0 0
    %7239 = vmatpush1.bf16.msra.mxu0 0
    %7240 = vmatprep.subr.bf16.mxu0 0
    %7241 = vmatpush1.bf16.msra.mxu0 0
    %7242 = vmatprep.subr.bf16.mxu0 0
    %7243 = vmatpush1.bf16.msra.mxu0 0
    %7244 = vmatprep.subr.bf16.mxu0 0
    %7245 = vmatpush1.bf16.msra.mxu0 0
    %7246 = vmatprep.subr.bf16.mxu0 0
    %7247 = vmatpush1.bf16.msra.mxu0 0
    %7248 = vmatprep.subr.bf16.mxu0 0
    %7249 = vmatpush1.bf16.msra.mxu0 0
    %7250 = vmatprep.subr.bf16.mxu0 0
    %7251 = vmatpush1.bf16.msra.mxu0 0
    %7252 = vmatprep.subr.bf16.mxu0 0
    %7253 = vmatpush1.bf16.msra.mxu0 0
    %7254 = vmatprep.mubr.bf16.mxu0 0
    %7255 = vmatmul.mubr.bf16.gmra.mrb[0].mxu0 %v7217
    %v7256 = vpop.f32.mrb[0].mxu0
    %v7257 = vadd.f32 0.0, %v7256
    %v7258 = vpop.f32.mrb[0].mxu0
    %v7259 = vpop.f32.mrb[0].mxu0
    %v7260 = vpop.f32.mrb[0].mxu0
    %7261 = vdwg.mxu0
    %7262 = vrot.lane.b32.xlu0 %v4888, 48
    %v7263 = vpop.permute.xlu0 %7262
    %v7265 = vsel %vm498, %v7160, 0
    %v7268 = vsel %vm997, %v7263, 0
    %7270 = vmatprep.subr.bf16.mxu0 0
    %7271 = vmatpush1.bf16.msra.mxu0 %v7268
    %7272 = vmatprep.subr.bf16.mxu0 0
    %7273 = vmatpush1.bf16.msra.mxu0 0
    %7274 = vmatprep.subr.bf16.mxu0 0
    %7275 = vmatpush1.bf16.msra.mxu0 0
    %7276 = vmatprep.subr.bf16.mxu0 0
    %7277 = vmatpush1.bf16.msra.mxu0 0
    %7278 = vmatprep.subr.bf16.mxu0 0
    %7279 = vmatpush1.bf16.msra.mxu0 0
    %7280 = vmatprep.subr.bf16.mxu0 0
    %7281 = vmatpush1.bf16.msra.mxu0 0
    %7282 = vmatprep.subr.bf16.mxu0 0
    %7283 = vmatpush1.bf16.msra.mxu0 0
    %7284 = vmatprep.subr.bf16.mxu0 0
    %7285 = vmatpush1.bf16.msra.mxu0 0
    %7286 = vmatprep.subr.bf16.mxu0 0
    %7287 = vmatpush1.bf16.msra.mxu0 0
    %7288 = vmatprep.subr.bf16.mxu0 0
    %7289 = vmatpush1.bf16.msra.mxu0 0
    %7290 = vmatprep.subr.bf16.mxu0 0
    %7291 = vmatpush1.bf16.msra.mxu0 0
    %7292 = vmatprep.subr.bf16.mxu0 0
    %7293 = vmatpush1.bf16.msra.mxu0 0
    %7294 = vmatprep.subr.bf16.mxu0 0
    %7295 = vmatpush1.bf16.msra.mxu0 0
    %7296 = vmatprep.subr.bf16.mxu0 0
    %7297 = vmatpush1.bf16.msra.mxu0 0
    %7298 = vmatprep.subr.bf16.mxu0 0
    %7299 = vmatpush1.bf16.msra.mxu0 0
    %7300 = vmatprep.subr.bf16.mxu0 0
    %7301 = vmatpush1.bf16.msra.mxu0 0
    %7302 = vmatprep.mubr.bf16.mxu0 0
    %7303 = vmatmul.mubr.bf16.gmra.mrb[0].mxu0 %v7265
    %v7304 = vpop.f32.mrb[0].mxu0
    %v7305 = vadd.f32 0.0, %v7304
    %v7306 = vpop.f32.mrb[0].mxu0
    %v7307 = vpop.f32.mrb[0].mxu0
    %v7308 = vpop.f32.mrb[0].mxu0
    %7309 = vdwg.mxu0
    %7310 = vrot.lane.b32.xlu0 %v4889, 48
    %v7311 = vpop.permute.xlu0 %7310
    %v7313 = vsel %vm498, %v7161, 0
    %v7316 = vsel %vm997, %v7311, 0
    %7318 = vmatprep.subr.bf16.mxu0 0
    %7319 = vmatpush1.bf16.msra.mxu0 %v7316
    %7320 = vmatprep.subr.bf16.mxu0 0
    %7321 = vmatpush1.bf16.msra.mxu0 0
    %7322 = vmatprep.subr.bf16.mxu0 0
    %7323 = vmatpush1.bf16.msra.mxu0 0
    %7324 = vmatprep.subr.bf16.mxu0 0
    %7325 = vmatpush1.bf16.msra.mxu0 0
    %7326 = vmatprep.subr.bf16.mxu0 0
    %7327 = vmatpush1.bf16.msra.mxu0 0
    %7328 = vmatprep.subr.bf16.mxu0 0
    %7329 = vmatpush1.bf16.msra.mxu0 0
    %7330 = vmatprep.subr.bf16.mxu0 0
    %7331 = vmatpush1.bf16.msra.mxu0 0
    %7332 = vmatprep.subr.bf16.mxu0 0
    %7333 = vmatpush1.bf16.msra.mxu0 0
    %7334 = vmatprep.subr.bf16.mxu0 0
    %7335 = vmatpush1.bf16.msra.mxu0 0
    %7336 = vmatprep.subr.bf16.mxu0 0
    %7337 = vmatpush1.bf16.msra.mxu0 0
    %7338 = vmatprep.subr.bf16.mxu0 0
    %7339 = vmatpush1.bf16.msra.mxu0 0
    %7340 = vmatprep.subr.bf16.mxu0 0
    %7341 = vmatpush1.bf16.msra.mxu0 0
    %7342 = vmatprep.subr.bf16.mxu0 0
    %7343 = vmatpush1.bf16.msra.mxu0 0
    %7344 = vmatprep.subr.bf16.mxu0 0
    %7345 = vmatpush1.bf16.msra.mxu0 0
    %7346 = vmatprep.subr.bf16.mxu0 0
    %7347 = vmatpush1.bf16.msra.mxu0 0
    %7348 = vmatprep.subr.bf16.mxu0 0
    %7349 = vmatpush1.bf16.msra.mxu0 0
    %7350 = vmatprep.mubr.bf16.mxu0 0
    %7351 = vmatmul.mubr.bf16.gmra.mrb[0].mxu0 %v7313
    %v7352 = vpop.f32.mrb[0].mxu0
    %v7353 = vadd.f32 0.0, %v7352
    %v7354 = vpop.f32.mrb[0].mxu0
    %v7355 = vpop.f32.mrb[0].mxu0
    %v7356 = vpop.f32.mrb[0].mxu0
    %7357 = vdwg.mxu0
    %7358 = vrot.lane.b32.xlu0 %v4890, 48
    %v7359 = vpop.permute.xlu0 %7358
    %v7361 = vsel %vm498, %v7162, 0
    %v7364 = vsel %vm997, %v7359, 0
    %7366 = vmatprep.subr.bf16.mxu0 0
    %7367 = vmatpush1.bf16.msra.mxu0 %v7364
    %7368 = vmatprep.subr.bf16.mxu0 0
    %7369 = vmatpush1.bf16.msra.mxu0 0
    %7370 = vmatprep.subr.bf16.mxu0 0
    %7371 = vmatpush1.bf16.msra.mxu0 0
    %7372 = vmatprep.subr.bf16.mxu0 0
    %7373 = vmatpush1.bf16.msra.mxu0 0
    %7374 = vmatprep.subr.bf16.mxu0 0
    %7375 = vmatpush1.bf16.msra.mxu0 0
    %7376 = vmatprep.subr.bf16.mxu0 0
    %7377 = vmatpush1.bf16.msra.mxu0 0
    %7378 = vmatprep.subr.bf16.mxu0 0
    %7379 = vmatpush1.bf16.msra.mxu0 0
    %7380 = vmatprep.subr.bf16.mxu0 0
    %7381 = vmatpush1.bf16.msra.mxu0 0
    %7382 = vmatprep.subr.bf16.mxu0 0
    %7383 = vmatpush1.bf16.msra.mxu0 0
    %7384 = vmatprep.subr.bf16.mxu0 0
    %7385 = vmatpush1.bf16.msra.mxu0 0
    %7386 = vmatprep.subr.bf16.mxu0 0
    %7387 = vmatpush1.bf16.msra.mxu0 0
    %7388 = vmatprep.subr.bf16.mxu0 0
    %7389 = vmatpush1.bf16.msra.mxu0 0
    %7390 = vmatprep.subr.bf16.mxu0 0
    %7391 = vmatpush1.bf16.msra.mxu0 0
    %7392 = vmatprep.subr.bf16.mxu0 0
    %7393 = vmatpush1.bf16.msra.mxu0 0
    %7394 = vmatprep.subr.bf16.mxu0 0
    %7395 = vmatpush1.bf16.msra.mxu0 0
    %7396 = vmatprep.subr.bf16.mxu0 0
    %7397 = vmatpush1.bf16.msra.mxu0 0
    %7398 = vmatprep.mubr.bf16.mxu0 0
    %7399 = vmatmul.mubr.bf16.gmra.mrb[0].mxu0 %v7361
    %v7400 = vpop.f32.mrb[0].mxu0
    %v7401 = vadd.f32 0.0, %v7400
    %v7402 = vpop.f32.mrb[0].mxu0
    %v7403 = vpop.f32.mrb[0].mxu0
    %v7404 = vpop.f32.mrb[0].mxu0
    %7405 = vdwg.mxu0
    %7406 = vrot.lane.b32.xlu0 %v4891, 48
    %v7407 = vpop.permute.xlu0 %7406
    %v7409 = vsel %vm498, %v7163, 0
    %v7412 = vsel %vm997, %v7407, 0
    %7414 = vmatprep.subr.bf16.mxu0 0
    %7415 = vmatpush1.bf16.msra.mxu0 %v7412
    %7416 = vmatprep.subr.bf16.mxu0 0
    %7417 = vmatpush1.bf16.msra.mxu0 0
    %7418 = vmatprep.subr.bf16.mxu0 0
    %7419 = vmatpush1.bf16.msra.mxu0 0
    %7420 = vmatprep.subr.bf16.mxu0 0
    %7421 = vmatpush1.bf16.msra.mxu0 0
    %7422 = vmatprep.subr.bf16.mxu0 0
    %7423 = vmatpush1.bf16.msra.mxu0 0
    %7424 = vmatprep.subr.bf16.mxu0 0
    %7425 = vmatpush1.bf16.msra.mxu0 0
    %7426 = vmatprep.subr.bf16.mxu0 0
    %7427 = vmatpush1.bf16.msra.mxu0 0
    %7428 = vmatprep.subr.bf16.mxu0 0
    %7429 = vmatpush1.bf16.msra.mxu0 0
    %7430 = vmatprep.subr.bf16.mxu0 0
    %7431 = vmatpush1.bf16.msra.mxu0 0
    %7432 = vmatprep.subr.bf16.mxu0 0
    %7433 = vmatpush1.bf16.msra.mxu0 0
    %7434 = vmatprep.subr.bf16.mxu0 0
    %7435 = vmatpush1.bf16.msra.mxu0 0
    %7436 = vmatprep.subr.bf16.mxu0 0
    %7437 = vmatpush1.bf16.msra.mxu0 0
    %7438 = vmatprep.subr.bf16.mxu0 0
    %7439 = vmatpush1.bf16.msra.mxu0 0
    %7440 = vmatprep.subr.bf16.mxu0 0
    %7441 = vmatpush1.bf16.msra.mxu0 0
    %7442 = vmatprep.subr.bf16.mxu0 0
    %7443 = vmatpush1.bf16.msra.mxu0 0
    %7444 = vmatprep.subr.bf16.mxu0 0
    %7445 = vmatpush1.bf16.msra.mxu0 0
    %7446 = vmatprep.mubr.bf16.mxu0 0
    %7447 = vmatmul.mubr.bf16.gmra.mrb[0].mxu0 %v7409
    %v7448 = vpop.f32.mrb[0].mxu0
    %v7449 = vadd.f32 0.0, %v7448
    %v7450 = vpop.f32.mrb[0].mxu0
    %v7451 = vpop.f32.mrb[0].mxu0
    %v7452 = vpop.f32.mrb[0].mxu0
    %7453 = vdwg.mxu0
    %7454 = vrot.lane.b32.xlu0 %v4892, 48
    %v7455 = vpop.permute.xlu0 %7454
    %v7457 = vsel %vm498, %v7164, 0
    %v7460 = vsel %vm997, %v7455, 0
    %7462 = vmatprep.subr.bf16.mxu0 0
    %7463 = vmatpush1.bf16.msra.mxu0 %v7460
    %7464 = vmatprep.subr.bf16.mxu0 0
    %7465 = vmatpush1.bf16.msra.mxu0 0
    %7466 = vmatprep.subr.bf16.mxu0 0
    %7467 = vmatpush1.bf16.msra.mxu0 0
    %7468 = vmatprep.subr.bf16.mxu0 0
    %7469 = vmatpush1.bf16.msra.mxu0 0
    %7470 = vmatprep.subr.bf16.mxu0 0
    %7471 = vmatpush1.bf16.msra.mxu0 0
    %7472 = vmatprep.subr.bf16.mxu0 0
    %7473 = vmatpush1.bf16.msra.mxu0 0
    %7474 = vmatprep.subr.bf16.mxu0 0
    %7475 = vmatpush1.bf16.msra.mxu0 0
    %7476 = vmatprep.subr.bf16.mxu0 0
    %7477 = vmatpush1.bf16.msra.mxu0 0
    %7478 = vmatprep.subr.bf16.mxu0 0
    %7479 = vmatpush1.bf16.msra.mxu0 0
    %7480 = vmatprep.subr.bf16.mxu0 0
    %7481 = vmatpush1.bf16.msra.mxu0 0
    %7482 = vmatprep.subr.bf16.mxu0 0
    %7483 = vmatpush1.bf16.msra.mxu0 0
    %7484 = vmatprep.subr.bf16.mxu0 0
    %7485 = vmatpush1.bf16.msra.mxu0 0
    %7486 = vmatprep.subr.bf16.mxu0 0
    %7487 = vmatpush1.bf16.msra.mxu0 0
    %7488 = vmatprep.subr.bf16.mxu0 0
    %7489 = vmatpush1.bf16.msra.mxu0 0
    %7490 = vmatprep.subr.bf16.mxu0 0
    %7491 = vmatpush1.bf16.msra.mxu0 0
    %7492 = vmatprep.subr.bf16.mxu0 0
    %7493 = vmatpush1.bf16.msra.mxu0 0
    %7494 = vmatprep.mubr.bf16.mxu0 0
    %7495 = vmatmul.mubr.bf16.gmra.mrb[0].mxu0 %v7457
    %v7496 = vpop.f32.mrb[0].mxu0
    %v7497 = vadd.f32 0.0, %v7496
    %v7498 = vpop.f32.mrb[0].mxu0
    %v7499 = vpop.f32.mrb[0].mxu0
    %v7500 = vpop.f32.mrb[0].mxu0
    %7501 = vdwg.mxu0
    %7502 = vrot.lane.b32.xlu0 %v4893, 48
    %v7503 = vpop.permute.xlu0 %7502
    %v7505 = vsel %vm498, %v7165, 0
    %v7508 = vsel %vm997, %v7503, 0
    %7510 = vmatprep.subr.bf16.mxu0 0
    %7511 = vmatpush1.bf16.msra.mxu0 %v7508
    %7512 = vmatprep.subr.bf16.mxu0 0
    %7513 = vmatpush1.bf16.msra.mxu0 0
    %7514 = vmatprep.subr.bf16.mxu0 0
    %7515 = vmatpush1.bf16.msra.mxu0 0
    %7516 = vmatprep.subr.bf16.mxu0 0
    %7517 = vmatpush1.bf16.msra.mxu0 0
    %7518 = vmatprep.subr.bf16.mxu0 0
    %7519 = vmatpush1.bf16.msra.mxu0 0
    %7520 = vmatprep.subr.bf16.mxu0 0
    %7521 = vmatpush1.bf16.msra.mxu0 0
    %7522 = vmatprep.subr.bf16.mxu0 0
    %7523 = vmatpush1.bf16.msra.mxu0 0
    %7524 = vmatprep.subr.bf16.mxu0 0
    %7525 = vmatpush1.bf16.msra.mxu0 0
    %7526 = vmatprep.subr.bf16.mxu0 0
    %7527 = vmatpush1.bf16.msra.mxu0 0
    %7528 = vmatprep.subr.bf16.mxu0 0
    %7529 = vmatpush1.bf16.msra.mxu0 0
    %7530 = vmatprep.subr.bf16.mxu0 0
    %7531 = vmatpush1.bf16.msra.mxu0 0
    %7532 = vmatprep.subr.bf16.mxu0 0
    %7533 = vmatpush1.bf16.msra.mxu0 0
    %7534 = vmatprep.subr.bf16.mxu0 0
    %7535 = vmatpush1.bf16.msra.mxu0 0
    %7536 = vmatprep.subr.bf16.mxu0 0
    %7537 = vmatpush1.bf16.msra.mxu0 0
    %7538 = vmatprep.subr.bf16.mxu0 0
    %7539 = vmatpush1.bf16.msra.mxu0 0
    %7540 = vmatprep.subr.bf16.mxu0 0
    %7541 = vmatpush1.bf16.msra.mxu0 0
    %7542 = vmatprep.mubr.bf16.mxu0 0
    %7543 = vmatmul.mubr.bf16.gmra.mrb[0].mxu0 %v7505
    %v7544 = vpop.f32.mrb[0].mxu0
    %v7545 = vadd.f32 0.0, %v7544
    %v7546 = vpop.f32.mrb[0].mxu0
    %v7547 = vpop.f32.mrb[0].mxu0
    %v7548 = vpop.f32.mrb[0].mxu0
    %7549 = vdwg.mxu0
    %7550 = vrot.lane.b32.xlu0 %v4886, 104
    %v7551 = vpop.permute.xlu0 %7550
    %7552 = vrot.lane.b32.xlu0 %v4886, 72
    %v7553 = vpop.permute.xlu0 %7552
    %v7555 = vsel %vm498, %v7551, 0
    %v7558 = vsel %vm498, %v7553, 0
    %7560 = vmatprep.subr.bf16.mxu0 0
    %7561 = vmatpush1.bf16.xpose.msra.mxu0 %v7558
    %7562 = vmatprep.subr.bf16.mxu0 0
    %7563 = vmatpush1.bf16.xpose.msra.mxu0 0
    %7564 = vmatprep.subr.bf16.mxu0 0
    %7565 = vmatpush1.bf16.xpose.msra.mxu0 0
    %7566 = vmatprep.subr.bf16.mxu0 0
    %7567 = vmatpush1.bf16.xpose.msra.mxu0 0
    %7568 = vmatprep.subr.bf16.mxu0 0
    %7569 = vmatpush1.bf16.xpose.msra.mxu0 0
    %7570 = vmatprep.subr.bf16.mxu0 0
    %7571 = vmatpush1.bf16.xpose.msra.mxu0 0
    %7572 = vmatprep.subr.bf16.mxu0 0
    %7573 = vmatpush1.bf16.xpose.msra.mxu0 0
    %7574 = vmatprep.subr.bf16.mxu0 0
    %7575 = vmatpush1.bf16.xpose.msra.mxu0 0
    %7576 = vmatprep.subr.bf16.mxu0 0
    %7577 = vmatpush1.bf16.xpose.msra.mxu0 0
    %7578 = vmatprep.subr.bf16.mxu0 0
    %7579 = vmatpush1.bf16.xpose.msra.mxu0 0
    %7580 = vmatprep.subr.bf16.mxu0 0
    %7581 = vmatpush1.bf16.xpose.msra.mxu0 0
    %7582 = vmatprep.subr.bf16.mxu0 0
    %7583 = vmatpush1.bf16.xpose.msra.mxu0 0
    %7584 = vmatprep.subr.bf16.mxu0 0
    %7585 = vmatpush1.bf16.xpose.msra.mxu0 0
    %7586 = vmatprep.subr.bf16.mxu0 0
    %7587 = vmatpush1.bf16.xpose.msra.mxu0 0
    %7588 = vmatprep.subr.bf16.mxu0 0
    %7589 = vmatpush1.bf16.xpose.msra.mxu0 0
    %7590 = vmatprep.subr.bf16.mxu0 0
    %7591 = vmatpush1.bf16.xpose.msra.mxu0 0
    %7592 = vmatprep.mubr.bf16.mxu0 0
    %7593 = vmatmul.mubr.bf16.gmra.mrb[0].mxu0 %v7555
    %v7594 = vpop.f32.mrb[0].mxu0
    %v7595 = vadd.f32 0.0, %v7594
    %v7596 = vpop.f32.mrb[0].mxu0
    %v7597 = vpop.f32.mrb[0].mxu0
    %v7598 = vpop.f32.mrb[0].mxu0
    %7599 = vdwg.mxu0
    %7600 = vrot.lane.b32.xlu0 %v4887, 104
    %v7601 = vpop.permute.xlu0 %7600
    %7602 = vrot.lane.b32.xlu0 %v4887, 72
    %v7603 = vpop.permute.xlu0 %7602
    %v7605 = vsel %vm498, %v7601, 0
    %v7608 = vsel %vm498, %v7603, 0
    %7610 = vmatprep.subr.bf16.mxu0 0
    %7611 = vmatpush1.bf16.xpose.msra.mxu0 %v7608
    %7612 = vmatprep.subr.bf16.mxu0 0
    %7613 = vmatpush1.bf16.xpose.msra.mxu0 0
    %7614 = vmatprep.subr.bf16.mxu0 0
    %7615 = vmatpush1.bf16.xpose.msra.mxu0 0
    %7616 = vmatprep.subr.bf16.mxu0 0
    %7617 = vmatpush1.bf16.xpose.msra.mxu0 0
    %7618 = vmatprep.subr.bf16.mxu0 0
    %7619 = vmatpush1.bf16.xpose.msra.mxu0 0
    %7620 = vmatprep.subr.bf16.mxu0 0
    %7621 = vmatpush1.bf16.xpose.msra.mxu0 0
    %7622 = vmatprep.subr.bf16.mxu0 0
    %7623 = vmatpush1.bf16.xpose.msra.mxu0 0
    %7624 = vmatprep.subr.bf16.mxu0 0
    %7625 = vmatpush1.bf16.xpose.msra.mxu0 0
    %7626 = vmatprep.subr.bf16.mxu0 0
    %7627 = vmatpush1.bf16.xpose.msra.mxu0 0
    %7628 = vmatprep.subr.bf16.mxu0 0
    %7629 = vmatpush1.bf16.xpose.msra.mxu0 0
    %7630 = vmatprep.subr.bf16.mxu0 0
    %7631 = vmatpush1.bf16.xpose.msra.mxu0 0
    %7632 = vmatprep.subr.bf16.mxu0 0
    %7633 = vmatpush1.bf16.xpose.msra.mxu0 0
    %7634 = vmatprep.subr.bf16.mxu0 0
    %7635 = vmatpush1.bf16.xpose.msra.mxu0 0
    %7636 = vmatprep.subr.bf16.mxu0 0
    %7637 = vmatpush1.bf16.xpose.msra.mxu0 0
    %7638 = vmatprep.subr.bf16.mxu0 0
    %7639 = vmatpush1.bf16.xpose.msra.mxu0 0
    %7640 = vmatprep.subr.bf16.mxu0 0
    %7641 = vmatpush1.bf16.xpose.msra.mxu0 0
    %7642 = vmatprep.mubr.bf16.mxu0 0
    %7643 = vmatmul.mubr.bf16.gmra.mrb[0].mxu0 %v7605
    %v7644 = vpop.f32.mrb[0].mxu0
    %v7645 = vadd.f32 0.0, %v7644
    %v7646 = vpop.f32.mrb[0].mxu0
    %v7647 = vpop.f32.mrb[0].mxu0
    %v7648 = vpop.f32.mrb[0].mxu0
    %7649 = vdwg.mxu0
    %7650 = vrot.lane.b32.xlu0 %v4888, 104
    %v7651 = vpop.permute.xlu0 %7650
    %7652 = vrot.lane.b32.xlu0 %v4888, 72
    %v7653 = vpop.permute.xlu0 %7652
    %v7655 = vsel %vm498, %v7651, 0
    %v7658 = vsel %vm498, %v7653, 0
    %7660 = vmatprep.subr.bf16.mxu0 0
    %7661 = vmatpush1.bf16.xpose.msra.mxu0 %v7658
    %7662 = vmatprep.subr.bf16.mxu0 0
    %7663 = vmatpush1.bf16.xpose.msra.mxu0 0
    %7664 = vmatprep.subr.bf16.mxu0 0
    %7665 = vmatpush1.bf16.xpose.msra.mxu0 0
    %7666 = vmatprep.subr.bf16.mxu0 0
    %7667 = vmatpush1.bf16.xpose.msra.mxu0 0
    %7668 = vmatprep.subr.bf16.mxu0 0
    %7669 = vmatpush1.bf16.xpose.msra.mxu0 0
    %7670 = vmatprep.subr.bf16.mxu0 0
    %7671 = vmatpush1.bf16.xpose.msra.mxu0 0
    %7672 = vmatprep.subr.bf16.mxu0 0
    %7673 = vmatpush1.bf16.xpose.msra.mxu0 0
    %7674 = vmatprep.subr.bf16.mxu0 0
    %7675 = vmatpush1.bf16.xpose.msra.mxu0 0
    %7676 = vmatprep.subr.bf16.mxu0 0
    %7677 = vmatpush1.bf16.xpose.msra.mxu0 0
    %7678 = vmatprep.subr.bf16.mxu0 0
    %7679 = vmatpush1.bf16.xpose.msra.mxu0 0
    %7680 = vmatprep.subr.bf16.mxu0 0
    %7681 = vmatpush1.bf16.xpose.msra.mxu0 0
    %7682 = vmatprep.subr.bf16.mxu0 0
    %7683 = vmatpush1.bf16.xpose.msra.mxu0 0
    %7684 = vmatprep.subr.bf16.mxu0 0
    %7685 = vmatpush1.bf16.xpose.msra.mxu0 0
    %7686 = vmatprep.subr.bf16.mxu0 0
    %7687 = vmatpush1.bf16.xpose.msra.mxu0 0
    %7688 = vmatprep.subr.bf16.mxu0 0
    %7689 = vmatpush1.bf16.xpose.msra.mxu0 0
    %7690 = vmatprep.subr.bf16.mxu0 0
    %7691 = vmatpush1.bf16.xpose.msra.mxu0 0
    %7692 = vmatprep.mubr.bf16.mxu0 0
    %7693 = vmatmul.mubr.bf16.gmra.mrb[0].mxu0 %v7655
    %v7694 = vpop.f32.mrb[0].mxu0
    %v7695 = vadd.f32 0.0, %v7694
    %v7696 = vpop.f32.mrb[0].mxu0
    %v7697 = vpop.f32.mrb[0].mxu0
    %v7698 = vpop.f32.mrb[0].mxu0
    %7699 = vdwg.mxu0
    %7700 = vrot.lane.b32.xlu0 %v4889, 104
    %v7701 = vpop.permute.xlu0 %7700
    %7702 = vrot.lane.b32.xlu0 %v4889, 72
    %v7703 = vpop.permute.xlu0 %7702
    %v7705 = vsel %vm498, %v7701, 0
    %v7708 = vsel %vm498, %v7703, 0
    %7710 = vmatprep.subr.bf16.mxu0 0
    %7711 = vmatpush1.bf16.xpose.msra.mxu0 %v7708
    %7712 = vmatprep.subr.bf16.mxu0 0
    %7713 = vmatpush1.bf16.xpose.msra.mxu0 0
    %7714 = vmatprep.subr.bf16.mxu0 0
    %7715 = vmatpush1.bf16.xpose.msra.mxu0 0
    %7716 = vmatprep.subr.bf16.mxu0 0
    %7717 = vmatpush1.bf16.xpose.msra.mxu0 0
    %7718 = vmatprep.subr.bf16.mxu0 0
    %7719 = vmatpush1.bf16.xpose.msra.mxu0 0
    %7720 = vmatprep.subr.bf16.mxu0 0
    %7721 = vmatpush1.bf16.xpose.msra.mxu0 0
    %7722 = vmatprep.subr.bf16.mxu0 0
    %7723 = vmatpush1.bf16.xpose.msra.mxu0 0
    %7724 = vmatprep.subr.bf16.mxu0 0
    %7725 = vmatpush1.bf16.xpose.msra.mxu0 0
    %7726 = vmatprep.subr.bf16.mxu0 0
    %7727 = vmatpush1.bf16.xpose.msra.mxu0 0
    %7728 = vmatprep.subr.bf16.mxu0 0
    %7729 = vmatpush1.bf16.xpose.msra.mxu0 0
    %7730 = vmatprep.subr.bf16.mxu0 0
    %7731 = vmatpush1.bf16.xpose.msra.mxu0 0
    %7732 = vmatprep.subr.bf16.mxu0 0
    %7733 = vmatpush1.bf16.xpose.msra.mxu0 0
    %7734 = vmatprep.subr.bf16.mxu0 0
    %7735 = vmatpush1.bf16.xpose.msra.mxu0 0
    %7736 = vmatprep.subr.bf16.mxu0 0
    %7737 = vmatpush1.bf16.xpose.msra.mxu0 0
    %7738 = vmatprep.subr.bf16.mxu0 0
    %7739 = vmatpush1.bf16.xpose.msra.mxu0 0
    %7740 = vmatprep.subr.bf16.mxu0 0
    %7741 = vmatpush1.bf16.xpose.msra.mxu0 0
    %7742 = vmatprep.mubr.bf16.mxu0 0
    %7743 = vmatmul.mubr.bf16.gmra.mrb[0].mxu0 %v7705
    %v7744 = vpop.f32.mrb[0].mxu0
    %v7745 = vadd.f32 0.0, %v7744
    %v7746 = vpop.f32.mrb[0].mxu0
    %v7747 = vpop.f32.mrb[0].mxu0
    %v7748 = vpop.f32.mrb[0].mxu0
    %7749 = vdwg.mxu0
    %7750 = vrot.lane.b32.xlu0 %v4890, 104
    %v7751 = vpop.permute.xlu0 %7750
    %7752 = vrot.lane.b32.xlu0 %v4890, 72
    %v7753 = vpop.permute.xlu0 %7752
    %v7755 = vsel %vm498, %v7751, 0
    %v7758 = vsel %vm498, %v7753, 0
    %7760 = vmatprep.subr.bf16.mxu0 0
    %7761 = vmatpush1.bf16.xpose.msra.mxu0 %v7758
    %7762 = vmatprep.subr.bf16.mxu0 0
    %7763 = vmatpush1.bf16.xpose.msra.mxu0 0
    %7764 = vmatprep.subr.bf16.mxu0 0
    %7765 = vmatpush1.bf16.xpose.msra.mxu0 0
    %7766 = vmatprep.subr.bf16.mxu0 0
    %7767 = vmatpush1.bf16.xpose.msra.mxu0 0
    %7768 = vmatprep.subr.bf16.mxu0 0
    %7769 = vmatpush1.bf16.xpose.msra.mxu0 0
    %7770 = vmatprep.subr.bf16.mxu0 0
    %7771 = vmatpush1.bf16.xpose.msra.mxu0 0
    %7772 = vmatprep.subr.bf16.mxu0 0
    %7773 = vmatpush1.bf16.xpose.msra.mxu0 0
    %7774 = vmatprep.subr.bf16.mxu0 0
    %7775 = vmatpush1.bf16.xpose.msra.mxu0 0
    %7776 = vmatprep.subr.bf16.mxu0 0
    %7777 = vmatpush1.bf16.xpose.msra.mxu0 0
    %7778 = vmatprep.subr.bf16.mxu0 0
    %7779 = vmatpush1.bf16.xpose.msra.mxu0 0
    %7780 = vmatprep.subr.bf16.mxu0 0
    %7781 = vmatpush1.bf16.xpose.msra.mxu0 0
    %7782 = vmatprep.subr.bf16.mxu0 0
    %7783 = vmatpush1.bf16.xpose.msra.mxu0 0
    %7784 = vmatprep.subr.bf16.mxu0 0
    %7785 = vmatpush1.bf16.xpose.msra.mxu0 0
    %7786 = vmatprep.subr.bf16.mxu0 0
    %7787 = vmatpush1.bf16.xpose.msra.mxu0 0
    %7788 = vmatprep.subr.bf16.mxu0 0
    %7789 = vmatpush1.bf16.xpose.msra.mxu0 0
    %7790 = vmatprep.subr.bf16.mxu0 0
    %7791 = vmatpush1.bf16.xpose.msra.mxu0 0
    %7792 = vmatprep.mubr.bf16.mxu0 0
    %7793 = vmatmul.mubr.bf16.gmra.mrb[0].mxu0 %v7755
    %v7794 = vpop.f32.mrb[0].mxu0
    %v7795 = vadd.f32 0.0, %v7794
    %v7796 = vpop.f32.mrb[0].mxu0
    %v7797 = vpop.f32.mrb[0].mxu0
    %v7798 = vpop.f32.mrb[0].mxu0
    %7799 = vdwg.mxu0
    %7800 = vrot.lane.b32.xlu0 %v4891, 104
    %v7801 = vpop.permute.xlu0 %7800
    %7802 = vrot.lane.b32.xlu0 %v4891, 72
    %v7803 = vpop.permute.xlu0 %7802
    %v7805 = vsel %vm498, %v7801, 0
    %v7808 = vsel %vm498, %v7803, 0
    %7810 = vmatprep.subr.bf16.mxu0 0
    %7811 = vmatpush1.bf16.xpose.msra.mxu0 %v7808
    %7812 = vmatprep.subr.bf16.mxu0 0
    %7813 = vmatpush1.bf16.xpose.msra.mxu0 0
    %7814 = vmatprep.subr.bf16.mxu0 0
    %7815 = vmatpush1.bf16.xpose.msra.mxu0 0
    %7816 = vmatprep.subr.bf16.mxu0 0
    %7817 = vmatpush1.bf16.xpose.msra.mxu0 0
    %7818 = vmatprep.subr.bf16.mxu0 0
    %7819 = vmatpush1.bf16.xpose.msra.mxu0 0
    %7820 = vmatprep.subr.bf16.mxu0 0
    %7821 = vmatpush1.bf16.xpose.msra.mxu0 0
    %7822 = vmatprep.subr.bf16.mxu0 0
    %7823 = vmatpush1.bf16.xpose.msra.mxu0 0
    %7824 = vmatprep.subr.bf16.mxu0 0
    %7825 = vmatpush1.bf16.xpose.msra.mxu0 0
    %7826 = vmatprep.subr.bf16.mxu0 0
    %7827 = vmatpush1.bf16.xpose.msra.mxu0 0
    %7828 = vmatprep.subr.bf16.mxu0 0
    %7829 = vmatpush1.bf16.xpose.msra.mxu0 0
    %7830 = vmatprep.subr.bf16.mxu0 0
    %7831 = vmatpush1.bf16.xpose.msra.mxu0 0
    %7832 = vmatprep.subr.bf16.mxu0 0
    %7833 = vmatpush1.bf16.xpose.msra.mxu0 0
    %7834 = vmatprep.subr.bf16.mxu0 0
    %7835 = vmatpush1.bf16.xpose.msra.mxu0 0
    %7836 = vmatprep.subr.bf16.mxu0 0
    %7837 = vmatpush1.bf16.xpose.msra.mxu0 0
    %7838 = vmatprep.subr.bf16.mxu0 0
    %7839 = vmatpush1.bf16.xpose.msra.mxu0 0
    %7840 = vmatprep.subr.bf16.mxu0 0
    %7841 = vmatpush1.bf16.xpose.msra.mxu0 0
    %7842 = vmatprep.mubr.bf16.mxu0 0
    %7843 = vmatmul.mubr.bf16.gmra.mrb[0].mxu0 %v7805
    %v7844 = vpop.f32.mrb[0].mxu0
    %v7845 = vadd.f32 0.0, %v7844
    %v7846 = vpop.f32.mrb[0].mxu0
    %v7847 = vpop.f32.mrb[0].mxu0
    %v7848 = vpop.f32.mrb[0].mxu0
    %7849 = vdwg.mxu0
    %7850 = vrot.lane.b32.xlu0 %v4892, 104
    %v7851 = vpop.permute.xlu0 %7850
    %7852 = vrot.lane.b32.xlu0 %v4892, 72
    %v7853 = vpop.permute.xlu0 %7852
    %v7855 = vsel %vm498, %v7851, 0
    %v7858 = vsel %vm498, %v7853, 0
    %7860 = vmatprep.subr.bf16.mxu0 0
    %7861 = vmatpush1.bf16.xpose.msra.mxu0 %v7858
    %7862 = vmatprep.subr.bf16.mxu0 0
    %7863 = vmatpush1.bf16.xpose.msra.mxu0 0
    %7864 = vmatprep.subr.bf16.mxu0 0
    %7865 = vmatpush1.bf16.xpose.msra.mxu0 0
    %7866 = vmatprep.subr.bf16.mxu0 0
    %7867 = vmatpush1.bf16.xpose.msra.mxu0 0
    %7868 = vmatprep.subr.bf16.mxu0 0
    %7869 = vmatpush1.bf16.xpose.msra.mxu0 0
    %7870 = vmatprep.subr.bf16.mxu0 0
    %7871 = vmatpush1.bf16.xpose.msra.mxu0 0
    %7872 = vmatprep.subr.bf16.mxu0 0
    %7873 = vmatpush1.bf16.xpose.msra.mxu0 0
    %7874 = vmatprep.subr.bf16.mxu0 0
    %7875 = vmatpush1.bf16.xpose.msra.mxu0 0
    %7876 = vmatprep.subr.bf16.mxu0 0
    %7877 = vmatpush1.bf16.xpose.msra.mxu0 0
    %7878 = vmatprep.subr.bf16.mxu0 0
    %7879 = vmatpush1.bf16.xpose.msra.mxu0 0
    %7880 = vmatprep.subr.bf16.mxu0 0
    %7881 = vmatpush1.bf16.xpose.msra.mxu0 0
    %7882 = vmatprep.subr.bf16.mxu0 0
    %7883 = vmatpush1.bf16.xpose.msra.mxu0 0
    %7884 = vmatprep.subr.bf16.mxu0 0
    %7885 = vmatpush1.bf16.xpose.msra.mxu0 0
    %7886 = vmatprep.subr.bf16.mxu0 0
    %7887 = vmatpush1.bf16.xpose.msra.mxu0 0
    %7888 = vmatprep.subr.bf16.mxu0 0
    %7889 = vmatpush1.bf16.xpose.msra.mxu0 0
    %7890 = vmatprep.subr.bf16.mxu0 0
    %7891 = vmatpush1.bf16.xpose.msra.mxu0 0
    %7892 = vmatprep.mubr.bf16.mxu0 0
    %7893 = vmatmul.mubr.bf16.gmra.mrb[0].mxu0 %v7855
    %v7894 = vpop.f32.mrb[0].mxu0
    %v7895 = vadd.f32 0.0, %v7894
    %v7896 = vpop.f32.mrb[0].mxu0
    %v7897 = vpop.f32.mrb[0].mxu0
    %v7898 = vpop.f32.mrb[0].mxu0
    %7899 = vdwg.mxu0
    %7900 = vrot.lane.b32.xlu0 %v4893, 104
    %v7901 = vpop.permute.xlu0 %7900
    %7902 = vrot.lane.b32.xlu0 %v4893, 72
    %v7903 = vpop.permute.xlu0 %7902
    %v7905 = vsel %vm498, %v7901, 0
    %v7908 = vsel %vm498, %v7903, 0
    %7910 = vmatprep.subr.bf16.mxu0 0
    %7911 = vmatpush1.bf16.xpose.msra.mxu0 %v7908
    %7912 = vmatprep.subr.bf16.mxu0 0
    %7913 = vmatpush1.bf16.xpose.msra.mxu0 0
    %7914 = vmatprep.subr.bf16.mxu0 0
    %7915 = vmatpush1.bf16.xpose.msra.mxu0 0
    %7916 = vmatprep.subr.bf16.mxu0 0
    %7917 = vmatpush1.bf16.xpose.msra.mxu0 0
    %7918 = vmatprep.subr.bf16.mxu0 0
    %7919 = vmatpush1.bf16.xpose.msra.mxu0 0
    %7920 = vmatprep.subr.bf16.mxu0 0
    %7921 = vmatpush1.bf16.xpose.msra.mxu0 0
    %7922 = vmatprep.subr.bf16.mxu0 0
    %7923 = vmatpush1.bf16.xpose.msra.mxu0 0
    %7924 = vmatprep.subr.bf16.mxu0 0
    %7925 = vmatpush1.bf16.xpose.msra.mxu0 0
    %7926 = vmatprep.subr.bf16.mxu0 0
    %7927 = vmatpush1.bf16.xpose.msra.mxu0 0
    %7928 = vmatprep.subr.bf16.mxu0 0
    %7929 = vmatpush1.bf16.xpose.msra.mxu0 0
    %7930 = vmatprep.subr.bf16.mxu0 0
    %7931 = vmatpush1.bf16.xpose.msra.mxu0 0
    %7932 = vmatprep.subr.bf16.mxu0 0
    %7933 = vmatpush1.bf16.xpose.msra.mxu0 0
    %7934 = vmatprep.subr.bf16.mxu0 0
    %7935 = vmatpush1.bf16.xpose.msra.mxu0 0
    %7936 = vmatprep.subr.bf16.mxu0 0
    %7937 = vmatpush1.bf16.xpose.msra.mxu0 0
    %7938 = vmatprep.subr.bf16.mxu0 0
    %7939 = vmatpush1.bf16.xpose.msra.mxu0 0
    %7940 = vmatprep.subr.bf16.mxu0 0
    %7941 = vmatpush1.bf16.xpose.msra.mxu0 0
    %7942 = vmatprep.mubr.bf16.mxu0 0
    %7943 = vmatmul.mubr.bf16.gmra.mrb[0].mxu0 %v7905
    %v7944 = vpop.f32.mrb[0].mxu0
    %v7945 = vadd.f32 0.0, %v7944
    %v7946 = vpop.f32.mrb[0].mxu0
    %v7947 = vpop.f32.mrb[0].mxu0
    %v7948 = vpop.f32.mrb[0].mxu0
    %7949 = vdwg.mxu0
    %v7950 = vmul.f32 %v7595, 0.35355338
    %v7951 = vmul.f32 %v7645, 0.35355338
    %v7952 = vmul.f32 %v7695, 0.35355338
    %v7953 = vmul.f32 %v7745, 0.35355338
    %v7954 = vmul.f32 %v7795, 0.35355338
    %v7955 = vmul.f32 %v7845, 0.35355338
    %v7956 = vmul.f32 %v7895, 0.35355338
    %v7957 = vmul.f32 %v7945, 0.35355338
    %v7958 = vsel %vm498, %v7950, -inf
    %7959 = vmax.xlane.f32.xlu0 %v7958
    %v7960 = vpop.xlane.xlu0 %7959
    %v7961 = vsel %vm498, %v7951, -inf
    %7962 = vmax.xlane.f32.xlu0 %v7961
    %v7963 = vpop.xlane.xlu0 %7962
    %v7964 = vsel %vm498, %v7952, -inf
    %7965 = vmax.xlane.f32.xlu0 %v7964
    %v7966 = vpop.xlane.xlu0 %7965
    %v7967 = vsel %vm498, %v7953, -inf
    %7968 = vmax.xlane.f32.xlu0 %v7967
    %v7969 = vpop.xlane.xlu0 %7968
    %v7970 = vsel %vm498, %v7954, -inf
    %7971 = vmax.xlane.f32.xlu0 %v7970
    %v7972 = vpop.xlane.xlu0 %7971
    %v7973 = vsel %vm498, %v7955, -inf
    %7974 = vmax.xlane.f32.xlu0 %v7973
    %v7975 = vpop.xlane.xlu0 %7974
    %v7976 = vsel %vm498, %v7956, -inf
    %7977 = vmax.xlane.f32.xlu0 %v7976
    %v7978 = vpop.xlane.xlu0 %7977
    %v7979 = vsel %vm498, %v7957, -inf
    %7980 = vmax.xlane.f32.xlu0 %v7979
    %v7981 = vpop.xlane.xlu0 %7980
    %v7982 = vsub.f32 %v7950, %v7960
    %v7983 = vsub.f32 %v7951, %v7963
    %v7984 = vsub.f32 %v7952, %v7966
    %v7985 = vsub.f32 %v7953, %v7969
    %v7986 = vsub.f32 %v7954, %v7972
    %v7987 = vsub.f32 %v7955, %v7975
    %v7988 = vsub.f32 %v7956, %v7978
    %v7989 = vsub.f32 %v7957, %v7981
    %v7990 = vmul.f32 %v7982, 1.442695
    %v7991 = vpow.pop %v7990
    %v7992 = vmul.f32 %v7983, 1.442695
    %v7993 = vpow.pop %v7992
    %v7994 = vmul.f32 %v7984, 1.442695
    %v7995 = vpow.pop %v7994
    %v7996 = vmul.f32 %v7985, 1.442695
    %v7997 = vpow.pop %v7996
    %v7998 = vmul.f32 %v7986, 1.442695
    %v7999 = vpow.pop %v7998
    %v8000 = vmul.f32 %v7987, 1.442695
    %v8001 = vpow.pop %v8000
    %v8002 = vmul.f32 %v7988, 1.442695
    %v8003 = vpow.pop %v8002
    %v8004 = vmul.f32 %v7989, 1.442695
    %v8005 = vpow.pop %v8004
    %v8006 = vsel %vm498, %v7991, 0.0
    %8007 = vadd.xlane.f32.xlu0 %v8006
    %v8008 = vpop.xlane.xlu0 %8007
    %v8009 = vsel %vm498, %v7993, 0.0
    %8010 = vadd.xlane.f32.xlu0 %v8009
    %v8011 = vpop.xlane.xlu0 %8010
    %v8012 = vsel %vm498, %v7995, 0.0
    %8013 = vadd.xlane.f32.xlu0 %v8012
    %v8014 = vpop.xlane.xlu0 %8013
    %v8015 = vsel %vm498, %v7997, 0.0
    %8016 = vadd.xlane.f32.xlu0 %v8015
    %v8017 = vpop.xlane.xlu0 %8016
    %v8018 = vsel %vm498, %v7999, 0.0
    %8019 = vadd.xlane.f32.xlu0 %v8018
    %v8020 = vpop.xlane.xlu0 %8019
    %v8021 = vsel %vm498, %v8001, 0.0
    %8022 = vadd.xlane.f32.xlu0 %v8021
    %v8023 = vpop.xlane.xlu0 %8022
    %v8024 = vsel %vm498, %v8003, 0.0
    %8025 = vadd.xlane.f32.xlu0 %v8024
    %v8026 = vpop.xlane.xlu0 %8025
    %v8027 = vsel %vm498, %v8005, 0.0
    %8028 = vadd.xlane.f32.xlu0 %v8027
    %v8029 = vpop.xlane.xlu0 %8028
    %v8030 = vrcp.pop %v8008
    %v8031 = vrcp.pop %v8011
    %v8032 = vrcp.pop %v8014
    %v8033 = vrcp.pop %v8017
    %v8034 = vrcp.pop %v8020
    %v8035 = vrcp.pop %v8023
    %v8036 = vrcp.pop %v8026
    %v8037 = vrcp.pop %v8029
    %v8038 = vmul.f32 %v7991, %v8030
    %v8039 = vmul.f32 %v7993, %v8031
    %v8040 = vmul.f32 %v7995, %v8032
    %v8041 = vmul.f32 %v7997, %v8033
    %v8042 = vmul.f32 %v7999, %v8034
    %v8043 = vmul.f32 %v8001, %v8035
    %v8044 = vmul.f32 %v8003, %v8036
    %v8045 = vmul.f32 %v8005, %v8037
    %v8046 = vpack.c.bf16 %v8038, %v8038
    %v8047 = vpack.c.bf16 %v8039, %v8039
    %v8048 = vpack.c.bf16 %v8040, %v8040
    %v8049 = vpack.c.bf16 %v8041, %v8041
    %v8050 = vpack.c.bf16 %v8042, %v8042
    %v8051 = vpack.c.bf16 %v8043, %v8043
    %v8052 = vpack.c.bf16 %v8044, %v8044
    %v8053 = vpack.c.bf16 %v8045, %v8045
    %8054 = vrot.lane.b32.xlu0 %v4886, 40
    %v8055 = vpop.permute.xlu0 %8054
    %v8057 = vsel %vm498, %v8046, 0
    %v8060 = vsel %vm997, %v8055, 0
    %8062 = vmatprep.subr.bf16.mxu0 0
    %8063 = vmatpush1.bf16.msra.mxu0 %v8060
    %8064 = vmatprep.subr.bf16.mxu0 0
    %8065 = vmatpush1.bf16.msra.mxu0 0
    %8066 = vmatprep.subr.bf16.mxu0 0
    %8067 = vmatpush1.bf16.msra.mxu0 0
    %8068 = vmatprep.subr.bf16.mxu0 0
    %8069 = vmatpush1.bf16.msra.mxu0 0
    %8070 = vmatprep.subr.bf16.mxu0 0
    %8071 = vmatpush1.bf16.msra.mxu0 0
    %8072 = vmatprep.subr.bf16.mxu0 0
    %8073 = vmatpush1.bf16.msra.mxu0 0
    %8074 = vmatprep.subr.bf16.mxu0 0
    %8075 = vmatpush1.bf16.msra.mxu0 0
    %8076 = vmatprep.subr.bf16.mxu0 0
    %8077 = vmatpush1.bf16.msra.mxu0 0
    %8078 = vmatprep.subr.bf16.mxu0 0
    %8079 = vmatpush1.bf16.msra.mxu0 0
    %8080 = vmatprep.subr.bf16.mxu0 0
    %8081 = vmatpush1.bf16.msra.mxu0 0
    %8082 = vmatprep.subr.bf16.mxu0 0
    %8083 = vmatpush1.bf16.msra.mxu0 0
    %8084 = vmatprep.subr.bf16.mxu0 0
    %8085 = vmatpush1.bf16.msra.mxu0 0
    %8086 = vmatprep.subr.bf16.mxu0 0
    %8087 = vmatpush1.bf16.msra.mxu0 0
    %8088 = vmatprep.subr.bf16.mxu0 0
    %8089 = vmatpush1.bf16.msra.mxu0 0
    %8090 = vmatprep.subr.bf16.mxu0 0
    %8091 = vmatpush1.bf16.msra.mxu0 0
    %8092 = vmatprep.subr.bf16.mxu0 0
    %8093 = vmatpush1.bf16.msra.mxu0 0
    %8094 = vmatprep.mubr.bf16.mxu0 0
    %8095 = vmatmul.mubr.bf16.gmra.mrb[0].mxu0 %v8057
    %v8096 = vpop.f32.mrb[0].mxu0
    %v8097 = vadd.f32 0.0, %v8096
    %v8098 = vpop.f32.mrb[0].mxu0
    %v8099 = vpop.f32.mrb[0].mxu0
    %v8100 = vpop.f32.mrb[0].mxu0
    %8101 = vdwg.mxu0
    %8102 = vrot.lane.b32.xlu0 %v4887, 40
    %v8103 = vpop.permute.xlu0 %8102
    %v8105 = vsel %vm498, %v8047, 0
    %v8108 = vsel %vm997, %v8103, 0
    %8110 = vmatprep.subr.bf16.mxu0 0
    %8111 = vmatpush1.bf16.msra.mxu0 %v8108
    %8112 = vmatprep.subr.bf16.mxu0 0
    %8113 = vmatpush1.bf16.msra.mxu0 0
    %8114 = vmatprep.subr.bf16.mxu0 0
    %8115 = vmatpush1.bf16.msra.mxu0 0
    %8116 = vmatprep.subr.bf16.mxu0 0
    %8117 = vmatpush1.bf16.msra.mxu0 0
    %8118 = vmatprep.subr.bf16.mxu0 0
    %8119 = vmatpush1.bf16.msra.mxu0 0
    %8120 = vmatprep.subr.bf16.mxu0 0
    %8121 = vmatpush1.bf16.msra.mxu0 0
    %8122 = vmatprep.subr.bf16.mxu0 0
    %8123 = vmatpush1.bf16.msra.mxu0 0
    %8124 = vmatprep.subr.bf16.mxu0 0
    %8125 = vmatpush1.bf16.msra.mxu0 0
    %8126 = vmatprep.subr.bf16.mxu0 0
    %8127 = vmatpush1.bf16.msra.mxu0 0
    %8128 = vmatprep.subr.bf16.mxu0 0
    %8129 = vmatpush1.bf16.msra.mxu0 0
    %8130 = vmatprep.subr.bf16.mxu0 0
    %8131 = vmatpush1.bf16.msra.mxu0 0
    %8132 = vmatprep.subr.bf16.mxu0 0
    %8133 = vmatpush1.bf16.msra.mxu0 0
    %8134 = vmatprep.subr.bf16.mxu0 0
    %8135 = vmatpush1.bf16.msra.mxu0 0
    %8136 = vmatprep.subr.bf16.mxu0 0
    %8137 = vmatpush1.bf16.msra.mxu0 0
    %8138 = vmatprep.subr.bf16.mxu0 0
    %8139 = vmatpush1.bf16.msra.mxu0 0
    %8140 = vmatprep.subr.bf16.mxu0 0
    %8141 = vmatpush1.bf16.msra.mxu0 0
    %8142 = vmatprep.mubr.bf16.mxu0 0
    %8143 = vmatmul.mubr.bf16.gmra.mrb[0].mxu0 %v8105
    %v8144 = vpop.f32.mrb[0].mxu0
    %v8145 = vadd.f32 0.0, %v8144
    %v8146 = vpop.f32.mrb[0].mxu0
    %v8147 = vpop.f32.mrb[0].mxu0
    %v8148 = vpop.f32.mrb[0].mxu0
    %8149 = vdwg.mxu0
    %8150 = vrot.lane.b32.xlu0 %v4888, 40
    %v8151 = vpop.permute.xlu0 %8150
    %v8153 = vsel %vm498, %v8048, 0
    %v8156 = vsel %vm997, %v8151, 0
    %8158 = vmatprep.subr.bf16.mxu0 0
    %8159 = vmatpush1.bf16.msra.mxu0 %v8156
    %8160 = vmatprep.subr.bf16.mxu0 0
    %8161 = vmatpush1.bf16.msra.mxu0 0
    %8162 = vmatprep.subr.bf16.mxu0 0
    %8163 = vmatpush1.bf16.msra.mxu0 0
    %8164 = vmatprep.subr.bf16.mxu0 0
    %8165 = vmatpush1.bf16.msra.mxu0 0
    %8166 = vmatprep.subr.bf16.mxu0 0
    %8167 = vmatpush1.bf16.msra.mxu0 0
    %8168 = vmatprep.subr.bf16.mxu0 0
    %8169 = vmatpush1.bf16.msra.mxu0 0
    %8170 = vmatprep.subr.bf16.mxu0 0
    %8171 = vmatpush1.bf16.msra.mxu0 0
    %8172 = vmatprep.subr.bf16.mxu0 0
    %8173 = vmatpush1.bf16.msra.mxu0 0
    %8174 = vmatprep.subr.bf16.mxu0 0
    %8175 = vmatpush1.bf16.msra.mxu0 0
    %8176 = vmatprep.subr.bf16.mxu0 0
    %8177 = vmatpush1.bf16.msra.mxu0 0
    %8178 = vmatprep.subr.bf16.mxu0 0
    %8179 = vmatpush1.bf16.msra.mxu0 0
    %8180 = vmatprep.subr.bf16.mxu0 0
    %8181 = vmatpush1.bf16.msra.mxu0 0
    %8182 = vmatprep.subr.bf16.mxu0 0
    %8183 = vmatpush1.bf16.msra.mxu0 0
    %8184 = vmatprep.subr.bf16.mxu0 0
    %8185 = vmatpush1.bf16.msra.mxu0 0
    %8186 = vmatprep.subr.bf16.mxu0 0
    %8187 = vmatpush1.bf16.msra.mxu0 0
    %8188 = vmatprep.subr.bf16.mxu0 0
    %8189 = vmatpush1.bf16.msra.mxu0 0
    %8190 = vmatprep.mubr.bf16.mxu0 0
    %8191 = vmatmul.mubr.bf16.gmra.mrb[0].mxu0 %v8153
    %v8192 = vpop.f32.mrb[0].mxu0
    %v8193 = vadd.f32 0.0, %v8192
    %v8194 = vpop.f32.mrb[0].mxu0
    %v8195 = vpop.f32.mrb[0].mxu0
    %v8196 = vpop.f32.mrb[0].mxu0
    %8197 = vdwg.mxu0
    %8198 = vrot.lane.b32.xlu0 %v4889, 40
    %v8199 = vpop.permute.xlu0 %8198
    %v8201 = vsel %vm498, %v8049, 0
    %v8204 = vsel %vm997, %v8199, 0
    %8206 = vmatprep.subr.bf16.mxu0 0
    %8207 = vmatpush1.bf16.msra.mxu0 %v8204
    %8208 = vmatprep.subr.bf16.mxu0 0
    %8209 = vmatpush1.bf16.msra.mxu0 0
    %8210 = vmatprep.subr.bf16.mxu0 0
    %8211 = vmatpush1.bf16.msra.mxu0 0
    %8212 = vmatprep.subr.bf16.mxu0 0
    %8213 = vmatpush1.bf16.msra.mxu0 0
    %8214 = vmatprep.subr.bf16.mxu0 0
    %8215 = vmatpush1.bf16.msra.mxu0 0
    %8216 = vmatprep.subr.bf16.mxu0 0
    %8217 = vmatpush1.bf16.msra.mxu0 0
    %8218 = vmatprep.subr.bf16.mxu0 0
    %8219 = vmatpush1.bf16.msra.mxu0 0
    %8220 = vmatprep.subr.bf16.mxu0 0
    %8221 = vmatpush1.bf16.msra.mxu0 0
    %8222 = vmatprep.subr.bf16.mxu0 0
    %8223 = vmatpush1.bf16.msra.mxu0 0
    %8224 = vmatprep.subr.bf16.mxu0 0
    %8225 = vmatpush1.bf16.msra.mxu0 0
    %8226 = vmatprep.subr.bf16.mxu0 0
    %8227 = vmatpush1.bf16.msra.mxu0 0
    %8228 = vmatprep.subr.bf16.mxu0 0
    %8229 = vmatpush1.bf16.msra.mxu0 0
    %8230 = vmatprep.subr.bf16.mxu0 0
    %8231 = vmatpush1.bf16.msra.mxu0 0
    %8232 = vmatprep.subr.bf16.mxu0 0
    %8233 = vmatpush1.bf16.msra.mxu0 0
    %8234 = vmatprep.subr.bf16.mxu0 0
    %8235 = vmatpush1.bf16.msra.mxu0 0
    %8236 = vmatprep.subr.bf16.mxu0 0
    %8237 = vmatpush1.bf16.msra.mxu0 0
    %8238 = vmatprep.mubr.bf16.mxu0 0
    %8239 = vmatmul.mubr.bf16.gmra.mrb[0].mxu0 %v8201
    %v8240 = vpop.f32.mrb[0].mxu0
    %v8241 = vadd.f32 0.0, %v8240
    %v8242 = vpop.f32.mrb[0].mxu0
    %v8243 = vpop.f32.mrb[0].mxu0
    %v8244 = vpop.f32.mrb[0].mxu0
    %8245 = vdwg.mxu0
    %8246 = vrot.lane.b32.xlu0 %v4890, 40
    %v8247 = vpop.permute.xlu0 %8246
    %v8249 = vsel %vm498, %v8050, 0
    %v8252 = vsel %vm997, %v8247, 0
    %8254 = vmatprep.subr.bf16.mxu0 0
    %8255 = vmatpush1.bf16.msra.mxu0 %v8252
    %8256 = vmatprep.subr.bf16.mxu0 0
    %8257 = vmatpush1.bf16.msra.mxu0 0
    %8258 = vmatprep.subr.bf16.mxu0 0
    %8259 = vmatpush1.bf16.msra.mxu0 0
    %8260 = vmatprep.subr.bf16.mxu0 0
    %8261 = vmatpush1.bf16.msra.mxu0 0
    %8262 = vmatprep.subr.bf16.mxu0 0
    %8263 = vmatpush1.bf16.msra.mxu0 0
    %8264 = vmatprep.subr.bf16.mxu0 0
    %8265 = vmatpush1.bf16.msra.mxu0 0
    %8266 = vmatprep.subr.bf16.mxu0 0
    %8267 = vmatpush1.bf16.msra.mxu0 0
    %8268 = vmatprep.subr.bf16.mxu0 0
    %8269 = vmatpush1.bf16.msra.mxu0 0
    %8270 = vmatprep.subr.bf16.mxu0 0
    %8271 = vmatpush1.bf16.msra.mxu0 0
    %8272 = vmatprep.subr.bf16.mxu0 0
    %8273 = vmatpush1.bf16.msra.mxu0 0
    %8274 = vmatprep.subr.bf16.mxu0 0
    %8275 = vmatpush1.bf16.msra.mxu0 0
    %8276 = vmatprep.subr.bf16.mxu0 0
    %8277 = vmatpush1.bf16.msra.mxu0 0
    %8278 = vmatprep.subr.bf16.mxu0 0
    %8279 = vmatpush1.bf16.msra.mxu0 0
    %8280 = vmatprep.subr.bf16.mxu0 0
    %8281 = vmatpush1.bf16.msra.mxu0 0
    %8282 = vmatprep.subr.bf16.mxu0 0
    %8283 = vmatpush1.bf16.msra.mxu0 0
    %8284 = vmatprep.subr.bf16.mxu0 0
    %8285 = vmatpush1.bf16.msra.mxu0 0
    %8286 = vmatprep.mubr.bf16.mxu0 0
    %8287 = vmatmul.mubr.bf16.gmra.mrb[0].mxu0 %v8249
    %v8288 = vpop.f32.mrb[0].mxu0
    %v8289 = vadd.f32 0.0, %v8288
    %v8290 = vpop.f32.mrb[0].mxu0
    %v8291 = vpop.f32.mrb[0].mxu0
    %v8292 = vpop.f32.mrb[0].mxu0
    %8293 = vdwg.mxu0
    %8294 = vrot.lane.b32.xlu0 %v4891, 40
    %v8295 = vpop.permute.xlu0 %8294
    %v8297 = vsel %vm498, %v8051, 0
    %v8300 = vsel %vm997, %v8295, 0
    %8302 = vmatprep.subr.bf16.mxu0 0
    %8303 = vmatpush1.bf16.msra.mxu0 %v8300
    %8304 = vmatprep.subr.bf16.mxu0 0
    %8305 = vmatpush1.bf16.msra.mxu0 0
    %8306 = vmatprep.subr.bf16.mxu0 0
    %8307 = vmatpush1.bf16.msra.mxu0 0
    %8308 = vmatprep.subr.bf16.mxu0 0
    %8309 = vmatpush1.bf16.msra.mxu0 0
    %8310 = vmatprep.subr.bf16.mxu0 0
    %8311 = vmatpush1.bf16.msra.mxu0 0
    %8312 = vmatprep.subr.bf16.mxu0 0
    %8313 = vmatpush1.bf16.msra.mxu0 0
    %8314 = vmatprep.subr.bf16.mxu0 0
    %8315 = vmatpush1.bf16.msra.mxu0 0
    %8316 = vmatprep.subr.bf16.mxu0 0
    %8317 = vmatpush1.bf16.msra.mxu0 0
    %8318 = vmatprep.subr.bf16.mxu0 0
    %8319 = vmatpush1.bf16.msra.mxu0 0
    %8320 = vmatprep.subr.bf16.mxu0 0
    %8321 = vmatpush1.bf16.msra.mxu0 0
    %8322 = vmatprep.subr.bf16.mxu0 0
    %8323 = vmatpush1.bf16.msra.mxu0 0
    %8324 = vmatprep.subr.bf16.mxu0 0
    %8325 = vmatpush1.bf16.msra.mxu0 0
    %8326 = vmatprep.subr.bf16.mxu0 0
    %8327 = vmatpush1.bf16.msra.mxu0 0
    %8328 = vmatprep.subr.bf16.mxu0 0
    %8329 = vmatpush1.bf16.msra.mxu0 0
    %8330 = vmatprep.subr.bf16.mxu0 0
    %8331 = vmatpush1.bf16.msra.mxu0 0
    %8332 = vmatprep.subr.bf16.mxu0 0
    %8333 = vmatpush1.bf16.msra.mxu0 0
    %8334 = vmatprep.mubr.bf16.mxu0 0
    %8335 = vmatmul.mubr.bf16.gmra.mrb[0].mxu0 %v8297
    %v8336 = vpop.f32.mrb[0].mxu0
    %v8337 = vadd.f32 0.0, %v8336
    %v8338 = vpop.f32.mrb[0].mxu0
    %v8339 = vpop.f32.mrb[0].mxu0
    %v8340 = vpop.f32.mrb[0].mxu0
    %8341 = vdwg.mxu0
    %8342 = vrot.lane.b32.xlu0 %v4892, 40
    %v8343 = vpop.permute.xlu0 %8342
    %v8345 = vsel %vm498, %v8052, 0
    %v8348 = vsel %vm997, %v8343, 0
    %8350 = vmatprep.subr.bf16.mxu0 0
    %8351 = vmatpush1.bf16.msra.mxu0 %v8348
    %8352 = vmatprep.subr.bf16.mxu0 0
    %8353 = vmatpush1.bf16.msra.mxu0 0
    %8354 = vmatprep.subr.bf16.mxu0 0
    %8355 = vmatpush1.bf16.msra.mxu0 0
    %8356 = vmatprep.subr.bf16.mxu0 0
    %8357 = vmatpush1.bf16.msra.mxu0 0
    %8358 = vmatprep.subr.bf16.mxu0 0
    %8359 = vmatpush1.bf16.msra.mxu0 0
    %8360 = vmatprep.subr.bf16.mxu0 0
    %8361 = vmatpush1.bf16.msra.mxu0 0
    %8362 = vmatprep.subr.bf16.mxu0 0
    %8363 = vmatpush1.bf16.msra.mxu0 0
    %8364 = vmatprep.subr.bf16.mxu0 0
    %8365 = vmatpush1.bf16.msra.mxu0 0
    %8366 = vmatprep.subr.bf16.mxu0 0
    %8367 = vmatpush1.bf16.msra.mxu0 0
    %8368 = vmatprep.subr.bf16.mxu0 0
    %8369 = vmatpush1.bf16.msra.mxu0 0
    %8370 = vmatprep.subr.bf16.mxu0 0
    %8371 = vmatpush1.bf16.msra.mxu0 0
    %8372 = vmatprep.subr.bf16.mxu0 0
    %8373 = vmatpush1.bf16.msra.mxu0 0
    %8374 = vmatprep.subr.bf16.mxu0 0
    %8375 = vmatpush1.bf16.msra.mxu0 0
    %8376 = vmatprep.subr.bf16.mxu0 0
    %8377 = vmatpush1.bf16.msra.mxu0 0
    %8378 = vmatprep.subr.bf16.mxu0 0
    %8379 = vmatpush1.bf16.msra.mxu0 0
    %8380 = vmatprep.subr.bf16.mxu0 0
    %8381 = vmatpush1.bf16.msra.mxu0 0
    %8382 = vmatprep.mubr.bf16.mxu0 0
    %8383 = vmatmul.mubr.bf16.gmra.mrb[0].mxu0 %v8345
    %v8384 = vpop.f32.mrb[0].mxu0
    %v8385 = vadd.f32 0.0, %v8384
    %v8386 = vpop.f32.mrb[0].mxu0
    %v8387 = vpop.f32.mrb[0].mxu0
    %v8388 = vpop.f32.mrb[0].mxu0
    %8389 = vdwg.mxu0
    %8390 = vrot.lane.b32.xlu0 %v4893, 40
    %v8391 = vpop.permute.xlu0 %8390
    %v8393 = vsel %vm498, %v8053, 0
    %v8396 = vsel %vm997, %v8391, 0
    %8398 = vmatprep.subr.bf16.mxu0 0
    %8399 = vmatpush1.bf16.msra.mxu0 %v8396
    %8400 = vmatprep.subr.bf16.mxu0 0
    %8401 = vmatpush1.bf16.msra.mxu0 0
    %8402 = vmatprep.subr.bf16.mxu0 0
    %8403 = vmatpush1.bf16.msra.mxu0 0
    %8404 = vmatprep.subr.bf16.mxu0 0
    %8405 = vmatpush1.bf16.msra.mxu0 0
    %8406 = vmatprep.subr.bf16.mxu0 0
    %8407 = vmatpush1.bf16.msra.mxu0 0
    %8408 = vmatprep.subr.bf16.mxu0 0
    %8409 = vmatpush1.bf16.msra.mxu0 0
    %8410 = vmatprep.subr.bf16.mxu0 0
    %8411 = vmatpush1.bf16.msra.mxu0 0
    %8412 = vmatprep.subr.bf16.mxu0 0
    %8413 = vmatpush1.bf16.msra.mxu0 0
    %8414 = vmatprep.subr.bf16.mxu0 0
    %8415 = vmatpush1.bf16.msra.mxu0 0
    %8416 = vmatprep.subr.bf16.mxu0 0
    %8417 = vmatpush1.bf16.msra.mxu0 0
    %8418 = vmatprep.subr.bf16.mxu0 0
    %8419 = vmatpush1.bf16.msra.mxu0 0
    %8420 = vmatprep.subr.bf16.mxu0 0
    %8421 = vmatpush1.bf16.msra.mxu0 0
    %8422 = vmatprep.subr.bf16.mxu0 0
    %8423 = vmatpush1.bf16.msra.mxu0 0
    %8424 = vmatprep.subr.bf16.mxu0 0
    %8425 = vmatpush1.bf16.msra.mxu0 0
    %8426 = vmatprep.subr.bf16.mxu0 0
    %8427 = vmatpush1.bf16.msra.mxu0 0
    %8428 = vmatprep.subr.bf16.mxu0 0
    %8429 = vmatpush1.bf16.msra.mxu0 0
    %8430 = vmatprep.mubr.bf16.mxu0 0
    %8431 = vmatmul.mubr.bf16.gmra.mrb[0].mxu0 %v8393
    %v8432 = vpop.f32.mrb[0].mxu0
    %v8433 = vadd.f32 0.0, %v8432
    %v8434 = vpop.f32.mrb[0].mxu0
    %v8435 = vpop.f32.mrb[0].mxu0
    %v8436 = vpop.f32.mrb[0].mxu0
    %8437 = vdwg.mxu0
    %8446 = vrot.lane.b32.xlu0 %v6321, 8
    %v8447 = vpop.permute.xlu0 %8446
    %8448 = vrot.lane.b32.xlu0 %v6369, 8
    %v8449 = vpop.permute.xlu0 %8448
    %8450 = vrot.lane.b32.xlu0 %v6417, 8
    %v8451 = vpop.permute.xlu0 %8450
    %8452 = vrot.lane.b32.xlu0 %v6465, 8
    %v8453 = vpop.permute.xlu0 %8452
    %8454 = vrot.lane.b32.xlu0 %v6513, 8
    %v8455 = vpop.permute.xlu0 %8454
    %8456 = vrot.lane.b32.xlu0 %v6561, 8
    %v8457 = vpop.permute.xlu0 %8456
    %8458 = vrot.lane.b32.xlu0 %v6609, 8
    %v8459 = vpop.permute.xlu0 %8458
    %8460 = vrot.lane.b32.xlu0 %v6657, 8
    %v8461 = vpop.permute.xlu0 %8460
    %8478 = vrot.lane.b32.xlu0 %v7209, 16
    %v8479 = vpop.permute.xlu0 %8478
    %8480 = vrot.lane.b32.xlu0 %v7257, 16
    %v8481 = vpop.permute.xlu0 %8480
    %8482 = vrot.lane.b32.xlu0 %v7305, 16
    %v8483 = vpop.permute.xlu0 %8482
    %8484 = vrot.lane.b32.xlu0 %v7353, 16
    %v8485 = vpop.permute.xlu0 %8484
    %8486 = vrot.lane.b32.xlu0 %v7401, 16
    %v8487 = vpop.permute.xlu0 %8486
    %8488 = vrot.lane.b32.xlu0 %v7449, 16
    %v8489 = vpop.permute.xlu0 %8488
    %8490 = vrot.lane.b32.xlu0 %v7497, 16
    %v8491 = vpop.permute.xlu0 %8490
    %8492 = vrot.lane.b32.xlu0 %v7545, 16
    %v8493 = vpop.permute.xlu0 %8492
    %8510 = vrot.lane.b32.xlu0 %v8097, 24
    %v8511 = vpop.permute.xlu0 %8510
    %8512 = vrot.lane.b32.xlu0 %v8145, 24
    %v8513 = vpop.permute.xlu0 %8512
    %8514 = vrot.lane.b32.xlu0 %v8193, 24
    %v8515 = vpop.permute.xlu0 %8514
    %8516 = vrot.lane.b32.xlu0 %v8241, 24
    %v8517 = vpop.permute.xlu0 %8516
    %8518 = vrot.lane.b32.xlu0 %v8289, 24
    %v8519 = vpop.permute.xlu0 %8518
    %8520 = vrot.lane.b32.xlu0 %v8337, 24
    %v8521 = vpop.permute.xlu0 %8520
    %8522 = vrot.lane.b32.xlu0 %v8385, 24
    %v8523 = vpop.permute.xlu0 %8522
    %8524 = vrot.lane.b32.xlu0 %v8433, 24
    %v8525 = vpop.permute.xlu0 %8524
    %v8534 = vsel %vm498, %v5433, %v8447
    %v8535 = vsel %vm498, %v5481, %v8449
    %v8536 = vsel %vm498, %v5529, %v8451
    %v8537 = vsel %vm498, %v5577, %v8453
    %v8538 = vsel %vm498, %v5625, %v8455
    %v8539 = vsel %vm498, %v5673, %v8457
    %v8540 = vsel %vm498, %v5721, %v8459
    %v8541 = vsel %vm498, %v5769, %v8461
    %v8542 = vsel %vm295, %v8534, %v8479
    %v8543 = vsel %vm295, %v8535, %v8481
    %v8544 = vsel %vm295, %v8536, %v8483
    %v8545 = vsel %vm295, %v8537, %v8485
    %v8546 = vsel %vm295, %v8538, %v8487
    %v8547 = vsel %vm295, %v8539, %v8489
    %v8548 = vsel %vm295, %v8540, %v8491
    %v8549 = vsel %vm295, %v8541, %v8493
    %v8550 = vsel %vm4153, %v8542, %v8511
    %v8551 = vsel %vm4153, %v8543, %v8513
    %v8552 = vsel %vm4153, %v8544, %v8515
    %v8553 = vsel %vm4153, %v8545, %v8517
    %v8554 = vsel %vm4153, %v8546, %v8519
    %v8555 = vsel %vm4153, %v8547, %v8521
    %v8556 = vsel %vm4153, %v8548, %v8523
    %v8557 = vsel %vm4153, %v8549, %v8525
    %v8558 = vpack.c.bf16 %v8551, %v8550
    %v8559 = vpack.c.bf16 %v8553, %v8552
    %v8560 = vpack.c.bf16 %v8555, %v8554
    %v8561 = vpack.c.bf16 %v8557, %v8556
    %s8562 = scalar_lea.vmem [#allocation13], 16
    %v8563 = vld [vmem:[%s8562] sm:$0xf]
    %v8564 = vld [vmem:[%s8562 + $0x4] sm:$0xf]
    %v8565 = vld [vmem:[%s8562 + $0x8] sm:$0xf]
    %v8566 = vld [vmem:[%s8562 + $0xc] sm:$0xf]
    %s8567 = scalar_lea.vmem [#allocation14], 1
    %v8568 = vld [vmem:[%s8567] sm:$0x1]
    %v8570 = vlaneseq
    %v8571 = vshrl.u32 %v8570, 7
    %v8572 = vsub.s32 0, %v8571
    %v8573 = vrot.slane %v8568, %v8572
    %v8579 = vunpack.c.l.b16 %v8563
    %v8580 = vunpack.c.l.b16 %v8564
    %v8581 = vunpack.c.l.b16 %v8565
    %v8582 = vunpack.c.l.b16 %v8566
    %v8583 = vpack.c.b16 %v8580, %v8579
    %v8584 = vpack.c.b16 %v8582, %v8581
    %v8588 = vsel %vm409, %v8558, 0
    %v8591 = vsel %vm409, %v8559, 0
    %v8594 = vsel %vm409, %v8560, 0
    %v8597 = vsel %vm409, %v8561, 0
    %8599 = vmatprep.subr.bf16.mxu0 0
    %8600 = vmatpush1.bf16.msra.mxu0 %v8583
    %8601 = vmatprep.subr.bf16.mxu0 0
    %8602 = vmatpush1.bf16.msra.mxu0 %v8584
    %8603 = vmatprep.subr.bf16.mxu0 0
    %8604 = vmatpush1.bf16.msra.mxu0 0
    %8605 = vmatprep.subr.bf16.mxu0 0
    %8606 = vmatpush1.bf16.msra.mxu0 0
    %8607 = vmatprep.subr.bf16.mxu0 0
    %8608 = vmatpush1.bf16.msra.mxu0 0
    %8609 = vmatprep.subr.bf16.mxu0 0
    %8610 = vmatpush1.bf16.msra.mxu0 0
    %8611 = vmatprep.subr.bf16.mxu0 0
    %8612 = vmatpush1.bf16.msra.mxu0 0
    %8613 = vmatprep.subr.bf16.mxu0 0
    %8614 = vmatpush1.bf16.msra.mxu0 0
    %8615 = vmatprep.subr.bf16.mxu0 0
    %8616 = vmatpush1.bf16.msra.mxu0 0
    %8617 = vmatprep.subr.bf16.mxu0 0
    %8618 = vmatpush1.bf16.msra.mxu0 0
    %8619 = vmatprep.subr.bf16.mxu0 0
    %8620 = vmatpush1.bf16.msra.mxu0 0
    %8621 = vmatprep.subr.bf16.mxu0 0
    %8622 = vmatpush1.bf16.msra.mxu0 0
    %8623 = vmatprep.subr.bf16.mxu0 0
    %8624 = vmatpush1.bf16.msra.mxu0 0
    %8625 = vmatprep.subr.bf16.mxu0 0
    %8626 = vmatpush1.bf16.msra.mxu0 0
    %8627 = vmatprep.subr.bf16.mxu0 0
    %8628 = vmatpush1.bf16.msra.mxu0 0
    %8629 = vmatprep.subr.bf16.mxu0 0
    %8630 = vmatpush1.bf16.msra.mxu0 0
    %8631 = vmatprep.mubr.bf16.mxu0 0
    %8632 = vmatmul.mubr.bf16.gmra.mrb[0].mxu0 %v8588
    %v8633 = vpop.f32.mrb[0].mxu0
    %v8634 = vadd.f32 %v8573, %v8633
    %v8635 = vpop.f32.mrb[0].mxu0
    %v8636 = vpop.f32.mrb[0].mxu0
    %v8637 = vadd.f32 %v8573, %v8636
    %v8638 = vpop.f32.mrb[0].mxu0
    %8639 = vmatprep.mubr.bf16.mxu0 0
    %8640 = vmatmul.mubr.bf16.gmra.mrb[0].mxu0 %v8591
    %v8641 = vpop.f32.mrb[0].mxu0
    %v8642 = vadd.f32 %v8573, %v8641
    %v8643 = vpop.f32.mrb[0].mxu0
    %v8644 = vpop.f32.mrb[0].mxu0
    %v8645 = vadd.f32 %v8573, %v8644
    %v8646 = vpop.f32.mrb[0].mxu0
    %8647 = vmatprep.mubr.bf16.mxu0 0
    %8648 = vmatmul.mubr.bf16.gmra.mrb[0].mxu0 %v8594
    %v8649 = vpop.f32.mrb[0].mxu0
    %v8650 = vadd.f32 %v8573, %v8649
    %v8651 = vpop.f32.mrb[0].mxu0
    %v8652 = vpop.f32.mrb[0].mxu0
    %v8653 = vadd.f32 %v8573, %v8652
    %v8654 = vpop.f32.mrb[0].mxu0
    %8655 = vmatprep.mubr.bf16.mxu0 0
    %8656 = vmatmul.mubr.bf16.gmra.mrb[0].mxu0 %v8597
    %v8657 = vpop.f32.mrb[0].mxu0
    %v8658 = vadd.f32 %v8573, %v8657
    %v8659 = vpop.f32.mrb[0].mxu0
    %v8660 = vpop.f32.mrb[0].mxu0
    %v8661 = vadd.f32 %v8573, %v8660
    %v8662 = vpop.f32.mrb[0].mxu0
    %8663 = vdwg.mxu0
    %v8664 = vadd.f32 %v4772, %v8634
    %v8665 = vadd.f32 %v4773, %v8637
    %v8666 = vadd.f32 %v4774, %v8642
    %v8667 = vadd.f32 %v4775, %v8645
    %v8668 = vadd.f32 %v4776, %v8650
    %v8669 = vadd.f32 %v4777, %v8653
    %v8670 = vadd.f32 %v4778, %v8658
    %v8671 = vadd.f32 %v4779, %v8661
    %v8672 = vsel %vm409, %v8664, 0.0
    %v8673 = vsel %vm409, %v8665, 0.0
    %v8674 = vadd.f32 %v8672, %v8673
    %v8675 = vsel %vm409, %v8666, 0.0
    %v8676 = vadd.f32 %v8674, %v8675
    %v8677 = vsel %vm409, %v8667, 0.0
    %v8678 = vadd.f32 %v8676, %v8677
    %v8679 = vsel %vm409, %v8668, 0.0
    %v8680 = vadd.f32 %v8678, %v8679
    %v8681 = vsel %vm409, %v8669, 0.0
    %v8682 = vadd.f32 %v8680, %v8681
    %v8683 = vsel %vm409, %v8670, 0.0
    %v8684 = vadd.f32 %v8682, %v8683
    %v8685 = vsel %vm409, %v8671, 0.0
    %v8686 = vadd.f32 %v8684, %v8685
    %v8687 = vrot.slane %v8686, 4
    %v8688 = vadd.f32 %v8686, %v8687
    %v8689 = vrot.slane %v8688, 2
    %v8690 = vadd.f32 %v8688, %v8689
    %v8691 = vrot.slane %v8690, 1
    %v8692 = vadd.f32 %v8690, %v8691
    %v8693 = vmul.f32 %v8692, %v4295
    %v8694 = vsub.f32 %v8664, %v8693
    %v8695 = vsub.f32 %v8665, %v8693
    %v8696 = vsub.f32 %v8666, %v8693
    %v8697 = vsub.f32 %v8667, %v8693
    %v8698 = vsub.f32 %v8668, %v8693
    %v8699 = vsub.f32 %v8669, %v8693
    %v8700 = vsub.f32 %v8670, %v8693
    %v8701 = vsub.f32 %v8671, %v8693
    %v8702 = vmul.f32 %v8694, %v8694
    %v8703 = vmul.f32 %v8695, %v8695
    %v8704 = vmul.f32 %v8696, %v8696
    %v8705 = vmul.f32 %v8697, %v8697
    %v8706 = vmul.f32 %v8698, %v8698
    %v8707 = vmul.f32 %v8699, %v8699
    %v8708 = vmul.f32 %v8700, %v8700
    %v8709 = vmul.f32 %v8701, %v8701
    %v8710 = vsel %vm409, %v8702, 0.0
    %v8711 = vsel %vm409, %v8703, 0.0
    %v8712 = vadd.f32 %v8710, %v8711
    %v8713 = vsel %vm409, %v8704, 0.0
    %v8714 = vadd.f32 %v8712, %v8713
    %v8715 = vsel %vm409, %v8705, 0.0
    %v8716 = vadd.f32 %v8714, %v8715
    %v8717 = vsel %vm409, %v8706, 0.0
    %v8718 = vadd.f32 %v8716, %v8717
    %v8719 = vsel %vm409, %v8707, 0.0
    %v8720 = vadd.f32 %v8718, %v8719
    %v8721 = vsel %vm409, %v8708, 0.0
    %v8722 = vadd.f32 %v8720, %v8721
    %v8723 = vsel %vm409, %v8709, 0.0
    %v8724 = vadd.f32 %v8722, %v8723
    %v8725 = vrot.slane %v8724, 4
    %v8726 = vadd.f32 %v8724, %v8725
    %v8727 = vrot.slane %v8726, 2
    %v8728 = vadd.f32 %v8726, %v8727
    %v8729 = vrot.slane %v8728, 1
    %v8730 = vadd.f32 %v8728, %v8729
    %v8731 = vmul.f32 %v8730, %v4295
    %v8732 = vadd.f32 %v8731, 1e-05
    %v8733 = vrsqrt.pop %v8732
    %v8734 = vmul.f32 %v8694, %v8733
    %v8735 = vmul.f32 %v8695, %v8733
    %v8736 = vmul.f32 %v8696, %v8733
    %v8737 = vmul.f32 %v8697, %v8733
    %v8738 = vmul.f32 %v8698, %v8733
    %v8739 = vmul.f32 %v8699, %v8733
    %v8740 = vmul.f32 %v8700, %v8733
    %v8741 = vmul.f32 %v8701, %v8733
    %s8742 = scalar_lea.vmem [#allocation16], 1
    %v8743 = vld [vmem:[%s8742] sm:$0x1]
    %v8745 = vlaneseq
    %v8746 = vshrl.u32 %v8745, 7
    %v8747 = vsub.s32 0, %v8746
    %v8748 = vrot.slane %v8743, %v8747
    %v8750 = vmul.f32 %v8734, %v8748
    %v8751 = vmul.f32 %v8735, %v8748
    %v8752 = vmul.f32 %v8736, %v8748
    %v8753 = vmul.f32 %v8737, %v8748
    %v8754 = vmul.f32 %v8738, %v8748
    %v8755 = vmul.f32 %v8739, %v8748
    %v8756 = vmul.f32 %v8740, %v8748
    %v8757 = vmul.f32 %v8741, %v8748
    %s8758 = scalar_lea.vmem [#allocation17], 1
    %v8759 = vld [vmem:[%s8758] sm:$0x1]
    %v8761 = vlaneseq
    %v8762 = vshrl.u32 %v8761, 7
    %v8763 = vsub.s32 0, %v8762
    %v8764 = vrot.slane %v8759, %v8763
    %v8766 = vadd.f32 %v8750, %v8764
    %v8767 = vadd.f32 %v8751, %v8764
    %v8768 = vadd.f32 %v8752, %v8764
    %v8769 = vadd.f32 %v8753, %v8764
    %v8770 = vadd.f32 %v8754, %v8764
    %v8771 = vadd.f32 %v8755, %v8764
    %v8772 = vadd.f32 %v8756, %v8764
    %v8773 = vadd.f32 %v8757, %v8764
    %v8774 = vpack.c.bf16 %v8767, %v8766
    %v8775 = vpack.c.bf16 %v8769, %v8768
    %v8776 = vpack.c.bf16 %v8771, %v8770
    %v8777 = vpack.c.bf16 %v8773, %v8772
    %s8778 = scalar_lea.vmem [#allocation19], 16
    %v8779 = vld [vmem:[%s8778] sm:$0xf]
    %v8780 = vld [vmem:[%s8778 + $0x4] sm:$0xf]
    %v8781 = vld [vmem:[%s8778 + $0x8] sm:$0xf]
    %v8782 = vld [vmem:[%s8778 + $0xc] sm:$0xf]
    %s8783 = scalar_lea.vmem [#allocation20], 1
    %v8784 = vld [vmem:[%s8783] sm:$0x1]
    %v8786 = vlaneseq
    %v8787 = vshrl.u32 %v8786, 7
    %v8788 = vsub.s32 0, %v8787
    %v8789 = vrot.slane %v8784, %v8788
    %v8795 = vunpack.c.l.b16 %v8779
    %v8796 = vunpack.c.l.b16 %v8780
    %v8797 = vunpack.c.l.b16 %v8781
    %v8798 = vunpack.c.l.b16 %v8782
    %v8799 = vpack.c.b16 %v8796, %v8795
    %v8800 = vpack.c.b16 %v8798, %v8797
    %v8804 = vsel %vm409, %v8774, 0
    %v8807 = vsel %vm409, %v8775, 0
    %v8810 = vsel %vm409, %v8776, 0
    %v8813 = vsel %vm409, %v8777, 0
    %8815 = vmatprep.subr.bf16.mxu0 0
    %8816 = vmatpush1.bf16.msra.mxu0 %v8799
    %8817 = vmatprep.subr.bf16.mxu0 0
    %8818 = vmatpush1.bf16.msra.mxu0 %v8800
    %8819 = vmatprep.subr.bf16.mxu0 0
    %8820 = vmatpush1.bf16.msra.mxu0 0
    %8821 = vmatprep.subr.bf16.mxu0 0
    %8822 = vmatpush1.bf16.msra.mxu0 0
    %8823 = vmatprep.subr.bf16.mxu0 0
    %8824 = vmatpush1.bf16.msra.mxu0 0
    %8825 = vmatprep.subr.bf16.mxu0 0
    %8826 = vmatpush1.bf16.msra.mxu0 0
    %8827 = vmatprep.subr.bf16.mxu0 0
    %8828 = vmatpush1.bf16.msra.mxu0 0
    %8829 = vmatprep.subr.bf16.mxu0 0
    %8830 = vmatpush1.bf16.msra.mxu0 0
    %8831 = vmatprep.subr.bf16.mxu0 0
    %8832 = vmatpush1.bf16.msra.mxu0 0
    %8833 = vmatprep.subr.bf16.mxu0 0
    %8834 = vmatpush1.bf16.msra.mxu0 0
    %8835 = vmatprep.subr.bf16.mxu0 0
    %8836 = vmatpush1.bf16.msra.mxu0 0
    %8837 = vmatprep.subr.bf16.mxu0 0
    %8838 = vmatpush1.bf16.msra.mxu0 0
    %8839 = vmatprep.subr.bf16.mxu0 0
    %8840 = vmatpush1.bf16.msra.mxu0 0
    %8841 = vmatprep.subr.bf16.mxu0 0
    %8842 = vmatpush1.bf16.msra.mxu0 0
    %8843 = vmatprep.subr.bf16.mxu0 0
    %8844 = vmatpush1.bf16.msra.mxu0 0
    %8845 = vmatprep.subr.bf16.mxu0 0
    %8846 = vmatpush1.bf16.msra.mxu0 0
    %8847 = vmatprep.mubr.bf16.mxu0 0
    %8848 = vmatmul.mubr.bf16.gmra.mrb[0].mxu0 %v8804
    %v8849 = vpop.f32.mrb[0].mxu0
    %v8850 = vadd.f32 %v8789, %v8849
    %v8851 = vpop.f32.mrb[0].mxu0
    %v8852 = vpop.f32.mrb[0].mxu0
    %v8853 = vadd.f32 %v8789, %v8852
    %v8854 = vpop.f32.mrb[0].mxu0
    %8855 = vmatprep.mubr.bf16.mxu0 0
    %8856 = vmatmul.mubr.bf16.gmra.mrb[0].mxu0 %v8807
    %v8857 = vpop.f32.mrb[0].mxu0
    %v8858 = vadd.f32 %v8789, %v8857
    %v8859 = vpop.f32.mrb[0].mxu0
    %v8860 = vpop.f32.mrb[0].mxu0
    %v8861 = vadd.f32 %v8789, %v8860
    %v8862 = vpop.f32.mrb[0].mxu0
    %8863 = vmatprep.mubr.bf16.mxu0 0
    %8864 = vmatmul.mubr.bf16.gmra.mrb[0].mxu0 %v8810
    %v8865 = vpop.f32.mrb[0].mxu0
    %v8866 = vadd.f32 %v8789, %v8865
    %v8867 = vpop.f32.mrb[0].mxu0
    %v8868 = vpop.f32.mrb[0].mxu0
    %v8869 = vadd.f32 %v8789, %v8868
    %v8870 = vpop.f32.mrb[0].mxu0
    %8871 = vmatprep.mubr.bf16.mxu0 0
    %8872 = vmatmul.mubr.bf16.gmra.mrb[0].mxu0 %v8813
    %v8873 = vpop.f32.mrb[0].mxu0
    %v8874 = vadd.f32 %v8789, %v8873
    %v8875 = vpop.f32.mrb[0].mxu0
    %v8876 = vpop.f32.mrb[0].mxu0
    %v8877 = vadd.f32 %v8789, %v8876
    %v8878 = vpop.f32.mrb[0].mxu0
    %8879 = vdwg.mxu0
    %v8880 = vmul.f32 %v8850, %v8850
    %v8881 = vmul.f32 %v8853, %v8853
    %v8882 = vmul.f32 %v8858, %v8858
    %v8883 = vmul.f32 %v8861, %v8861
    %v8884 = vmul.f32 %v8866, %v8866
    %v8885 = vmul.f32 %v8869, %v8869
    %v8886 = vmul.f32 %v8874, %v8874
    %v8887 = vmul.f32 %v8877, %v8877
    %v8888 = vmul.f32 %v8850, %v8880
    %v8889 = vmul.f32 %v8853, %v8881
    %v8890 = vmul.f32 %v8858, %v8882
    %v8891 = vmul.f32 %v8861, %v8883
    %v8892 = vmul.f32 %v8866, %v8884
    %v8893 = vmul.f32 %v8869, %v8885
    %v8894 = vmul.f32 %v8874, %v8886
    %v8895 = vmul.f32 %v8877, %v8887
    %v8896 = vmul.f32 %v8888, 0.044715
    %v8897 = vmul.f32 %v8889, 0.044715
    %v8898 = vmul.f32 %v8890, 0.044715
    %v8899 = vmul.f32 %v8891, 0.044715
    %v8900 = vmul.f32 %v8892, 0.044715
    %v8901 = vmul.f32 %v8893, 0.044715
    %v8902 = vmul.f32 %v8894, 0.044715
    %v8903 = vmul.f32 %v8895, 0.044715
    %v8904 = vadd.f32 %v8850, %v8896
    %v8905 = vadd.f32 %v8853, %v8897
    %v8906 = vadd.f32 %v8858, %v8898
    %v8907 = vadd.f32 %v8861, %v8899
    %v8908 = vadd.f32 %v8866, %v8900
    %v8909 = vadd.f32 %v8869, %v8901
    %v8910 = vadd.f32 %v8874, %v8902
    %v8911 = vadd.f32 %v8877, %v8903
    %v8912 = vmul.f32 %v8904, 0.7978846
    %v8913 = vmul.f32 %v8905, 0.7978846
    %v8914 = vmul.f32 %v8906, 0.7978846
    %v8915 = vmul.f32 %v8907, 0.7978846
    %v8916 = vmul.f32 %v8908, 0.7978846
    %v8917 = vmul.f32 %v8909, 0.7978846
    %v8918 = vmul.f32 %v8910, 0.7978846
    %v8919 = vmul.f32 %v8911, 0.7978846
    %v8920 = vtanh.pop %v8912
    %v8921 = vtanh.pop %v8913
    %v8922 = vtanh.pop %v8914
    %v8923 = vtanh.pop %v8915
    %v8924 = vtanh.pop %v8916
    %v8925 = vtanh.pop %v8917
    %v8926 = vtanh.pop %v8918
    %v8927 = vtanh.pop %v8919
    %v8928 = vadd.f32 %v8920, 1.0
    %v8929 = vadd.f32 %v8921, 1.0
    %v8930 = vadd.f32 %v8922, 1.0
    %v8931 = vadd.f32 %v8923, 1.0
    %v8932 = vadd.f32 %v8924, 1.0
    %v8933 = vadd.f32 %v8925, 1.0
    %v8934 = vadd.f32 %v8926, 1.0
    %v8935 = vadd.f32 %v8927, 1.0
    %v8936 = vmul.f32 %v8928, 0.5
    %v8937 = vmul.f32 %v8929, 0.5
    %v8938 = vmul.f32 %v8930, 0.5
    %v8939 = vmul.f32 %v8931, 0.5
    %v8940 = vmul.f32 %v8932, 0.5
    %v8941 = vmul.f32 %v8933, 0.5
    %v8942 = vmul.f32 %v8934, 0.5
    %v8943 = vmul.f32 %v8935, 0.5
    %v8944 = vmul.f32 %v8850, %v8936
    %v8945 = vmul.f32 %v8853, %v8937
    %v8946 = vmul.f32 %v8858, %v8938
    %v8947 = vmul.f32 %v8861, %v8939
    %v8948 = vmul.f32 %v8866, %v8940
    %v8949 = vmul.f32 %v8869, %v8941
    %v8950 = vmul.f32 %v8874, %v8942
    %v8951 = vmul.f32 %v8877, %v8943
    %v8952 = vpack.c.bf16 %v8945, %v8944
    %v8953 = vpack.c.bf16 %v8947, %v8946
    %v8954 = vpack.c.bf16 %v8949, %v8948
    %v8955 = vpack.c.bf16 %v8951, %v8950
    %s8956 = scalar_lea.vmem [#allocation22], 32
    %v8957 = vld [vmem:[%s8956] sm:$0xf]
    %v8958 = vld [vmem:[%s8956 + $0x4] sm:$0xf]
    %v8959 = vld [vmem:[%s8956 + $0x8] sm:$0xf]
    %v8960 = vld [vmem:[%s8956 + $0xc] sm:$0xf]
    %v8961 = vld [vmem:[%s8956 + $0x10] sm:$0xf]
    %v8962 = vld [vmem:[%s8956 + $0x14] sm:$0xf]
    %v8963 = vld [vmem:[%s8956 + $0x18] sm:$0xf]
    %v8964 = vld [vmem:[%s8956 + $0x1c] sm:$0xf]
    %s8965 = scalar_lea.vmem [#allocation23], 1
    %v8966 = vld [vmem:[%s8965] sm:$0x1]
    %v8968 = vlaneseq
    %v8969 = vshrl.u32 %v8968, 7
    %v8970 = vsub.s32 0, %v8969
    %v8971 = vrot.slane %v8966, %v8970
    %v8981 = vunpack.c.l.b16 %v8957
    %v8982 = vunpack.c.l.b16 %v8958
    %v8983 = vunpack.c.l.b16 %v8959
    %v8984 = vunpack.c.l.b16 %v8960
    %v8985 = vunpack.c.l.b16 %v8961
    %v8986 = vunpack.c.l.b16 %v8962
    %v8987 = vunpack.c.l.b16 %v8963
    %v8988 = vunpack.c.l.b16 %v8964
    %v8989 = vpack.c.b16 %v8982, %v8981
    %v8990 = vpack.c.b16 %v8984, %v8983
    %v8991 = vpack.c.b16 %v8986, %v8985
    %v8992 = vpack.c.b16 %v8988, %v8987
    %v8998 = vsel %vm4594, %v8952, 0
    %v9001 = vsel %vm4594, %v8953, 0
    %v9004 = vsel %vm4594, %v8954, 0
    %v9007 = vsel %vm4594, %v8955, 0
    %9009 = vmatprep.subr.bf16.mxu0 0
    %9010 = vmatpush1.bf16.msra.mxu0 %v8989
    %9011 = vmatprep.subr.bf16.mxu0 0
    %9012 = vmatpush1.bf16.msra.mxu0 %v8990
    %9013 = vmatprep.subr.bf16.mxu0 0
    %9014 = vmatpush1.bf16.msra.mxu0 %v8991
    %9015 = vmatprep.subr.bf16.mxu0 0
    %9016 = vmatpush1.bf16.msra.mxu0 %v8992
    %9017 = vmatprep.subr.bf16.mxu0 0
    %9018 = vmatpush1.bf16.msra.mxu0 0
    %9019 = vmatprep.subr.bf16.mxu0 0
    %9020 = vmatpush1.bf16.msra.mxu0 0
    %9021 = vmatprep.subr.bf16.mxu0 0
    %9022 = vmatpush1.bf16.msra.mxu0 0
    %9023 = vmatprep.subr.bf16.mxu0 0
    %9024 = vmatpush1.bf16.msra.mxu0 0
    %9025 = vmatprep.subr.bf16.mxu0 0
    %9026 = vmatpush1.bf16.msra.mxu0 0
    %9027 = vmatprep.subr.bf16.mxu0 0
    %9028 = vmatpush1.bf16.msra.mxu0 0
    %9029 = vmatprep.subr.bf16.mxu0 0
    %9030 = vmatpush1.bf16.msra.mxu0 0
    %9031 = vmatprep.subr.bf16.mxu0 0
    %9032 = vmatpush1.bf16.msra.mxu0 0
    %9033 = vmatprep.subr.bf16.mxu0 0
    %9034 = vmatpush1.bf16.msra.mxu0 0
    %9035 = vmatprep.subr.bf16.mxu0 0
    %9036 = vmatpush1.bf16.msra.mxu0 0
    %9037 = vmatprep.subr.bf16.mxu0 0
    %9038 = vmatpush1.bf16.msra.mxu0 0
    %9039 = vmatprep.subr.bf16.mxu0 0
    %9040 = vmatpush1.bf16.msra.mxu0 0
    %9041 = vmatprep.mubr.bf16.mxu0 0
    %9042 = vmatmul.mubr.bf16.gmra.mrb[0].mxu0 %v8998
    %v9043 = vpop.f32.mrb[0].mxu0
    %v9044 = vadd.f32 %v8971, %v9043
    %v9045 = vpop.f32.mrb[0].mxu0
    %v9046 = vpop.f32.mrb[0].mxu0
    %v9047 = vadd.f32 %v8971, %v9046
    %v9048 = vpop.f32.mrb[0].mxu0
    %9049 = vmatprep.mubr.bf16.mxu0 0
    %9050 = vmatmul.mubr.bf16.gmra.mrb[0].mxu0 %v9001
    %v9051 = vpop.f32.mrb[0].mxu0
    %v9052 = vadd.f32 %v8971, %v9051
    %v9053 = vpop.f32.mrb[0].mxu0
    %v9054 = vpop.f32.mrb[0].mxu0
    %v9055 = vadd.f32 %v8971, %v9054
    %v9056 = vpop.f32.mrb[0].mxu0
    %9057 = vmatprep.mubr.bf16.mxu0 0
    %9058 = vmatmul.mubr.bf16.gmra.mrb[0].mxu0 %v9004
    %v9059 = vpop.f32.mrb[0].mxu0
    %v9060 = vadd.f32 %v8971, %v9059
    %v9061 = vpop.f32.mrb[0].mxu0
    %v9062 = vpop.f32.mrb[0].mxu0
    %v9063 = vadd.f32 %v8971, %v9062
    %v9064 = vpop.f32.mrb[0].mxu0
    %9065 = vmatprep.mubr.bf16.mxu0 0
    %9066 = vmatmul.mubr.bf16.gmra.mrb[0].mxu0 %v9007
    %v9067 = vpop.f32.mrb[0].mxu0
    %v9068 = vadd.f32 %v8971, %v9067
    %v9069 = vpop.f32.mrb[0].mxu0
    %v9070 = vpop.f32.mrb[0].mxu0
    %v9071 = vadd.f32 %v8971, %v9070
    %v9072 = vpop.f32.mrb[0].mxu0
    %9073 = vdwg.mxu0
    %v9074 = vadd.f32 %v8766, %v9044
    %v9075 = vadd.f32 %v8767, %v9047
    %v9076 = vadd.f32 %v8768, %v9052
    %v9077 = vadd.f32 %v8769, %v9055
    %v9078 = vadd.f32 %v8770, %v9060
    %v9079 = vadd.f32 %v8771, %v9063
    %v9080 = vadd.f32 %v8772, %v9068
    %v9081 = vadd.f32 %v8773, %v9071
    %v9082 = vsel %vm409, %v9074, 0.0
    %v9083 = vsel %vm409, %v9075, 0.0
    %v9084 = vadd.f32 %v9082, %v9083
    %v9085 = vsel %vm409, %v9076, 0.0
    %v9086 = vadd.f32 %v9084, %v9085
    %v9087 = vsel %vm409, %v9077, 0.0
    %v9088 = vadd.f32 %v9086, %v9087
    %v9089 = vsel %vm409, %v9078, 0.0
    %v9090 = vadd.f32 %v9088, %v9089
    %v9091 = vsel %vm409, %v9079, 0.0
    %v9092 = vadd.f32 %v9090, %v9091
    %v9093 = vsel %vm409, %v9080, 0.0
    %v9094 = vadd.f32 %v9092, %v9093
    %v9095 = vsel %vm409, %v9081, 0.0
    %v9096 = vadd.f32 %v9094, %v9095
    %v9097 = vrot.slane %v9096, 4
    %v9098 = vadd.f32 %v9096, %v9097
    %v9099 = vrot.slane %v9098, 2
    %v9100 = vadd.f32 %v9098, %v9099
    %v9101 = vrot.slane %v9100, 1
    %v9102 = vadd.f32 %v9100, %v9101
    %v9103 = vmul.f32 %v9102, %v4295
    %v9104 = vsub.f32 %v9074, %v9103
    %v9105 = vsub.f32 %v9075, %v9103
    %v9106 = vsub.f32 %v9076, %v9103
    %v9107 = vsub.f32 %v9077, %v9103
    %v9108 = vsub.f32 %v9078, %v9103
    %v9109 = vsub.f32 %v9079, %v9103
    %v9110 = vsub.f32 %v9080, %v9103
    %v9111 = vsub.f32 %v9081, %v9103
    %v9112 = vmul.f32 %v9104, %v9104
    %v9113 = vmul.f32 %v9105, %v9105
    %v9114 = vmul.f32 %v9106, %v9106
    %v9115 = vmul.f32 %v9107, %v9107
    %v9116 = vmul.f32 %v9108, %v9108
    %v9117 = vmul.f32 %v9109, %v9109
    %v9118 = vmul.f32 %v9110, %v9110
    %v9119 = vmul.f32 %v9111, %v9111
    %v9120 = vsel %vm409, %v9112, 0.0
    %v9121 = vsel %vm409, %v9113, 0.0
    %v9122 = vadd.f32 %v9120, %v9121
    %v9123 = vsel %vm409, %v9114, 0.0
    %v9124 = vadd.f32 %v9122, %v9123
    %v9125 = vsel %vm409, %v9115, 0.0
    %v9126 = vadd.f32 %v9124, %v9125
    %v9127 = vsel %vm409, %v9116, 0.0
    %v9128 = vadd.f32 %v9126, %v9127
    %v9129 = vsel %vm409, %v9117, 0.0
    %v9130 = vadd.f32 %v9128, %v9129
    %v9131 = vsel %vm409, %v9118, 0.0
    %v9132 = vadd.f32 %v9130, %v9131
    %v9133 = vsel %vm409, %v9119, 0.0
    %v9134 = vadd.f32 %v9132, %v9133
    %v9135 = vrot.slane %v9134, 4
    %v9136 = vadd.f32 %v9134, %v9135
    %v9137 = vrot.slane %v9136, 2
    %v9138 = vadd.f32 %v9136, %v9137
    %v9139 = vrot.slane %v9138, 1
    %v9140 = vadd.f32 %v9138, %v9139
    %v9141 = vmul.f32 %v9140, %v4295
    %v9142 = vadd.f32 %v9141, 1e-05
    %v9143 = vrsqrt.pop %v9142
    %v9144 = vmul.f32 %v9104, %v9143
    %v9145 = vmul.f32 %v9105, %v9143
    %v9146 = vmul.f32 %v9106, %v9143
    %v9147 = vmul.f32 %v9107, %v9143
    %v9148 = vmul.f32 %v9108, %v9143
    %v9149 = vmul.f32 %v9109, %v9143
    %v9150 = vmul.f32 %v9110, %v9143
    %v9151 = vmul.f32 %v9111, %v9143
    %s9152 = scalar_lea.vmem [#allocation25], 1
    %v9153 = vld [vmem:[%s9152] sm:$0x1]
    %v9155 = vlaneseq
    %v9156 = vshrl.u32 %v9155, 7
    %v9157 = vsub.s32 0, %v9156
    %v9158 = vrot.slane %v9153, %v9157
    %v9160 = vmul.f32 %v9144, %v9158
    %v9161 = vmul.f32 %v9145, %v9158
    %v9162 = vmul.f32 %v9146, %v9158
    %v9163 = vmul.f32 %v9147, %v9158
    %v9164 = vmul.f32 %v9148, %v9158
    %v9165 = vmul.f32 %v9149, %v9158
    %v9166 = vmul.f32 %v9150, %v9158
    %v9167 = vmul.f32 %v9151, %v9158
    %s9168 = scalar_lea.vmem [#allocation26], 1
    %v9169 = vld [vmem:[%s9168] sm:$0x1]
    %v9171 = vlaneseq
    %v9172 = vshrl.u32 %v9171, 7
    %v9173 = vsub.s32 0, %v9172
    %v9174 = vrot.slane %v9169, %v9173
    %v9176 = vadd.f32 %v9160, %v9174
    %v9177 = vadd.f32 %v9161, %v9174
    %v9178 = vadd.f32 %v9162, %v9174
    %v9179 = vadd.f32 %v9163, %v9174
    %v9180 = vadd.f32 %v9164, %v9174
    %v9181 = vadd.f32 %v9165, %v9174
    %v9182 = vadd.f32 %v9166, %v9174
    %v9183 = vadd.f32 %v9167, %v9174
    %9184 = vst.msk [vmem:[#allocation28] sm:$0xff] %vm409, %v9176
    %9185 = vst.msk [vmem:[#allocation28 + $0x8] sm:$0xff] %vm409, %v9177
    %9186 = vst.msk [vmem:[#allocation28 + $0x10] sm:$0xff] %vm409, %v9178
    %9187 = vst.msk [vmem:[#allocation28 + $0x18] sm:$0xff] %vm409, %v9179
    %9188 = vst.msk [vmem:[#allocation28 + $0x20] sm:$0xff] %vm409, %v9180
    %9189 = vst.msk [vmem:[#allocation28 + $0x28] sm:$0xff] %vm409, %v9181
    %9190 = vst.msk [vmem:[#allocation28 + $0x30] sm:$0xff] %vm409, %v9182
    %9191 = vst.msk [vmem:[#allocation28 + $0x38] sm:$0xff] %vm409, %v9183
    // Predicated region
    $region130: #{patchtst_forward.2} parent=1 // pred_check
      _
    $region131: #{patchtst_forward.2} parent=1 // pred_check_branch
      %9193 = sbr.rel (0) target = $region133
    $region132: #{patchtst_forward.2} parent=1 // pred_region
      %s9195 = ssub.s32 1024, 1024
      %9196 = vsyncadd [#allocation4], %s9195
      %s9197 = sshll.u32 [#allocation28], 4
      %s9198 = int_to_ptr.vmem [resolvable:$true] %s9197
      %9203 = dma.vmem_to_hbm [thread:$0]  %s9198, 1024, %s16, [#allocation4], 128, 128, 8
    $region133: #{patchtst_forward.2} parent=1 // pred_fallthru
      _
    // Predicated region
    $region134: #{patchtst_forward.2} parent=1 // pred_check
      _
    $region135: #{patchtst_forward.2} parent=1 // pred_check_branch
      %9205 = sbr.rel (0) target = $region137
    $region136: #{patchtst_forward.2} parent=1 // pred_region
      %9206 = dma.done [#allocation4], 1024
    $region137: #{patchtst_forward.2} parent=1 // pred_fallthru
      _
    %9207 = vsyncpa [#allocation3], 1
    %9208 = vsyncpa [#allocation6], 1
    %9209 = vsyncpa [#allocation9], 1
    %9210 = vsyncpa [#allocation12], 1
    %9211 = vsyncpa [#allocation15], 1
    %9212 = vsyncpa [#allocation18], 1
    %9213 = vsyncpa [#allocation21], 1
    %9214 = vsyncpa [#allocation24], 1
    %9215 = vsyncpa [#allocation27], 1
    %9216 = vsyncpa [#allocation4], 1

</llo_original>
